<compile_context>
chip_gen: v7x
topology: tpu7x:2x2x1
jax: 0.10.0
libtpu: 0.0.40
codegen_flags: <defaults>
</compile_context>

<pallas_src>
import functools
import math

import jax
import jax.numpy as jnp
from jax.experimental import pallas as pl
from jax.experimental.pallas import tpu as pltpu


# ----------------------------------------------------------------------------
# Pallas kernel 1: implicit-GEMM 3D conv + per-block BN statistics
#   grid = (N, To, kT); the kT axis is the temporal-tap reduction (accumulator
#   resident across it), (N, To) are parallel.
# ----------------------------------------------------------------------------
def _conv_stem_kernel(x_ref, w_ref, y_ref, s1_ref, s2_ref, acc_ref,
                      *, kH, kW, sH, sW, Ho, Wo, Cin):
    kt = pl.program_id(2)
    nkt = pl.num_programs(2)

    @pl.when(kt == 0)
    def _init():
        acc_ref[...] = jnp.zeros_like(acc_ref)

    # Phase-decomposed input slab for this (n, t_in) frame: (H2, W2, sH*sW*Cin), bf16.
    slab = x_ref[...][0, 0]
    wblk = w_ref[...][0]            # (kH*kW, Cin, Cout), bf16

    # Build the (M, K) patch tile in VMEM tap-by-tap and accumulate MXU matmuls in f32.
    total = jnp.zeros(acc_ref.shape, jnp.float32)
    for kh in range(kH):
        hh, sph = kh // sH, kh % sH
        for kw in range(kW):
            ww, spw = kw // sW, kw % sW
            c0 = (sph * sW + spw) * Cin
            win = slab[hh:hh + Ho, ww:ww + Wo, c0:c0 + Cin]    # (Ho, Wo, Cin) unit-stride
            lhs = win.reshape(Ho * Wo, Cin)                    # minor dim unchanged
            rhs = wblk[kh * kW + kw]                           # (Cin, Cout)
            total = total + jnp.dot(lhs, rhs, preferred_element_type=jnp.float32)
    acc_ref[...] += total

    @pl.when(kt == nkt - 1)
    def _finalize():
        a = acc_ref[...]                                       # (Ho*Wo, Cout) f32
        y_ref[0] = a.astype(y_ref.dtype)                       # bf16 conv output
        # Per-block partial BN statistics (reduced in JAX; keeps (N, To) axes parallel).
        # NOTE: E[x^2]-E[x]^2 with f32 partials is adequate here (near-zero-mean conv
        # output, small per-block M); a Welford pass would be needed for extreme cases.
        s1_ref[0] = jnp.sum(a, axis=0, keepdims=True)
        s2_ref[0] = jnp.sum(a * a, axis=0, keepdims=True)


# ----------------------------------------------------------------------------
# Pallas kernel 2: fused BN-apply + ReLU + 3x3 / stride-2 max pool (pad 1)
#   Input layout (F, Ho, Wo//2, 2*Cout): W-parity folded into the channel dim so the
#   stride-2 column subsample is a lane-slice; the row subsample is a leading-dim
#   reshape.  Only unit-stride slices / concats are used.
# ----------------------------------------------------------------------------
def _bn_relu_pool_kernel(x_ref, sc_ref, sh_ref, o_ref, *, Cout):
    F, Ho, W2, C2 = x_ref.shape
    Hn = Ho // 2

    x = x_ref[...].astype(jnp.float32)
    sc = sc_ref[...].reshape(1, 1, 1, C2)
    sh = sh_ref[...].reshape(1, 1, 1, C2)
    y = jnp.maximum(x * sc + sh, 0.0)          # BN + ReLU (values >= 0 afterwards)

    # Column window {2wn-1, 2wn, 2wn+1}: even cols = channels [0:C), odd = [C:2C).
    a0 = y[:, :, :, 0:Cout]                    # column 2*wn
    a1 = y[:, :, :, Cout:2 * Cout]             # column 2*wn + 1
    zc = jnp.zeros_like(a1[:, :, 0:1, :])
    a1m = jnp.concatenate([zc, a1[:, :, 0:W2 - 1, :]], axis=2)   # column 2*wn - 1 (pad -> 0)
    cm = jnp.maximum(jnp.maximum(a0, a1), a1m)                   # (F, Ho, Wn, C)

    # Row window {2hn-1, 2hn, 2hn+1}: split the leading H dim by parity (metadata only).
    cmr = cm.reshape(F, Hn, 2, W2, Cout)
    b0 = cmr[:, :, 0]                                            # row 2*hn
    b1 = cmr[:, :, 1]                                            # row 2*hn + 1
    zr = jnp.zeros_like(b1[:, 0:1])
    b1m = jnp.concatenate([zr, b1[:, 0:Hn - 1]], axis=1)         # row 2*hn - 1 (pad -> 0)

    # The window center (2hn, 2wn) is always valid and ReLU output >= 0, so zero padding
    # reproduces MaxPool3d's -inf padding semantics exactly.
    o_ref[...] = jnp.maximum(jnp.maximum(b0, b1), b1m).astype(o_ref.dtype)


# ----------------------------------------------------------------------------
# JAX glue (layout plumbing only; no large HBM intermediates)
# ----------------------------------------------------------------------------
@functools.partial(jax.jit, static_argnames=("kernel", "stride", "padding", "eps"))
def stem_forward(x_ncthw, w, gamma, beta, kernel, stride, padding, eps):
    kT, kH, kW = kernel
    sT, sH, sW = stride
    pT, pH, pW = padding
    N, Cin, T, H, W = x_ncthw.shape
    Cout = w.shape[0]

    To = (T + 2 * pT - kT) // sT + 1
    Ho = (H + 2 * pH - kH) // sH + 1
    Wo = (W + 2 * pW - kW) // sW + 1
    assert Ho % 2 == 0 and Wo % 2 == 0, "pool parity trick assumes even conv output H/W"
    Hn, Wn = Ho // 2, Wo // 2
    NT, M = N * To, Ho * Wo

    # --- channels-last, bf16, pad, stride-radix space-to-depth (~1x input size) ---
    xcl = jnp.transpose(x_ncthw, (0, 2, 3, 4, 1)).astype(jnp.bfloat16)   # (N,T,H,W,Cin)
    Hp, Wp = H + 2 * pH, W + 2 * pW
    H2 = max(-(-Hp // sH), Ho + (kH - 1) // sH)
    W2 = max(-(-Wp // sW), Wo + (kW - 1) // sW)
    xp = jnp.pad(xcl, ((0, 0), (pT, pT),
                       (pH, sH * H2 - H - pH),
                       (pW, sW * W2 - W - pW),
                       (0, 0)))
    Tp = T + 2 * pT
    CF = sH * sW * Cin
    xs = (xp.reshape(N, Tp, H2, sH, W2, sW, Cin)
            .transpose(0, 1, 2, 4, 3, 5, 6)
            .reshape(N, Tp, H2, W2, CF))                                  # (N,Tp,H2,W2,CF)

    wk = (jnp.transpose(w, (2, 3, 4, 1, 0))
             .reshape(kT, kH * kW, Cin, Cout)
             .astype(jnp.bfloat16))

    conv_kernel = functools.partial(_conv_stem_kernel, kH=kH, kW=kW, sH=sH, sW=sW,
                                    Ho=Ho, Wo=Wo, Cin=Cin)
    y, s1, s2 = pl.pallas_call(
        conv_kernel,
        out_shape=(
            jax.ShapeDtypeStruct((NT, M, Cout), jnp.bfloat16),
            jax.ShapeDtypeStruct((NT, 1, Cout), jnp.float32),
            jax.ShapeDtypeStruct((NT, 1, Cout), jnp.float32),
        ),
        grid=(N, To, kT),
        in_specs=[
            pl.BlockSpec((1, 1, H2, W2, CF), lambda n, t, k: (n, sT * t + k, 0, 0, 0)),
            pl.BlockSpec((1, kH * kW, Cin, Cout), lambda n, t, k: (k, 0, 0, 0)),
        ],
        out_specs=(
            pl.BlockSpec((1, M, Cout), lambda n, t, k: (n * To + t, 0, 0)),
            pl.BlockSpec((1, 1, Cout), lambda n, t, k: (n * To + t, 0, 0)),
            pl.BlockSpec((1, 1, Cout), lambda n, t, k: (n * To + t, 0, 0)),
        ),
        scratch_shapes=[pltpu.VMEM((M, Cout), jnp.float32)],
        compiler_params=pltpu.CompilerParams(
            dimension_semantics=("parallel", "parallel", "arbitrary"),
            vmem_limit_bytes=48 * 1024 * 1024),
    )(xs, wk)

    # --- training-mode BatchNorm3d: biased batch statistics from the f32 partials ---
    m_total = float(NT * M)
    s1t = jnp.sum(s1.reshape(NT, Cout), axis=0)
    s2t = jnp.sum(s2.reshape(NT, Cout), axis=0)
    mean = s1t / m_total
    var = jnp.maximum(s2t / m_total - mean * mean, 0.0)
    scale = gamma.astype(jnp.float32) * jax.lax.rsqrt(var + eps)
    shift = beta.astype(jnp.float32) - mean * scale
    # Channel params repeated for both W-parities (pool layout folds parity into channels).
    scale2 = jnp.concatenate([scale, scale]).reshape(1, 2 * Cout)
    shift2 = jnp.concatenate([shift, shift]).reshape(1, 2 * Cout)

    # Metadata-only view: (NT, Ho*Wo, C) -> (NT, Ho, Wo/2, 2*C)  (w-parity folded minor).
    yv = y.reshape(NT, Ho, Wn, 2 * Cout)

    F = math.gcd(NT, 8)   # frames per pool block
    pool_kernel = functools.partial(_bn_relu_pool_kernel, Cout=Cout)
    pooled = pl.pallas_call(
        pool_kernel,
        out_shape=jax.ShapeDtypeStruct((NT, Hn, Wn, Cout), jnp.float32),
        grid=(NT // F,),
        in_specs=[
            pl.BlockSpec((F, Ho, Wn, 2 * Cout), lambda i: (i, 0, 0, 0)),
            pl.BlockSpec((1, 2 * Cout), lambda i: (0, 0)),
            pl.BlockSpec((1, 2 * Cout), lambda i: (0, 0)),
        ],
        out_specs=pl.BlockSpec((F, Hn, Wn, Cout), lambda i: (i, 0, 0, 0)),
        compiler_params=pltpu.CompilerParams(
            dimension_semantics=("parallel",),
            vmem_limit_bytes=48 * 1024 * 1024),
    )(yv, scale2, shift2)

    out = pooled.reshape(N, To, Hn, Wn, Cout)
    return jnp.transpose(out, (0, 4, 1, 2, 3))   # back to NCTHW (module contract)


def video_model_stem(xs, params, cfg):
    assert len(xs) == len(params)
    outs = []
    for pw in range(len(xs)):
        outs.append(
            stem_forward(
                xs[pw], params[pw]["w"], params[pw]["gamma"], params[pw]["beta"],
                tuple(cfg["kernel"][pw]), tuple(cfg["stride"][pw]),
                tuple(cfg["padding"][pw]), cfg["eps"],
            )
        )
    return outs


# ----------------------------------------------------------------------------
# Pure-JAX reference (module semantics, f32 throughout) for correctness check
# ----------------------------------------------------------------------------
def ref_stem(x_ncthw, w, gamma, beta, stride, padding, eps):
    y = jax.lax.conv_general_dilated(
        x_ncthw.astype(jnp.float32), w.astype(jnp.float32),
        window_strides=tuple(stride), padding=[(p, p) for p in padding],
        dimension_numbers=("NCDHW", "OIDHW", "NCDHW"),
        precision=jax.lax.Precision.HIGHEST,
    )
    mean = jnp.mean(y, axis=(0, 2, 3, 4), keepdims=True)
    var = jnp.var(y, axis=(0, 2, 3, 4), keepdims=True)
    y = (y - mean) / jnp.sqrt(var + eps)
    y = y * gamma.reshape(1, -1, 1, 1, 1) + beta.reshape(1, -1, 1, 1, 1)
    y = jnp.maximum(y, 0.0)
    return jax.lax.reduce_window(
        y, -jnp.inf, jax.lax.max,
        window_dimensions=(1, 1, 1, 3, 3), window_strides=(1, 1, 1, 2, 2),
        padding=((0, 0), (0, 0), (0, 0), (1, 1), (1, 1)),
    )


if __name__ == "__main__":
    # Two-pathway (SlowFast-style) config, small shapes.
    cfg = dict(
        dim_in=[3, 3], dim_out=[16, 8],
        kernel=[[1, 7, 7], [5, 7, 7]],
        stride=[[1, 2, 2], [1, 2, 2]],
        padding=[[0, 3, 3], [2, 3, 3]],
        eps=1e-5,
    )
    # TODO(synk): BatchNorm running_mean/running_var momentum update (bn_mmt) is a
    # training-time buffer side effect and is not materialized here.

    key = jax.random.PRNGKey(0)
    k_x0, k_x1, k_w0, k_w1 = jax.random.split(key, 4)
    xs = [
        jax.random.normal(k_x0, (2, 3, 4, 16, 16), jnp.float32),    # slow pathway
        jax.random.normal(k_x1, (2, 3, 16, 16, 16), jnp.float32),   # fast pathway
    ]
    wkeys = [k_w0, k_w1]
    params = []
    for pw in range(2):
        Cin, Cout = cfg["dim_in"][pw], cfg["dim_out"][pw]
        kT, kH, kW = cfg["kernel"][pw]
        w = 0.05 * jax.random.normal(wkeys[pw], (Cout, Cin, kT, kH, kW), jnp.float32)
        gamma = 1.0 + 0.1 * jnp.cos(jnp.arange(Cout, dtype=jnp.float32))
        beta = 0.05 * jnp.sin(jnp.arange(Cout, dtype=jnp.float32))
        params.append(dict(w=w, gamma=gamma, beta=beta))

    outs = video_model_stem(xs, params, cfg)
    outs = [jax.block_until_ready(o) for o in outs]

    # Verify against the f32 reference.  The kernel uses bf16 MXU inputs and a bf16
    # conv-output intermediate (f32 accumulation / statistics), which bounds the
    # worst-case error on the BN-normalized outputs at roughly 3e-2.
    for pw in range(2):
        ref = ref_stem(xs[pw], params[pw]["w"], params[pw]["gamma"], params[pw]["beta"],
                       cfg["stride"][pw], cfg["padding"][pw], cfg["eps"])
        assert outs[pw].shape == ref.shape, (outs[pw].shape, ref.shape)
        err = float(jnp.max(jnp.abs(outs[pw] - ref)))
        print(f"pathway {pw}: shape {outs[pw].shape}, max abs err vs f32 ref = {err:.4e}")
        assert err < 4e-2, f"pathway {pw} max abs err {err}"

    print("KERNEL_OK")
</pallas_src>

<mosaic_0001>
module attributes {stable_mosaic.version = 11 : i64} {
  func.func @_conv_stem_kernel(%arg0: i32, %arg1: i32, %arg2: i32, %arg3: memref<1x1x11x11x12xbf16, #tpu.memory_space<vmem>>, %arg4: memref<1x49x3x16xbf16, #tpu.memory_space<vmem>>, %arg5: memref<1x64x16xbf16, #tpu.memory_space<vmem>>, %arg6: memref<1x1x16xf32, #tpu.memory_space<vmem>>, %arg7: memref<1x1x16xf32, #tpu.memory_space<vmem>>, %arg8: memref<64x16xf32, #tpu.memory_space<vmem>>) attributes {dimension_semantics = [#tpu.dimension_semantics<parallel>, #tpu.dimension_semantics<parallel>, #tpu.dimension_semantics<arbitrary>], iteration_bounds = array<i64: 2, 4, 1>, scalar_prefetch = 0 : i64, scratch_operands = 1 : i64, tpu.core_type = #tpu.core_type<tc>, window_params = [{transform_indices = @transform_0, window_bounds = array<i64: 1, 1, 11, 11, 12>}, {transform_indices = @transform_1, window_bounds = array<i64: 1, 49, 3, 16>}, {transform_indices = @transform_2, window_bounds = array<i64: 1, 64, 16>}, {transform_indices = @transform_3, window_bounds = array<i64: 1, 1, 16>}, {transform_indices = @transform_4, window_bounds = array<i64: 1, 1, 16>}]} {
    %c0_i32 = arith.constant 0 : i32
    %0 = arith.cmpi eq, %arg2, %c0_i32 : i32
    %1 = arith.extui %0 : i1 to i32
    %c0_i32_0 = arith.constant 0 : i32
    %2 = arith.cmpi ne, %1, %c0_i32_0 : i32
    scf.if %2 {
      %cst_64 = arith.constant 0.000000e+00 : f32
      %308 = vector.broadcast %cst_64 : f32 to vector<64x16xf32>
      %c0_65 = arith.constant 0 : index
      %c0_66 = arith.constant 0 : index
      %309 = vector.load %arg8[%c0_65, %c0_66] : memref<64x16xf32, #tpu.memory_space<vmem>>, vector<64x16xf32>
      tpu.vector_store %arg8[%c0_65, %c0_66], %308 {strides = array<i32>} : memref<64x16xf32, #tpu.memory_space<vmem>>, vector<64x16xf32>,
    } else {
    }
    %c0 = arith.constant 0 : index
    %c0_1 = arith.constant 0 : index
    %c0_2 = arith.constant 0 : index
    %c0_3 = arith.constant 0 : index
    %c0_4 = arith.constant 0 : index
    %3 = vector.load %arg3[%c0, %c0_1, %c0_2, %c0_3, %c0_4] : memref<1x1x11x11x12xbf16, #tpu.memory_space<vmem>>, vector<1x1x11x11x12xbf16>
    %4 = vector.shape_cast %3 : vector<1x1x11x11x12xbf16> to vector<11x11x12xbf16>
    %c0_5 = arith.constant 0 : index
    %c0_6 = arith.constant 0 : index
    %c0_7 = arith.constant 0 : index
    %c0_8 = arith.constant 0 : index
    %5 = vector.load %arg4[%c0_5, %c0_6, %c0_7, %c0_8] : memref<1x49x3x16xbf16, #tpu.memory_space<vmem>>, vector<1x49x3x16xbf16>
    %6 = vector.shape_cast %5 : vector<1x49x3x16xbf16> to vector<49x3x16xbf16>
    %cst = arith.constant 0.000000e+00 : f32
    %7 = vector.broadcast %cst : f32 to vector<64x16xf32>
    %8 = vector.extract_strided_slice %4 {offsets = [0, 0, 0], sizes = [8, 8, 3], strides = [1, 1, 1]} : vector<11x11x12xbf16> to vector<8x8x3xbf16>
    %9 = vector.shape_cast %8 : vector<8x8x3xbf16> to vector<64x3xbf16>
    %10 = vector.extract_strided_slice %6 {offsets = [0, 0, 0], sizes = [1, 3, 16], strides = [1, 1, 1]} : vector<49x3x16xbf16> to vector<1x3x16xbf16>
    %11 = vector.shape_cast %10 : vector<1x3x16xbf16> to vector<3x16xbf16>
    %cst_9 = arith.constant dense<0.000000e+00> : vector<64x16xf32>
    %12 = tpu.matmul %9, %11, %cst_9 {dimension_numbers = #tpu.dot_dimension_numbers<[1], [0], [0], [1], [0, 0, 1, 1], [], []>} : vector<64x3xbf16>, vector<3x16xbf16>, vector<64x16xf32> -> vector<64x16xf32>
    %13 = arith.addf %7, %12 : vector<64x16xf32>
    %14 = vector.extract_strided_slice %4 {offsets = [0, 0, 3], sizes = [8, 8, 3], strides = [1, 1, 1]} : vector<11x11x12xbf16> to vector<8x8x3xbf16>
    %15 = vector.shape_cast %14 : vector<8x8x3xbf16> to vector<64x3xbf16>
    %16 = vector.extract_strided_slice %6 {offsets = [1, 0, 0], sizes = [1, 3, 16], strides = [1, 1, 1]} : vector<49x3x16xbf16> to vector<1x3x16xbf16>
    %17 = vector.shape_cast %16 : vector<1x3x16xbf16> to vector<3x16xbf16>
    %cst_10 = arith.constant dense<0.000000e+00> : vector<64x16xf32>
    %18 = tpu.matmul %15, %17, %cst_10 {dimension_numbers = #tpu.dot_dimension_numbers<[1], [0], [0], [1], [0, 0, 1, 1], [], []>} : vector<64x3xbf16>, vector<3x16xbf16>, vector<64x16xf32> -> vector<64x16xf32>
    %19 = arith.addf %13, %18 : vector<64x16xf32>
    %20 = vector.extract_strided_slice %4 {offsets = [0, 1, 0], sizes = [8, 8, 3], strides = [1, 1, 1]} : vector<11x11x12xbf16> to vector<8x8x3xbf16>
    %21 = vector.shape_cast %20 : vector<8x8x3xbf16> to vector<64x3xbf16>
    %22 = vector.extract_strided_slice %6 {offsets = [2, 0, 0], sizes = [1, 3, 16], strides = [1, 1, 1]} : vector<49x3x16xbf16> to vector<1x3x16xbf16>
    %23 = vector.shape_cast %22 : vector<1x3x16xbf16> to vector<3x16xbf16>
    %cst_11 = arith.constant dense<0.000000e+00> : vector<64x16xf32>
    %24 = tpu.matmul %21, %23, %cst_11 {dimension_numbers = #tpu.dot_dimension_numbers<[1], [0], [0], [1], [0, 0, 1, 1], [], []>} : vector<64x3xbf16>, vector<3x16xbf16>, vector<64x16xf32> -> vector<64x16xf32>
    %25 = arith.addf %19, %24 : vector<64x16xf32>
    %26 = vector.extract_strided_slice %4 {offsets = [0, 1, 3], sizes = [8, 8, 3], strides = [1, 1, 1]} : vector<11x11x12xbf16> to vector<8x8x3xbf16>
    %27 = vector.shape_cast %26 : vector<8x8x3xbf16> to vector<64x3xbf16>
    %28 = vector.extract_strided_slice %6 {offsets = [3, 0, 0], sizes = [1, 3, 16], strides = [1, 1, 1]} : vector<49x3x16xbf16> to vector<1x3x16xbf16>
    %29 = vector.shape_cast %28 : vector<1x3x16xbf16> to vector<3x16xbf16>
    %cst_12 = arith.constant dense<0.000000e+00> : vector<64x16xf32>
    %30 = tpu.matmul %27, %29, %cst_12 {dimension_numbers = #tpu.dot_dimension_numbers<[1], [0], [0], [1], [0, 0, 1, 1], [], []>} : vector<64x3xbf16>, vector<3x16xbf16>, vector<64x16xf32> -> vector<64x16xf32>
    %31 = arith.addf %25, %30 : vector<64x16xf32>
    %32 = vector.extract_strided_slice %4 {offsets = [0, 2, 0], sizes = [8, 8, 3], strides = [1, 1, 1]} : vector<11x11x12xbf16> to vector<8x8x3xbf16>
    %33 = vector.shape_cast %32 : vector<8x8x3xbf16> to vector<64x3xbf16>
    %34 = vector.extract_strided_slice %6 {offsets = [4, 0, 0], sizes = [1, 3, 16], strides = [1, 1, 1]} : vector<49x3x16xbf16> to vector<1x3x16xbf16>
    %35 = vector.shape_cast %34 : vector<1x3x16xbf16> to vector<3x16xbf16>
    %cst_13 = arith.constant dense<0.000000e+00> : vector<64x16xf32>
    %36 = tpu.matmul %33, %35, %cst_13 {dimension_numbers = #tpu.dot_dimension_numbers<[1], [0], [0], [1], [0, 0, 1, 1], [], []>} : vector<64x3xbf16>, vector<3x16xbf16>, vector<64x16xf32> -> vector<64x16xf32>
    %37 = arith.addf %31, %36 : vector<64x16xf32>
    %38 = vector.extract_strided_slice %4 {offsets = [0, 2, 3], sizes = [8, 8, 3], strides = [1, 1, 1]} : vector<11x11x12xbf16> to vector<8x8x3xbf16>
    %39 = vector.shape_cast %38 : vector<8x8x3xbf16> to vector<64x3xbf16>
    %40 = vector.extract_strided_slice %6 {offsets = [5, 0, 0], sizes = [1, 3, 16], strides = [1, 1, 1]} : vector<49x3x16xbf16> to vector<1x3x16xbf16>
    %41 = vector.shape_cast %40 : vector<1x3x16xbf16> to vector<3x16xbf16>
    %cst_14 = arith.constant dense<0.000000e+00> : vector<64x16xf32>
    %42 = tpu.matmul %39, %41, %cst_14 {dimension_numbers = #tpu.dot_dimension_numbers<[1], [0], [0], [1], [0, 0, 1, 1], [], []>} : vector<64x3xbf16>, vector<3x16xbf16>, vector<64x16xf32> -> vector<64x16xf32>
    %43 = arith.addf %37, %42 : vector<64x16xf32>
    %44 = vector.extract_strided_slice %4 {offsets = [0, 3, 0], sizes = [8, 8, 3], strides = [1, 1, 1]} : vector<11x11x12xbf16> to vector<8x8x3xbf16>
    %45 = vector.shape_cast %44 : vector<8x8x3xbf16> to vector<64x3xbf16>
    %46 = vector.extract_strided_slice %6 {offsets = [6, 0, 0], sizes = [1, 3, 16], strides = [1, 1, 1]} : vector<49x3x16xbf16> to vector<1x3x16xbf16>
    %47 = vector.shape_cast %46 : vector<1x3x16xbf16> to vector<3x16xbf16>
    %cst_15 = arith.constant dense<0.000000e+00> : vector<64x16xf32>
    %48 = tpu.matmul %45, %47, %cst_15 {dimension_numbers = #tpu.dot_dimension_numbers<[1], [0], [0], [1], [0, 0, 1, 1], [], []>} : vector<64x3xbf16>, vector<3x16xbf16>, vector<64x16xf32> -> vector<64x16xf32>
    %49 = arith.addf %43, %48 : vector<64x16xf32>
    %50 = vector.extract_strided_slice %4 {offsets = [0, 0, 6], sizes = [8, 8, 3], strides = [1, 1, 1]} : vector<11x11x12xbf16> to vector<8x8x3xbf16>
    %51 = vector.shape_cast %50 : vector<8x8x3xbf16> to vector<64x3xbf16>
    %52 = vector.extract_strided_slice %6 {offsets = [7, 0, 0], sizes = [1, 3, 16], strides = [1, 1, 1]} : vector<49x3x16xbf16> to vector<1x3x16xbf16>
    %53 = vector.shape_cast %52 : vector<1x3x16xbf16> to vector<3x16xbf16>
    %cst_16 = arith.constant dense<0.000000e+00> : vector<64x16xf32>
    %54 = tpu.matmul %51, %53, %cst_16 {dimension_numbers = #tpu.dot_dimension_numbers<[1], [0], [0], [1], [0, 0, 1, 1], [], []>} : vector<64x3xbf16>, vector<3x16xbf16>, vector<64x16xf32> -> vector<64x16xf32>
    %55 = arith.addf %49, %54 : vector<64x16xf32>
    %56 = vector.extract_strided_slice %4 {offsets = [0, 0, 9], sizes = [8, 8, 3], strides = [1, 1, 1]} : vector<11x11x12xbf16> to vector<8x8x3xbf16>
    %57 = vector.shape_cast %56 : vector<8x8x3xbf16> to vector<64x3xbf16>
    %58 = vector.extract_strided_slice %6 {offsets = [8, 0, 0], sizes = [1, 3, 16], strides = [1, 1, 1]} : vector<49x3x16xbf16> to vector<1x3x16xbf16>
    %59 = vector.shape_cast %58 : vector<1x3x16xbf16> to vector<3x16xbf16>
    %cst_17 = arith.constant dense<0.000000e+00> : vector<64x16xf32>
    %60 = tpu.matmul %57, %59, %cst_17 {dimension_numbers = #tpu.dot_dimension_numbers<[1], [0], [0], [1], [0, 0, 1, 1], [], []>} : vector<64x3xbf16>, vector<3x16xbf16>, vector<64x16xf32> -> vector<64x16xf32>
    %61 = arith.addf %55, %60 : vector<64x16xf32>
    %62 = vector.extract_strided_slice %4 {offsets = [0, 1, 6], sizes = [8, 8, 3], strides = [1, 1, 1]} : vector<11x11x12xbf16> to vector<8x8x3xbf16>
    %63 = vector.shape_cast %62 : vector<8x8x3xbf16> to vector<64x3xbf16>
    %64 = vector.extract_strided_slice %6 {offsets = [9, 0, 0], sizes = [1, 3, 16], strides = [1, 1, 1]} : vector<49x3x16xbf16> to vector<1x3x16xbf16>
    %65 = vector.shape_cast %64 : vector<1x3x16xbf16> to vector<3x16xbf16>
    %cst_18 = arith.constant dense<0.000000e+00> : vector<64x16xf32>
    %66 = tpu.matmul %63, %65, %cst_18 {dimension_numbers = #tpu.dot_dimension_numbers<[1], [0], [0], [1], [0, 0, 1, 1], [], []>} : vector<64x3xbf16>, vector<3x16xbf16>, vector<64x16xf32> -> vector<64x16xf32>
    %67 = arith.addf %61, %66 : vector<64x16xf32>
    %68 = vector.extract_strided_slice %4 {offsets = [0, 1, 9], sizes = [8, 8, 3], strides = [1, 1, 1]} : vector<11x11x12xbf16> to vector<8x8x3xbf16>
    %69 = vector.shape_cast %68 : vector<8x8x3xbf16> to vector<64x3xbf16>
    %70 = vector.extract_strided_slice %6 {offsets = [10, 0, 0], sizes = [1, 3, 16], strides = [1, 1, 1]} : vector<49x3x16xbf16> to vector<1x3x16xbf16>
    %71 = vector.shape_cast %70 : vector<1x3x16xbf16> to vector<3x16xbf16>
    %cst_19 = arith.constant dense<0.000000e+00> : vector<64x16xf32>
    %72 = tpu.matmul %69, %71, %cst_19 {dimension_numbers = #tpu.dot_dimension_numbers<[1], [0], [0], [1], [0, 0, 1, 1], [], []>} : vector<64x3xbf16>, vector<3x16xbf16>, vector<64x16xf32> -> vector<64x16xf32>
    %73 = arith.addf %67, %72 : vector<64x16xf32>
    %74 = vector.extract_strided_slice %4 {offsets = [0, 2, 6], sizes = [8, 8, 3], strides = [1, 1, 1]} : vector<11x11x12xbf16> to vector<8x8x3xbf16>
    %75 = vector.shape_cast %74 : vector<8x8x3xbf16> to vector<64x3xbf16>
    %76 = vector.extract_strided_slice %6 {offsets = [11, 0, 0], sizes = [1, 3, 16], strides = [1, 1, 1]} : vector<49x3x16xbf16> to vector<1x3x16xbf16>
    %77 = vector.shape_cast %76 : vector<1x3x16xbf16> to vector<3x16xbf16>
    %cst_20 = arith.constant dense<0.000000e+00> : vector<64x16xf32>
    %78 = tpu.matmul %75, %77, %cst_20 {dimension_numbers = #tpu.dot_dimension_numbers<[1], [0], [0], [1], [0, 0, 1, 1], [], []>} : vector<64x3xbf16>, vector<3x16xbf16>, vector<64x16xf32> -> vector<64x16xf32>
    %79 = arith.addf %73, %78 : vector<64x16xf32>
    %80 = vector.extract_strided_slice %4 {offsets = [0, 2, 9], sizes = [8, 8, 3], strides = [1, 1, 1]} : vector<11x11x12xbf16> to vector<8x8x3xbf16>
    %81 = vector.shape_cast %80 : vector<8x8x3xbf16> to vector<64x3xbf16>
    %82 = vector.extract_strided_slice %6 {offsets = [12, 0, 0], sizes = [1, 3, 16], strides = [1, 1, 1]} : vector<49x3x16xbf16> to vector<1x3x16xbf16>
    %83 = vector.shape_cast %82 : vector<1x3x16xbf16> to vector<3x16xbf16>
    %cst_21 = arith.constant dense<0.000000e+00> : vector<64x16xf32>
    %84 = tpu.matmul %81, %83, %cst_21 {dimension_numbers = #tpu.dot_dimension_numbers<[1], [0], [0], [1], [0, 0, 1, 1], [], []>} : vector<64x3xbf16>, vector<3x16xbf16>, vector<64x16xf32> -> vector<64x16xf32>
    %85 = arith.addf %79, %84 : vector<64x16xf32>
    %86 = vector.extract_strided_slice %4 {offsets = [0, 3, 6], sizes = [8, 8, 3], strides = [1, 1, 1]} : vector<11x11x12xbf16> to vector<8x8x3xbf16>
    %87 = vector.shape_cast %86 : vector<8x8x3xbf16> to vector<64x3xbf16>
    %88 = vector.extract_strided_slice %6 {offsets = [13, 0, 0], sizes = [1, 3, 16], strides = [1, 1, 1]} : vector<49x3x16xbf16> to vector<1x3x16xbf16>
    %89 = vector.shape_cast %88 : vector<1x3x16xbf16> to vector<3x16xbf16>
    %cst_22 = arith.constant dense<0.000000e+00> : vector<64x16xf32>
    %90 = tpu.matmul %87, %89, %cst_22 {dimension_numbers = #tpu.dot_dimension_numbers<[1], [0], [0], [1], [0, 0, 1, 1], [], []>} : vector<64x3xbf16>, vector<3x16xbf16>, vector<64x16xf32> -> vector<64x16xf32>
    %91 = arith.addf %85, %90 : vector<64x16xf32>
    %92 = vector.extract_strided_slice %4 {offsets = [1, 0, 0], sizes = [8, 8, 3], strides = [1, 1, 1]} : vector<11x11x12xbf16> to vector<8x8x3xbf16>
    %93 = vector.shape_cast %92 : vector<8x8x3xbf16> to vector<64x3xbf16>
    %94 = vector.extract_strided_slice %6 {offsets = [14, 0, 0], sizes = [1, 3, 16], strides = [1, 1, 1]} : vector<49x3x16xbf16> to vector<1x3x16xbf16>
    %95 = vector.shape_cast %94 : vector<1x3x16xbf16> to vector<3x16xbf16>
    %cst_23 = arith.constant dense<0.000000e+00> : vector<64x16xf32>
    %96 = tpu.matmul %93, %95, %cst_23 {dimension_numbers = #tpu.dot_dimension_numbers<[1], [0], [0], [1], [0, 0, 1, 1], [], []>} : vector<64x3xbf16>, vector<3x16xbf16>, vector<64x16xf32> -> vector<64x16xf32>
    %97 = arith.addf %91, %96 : vector<64x16xf32>
    %98 = vector.extract_strided_slice %4 {offsets = [1, 0, 3], sizes = [8, 8, 3], strides = [1, 1, 1]} : vector<11x11x12xbf16> to vector<8x8x3xbf16>
    %99 = vector.shape_cast %98 : vector<8x8x3xbf16> to vector<64x3xbf16>
    %100 = vector.extract_strided_slice %6 {offsets = [15, 0, 0], sizes = [1, 3, 16], strides = [1, 1, 1]} : vector<49x3x16xbf16> to vector<1x3x16xbf16>
    %101 = vector.shape_cast %100 : vector<1x3x16xbf16> to vector<3x16xbf16>
    %cst_24 = arith.constant dense<0.000000e+00> : vector<64x16xf32>
    %102 = tpu.matmul %99, %101, %cst_24 {dimension_numbers = #tpu.dot_dimension_numbers<[1], [0], [0], [1], [0, 0, 1, 1], [], []>} : vector<64x3xbf16>, vector<3x16xbf16>, vector<64x16xf32> -> vector<64x16xf32>
    %103 = arith.addf %97, %102 : vector<64x16xf32>
    %104 = vector.extract_strided_slice %4 {offsets = [1, 1, 0], sizes = [8, 8, 3], strides = [1, 1, 1]} : vector<11x11x12xbf16> to vector<8x8x3xbf16>
    %105 = vector.shape_cast %104 : vector<8x8x3xbf16> to vector<64x3xbf16>
    %106 = vector.extract_strided_slice %6 {offsets = [16, 0, 0], sizes = [1, 3, 16], strides = [1, 1, 1]} : vector<49x3x16xbf16> to vector<1x3x16xbf16>
    %107 = vector.shape_cast %106 : vector<1x3x16xbf16> to vector<3x16xbf16>
    %cst_25 = arith.constant dense<0.000000e+00> : vector<64x16xf32>
    %108 = tpu.matmul %105, %107, %cst_25 {dimension_numbers = #tpu.dot_dimension_numbers<[1], [0], [0], [1], [0, 0, 1, 1], [], []>} : vector<64x3xbf16>, vector<3x16xbf16>, vector<64x16xf32> -> vector<64x16xf32>
    %109 = arith.addf %103, %108 : vector<64x16xf32>
    %110 = vector.extract_strided_slice %4 {offsets = [1, 1, 3], sizes = [8, 8, 3], strides = [1, 1, 1]} : vector<11x11x12xbf16> to vector<8x8x3xbf16>
    %111 = vector.shape_cast %110 : vector<8x8x3xbf16> to vector<64x3xbf16>
    %112 = vector.extract_strided_slice %6 {offsets = [17, 0, 0], sizes = [1, 3, 16], strides = [1, 1, 1]} : vector<49x3x16xbf16> to vector<1x3x16xbf16>
    %113 = vector.shape_cast %112 : vector<1x3x16xbf16> to vector<3x16xbf16>
    %cst_26 = arith.constant dense<0.000000e+00> : vector<64x16xf32>
    %114 = tpu.matmul %111, %113, %cst_26 {dimension_numbers = #tpu.dot_dimension_numbers<[1], [0], [0], [1], [0, 0, 1, 1], [], []>} : vector<64x3xbf16>, vector<3x16xbf16>, vector<64x16xf32> -> vector<64x16xf32>
    %115 = arith.addf %109, %114 : vector<64x16xf32>
    %116 = vector.extract_strided_slice %4 {offsets = [1, 2, 0], sizes = [8, 8, 3], strides = [1, 1, 1]} : vector<11x11x12xbf16> to vector<8x8x3xbf16>
    %117 = vector.shape_cast %116 : vector<8x8x3xbf16> to vector<64x3xbf16>
    %118 = vector.extract_strided_slice %6 {offsets = [18, 0, 0], sizes = [1, 3, 16], strides = [1, 1, 1]} : vector<49x3x16xbf16> to vector<1x3x16xbf16>
    %119 = vector.shape_cast %118 : vector<1x3x16xbf16> to vector<3x16xbf16>
    %cst_27 = arith.constant dense<0.000000e+00> : vector<64x16xf32>
    %120 = tpu.matmul %117, %119, %cst_27 {dimension_numbers = #tpu.dot_dimension_numbers<[1], [0], [0], [1], [0, 0, 1, 1], [], []>} : vector<64x3xbf16>, vector<3x16xbf16>, vector<64x16xf32> -> vector<64x16xf32>
    %121 = arith.addf %115, %120 : vector<64x16xf32>
    %122 = vector.extract_strided_slice %4 {offsets = [1, 2, 3], sizes = [8, 8, 3], strides = [1, 1, 1]} : vector<11x11x12xbf16> to vector<8x8x3xbf16>
    %123 = vector.shape_cast %122 : vector<8x8x3xbf16> to vector<64x3xbf16>
    %124 = vector.extract_strided_slice %6 {offsets = [19, 0, 0], sizes = [1, 3, 16], strides = [1, 1, 1]} : vector<49x3x16xbf16> to vector<1x3x16xbf16>
    %125 = vector.shape_cast %124 : vector<1x3x16xbf16> to vector<3x16xbf16>
    %cst_28 = arith.constant dense<0.000000e+00> : vector<64x16xf32>
    %126 = tpu.matmul %123, %125, %cst_28 {dimension_numbers = #tpu.dot_dimension_numbers<[1], [0], [0], [1], [0, 0, 1, 1], [], []>} : vector<64x3xbf16>, vector<3x16xbf16>, vector<64x16xf32> -> vector<64x16xf32>
    %127 = arith.addf %121, %126 : vector<64x16xf32>
    %128 = vector.extract_strided_slice %4 {offsets = [1, 3, 0], sizes = [8, 8, 3], strides = [1, 1, 1]} : vector<11x11x12xbf16> to vector<8x8x3xbf16>
    %129 = vector.shape_cast %128 : vector<8x8x3xbf16> to vector<64x3xbf16>
    %130 = vector.extract_strided_slice %6 {offsets = [20, 0, 0], sizes = [1, 3, 16], strides = [1, 1, 1]} : vector<49x3x16xbf16> to vector<1x3x16xbf16>
    %131 = vector.shape_cast %130 : vector<1x3x16xbf16> to vector<3x16xbf16>
    %cst_29 = arith.constant dense<0.000000e+00> : vector<64x16xf32>
    %132 = tpu.matmul %129, %131, %cst_29 {dimension_numbers = #tpu.dot_dimension_numbers<[1], [0], [0], [1], [0, 0, 1, 1], [], []>} : vector<64x3xbf16>, vector<3x16xbf16>, vector<64x16xf32> -> vector<64x16xf32>
    %133 = arith.addf %127, %132 : vector<64x16xf32>
    %134 = vector.extract_strided_slice %4 {offsets = [1, 0, 6], sizes = [8, 8, 3], strides = [1, 1, 1]} : vector<11x11x12xbf16> to vector<8x8x3xbf16>
    %135 = vector.shape_cast %134 : vector<8x8x3xbf16> to vector<64x3xbf16>
    %136 = vector.extract_strided_slice %6 {offsets = [21, 0, 0], sizes = [1, 3, 16], strides = [1, 1, 1]} : vector<49x3x16xbf16> to vector<1x3x16xbf16>
    %137 = vector.shape_cast %136 : vector<1x3x16xbf16> to vector<3x16xbf16>
    %cst_30 = arith.constant dense<0.000000e+00> : vector<64x16xf32>
    %138 = tpu.matmul %135, %137, %cst_30 {dimension_numbers = #tpu.dot_dimension_numbers<[1], [0], [0], [1], [0, 0, 1, 1], [], []>} : vector<64x3xbf16>, vector<3x16xbf16>, vector<64x16xf32> -> vector<64x16xf32>
    %139 = arith.addf %133, %138 : vector<64x16xf32>
    %140 = vector.extract_strided_slice %4 {offsets = [1, 0, 9], sizes = [8, 8, 3], strides = [1, 1, 1]} : vector<11x11x12xbf16> to vector<8x8x3xbf16>
    %141 = vector.shape_cast %140 : vector<8x8x3xbf16> to vector<64x3xbf16>
    %142 = vector.extract_strided_slice %6 {offsets = [22, 0, 0], sizes = [1, 3, 16], strides = [1, 1, 1]} : vector<49x3x16xbf16> to vector<1x3x16xbf16>
    %143 = vector.shape_cast %142 : vector<1x3x16xbf16> to vector<3x16xbf16>
    %cst_31 = arith.constant dense<0.000000e+00> : vector<64x16xf32>
    %144 = tpu.matmul %141, %143, %cst_31 {dimension_numbers = #tpu.dot_dimension_numbers<[1], [0], [0], [1], [0, 0, 1, 1], [], []>} : vector<64x3xbf16>, vector<3x16xbf16>, vector<64x16xf32> -> vector<64x16xf32>
    %145 = arith.addf %139, %144 : vector<64x16xf32>
    %146 = vector.extract_strided_slice %4 {offsets = [1, 1, 6], sizes = [8, 8, 3], strides = [1, 1, 1]} : vector<11x11x12xbf16> to vector<8x8x3xbf16>
    %147 = vector.shape_cast %146 : vector<8x8x3xbf16> to vector<64x3xbf16>
    %148 = vector.extract_strided_slice %6 {offsets = [23, 0, 0], sizes = [1, 3, 16], strides = [1, 1, 1]} : vector<49x3x16xbf16> to vector<1x3x16xbf16>
    %149 = vector.shape_cast %148 : vector<1x3x16xbf16> to vector<3x16xbf16>
    %cst_32 = arith.constant dense<0.000000e+00> : vector<64x16xf32>
    %150 = tpu.matmul %147, %149, %cst_32 {dimension_numbers = #tpu.dot_dimension_numbers<[1], [0], [0], [1], [0, 0, 1, 1], [], []>} : vector<64x3xbf16>, vector<3x16xbf16>, vector<64x16xf32> -> vector<64x16xf32>
    %151 = arith.addf %145, %150 : vector<64x16xf32>
    %152 = vector.extract_strided_slice %4 {offsets = [1, 1, 9], sizes = [8, 8, 3], strides = [1, 1, 1]} : vector<11x11x12xbf16> to vector<8x8x3xbf16>
    %153 = vector.shape_cast %152 : vector<8x8x3xbf16> to vector<64x3xbf16>
    %154 = vector.extract_strided_slice %6 {offsets = [24, 0, 0], sizes = [1, 3, 16], strides = [1, 1, 1]} : vector<49x3x16xbf16> to vector<1x3x16xbf16>
    %155 = vector.shape_cast %154 : vector<1x3x16xbf16> to vector<3x16xbf16>
    %cst_33 = arith.constant dense<0.000000e+00> : vector<64x16xf32>
    %156 = tpu.matmul %153, %155, %cst_33 {dimension_numbers = #tpu.dot_dimension_numbers<[1], [0], [0], [1], [0, 0, 1, 1], [], []>} : vector<64x3xbf16>, vector<3x16xbf16>, vector<64x16xf32> -> vector<64x16xf32>
    %157 = arith.addf %151, %156 : vector<64x16xf32>
    %158 = vector.extract_strided_slice %4 {offsets = [1, 2, 6], sizes = [8, 8, 3], strides = [1, 1, 1]} : vector<11x11x12xbf16> to vector<8x8x3xbf16>
    %159 = vector.shape_cast %158 : vector<8x8x3xbf16> to vector<64x3xbf16>
    %160 = vector.extract_strided_slice %6 {offsets = [25, 0, 0], sizes = [1, 3, 16], strides = [1, 1, 1]} : vector<49x3x16xbf16> to vector<1x3x16xbf16>
    %161 = vector.shape_cast %160 : vector<1x3x16xbf16> to vector<3x16xbf16>
    %cst_34 = arith.constant dense<0.000000e+00> : vector<64x16xf32>
    %162 = tpu.matmul %159, %161, %cst_34 {dimension_numbers = #tpu.dot_dimension_numbers<[1], [0], [0], [1], [0, 0, 1, 1], [], []>} : vector<64x3xbf16>, vector<3x16xbf16>, vector<64x16xf32> -> vector<64x16xf32>
    %163 = arith.addf %157, %162 : vector<64x16xf32>
    %164 = vector.extract_strided_slice %4 {offsets = [1, 2, 9], sizes = [8, 8, 3], strides = [1, 1, 1]} : vector<11x11x12xbf16> to vector<8x8x3xbf16>
    %165 = vector.shape_cast %164 : vector<8x8x3xbf16> to vector<64x3xbf16>
    %166 = vector.extract_strided_slice %6 {offsets = [26, 0, 0], sizes = [1, 3, 16], strides = [1, 1, 1]} : vector<49x3x16xbf16> to vector<1x3x16xbf16>
    %167 = vector.shape_cast %166 : vector<1x3x16xbf16> to vector<3x16xbf16>
    %cst_35 = arith.constant dense<0.000000e+00> : vector<64x16xf32>
    %168 = tpu.matmul %165, %167, %cst_35 {dimension_numbers = #tpu.dot_dimension_numbers<[1], [0], [0], [1], [0, 0, 1, 1], [], []>} : vector<64x3xbf16>, vector<3x16xbf16>, vector<64x16xf32> -> vector<64x16xf32>
    %169 = arith.addf %163, %168 : vector<64x16xf32>
    %170 = vector.extract_strided_slice %4 {offsets = [1, 3, 6], sizes = [8, 8, 3], strides = [1, 1, 1]} : vector<11x11x12xbf16> to vector<8x8x3xbf16>
    %171 = vector.shape_cast %170 : vector<8x8x3xbf16> to vector<64x3xbf16>
    %172 = vector.extract_strided_slice %6 {offsets = [27, 0, 0], sizes = [1, 3, 16], strides = [1, 1, 1]} : vector<49x3x16xbf16> to vector<1x3x16xbf16>
    %173 = vector.shape_cast %172 : vector<1x3x16xbf16> to vector<3x16xbf16>
    %cst_36 = arith.constant dense<0.000000e+00> : vector<64x16xf32>
    %174 = tpu.matmul %171, %173, %cst_36 {dimension_numbers = #tpu.dot_dimension_numbers<[1], [0], [0], [1], [0, 0, 1, 1], [], []>} : vector<64x3xbf16>, vector<3x16xbf16>, vector<64x16xf32> -> vector<64x16xf32>
    %175 = arith.addf %169, %174 : vector<64x16xf32>
    %176 = vector.extract_strided_slice %4 {offsets = [2, 0, 0], sizes = [8, 8, 3], strides = [1, 1, 1]} : vector<11x11x12xbf16> to vector<8x8x3xbf16>
    %177 = vector.shape_cast %176 : vector<8x8x3xbf16> to vector<64x3xbf16>
    %178 = vector.extract_strided_slice %6 {offsets = [28, 0, 0], sizes = [1, 3, 16], strides = [1, 1, 1]} : vector<49x3x16xbf16> to vector<1x3x16xbf16>
    %179 = vector.shape_cast %178 : vector<1x3x16xbf16> to vector<3x16xbf16>
    %cst_37 = arith.constant dense<0.000000e+00> : vector<64x16xf32>
    %180 = tpu.matmul %177, %179, %cst_37 {dimension_numbers = #tpu.dot_dimension_numbers<[1], [0], [0], [1], [0, 0, 1, 1], [], []>} : vector<64x3xbf16>, vector<3x16xbf16>, vector<64x16xf32> -> vector<64x16xf32>
    %181 = arith.addf %175, %180 : vector<64x16xf32>
    %182 = vector.extract_strided_slice %4 {offsets = [2, 0, 3], sizes = [8, 8, 3], strides = [1, 1, 1]} : vector<11x11x12xbf16> to vector<8x8x3xbf16>
    %183 = vector.shape_cast %182 : vector<8x8x3xbf16> to vector<64x3xbf16>
    %184 = vector.extract_strided_slice %6 {offsets = [29, 0, 0], sizes = [1, 3, 16], strides = [1, 1, 1]} : vector<49x3x16xbf16> to vector<1x3x16xbf16>
    %185 = vector.shape_cast %184 : vector<1x3x16xbf16> to vector<3x16xbf16>
    %cst_38 = arith.constant dense<0.000000e+00> : vector<64x16xf32>
    %186 = tpu.matmul %183, %185, %cst_38 {dimension_numbers = #tpu.dot_dimension_numbers<[1], [0], [0], [1], [0, 0, 1, 1], [], []>} : vector<64x3xbf16>, vector<3x16xbf16>, vector<64x16xf32> -> vector<64x16xf32>
    %187 = arith.addf %181, %186 : vector<64x16xf32>
    %188 = vector.extract_strided_slice %4 {offsets = [2, 1, 0], sizes = [8, 8, 3], strides = [1, 1, 1]} : vector<11x11x12xbf16> to vector<8x8x3xbf16>
    %189 = vector.shape_cast %188 : vector<8x8x3xbf16> to vector<64x3xbf16>
    %190 = vector.extract_strided_slice %6 {offsets = [30, 0, 0], sizes = [1, 3, 16], strides = [1, 1, 1]} : vector<49x3x16xbf16> to vector<1x3x16xbf16>
    %191 = vector.shape_cast %190 : vector<1x3x16xbf16> to vector<3x16xbf16>
    %cst_39 = arith.constant dense<0.000000e+00> : vector<64x16xf32>
    %192 = tpu.matmul %189, %191, %cst_39 {dimension_numbers = #tpu.dot_dimension_numbers<[1], [0], [0], [1], [0, 0, 1, 1], [], []>} : vector<64x3xbf16>, vector<3x16xbf16>, vector<64x16xf32> -> vector<64x16xf32>
    %193 = arith.addf %187, %192 : vector<64x16xf32>
    %194 = vector.extract_strided_slice %4 {offsets = [2, 1, 3], sizes = [8, 8, 3], strides = [1, 1, 1]} : vector<11x11x12xbf16> to vector<8x8x3xbf16>
    %195 = vector.shape_cast %194 : vector<8x8x3xbf16> to vector<64x3xbf16>
    %196 = vector.extract_strided_slice %6 {offsets = [31, 0, 0], sizes = [1, 3, 16], strides = [1, 1, 1]} : vector<49x3x16xbf16> to vector<1x3x16xbf16>
    %197 = vector.shape_cast %196 : vector<1x3x16xbf16> to vector<3x16xbf16>
    %cst_40 = arith.constant dense<0.000000e+00> : vector<64x16xf32>
    %198 = tpu.matmul %195, %197, %cst_40 {dimension_numbers = #tpu.dot_dimension_numbers<[1], [0], [0], [1], [0, 0, 1, 1], [], []>} : vector<64x3xbf16>, vector<3x16xbf16>, vector<64x16xf32> -> vector<64x16xf32>
    %199 = arith.addf %193, %198 : vector<64x16xf32>
    %200 = vector.extract_strided_slice %4 {offsets = [2, 2, 0], sizes = [8, 8, 3], strides = [1, 1, 1]} : vector<11x11x12xbf16> to vector<8x8x3xbf16>
    %201 = vector.shape_cast %200 : vector<8x8x3xbf16> to vector<64x3xbf16>
    %202 = vector.extract_strided_slice %6 {offsets = [32, 0, 0], sizes = [1, 3, 16], strides = [1, 1, 1]} : vector<49x3x16xbf16> to vector<1x3x16xbf16>
    %203 = vector.shape_cast %202 : vector<1x3x16xbf16> to vector<3x16xbf16>
    %cst_41 = arith.constant dense<0.000000e+00> : vector<64x16xf32>
    %204 = tpu.matmul %201, %203, %cst_41 {dimension_numbers = #tpu.dot_dimension_numbers<[1], [0], [0], [1], [0, 0, 1, 1], [], []>} : vector<64x3xbf16>, vector<3x16xbf16>, vector<64x16xf32> -> vector<64x16xf32>
    %205 = arith.addf %199, %204 : vector<64x16xf32>
    %206 = vector.extract_strided_slice %4 {offsets = [2, 2, 3], sizes = [8, 8, 3], strides = [1, 1, 1]} : vector<11x11x12xbf16> to vector<8x8x3xbf16>
    %207 = vector.shape_cast %206 : vector<8x8x3xbf16> to vector<64x3xbf16>
    %208 = vector.extract_strided_slice %6 {offsets = [33, 0, 0], sizes = [1, 3, 16], strides = [1, 1, 1]} : vector<49x3x16xbf16> to vector<1x3x16xbf16>
    %209 = vector.shape_cast %208 : vector<1x3x16xbf16> to vector<3x16xbf16>
    %cst_42 = arith.constant dense<0.000000e+00> : vector<64x16xf32>
    %210 = tpu.matmul %207, %209, %cst_42 {dimension_numbers = #tpu.dot_dimension_numbers<[1], [0], [0], [1], [0, 0, 1, 1], [], []>} : vector<64x3xbf16>, vector<3x16xbf16>, vector<64x16xf32> -> vector<64x16xf32>
    %211 = arith.addf %205, %210 : vector<64x16xf32>
    %212 = vector.extract_strided_slice %4 {offsets = [2, 3, 0], sizes = [8, 8, 3], strides = [1, 1, 1]} : vector<11x11x12xbf16> to vector<8x8x3xbf16>
    %213 = vector.shape_cast %212 : vector<8x8x3xbf16> to vector<64x3xbf16>
    %214 = vector.extract_strided_slice %6 {offsets = [34, 0, 0], sizes = [1, 3, 16], strides = [1, 1, 1]} : vector<49x3x16xbf16> to vector<1x3x16xbf16>
    %215 = vector.shape_cast %214 : vector<1x3x16xbf16> to vector<3x16xbf16>
    %cst_43 = arith.constant dense<0.000000e+00> : vector<64x16xf32>
    %216 = tpu.matmul %213, %215, %cst_43 {dimension_numbers = #tpu.dot_dimension_numbers<[1], [0], [0], [1], [0, 0, 1, 1], [], []>} : vector<64x3xbf16>, vector<3x16xbf16>, vector<64x16xf32> -> vector<64x16xf32>
    %217 = arith.addf %211, %216 : vector<64x16xf32>
    %218 = vector.extract_strided_slice %4 {offsets = [2, 0, 6], sizes = [8, 8, 3], strides = [1, 1, 1]} : vector<11x11x12xbf16> to vector<8x8x3xbf16>
    %219 = vector.shape_cast %218 : vector<8x8x3xbf16> to vector<64x3xbf16>
    %220 = vector.extract_strided_slice %6 {offsets = [35, 0, 0], sizes = [1, 3, 16], strides = [1, 1, 1]} : vector<49x3x16xbf16> to vector<1x3x16xbf16>
    %221 = vector.shape_cast %220 : vector<1x3x16xbf16> to vector<3x16xbf16>
    %cst_44 = arith.constant dense<0.000000e+00> : vector<64x16xf32>
    %222 = tpu.matmul %219, %221, %cst_44 {dimension_numbers = #tpu.dot_dimension_numbers<[1], [0], [0], [1], [0, 0, 1, 1], [], []>} : vector<64x3xbf16>, vector<3x16xbf16>, vector<64x16xf32> -> vector<64x16xf32>
    %223 = arith.addf %217, %222 : vector<64x16xf32>
    %224 = vector.extract_strided_slice %4 {offsets = [2, 0, 9], sizes = [8, 8, 3], strides = [1, 1, 1]} : vector<11x11x12xbf16> to vector<8x8x3xbf16>
    %225 = vector.shape_cast %224 : vector<8x8x3xbf16> to vector<64x3xbf16>
    %226 = vector.extract_strided_slice %6 {offsets = [36, 0, 0], sizes = [1, 3, 16], strides = [1, 1, 1]} : vector<49x3x16xbf16> to vector<1x3x16xbf16>
    %227 = vector.shape_cast %226 : vector<1x3x16xbf16> to vector<3x16xbf16>
    %cst_45 = arith.constant dense<0.000000e+00> : vector<64x16xf32>
    %228 = tpu.matmul %225, %227, %cst_45 {dimension_numbers = #tpu.dot_dimension_numbers<[1], [0], [0], [1], [0, 0, 1, 1], [], []>} : vector<64x3xbf16>, vector<3x16xbf16>, vector<64x16xf32> -> vector<64x16xf32>
    %229 = arith.addf %223, %228 : vector<64x16xf32>
    %230 = vector.extract_strided_slice %4 {offsets = [2, 1, 6], sizes = [8, 8, 3], strides = [1, 1, 1]} : vector<11x11x12xbf16> to vector<8x8x3xbf16>
    %231 = vector.shape_cast %230 : vector<8x8x3xbf16> to vector<64x3xbf16>
    %232 = vector.extract_strided_slice %6 {offsets = [37, 0, 0], sizes = [1, 3, 16], strides = [1, 1, 1]} : vector<49x3x16xbf16> to vector<1x3x16xbf16>
    %233 = vector.shape_cast %232 : vector<1x3x16xbf16> to vector<3x16xbf16>
    %cst_46 = arith.constant dense<0.000000e+00> : vector<64x16xf32>
    %234 = tpu.matmul %231, %233, %cst_46 {dimension_numbers = #tpu.dot_dimension_numbers<[1], [0], [0], [1], [0, 0, 1, 1], [], []>} : vector<64x3xbf16>, vector<3x16xbf16>, vector<64x16xf32> -> vector<64x16xf32>
    %235 = arith.addf %229, %234 : vector<64x16xf32>
    %236 = vector.extract_strided_slice %4 {offsets = [2, 1, 9], sizes = [8, 8, 3], strides = [1, 1, 1]} : vector<11x11x12xbf16> to vector<8x8x3xbf16>
    %237 = vector.shape_cast %236 : vector<8x8x3xbf16> to vector<64x3xbf16>
    %238 = vector.extract_strided_slice %6 {offsets = [38, 0, 0], sizes = [1, 3, 16], strides = [1, 1, 1]} : vector<49x3x16xbf16> to vector<1x3x16xbf16>
    %239 = vector.shape_cast %238 : vector<1x3x16xbf16> to vector<3x16xbf16>
    %cst_47 = arith.constant dense<0.000000e+00> : vector<64x16xf32>
    %240 = tpu.matmul %237, %239, %cst_47 {dimension_numbers = #tpu.dot_dimension_numbers<[1], [0], [0], [1], [0, 0, 1, 1], [], []>} : vector<64x3xbf16>, vector<3x16xbf16>, vector<64x16xf32> -> vector<64x16xf32>
    %241 = arith.addf %235, %240 : vector<64x16xf32>
    %242 = vector.extract_strided_slice %4 {offsets = [2, 2, 6], sizes = [8, 8, 3], strides = [1, 1, 1]} : vector<11x11x12xbf16> to vector<8x8x3xbf16>
    %243 = vector.shape_cast %242 : vector<8x8x3xbf16> to vector<64x3xbf16>
    %244 = vector.extract_strided_slice %6 {offsets = [39, 0, 0], sizes = [1, 3, 16], strides = [1, 1, 1]} : vector<49x3x16xbf16> to vector<1x3x16xbf16>
    %245 = vector.shape_cast %244 : vector<1x3x16xbf16> to vector<3x16xbf16>
    %cst_48 = arith.constant dense<0.000000e+00> : vector<64x16xf32>
    %246 = tpu.matmul %243, %245, %cst_48 {dimension_numbers = #tpu.dot_dimension_numbers<[1], [0], [0], [1], [0, 0, 1, 1], [], []>} : vector<64x3xbf16>, vector<3x16xbf16>, vector<64x16xf32> -> vector<64x16xf32>
    %247 = arith.addf %241, %246 : vector<64x16xf32>
    %248 = vector.extract_strided_slice %4 {offsets = [2, 2, 9], sizes = [8, 8, 3], strides = [1, 1, 1]} : vector<11x11x12xbf16> to vector<8x8x3xbf16>
    %249 = vector.shape_cast %248 : vector<8x8x3xbf16> to vector<64x3xbf16>
    %250 = vector.extract_strided_slice %6 {offsets = [40, 0, 0], sizes = [1, 3, 16], strides = [1, 1, 1]} : vector<49x3x16xbf16> to vector<1x3x16xbf16>
    %251 = vector.shape_cast %250 : vector<1x3x16xbf16> to vector<3x16xbf16>
    %cst_49 = arith.constant dense<0.000000e+00> : vector<64x16xf32>
    %252 = tpu.matmul %249, %251, %cst_49 {dimension_numbers = #tpu.dot_dimension_numbers<[1], [0], [0], [1], [0, 0, 1, 1], [], []>} : vector<64x3xbf16>, vector<3x16xbf16>, vector<64x16xf32> -> vector<64x16xf32>
    %253 = arith.addf %247, %252 : vector<64x16xf32>
    %254 = vector.extract_strided_slice %4 {offsets = [2, 3, 6], sizes = [8, 8, 3], strides = [1, 1, 1]} : vector<11x11x12xbf16> to vector<8x8x3xbf16>
    %255 = vector.shape_cast %254 : vector<8x8x3xbf16> to vector<64x3xbf16>
    %256 = vector.extract_strided_slice %6 {offsets = [41, 0, 0], sizes = [1, 3, 16], strides = [1, 1, 1]} : vector<49x3x16xbf16> to vector<1x3x16xbf16>
    %257 = vector.shape_cast %256 : vector<1x3x16xbf16> to vector<3x16xbf16>
    %cst_50 = arith.constant dense<0.000000e+00> : vector<64x16xf32>
    %258 = tpu.matmul %255, %257, %cst_50 {dimension_numbers = #tpu.dot_dimension_numbers<[1], [0], [0], [1], [0, 0, 1, 1], [], []>} : vector<64x3xbf16>, vector<3x16xbf16>, vector<64x16xf32> -> vector<64x16xf32>
    %259 = arith.addf %253, %258 : vector<64x16xf32>
    %260 = vector.extract_strided_slice %4 {offsets = [3, 0, 0], sizes = [8, 8, 3], strides = [1, 1, 1]} : vector<11x11x12xbf16> to vector<8x8x3xbf16>
    %261 = vector.shape_cast %260 : vector<8x8x3xbf16> to vector<64x3xbf16>
    %262 = vector.extract_strided_slice %6 {offsets = [42, 0, 0], sizes = [1, 3, 16], strides = [1, 1, 1]} : vector<49x3x16xbf16> to vector<1x3x16xbf16>
    %263 = vector.shape_cast %262 : vector<1x3x16xbf16> to vector<3x16xbf16>
    %cst_51 = arith.constant dense<0.000000e+00> : vector<64x16xf32>
    %264 = tpu.matmul %261, %263, %cst_51 {dimension_numbers = #tpu.dot_dimension_numbers<[1], [0], [0], [1], [0, 0, 1, 1], [], []>} : vector<64x3xbf16>, vector<3x16xbf16>, vector<64x16xf32> -> vector<64x16xf32>
    %265 = arith.addf %259, %264 : vector<64x16xf32>
    %266 = vector.extract_strided_slice %4 {offsets = [3, 0, 3], sizes = [8, 8, 3], strides = [1, 1, 1]} : vector<11x11x12xbf16> to vector<8x8x3xbf16>
    %267 = vector.shape_cast %266 : vector<8x8x3xbf16> to vector<64x3xbf16>
    %268 = vector.extract_strided_slice %6 {offsets = [43, 0, 0], sizes = [1, 3, 16], strides = [1, 1, 1]} : vector<49x3x16xbf16> to vector<1x3x16xbf16>
    %269 = vector.shape_cast %268 : vector<1x3x16xbf16> to vector<3x16xbf16>
    %cst_52 = arith.constant dense<0.000000e+00> : vector<64x16xf32>
    %270 = tpu.matmul %267, %269, %cst_52 {dimension_numbers = #tpu.dot_dimension_numbers<[1], [0], [0], [1], [0, 0, 1, 1], [], []>} : vector<64x3xbf16>, vector<3x16xbf16>, vector<64x16xf32> -> vector<64x16xf32>
    %271 = arith.addf %265, %270 : vector<64x16xf32>
    %272 = vector.extract_strided_slice %4 {offsets = [3, 1, 0], sizes = [8, 8, 3], strides = [1, 1, 1]} : vector<11x11x12xbf16> to vector<8x8x3xbf16>
    %273 = vector.shape_cast %272 : vector<8x8x3xbf16> to vector<64x3xbf16>
    %274 = vector.extract_strided_slice %6 {offsets = [44, 0, 0], sizes = [1, 3, 16], strides = [1, 1, 1]} : vector<49x3x16xbf16> to vector<1x3x16xbf16>
    %275 = vector.shape_cast %274 : vector<1x3x16xbf16> to vector<3x16xbf16>
    %cst_53 = arith.constant dense<0.000000e+00> : vector<64x16xf32>
    %276 = tpu.matmul %273, %275, %cst_53 {dimension_numbers = #tpu.dot_dimension_numbers<[1], [0], [0], [1], [0, 0, 1, 1], [], []>} : vector<64x3xbf16>, vector<3x16xbf16>, vector<64x16xf32> -> vector<64x16xf32>
    %277 = arith.addf %271, %276 : vector<64x16xf32>
    %278 = vector.extract_strided_slice %4 {offsets = [3, 1, 3], sizes = [8, 8, 3], strides = [1, 1, 1]} : vector<11x11x12xbf16> to vector<8x8x3xbf16>
    %279 = vector.shape_cast %278 : vector<8x8x3xbf16> to vector<64x3xbf16>
    %280 = vector.extract_strided_slice %6 {offsets = [45, 0, 0], sizes = [1, 3, 16], strides = [1, 1, 1]} : vector<49x3x16xbf16> to vector<1x3x16xbf16>
    %281 = vector.shape_cast %280 : vector<1x3x16xbf16> to vector<3x16xbf16>
    %cst_54 = arith.constant dense<0.000000e+00> : vector<64x16xf32>
    %282 = tpu.matmul %279, %281, %cst_54 {dimension_numbers = #tpu.dot_dimension_numbers<[1], [0], [0], [1], [0, 0, 1, 1], [], []>} : vector<64x3xbf16>, vector<3x16xbf16>, vector<64x16xf32> -> vector<64x16xf32>
    %283 = arith.addf %277, %282 : vector<64x16xf32>
    %284 = vector.extract_strided_slice %4 {offsets = [3, 2, 0], sizes = [8, 8, 3], strides = [1, 1, 1]} : vector<11x11x12xbf16> to vector<8x8x3xbf16>
    %285 = vector.shape_cast %284 : vector<8x8x3xbf16> to vector<64x3xbf16>
    %286 = vector.extract_strided_slice %6 {offsets = [46, 0, 0], sizes = [1, 3, 16], strides = [1, 1, 1]} : vector<49x3x16xbf16> to vector<1x3x16xbf16>
    %287 = vector.shape_cast %286 : vector<1x3x16xbf16> to vector<3x16xbf16>
    %cst_55 = arith.constant dense<0.000000e+00> : vector<64x16xf32>
    %288 = tpu.matmul %285, %287, %cst_55 {dimension_numbers = #tpu.dot_dimension_numbers<[1], [0], [0], [1], [0, 0, 1, 1], [], []>} : vector<64x3xbf16>, vector<3x16xbf16>, vector<64x16xf32> -> vector<64x16xf32>
    %289 = arith.addf %283, %288 : vector<64x16xf32>
    %290 = vector.extract_strided_slice %4 {offsets = [3, 2, 3], sizes = [8, 8, 3], strides = [1, 1, 1]} : vector<11x11x12xbf16> to vector<8x8x3xbf16>
    %291 = vector.shape_cast %290 : vector<8x8x3xbf16> to vector<64x3xbf16>
    %292 = vector.extract_strided_slice %6 {offsets = [47, 0, 0], sizes = [1, 3, 16], strides = [1, 1, 1]} : vector<49x3x16xbf16> to vector<1x3x16xbf16>
    %293 = vector.shape_cast %292 : vector<1x3x16xbf16> to vector<3x16xbf16>
    %cst_56 = arith.constant dense<0.000000e+00> : vector<64x16xf32>
    %294 = tpu.matmul %291, %293, %cst_56 {dimension_numbers = #tpu.dot_dimension_numbers<[1], [0], [0], [1], [0, 0, 1, 1], [], []>} : vector<64x3xbf16>, vector<3x16xbf16>, vector<64x16xf32> -> vector<64x16xf32>
    %295 = arith.addf %289, %294 : vector<64x16xf32>
    %296 = vector.extract_strided_slice %4 {offsets = [3, 3, 0], sizes = [8, 8, 3], strides = [1, 1, 1]} : vector<11x11x12xbf16> to vector<8x8x3xbf16>
    %297 = vector.shape_cast %296 : vector<8x8x3xbf16> to vector<64x3xbf16>
    %298 = vector.extract_strided_slice %6 {offsets = [48, 0, 0], sizes = [1, 3, 16], strides = [1, 1, 1]} : vector<49x3x16xbf16> to vector<1x3x16xbf16>
    %299 = vector.shape_cast %298 : vector<1x3x16xbf16> to vector<3x16xbf16>
    %cst_57 = arith.constant dense<0.000000e+00> : vector<64x16xf32>
    %300 = tpu.matmul %297, %299, %cst_57 {dimension_numbers = #tpu.dot_dimension_numbers<[1], [0], [0], [1], [0, 0, 1, 1], [], []>} : vector<64x3xbf16>, vector<3x16xbf16>, vector<64x16xf32> -> vector<64x16xf32>
    %301 = arith.addf %295, %300 : vector<64x16xf32>
    %c0_58 = arith.constant 0 : index
    %c0_59 = arith.constant 0 : index
    %302 = vector.load %arg8[%c0_58, %c0_59] : memref<64x16xf32, #tpu.memory_space<vmem>>, vector<64x16xf32>
    %303 = arith.addf %302, %301 : vector<64x16xf32>
    %c0_60 = arith.constant 0 : index
    %c0_61 = arith.constant 0 : index
    %304 = vector.load %arg8[%c0_60, %c0_61] : memref<64x16xf32, #tpu.memory_space<vmem>>, vector<64x16xf32>
    tpu.vector_store %arg8[%c0_60, %c0_61], %303 {strides = array<i32>} : memref<64x16xf32, #tpu.memory_space<vmem>>, vector<64x16xf32>,
    %c0_i32_62 = arith.constant 0 : i32
    %305 = arith.cmpi eq, %arg2, %c0_i32_62 : i32
    %306 = arith.extui %305 : i1 to i32
    %c0_i32_63 = arith.constant 0 : i32
    %307 = arith.cmpi ne, %306, %c0_i32_63 : i32
    scf.if %307 {
      %c0_64 = arith.constant 0 : index
      %c0_65 = arith.constant 0 : index
      %308 = vector.load %arg8[%c0_64, %c0_65] : memref<64x16xf32, #tpu.memory_space<vmem>>, vector<64x16xf32>
      %309 = arith.truncf %308 : vector<64x16xf32> to vector<64x16xbf16>
      %c0_66 = arith.constant 0 : index
      %c0_67 = arith.constant 0 : index
      %c0_68 = arith.constant 0 : index
      %310 = vector.load %arg5[%c0_66, %c0_67, %c0_68] : memref<1x64x16xbf16, #tpu.memory_space<vmem>>, vector<1x64x16xbf16>
      %311 = vector.shape_cast %310 : vector<1x64x16xbf16> to vector<64x16xbf16>
      %312 = vector.shape_cast %309 : vector<64x16xbf16> to vector<1x64x16xbf16>
      tpu.vector_store %arg5[%c0_66, %c0_67, %c0_68], %312 {strides = array<i32>} : memref<1x64x16xbf16, #tpu.memory_space<vmem>>, vector<1x64x16xbf16>,
      %cst_69 = arith.constant dense<0.000000e+00> : vector<16xf32>
      %313 = vector.multi_reduction <add>, %308, %cst_69 [0] : vector<64x16xf32> to vector<16xf32>
      %314 = vector.shape_cast %313 : vector<16xf32> to vector<1x16xf32>
      %c0_70 = arith.constant 0 : index
      %c0_71 = arith.constant 0 : index
      %c0_72 = arith.constant 0 : index
      %315 = vector.load %arg6[%c0_70, %c0_71, %c0_72] : memref<1x1x16xf32, #tpu.memory_space<vmem>>, vector<1x1x16xf32>
      %316 = vector.shape_cast %315 : vector<1x1x16xf32> to vector<1x16xf32>
      %317 = vector.shape_cast %314 : vector<1x16xf32> to vector<1x1x16xf32>
      tpu.vector_store %arg6[%c0_70, %c0_71, %c0_72], %317 {strides = array<i32>} : memref<1x1x16xf32, #tpu.memory_space<vmem>>, vector<1x1x16xf32>,
      %318 = arith.mulf %308, %308 : vector<64x16xf32>
      %cst_73 = arith.constant dense<0.000000e+00> : vector<16xf32>
      %319 = vector.multi_reduction <add>, %318, %cst_73 [0] : vector<64x16xf32> to vector<16xf32>
      %320 = vector.shape_cast %319 : vector<16xf32> to vector<1x16xf32>
      %c0_74 = arith.constant 0 : index
      %c0_75 = arith.constant 0 : index
      %c0_76 = arith.constant 0 : index
      %321 = vector.load %arg7[%c0_74, %c0_75, %c0_76] : memref<1x1x16xf32, #tpu.memory_space<vmem>>, vector<1x1x16xf32>
      %322 = vector.shape_cast %321 : vector<1x1x16xf32> to vector<1x16xf32>
      %323 = vector.shape_cast %320 : vector<1x16xf32> to vector<1x1x16xf32>
      tpu.vector_store %arg7[%c0_74, %c0_75, %c0_76], %323 {strides = array<i32>} : memref<1x1x16xf32, #tpu.memory_space<vmem>>, vector<1x1x16xf32>,
    } else {
    }
    return
  }
  func.func @transform_0(%arg0: i32, %arg1: i32, %arg2: i32) -> (i32, i32, i32, i32, i32) {
    %c1_i32 = arith.constant 1 : i32
    %0 = arith.muli %c1_i32, %arg1 : i32
    %1 = arith.addi %0, %arg2 : i32
    %c0_i32 = arith.constant 0 : i32
    %c0_i32_0 = arith.constant 0 : i32
    %c0_i32_1 = arith.constant 0 : i32
    %c0_i32_2 = arith.constant 0 : i32
    return %arg0, %1, %c0_i32, %c0_i32_0, %c0_i32_1 : i32, i32, i32, i32, i32
  }
  func.func @transform_1(%arg0: i32, %arg1: i32, %arg2: i32) -> (i32, i32, i32, i32) {
    %c0_i32 = arith.constant 0 : i32
    %c0_i32_0 = arith.constant 0 : i32
    %c0_i32_1 = arith.constant 0 : i32
    %c0_i32_2 = arith.constant 0 : i32
    return %arg2, %c0_i32, %c0_i32_0, %c0_i32_1 : i32, i32, i32, i32
  }
  func.func @transform_2(%arg0: i32, %arg1: i32, %arg2: i32) -> (i32, i32, i32) {
    %c4_i32 = arith.constant 4 : i32
    %0 = arith.muli %arg0, %c4_i32 : i32
    %1 = arith.addi %0, %arg1 : i32
    %c0_i32 = arith.constant 0 : i32
    %c0_i32_0 = arith.constant 0 : i32
    %c0_i32_1 = arith.constant 0 : i32
    return %1, %c0_i32, %c0_i32_0 : i32, i32, i32
  }
  func.func @transform_3(%arg0: i32, %arg1: i32, %arg2: i32) -> (i32, i32, i32) {
    %c4_i32 = arith.constant 4 : i32
    %0 = arith.muli %arg0, %c4_i32 : i32
    %1 = arith.addi %0, %arg1 : i32
    %c0_i32 = arith.constant 0 : i32
    %c0_i32_0 = arith.constant 0 : i32
    %c0_i32_1 = arith.constant 0 : i32
    return %1, %c0_i32, %c0_i32_0 : i32, i32, i32
  }
  func.func @transform_4(%arg0: i32, %arg1: i32, %arg2: i32) -> (i32, i32, i32) {
    %c4_i32 = arith.constant 4 : i32
    %0 = arith.muli %arg0, %c4_i32 : i32
    %1 = arith.addi %0, %arg1 : i32
    %c0_i32 = arith.constant 0 : i32
    %c0_i32_0 = arith.constant 0 : i32
    %c0_i32_1 = arith.constant 0 : i32
    return %1, %c0_i32, %c0_i32_0 : i32, i32, i32
  }
}

module attributes {stable_mosaic.version = 11 : i64} {
  func.func @_bn_relu_pool_kernel(%arg0: i32, %arg1: memref<8x8x4x32xbf16, #tpu.memory_space<vmem>>, %arg2: memref<1x32xf32, #tpu.memory_space<vmem>>, %arg3: memref<1x32xf32, #tpu.memory_space<vmem>>, %arg4: memref<8x4x4x16xf32, #tpu.memory_space<vmem>>) attributes {dimension_semantics = [#tpu.dimension_semantics<parallel>], iteration_bounds = array<i64: 1>, scalar_prefetch = 0 : i64, scratch_operands = 0 : i64, tpu.core_type = #tpu.core_type<tc>, window_params = [{transform_indices = @transform_0, window_bounds = array<i64: 8, 8, 4, 32>}, {pipeline_mode = #tpu.pipeline_mode<synchronous>, transform_indices = @transform_1, window_bounds = array<i64: 1, 32>}, {pipeline_mode = #tpu.pipeline_mode<synchronous>, transform_indices = @transform_2, window_bounds = array<i64: 1, 32>}, {transform_indices = @transform_3, window_bounds = array<i64: 8, 4, 4, 16>}]} {
    %c0 = arith.constant 0 : index
    %c0_0 = arith.constant 0 : index
    %c0_1 = arith.constant 0 : index
    %c0_2 = arith.constant 0 : index
    %0 = vector.load %arg1[%c0, %c0_0, %c0_1, %c0_2] : memref<8x8x4x32xbf16, #tpu.memory_space<vmem>>, vector<8x8x4x32xbf16>
    %1 = arith.extf %0 : vector<8x8x4x32xbf16> to vector<8x8x4x32xf32>
    %c0_3 = arith.constant 0 : index
    %c0_4 = arith.constant 0 : index
    %2 = vector.load %arg2[%c0_3, %c0_4] : memref<1x32xf32, #tpu.memory_space<vmem>>, vector<1x32xf32>
    %3 = vector.shape_cast %2 : vector<1x32xf32> to vector<1x1x1x32xf32>
    %c0_5 = arith.constant 0 : index
    %c0_6 = arith.constant 0 : index
    %4 = vector.load %arg3[%c0_5, %c0_6] : memref<1x32xf32, #tpu.memory_space<vmem>>, vector<1x32xf32>
    %5 = vector.shape_cast %4 : vector<1x32xf32> to vector<1x1x1x32xf32>
    %6 = vector.broadcast %3 : vector<1x1x1x32xf32> to vector<8x8x4x32xf32>
    %7 = arith.mulf %1, %6 : vector<8x8x4x32xf32>
    %8 = vector.broadcast %5 : vector<1x1x1x32xf32> to vector<8x8x4x32xf32>
    %9 = arith.addf %7, %8 : vector<8x8x4x32xf32>
    %cst = arith.constant 0.000000e+00 : f32
    %10 = vector.broadcast %cst : f32 to vector<8x8x4x32xf32>
    %11 = arith.maximumf %9, %10 : vector<8x8x4x32xf32>
    %12 = vector.extract_strided_slice %11 {offsets = [0, 0, 0, 0], sizes = [8, 8, 4, 16], strides = [1, 1, 1, 1]} : vector<8x8x4x32xf32> to vector<8x8x4x16xf32>
    %13 = vector.extract_strided_slice %11 {offsets = [0, 0, 0, 16], sizes = [8, 8, 4, 16], strides = [1, 1, 1, 1]} : vector<8x8x4x32xf32> to vector<8x8x4x16xf32>
    %cst_7 = arith.constant 0.000000e+00 : f32
    %14 = vector.broadcast %cst_7 : f32 to vector<8x8x1x16xf32>
    %15 = vector.extract_strided_slice %13 {offsets = [0, 0, 0, 0], sizes = [8, 8, 3, 16], strides = [1, 1, 1, 1]} : vector<8x8x4x16xf32> to vector<8x8x3x16xf32>
    %16 = tpu.concatenate %14, %15 in 2 : vector<8x8x1x16xf32>, vector<8x8x3x16xf32> -> vector<8x8x4x16xf32>
    %17 = arith.maximumf %12, %13 : vector<8x8x4x16xf32>
    %18 = arith.maximumf %17, %16 : vector<8x8x4x16xf32>
    %19 = vector.shape_cast %18 : vector<8x8x4x16xf32> to vector<8x4x2x4x16xf32>
    %20 = vector.extract_strided_slice %19 {offsets = [0, 0, 0, 0, 0], sizes = [8, 4, 1, 4, 16], strides = [1, 1, 1, 1, 1]} : vector<8x4x2x4x16xf32> to vector<8x4x1x4x16xf32>
    %21 = vector.shape_cast %20 : vector<8x4x1x4x16xf32> to vector<8x4x4x16xf32>
    %22 = vector.extract_strided_slice %19 {offsets = [0, 0, 1, 0, 0], sizes = [8, 4, 1, 4, 16], strides = [1, 1, 1, 1, 1]} : vector<8x4x2x4x16xf32> to vector<8x4x1x4x16xf32>
    %23 = vector.shape_cast %22 : vector<8x4x1x4x16xf32> to vector<8x4x4x16xf32>
    %cst_8 = arith.constant 0.000000e+00 : f32
    %24 = vector.broadcast %cst_8 : f32 to vector<8x1x4x16xf32>
    %25 = vector.extract_strided_slice %23 {offsets = [0, 0, 0, 0], sizes = [8, 3, 4, 16], strides = [1, 1, 1, 1]} : vector<8x4x4x16xf32> to vector<8x3x4x16xf32>
    %26 = tpu.concatenate %24, %25 in 1 : vector<8x1x4x16xf32>, vector<8x3x4x16xf32> -> vector<8x4x4x16xf32>
    %27 = arith.maximumf %21, %23 : vector<8x4x4x16xf32>
    %28 = arith.maximumf %27, %26 : vector<8x4x4x16xf32>
    %c0_9 = arith.constant 0 : index
    %c0_10 = arith.constant 0 : index
    %c0_11 = arith.constant 0 : index
    %c0_12 = arith.constant 0 : index
    %29 = vector.load %arg4[%c0_9, %c0_10, %c0_11, %c0_12] : memref<8x4x4x16xf32, #tpu.memory_space<vmem>>, vector<8x4x4x16xf32>
    tpu.vector_store %arg4[%c0_9, %c0_10, %c0_11, %c0_12], %28 {strides = array<i32>} : memref<8x4x4x16xf32, #tpu.memory_space<vmem>>, vector<8x4x4x16xf32>,
    return
  }
  func.func @transform_0(%arg0: i32) -> (i32, i32, i32, i32) {
    %c0_i32 = arith.constant 0 : i32
    %c0_i32_0 = arith.constant 0 : i32
    %c0_i32_1 = arith.constant 0 : i32
    %c0_i32_2 = arith.constant 0 : i32
    return %arg0, %c0_i32, %c0_i32_0, %c0_i32_1 : i32, i32, i32, i32
  }
  func.func @transform_1(%arg0: i32) -> (i32, i32) {
    %c0_i32 = arith.constant 0 : i32
    %c0_i32_0 = arith.constant 0 : i32
    %c0_i32_1 = arith.constant 0 : i32
    return %c0_i32, %c0_i32_0 : i32, i32
  }
  func.func @transform_2(%arg0: i32) -> (i32, i32) {
    %c0_i32 = arith.constant 0 : i32
    %c0_i32_0 = arith.constant 0 : i32
    %c0_i32_1 = arith.constant 0 : i32
    return %c0_i32, %c0_i32_0 : i32, i32
  }
  func.func @transform_3(%arg0: i32) -> (i32, i32, i32, i32) {
    %c0_i32 = arith.constant 0 : i32
    %c0_i32_0 = arith.constant 0 : i32
    %c0_i32_1 = arith.constant 0 : i32
    %c0_i32_2 = arith.constant 0 : i32
    return %arg0, %c0_i32, %c0_i32_0, %c0_i32_1 : i32, i32, i32, i32
  }
}

</mosaic_0001>

<llo_original>
// kernel: stem_forward.3
$region0: #{stem_forward.3}
  #allocation0 [shape = 'u32[]', space=smem, size = 0x4, offset = 0x4, fixed_abs, tag = 'smem constant byte address 0x4 - core index']
  #allocation1 [shape = 'u32[144,128]{1,0:T(1,128)}', space=vmem, size = 0x12000, scoped, tag = 'internal scratch']
  %s0 = inlined_call_operand.vmem [shape: bf16[8,8,4,32], index: 0, kind: input, shape index: {}]
  %s1 = inlined_call_operand.vmem [shape: f32[1,32], index: 1, kind: input, shape index: {}]
  %s2 = inlined_call_operand.vmem [shape: f32[1,32], index: 2, kind: input, shape index: {}]
  %s3 = inlined_call_operand.hbm [shape: f32[8,4,4,16], index: 3, kind: output, shape index: {}]
  %s4 = sld [smem:[#allocation0]]
  $region22: #{stem_forward.3} parent=0
    _
  %s6 = ssub.s32 1, %s4
  %s7 = scalar_select 0, %s6, %s4
  $region1: #{stem_forward.3} parent=0
    #allocation2 [shape = 'u8[65536]{0}', space=vmem, size = 0x10000, scoped, tag = 'output window, operand 0, single buffered']
    #allocation3 [shape = 's32[1]{0}', space=sflag, size = 0x4, scoped, tag = 'scoped memory for stem_forward.3']
    %8 = vsyncpa [#allocation3], 0
    // Predicated region
    $region2: #{stem_forward.3} parent=1 // pred_check
      _
    $region3: #{stem_forward.3} parent=1 // pred_check_branch
      %10 = sbr.rel (0) target = $region5
    $region4: #{stem_forward.3} parent=1 // pred_region
      _
    $region5: #{stem_forward.3} parent=1 // pred_fallthru
      _
    // Predicated region
    $region6: #{stem_forward.3} parent=1 // pred_check
      _
    $region7: #{stem_forward.3} parent=1 // pred_check_branch
      %12 = sbr.rel (0) target = $region9
    $region8: #{stem_forward.3} parent=1 // pred_region
      _
    $region9: #{stem_forward.3} parent=1 // pred_fallthru
      _
    // Predicated region
    $region10: #{stem_forward.3} parent=1 // pred_check
      _
    $region11: #{stem_forward.3} parent=1 // pred_check_branch
      %14 = sbr.rel (0) target = $region13
    $region12: #{stem_forward.3} parent=1 // pred_region
      _
    $region13: #{stem_forward.3} parent=1 // pred_fallthru
      _
    %v15 = vld [vmem:[%s0] sm:$0x3]
    %v16 = vld [vmem:[%s0 + $0x2] sm:$0x3]
    %v17 = vld [vmem:[%s0 + $0x4] sm:$0x3]
    %v18 = vld [vmem:[%s0 + $0x6] sm:$0x3]
    %v19 = vld [vmem:[%s0 + $0x8] sm:$0x3]
    %v20 = vld [vmem:[%s0 + $0xa] sm:$0x3]
    %v21 = vld [vmem:[%s0 + $0xc] sm:$0x3]
    %v22 = vld [vmem:[%s0 + $0xe] sm:$0x3]
    %v23 = vld [vmem:[%s0 + $0x10] sm:$0x3]
    %v24 = vld [vmem:[%s0 + $0x12] sm:$0x3]
    %v25 = vld [vmem:[%s0 + $0x14] sm:$0x3]
    %v26 = vld [vmem:[%s0 + $0x16] sm:$0x3]
    %v27 = vld [vmem:[%s0 + $0x18] sm:$0x3]
    %v28 = vld [vmem:[%s0 + $0x1a] sm:$0x3]
    %v29 = vld [vmem:[%s0 + $0x1c] sm:$0x3]
    %v30 = vld [vmem:[%s0 + $0x1e] sm:$0x3]
    %v31 = vld [vmem:[%s0 + $0x20] sm:$0x3]
    %v32 = vld [vmem:[%s0 + $0x22] sm:$0x3]
    %v33 = vld [vmem:[%s0 + $0x24] sm:$0x3]
    %v34 = vld [vmem:[%s0 + $0x26] sm:$0x3]
    %v35 = vld [vmem:[%s0 + $0x28] sm:$0x3]
    %v36 = vld [vmem:[%s0 + $0x2a] sm:$0x3]
    %v37 = vld [vmem:[%s0 + $0x2c] sm:$0x3]
    %v38 = vld [vmem:[%s0 + $0x2e] sm:$0x3]
    %v39 = vld [vmem:[%s0 + $0x30] sm:$0x3]
    %v40 = vld [vmem:[%s0 + $0x32] sm:$0x3]
    %v41 = vld [vmem:[%s0 + $0x34] sm:$0x3]
    %v42 = vld [vmem:[%s0 + $0x36] sm:$0x3]
    %v43 = vld [vmem:[%s0 + $0x38] sm:$0x3]
    %v44 = vld [vmem:[%s0 + $0x3a] sm:$0x3]
    %v45 = vld [vmem:[%s0 + $0x3c] sm:$0x3]
    %v46 = vld [vmem:[%s0 + $0x3e] sm:$0x3]
    %v47 = vld [vmem:[%s0 + $0x40] sm:$0x3]
    %v48 = vld [vmem:[%s0 + $0x42] sm:$0x3]
    %v49 = vld [vmem:[%s0 + $0x44] sm:$0x3]
    %v50 = vld [vmem:[%s0 + $0x46] sm:$0x3]
    %v51 = vld [vmem:[%s0 + $0x48] sm:$0x3]
    %v52 = vld [vmem:[%s0 + $0x4a] sm:$0x3]
    %v53 = vld [vmem:[%s0 + $0x4c] sm:$0x3]
    %v54 = vld [vmem:[%s0 + $0x4e] sm:$0x3]
    %v55 = vld [vmem:[%s0 + $0x50] sm:$0x3]
    %v56 = vld [vmem:[%s0 + $0x52] sm:$0x3]
    %v57 = vld [vmem:[%s0 + $0x54] sm:$0x3]
    %v58 = vld [vmem:[%s0 + $0x56] sm:$0x3]
    %v59 = vld [vmem:[%s0 + $0x58] sm:$0x3]
    %v60 = vld [vmem:[%s0 + $0x5a] sm:$0x3]
    %v61 = vld [vmem:[%s0 + $0x5c] sm:$0x3]
    %v62 = vld [vmem:[%s0 + $0x5e] sm:$0x3]
    %v63 = vld [vmem:[%s0 + $0x60] sm:$0x3]
    %v64 = vld [vmem:[%s0 + $0x62] sm:$0x3]
    %v65 = vld [vmem:[%s0 + $0x64] sm:$0x3]
    %v66 = vld [vmem:[%s0 + $0x66] sm:$0x3]
    %v67 = vld [vmem:[%s0 + $0x68] sm:$0x3]
    %v68 = vld [vmem:[%s0 + $0x6a] sm:$0x3]
    %v69 = vld [vmem:[%s0 + $0x6c] sm:$0x3]
    %v70 = vld [vmem:[%s0 + $0x6e] sm:$0x3]
    %v71 = vld [vmem:[%s0 + $0x70] sm:$0x3]
    %v72 = vld [vmem:[%s0 + $0x72] sm:$0x3]
    %v73 = vld [vmem:[%s0 + $0x74] sm:$0x3]
    %v74 = vld [vmem:[%s0 + $0x76] sm:$0x3]
    %v75 = vld [vmem:[%s0 + $0x78] sm:$0x3]
    %v76 = vld [vmem:[%s0 + $0x7a] sm:$0x3]
    %v77 = vld [vmem:[%s0 + $0x7c] sm:$0x3]
    %v78 = vld [vmem:[%s0 + $0x7e] sm:$0x3]
    %v79 = vunpack.c.l.bf16 %v15
    %v80 = vunpack.c.l.bf16 %v16
    %v81 = vunpack.c.l.bf16 %v17
    %v82 = vunpack.c.l.bf16 %v18
    %v83 = vunpack.c.l.bf16 %v19
    %v84 = vunpack.c.l.bf16 %v20
    %v85 = vunpack.c.l.bf16 %v21
    %v86 = vunpack.c.l.bf16 %v22
    %v87 = vunpack.c.l.bf16 %v23
    %v88 = vunpack.c.l.bf16 %v24
    %v89 = vunpack.c.l.bf16 %v25
    %v90 = vunpack.c.l.bf16 %v26
    %v91 = vunpack.c.l.bf16 %v27
    %v92 = vunpack.c.l.bf16 %v28
    %v93 = vunpack.c.l.bf16 %v29
    %v94 = vunpack.c.l.bf16 %v30
    %v95 = vunpack.c.l.bf16 %v31
    %v96 = vunpack.c.l.bf16 %v32
    %v97 = vunpack.c.l.bf16 %v33
    %v98 = vunpack.c.l.bf16 %v34
    %v99 = vunpack.c.l.bf16 %v35
    %v100 = vunpack.c.l.bf16 %v36
    %v101 = vunpack.c.l.bf16 %v37
    %v102 = vunpack.c.l.bf16 %v38
    %v103 = vunpack.c.l.bf16 %v39
    %v104 = vunpack.c.l.bf16 %v40
    %v105 = vunpack.c.l.bf16 %v41
    %v106 = vunpack.c.l.bf16 %v42
    %v107 = vunpack.c.l.bf16 %v43
    %v108 = vunpack.c.l.bf16 %v44
    %v109 = vunpack.c.l.bf16 %v45
    %v110 = vunpack.c.l.bf16 %v46
    %v111 = vunpack.c.l.bf16 %v47
    %v112 = vunpack.c.l.bf16 %v48
    %v113 = vunpack.c.l.bf16 %v49
    %v114 = vunpack.c.l.bf16 %v50
    %v115 = vunpack.c.l.bf16 %v51
    %v116 = vunpack.c.l.bf16 %v52
    %v117 = vunpack.c.l.bf16 %v53
    %v118 = vunpack.c.l.bf16 %v54
    %v119 = vunpack.c.l.bf16 %v55
    %v120 = vunpack.c.l.bf16 %v56
    %v121 = vunpack.c.l.bf16 %v57
    %v122 = vunpack.c.l.bf16 %v58
    %v123 = vunpack.c.l.bf16 %v59
    %v124 = vunpack.c.l.bf16 %v60
    %v125 = vunpack.c.l.bf16 %v61
    %v126 = vunpack.c.l.bf16 %v62
    %v127 = vunpack.c.l.bf16 %v63
    %v128 = vunpack.c.l.bf16 %v64
    %v129 = vunpack.c.l.bf16 %v65
    %v130 = vunpack.c.l.bf16 %v66
    %v131 = vunpack.c.l.bf16 %v67
    %v132 = vunpack.c.l.bf16 %v68
    %v133 = vunpack.c.l.bf16 %v69
    %v134 = vunpack.c.l.bf16 %v70
    %v135 = vunpack.c.l.bf16 %v71
    %v136 = vunpack.c.l.bf16 %v72
    %v137 = vunpack.c.l.bf16 %v73
    %v138 = vunpack.c.l.bf16 %v74
    %v139 = vunpack.c.l.bf16 %v75
    %v140 = vunpack.c.l.bf16 %v76
    %v141 = vunpack.c.l.bf16 %v77
    %v142 = vunpack.c.l.bf16 %v78
    %v143 = vld [vmem:[%s1] sm:$0x1]
    %v144 = vld [vmem:[%s2] sm:$0x1]
    %v146 = vlaneseq
    %v147 = vshrl.u32 %v146, 7
    %v148 = vsub.s32 0, %v147
    %v149 = vrot.slane %v143, %v148
    %v151 = vmul.f32 %v79, %v149
    %v152 = vmul.f32 %v80, %v149
    %v153 = vmul.f32 %v81, %v149
    %v154 = vmul.f32 %v82, %v149
    %v155 = vmul.f32 %v83, %v149
    %v156 = vmul.f32 %v84, %v149
    %v157 = vmul.f32 %v85, %v149
    %v158 = vmul.f32 %v86, %v149
    %v159 = vmul.f32 %v87, %v149
    %v160 = vmul.f32 %v88, %v149
    %v161 = vmul.f32 %v89, %v149
    %v162 = vmul.f32 %v90, %v149
    %v163 = vmul.f32 %v91, %v149
    %v164 = vmul.f32 %v92, %v149
    %v165 = vmul.f32 %v93, %v149
    %v166 = vmul.f32 %v94, %v149
    %v167 = vmul.f32 %v95, %v149
    %v168 = vmul.f32 %v96, %v149
    %v169 = vmul.f32 %v97, %v149
    %v170 = vmul.f32 %v98, %v149
    %v171 = vmul.f32 %v99, %v149
    %v172 = vmul.f32 %v100, %v149
    %v173 = vmul.f32 %v101, %v149
    %v174 = vmul.f32 %v102, %v149
    %v175 = vmul.f32 %v103, %v149
    %v176 = vmul.f32 %v104, %v149
    %v177 = vmul.f32 %v105, %v149
    %v178 = vmul.f32 %v106, %v149
    %v179 = vmul.f32 %v107, %v149
    %v180 = vmul.f32 %v108, %v149
    %v181 = vmul.f32 %v109, %v149
    %v182 = vmul.f32 %v110, %v149
    %v183 = vmul.f32 %v111, %v149
    %v184 = vmul.f32 %v112, %v149
    %v185 = vmul.f32 %v113, %v149
    %v186 = vmul.f32 %v114, %v149
    %v187 = vmul.f32 %v115, %v149
    %v188 = vmul.f32 %v116, %v149
    %v189 = vmul.f32 %v117, %v149
    %v190 = vmul.f32 %v118, %v149
    %v191 = vmul.f32 %v119, %v149
    %v192 = vmul.f32 %v120, %v149
    %v193 = vmul.f32 %v121, %v149
    %v194 = vmul.f32 %v122, %v149
    %v195 = vmul.f32 %v123, %v149
    %v196 = vmul.f32 %v124, %v149
    %v197 = vmul.f32 %v125, %v149
    %v198 = vmul.f32 %v126, %v149
    %v199 = vmul.f32 %v127, %v149
    %v200 = vmul.f32 %v128, %v149
    %v201 = vmul.f32 %v129, %v149
    %v202 = vmul.f32 %v130, %v149
    %v203 = vmul.f32 %v131, %v149
    %v204 = vmul.f32 %v132, %v149
    %v205 = vmul.f32 %v133, %v149
    %v206 = vmul.f32 %v134, %v149
    %v207 = vmul.f32 %v135, %v149
    %v208 = vmul.f32 %v136, %v149
    %v209 = vmul.f32 %v137, %v149
    %v210 = vmul.f32 %v138, %v149
    %v211 = vmul.f32 %v139, %v149
    %v212 = vmul.f32 %v140, %v149
    %v213 = vmul.f32 %v141, %v149
    %v214 = vmul.f32 %v142, %v149
    %v216 = vlaneseq
    %v217 = vshrl.u32 %v216, 7
    %v218 = vsub.s32 0, %v217
    %v219 = vrot.slane %v144, %v218
    %v221 = vadd.f32 %v151, %v219
    %v222 = vadd.f32 %v152, %v219
    %v223 = vadd.f32 %v153, %v219
    %v224 = vadd.f32 %v154, %v219
    %v225 = vadd.f32 %v155, %v219
    %v226 = vadd.f32 %v156, %v219
    %v227 = vadd.f32 %v157, %v219
    %v228 = vadd.f32 %v158, %v219
    %v229 = vadd.f32 %v159, %v219
    %v230 = vadd.f32 %v160, %v219
    %v231 = vadd.f32 %v161, %v219
    %v232 = vadd.f32 %v162, %v219
    %v233 = vadd.f32 %v163, %v219
    %v234 = vadd.f32 %v164, %v219
    %v235 = vadd.f32 %v165, %v219
    %v236 = vadd.f32 %v166, %v219
    %v237 = vadd.f32 %v167, %v219
    %v238 = vadd.f32 %v168, %v219
    %v239 = vadd.f32 %v169, %v219
    %v240 = vadd.f32 %v170, %v219
    %v241 = vadd.f32 %v171, %v219
    %v242 = vadd.f32 %v172, %v219
    %v243 = vadd.f32 %v173, %v219
    %v244 = vadd.f32 %v174, %v219
    %v245 = vadd.f32 %v175, %v219
    %v246 = vadd.f32 %v176, %v219
    %v247 = vadd.f32 %v177, %v219
    %v248 = vadd.f32 %v178, %v219
    %v249 = vadd.f32 %v179, %v219
    %v250 = vadd.f32 %v180, %v219
    %v251 = vadd.f32 %v181, %v219
    %v252 = vadd.f32 %v182, %v219
    %v253 = vadd.f32 %v183, %v219
    %v254 = vadd.f32 %v184, %v219
    %v255 = vadd.f32 %v185, %v219
    %v256 = vadd.f32 %v186, %v219
    %v257 = vadd.f32 %v187, %v219
    %v258 = vadd.f32 %v188, %v219
    %v259 = vadd.f32 %v189, %v219
    %v260 = vadd.f32 %v190, %v219
    %v261 = vadd.f32 %v191, %v219
    %v262 = vadd.f32 %v192, %v219
    %v263 = vadd.f32 %v193, %v219
    %v264 = vadd.f32 %v194, %v219
    %v265 = vadd.f32 %v195, %v219
    %v266 = vadd.f32 %v196, %v219
    %v267 = vadd.f32 %v197, %v219
    %v268 = vadd.f32 %v198, %v219
    %v269 = vadd.f32 %v199, %v219
    %v270 = vadd.f32 %v200, %v219
    %v271 = vadd.f32 %v201, %v219
    %v272 = vadd.f32 %v202, %v219
    %v273 = vadd.f32 %v203, %v219
    %v274 = vadd.f32 %v204, %v219
    %v275 = vadd.f32 %v205, %v219
    %v276 = vadd.f32 %v206, %v219
    %v277 = vadd.f32 %v207, %v219
    %v278 = vadd.f32 %v208, %v219
    %v279 = vadd.f32 %v209, %v219
    %v280 = vadd.f32 %v210, %v219
    %v281 = vadd.f32 %v211, %v219
    %v282 = vadd.f32 %v212, %v219
    %v283 = vadd.f32 %v213, %v219
    %v284 = vadd.f32 %v214, %v219
    %v285 = vmax.f32 %v221, 0.0
    %v286 = vmax.f32 %v222, 0.0
    %v287 = vmax.f32 %v223, 0.0
    %v288 = vmax.f32 %v224, 0.0
    %v289 = vmax.f32 %v225, 0.0
    %v290 = vmax.f32 %v226, 0.0
    %v291 = vmax.f32 %v227, 0.0
    %v292 = vmax.f32 %v228, 0.0
    %v293 = vmax.f32 %v229, 0.0
    %v294 = vmax.f32 %v230, 0.0
    %v295 = vmax.f32 %v231, 0.0
    %v296 = vmax.f32 %v232, 0.0
    %v297 = vmax.f32 %v233, 0.0
    %v298 = vmax.f32 %v234, 0.0
    %v299 = vmax.f32 %v235, 0.0
    %v300 = vmax.f32 %v236, 0.0
    %v301 = vmax.f32 %v237, 0.0
    %v302 = vmax.f32 %v238, 0.0
    %v303 = vmax.f32 %v239, 0.0
    %v304 = vmax.f32 %v240, 0.0
    %v305 = vmax.f32 %v241, 0.0
    %v306 = vmax.f32 %v242, 0.0
    %v307 = vmax.f32 %v243, 0.0
    %v308 = vmax.f32 %v244, 0.0
    %v309 = vmax.f32 %v245, 0.0
    %v310 = vmax.f32 %v246, 0.0
    %v311 = vmax.f32 %v247, 0.0
    %v312 = vmax.f32 %v248, 0.0
    %v313 = vmax.f32 %v249, 0.0
    %v314 = vmax.f32 %v250, 0.0
    %v315 = vmax.f32 %v251, 0.0
    %v316 = vmax.f32 %v252, 0.0
    %v317 = vmax.f32 %v253, 0.0
    %v318 = vmax.f32 %v254, 0.0
    %v319 = vmax.f32 %v255, 0.0
    %v320 = vmax.f32 %v256, 0.0
    %v321 = vmax.f32 %v257, 0.0
    %v322 = vmax.f32 %v258, 0.0
    %v323 = vmax.f32 %v259, 0.0
    %v324 = vmax.f32 %v260, 0.0
    %v325 = vmax.f32 %v261, 0.0
    %v326 = vmax.f32 %v262, 0.0
    %v327 = vmax.f32 %v263, 0.0
    %v328 = vmax.f32 %v264, 0.0
    %v329 = vmax.f32 %v265, 0.0
    %v330 = vmax.f32 %v266, 0.0
    %v331 = vmax.f32 %v267, 0.0
    %v332 = vmax.f32 %v268, 0.0
    %v333 = vmax.f32 %v269, 0.0
    %v334 = vmax.f32 %v270, 0.0
    %v335 = vmax.f32 %v271, 0.0
    %v336 = vmax.f32 %v272, 0.0
    %v337 = vmax.f32 %v273, 0.0
    %v338 = vmax.f32 %v274, 0.0
    %v339 = vmax.f32 %v275, 0.0
    %v340 = vmax.f32 %v276, 0.0
    %v341 = vmax.f32 %v277, 0.0
    %v342 = vmax.f32 %v278, 0.0
    %v343 = vmax.f32 %v279, 0.0
    %v344 = vmax.f32 %v280, 0.0
    %v345 = vmax.f32 %v281, 0.0
    %v346 = vmax.f32 %v282, 0.0
    %v347 = vmax.f32 %v283, 0.0
    %v348 = vmax.f32 %v284, 0.0
    %v413 = vrot.slane %v285, 7
    %v414 = vrot.slane %v286, 7
    %v415 = vrot.slane %v287, 7
    %v416 = vrot.slane %v288, 7
    %v417 = vrot.slane %v289, 7
    %v418 = vrot.slane %v290, 7
    %v419 = vrot.slane %v291, 7
    %v420 = vrot.slane %v292, 7
    %v421 = vrot.slane %v293, 7
    %v422 = vrot.slane %v294, 7
    %v423 = vrot.slane %v295, 7
    %v424 = vrot.slane %v296, 7
    %v425 = vrot.slane %v297, 7
    %v426 = vrot.slane %v298, 7
    %v427 = vrot.slane %v299, 7
    %v428 = vrot.slane %v300, 7
    %v429 = vrot.slane %v301, 7
    %v430 = vrot.slane %v302, 7
    %v431 = vrot.slane %v303, 7
    %v432 = vrot.slane %v304, 7
    %v433 = vrot.slane %v305, 7
    %v434 = vrot.slane %v306, 7
    %v435 = vrot.slane %v307, 7
    %v436 = vrot.slane %v308, 7
    %v437 = vrot.slane %v309, 7
    %v438 = vrot.slane %v310, 7
    %v439 = vrot.slane %v311, 7
    %v440 = vrot.slane %v312, 7
    %v441 = vrot.slane %v313, 7
    %v442 = vrot.slane %v314, 7
    %v443 = vrot.slane %v315, 7
    %v444 = vrot.slane %v316, 7
    %v445 = vrot.slane %v317, 7
    %v446 = vrot.slane %v318, 7
    %v447 = vrot.slane %v319, 7
    %v448 = vrot.slane %v320, 7
    %v449 = vrot.slane %v321, 7
    %v450 = vrot.slane %v322, 7
    %v451 = vrot.slane %v323, 7
    %v452 = vrot.slane %v324, 7
    %v453 = vrot.slane %v325, 7
    %v454 = vrot.slane %v326, 7
    %v455 = vrot.slane %v327, 7
    %v456 = vrot.slane %v328, 7
    %v457 = vrot.slane %v329, 7
    %v458 = vrot.slane %v330, 7
    %v459 = vrot.slane %v331, 7
    %v460 = vrot.slane %v332, 7
    %v461 = vrot.slane %v333, 7
    %v462 = vrot.slane %v334, 7
    %v463 = vrot.slane %v335, 7
    %v464 = vrot.slane %v336, 7
    %v465 = vrot.slane %v337, 7
    %v466 = vrot.slane %v338, 7
    %v467 = vrot.slane %v339, 7
    %v468 = vrot.slane %v340, 7
    %v469 = vrot.slane %v341, 7
    %v470 = vrot.slane %v342, 7
    %v471 = vrot.slane %v343, 7
    %v472 = vrot.slane %v344, 7
    %v473 = vrot.slane %v345, 7
    %v474 = vrot.slane %v346, 7
    %v475 = vrot.slane %v347, 7
    %v476 = vrot.slane %v348, 7
    %477 = vrot.lane.b32.xlu0 %v413, 112
    %v478 = vpop.permute.xlu0 %477
    %479 = vrot.lane.b32.xlu0 %v414, 112
    %v480 = vpop.permute.xlu0 %479
    %481 = vrot.lane.b32.xlu0 %v415, 112
    %v482 = vpop.permute.xlu0 %481
    %483 = vrot.lane.b32.xlu0 %v416, 112
    %v484 = vpop.permute.xlu0 %483
    %485 = vrot.lane.b32.xlu0 %v417, 112
    %v486 = vpop.permute.xlu0 %485
    %487 = vrot.lane.b32.xlu0 %v418, 112
    %v488 = vpop.permute.xlu0 %487
    %489 = vrot.lane.b32.xlu0 %v419, 112
    %v490 = vpop.permute.xlu0 %489
    %491 = vrot.lane.b32.xlu0 %v420, 112
    %v492 = vpop.permute.xlu0 %491
    %493 = vrot.lane.b32.xlu0 %v421, 112
    %v494 = vpop.permute.xlu0 %493
    %495 = vrot.lane.b32.xlu0 %v422, 112
    %v496 = vpop.permute.xlu0 %495
    %497 = vrot.lane.b32.xlu0 %v423, 112
    %v498 = vpop.permute.xlu0 %497
    %499 = vrot.lane.b32.xlu0 %v424, 112
    %v500 = vpop.permute.xlu0 %499
    %501 = vrot.lane.b32.xlu0 %v425, 112
    %v502 = vpop.permute.xlu0 %501
    %503 = vrot.lane.b32.xlu0 %v426, 112
    %v504 = vpop.permute.xlu0 %503
    %505 = vrot.lane.b32.xlu0 %v427, 112
    %v506 = vpop.permute.xlu0 %505
    %507 = vrot.lane.b32.xlu0 %v428, 112
    %v508 = vpop.permute.xlu0 %507
    %509 = vrot.lane.b32.xlu0 %v429, 112
    %v510 = vpop.permute.xlu0 %509
    %511 = vrot.lane.b32.xlu0 %v430, 112
    %v512 = vpop.permute.xlu0 %511
    %513 = vrot.lane.b32.xlu0 %v431, 112
    %v514 = vpop.permute.xlu0 %513
    %515 = vrot.lane.b32.xlu0 %v432, 112
    %v516 = vpop.permute.xlu0 %515
    %517 = vrot.lane.b32.xlu0 %v433, 112
    %v518 = vpop.permute.xlu0 %517
    %519 = vrot.lane.b32.xlu0 %v434, 112
    %v520 = vpop.permute.xlu0 %519
    %521 = vrot.lane.b32.xlu0 %v435, 112
    %v522 = vpop.permute.xlu0 %521
    %523 = vrot.lane.b32.xlu0 %v436, 112
    %v524 = vpop.permute.xlu0 %523
    %525 = vrot.lane.b32.xlu0 %v437, 112
    %v526 = vpop.permute.xlu0 %525
    %527 = vrot.lane.b32.xlu0 %v438, 112
    %v528 = vpop.permute.xlu0 %527
    %529 = vrot.lane.b32.xlu0 %v439, 112
    %v530 = vpop.permute.xlu0 %529
    %531 = vrot.lane.b32.xlu0 %v440, 112
    %v532 = vpop.permute.xlu0 %531
    %533 = vrot.lane.b32.xlu0 %v441, 112
    %v534 = vpop.permute.xlu0 %533
    %535 = vrot.lane.b32.xlu0 %v442, 112
    %v536 = vpop.permute.xlu0 %535
    %537 = vrot.lane.b32.xlu0 %v443, 112
    %v538 = vpop.permute.xlu0 %537
    %539 = vrot.lane.b32.xlu0 %v444, 112
    %v540 = vpop.permute.xlu0 %539
    %541 = vrot.lane.b32.xlu0 %v445, 112
    %v542 = vpop.permute.xlu0 %541
    %543 = vrot.lane.b32.xlu0 %v446, 112
    %v544 = vpop.permute.xlu0 %543
    %545 = vrot.lane.b32.xlu0 %v447, 112
    %v546 = vpop.permute.xlu0 %545
    %547 = vrot.lane.b32.xlu0 %v448, 112
    %v548 = vpop.permute.xlu0 %547
    %549 = vrot.lane.b32.xlu0 %v449, 112
    %v550 = vpop.permute.xlu0 %549
    %551 = vrot.lane.b32.xlu0 %v450, 112
    %v552 = vpop.permute.xlu0 %551
    %553 = vrot.lane.b32.xlu0 %v451, 112
    %v554 = vpop.permute.xlu0 %553
    %555 = vrot.lane.b32.xlu0 %v452, 112
    %v556 = vpop.permute.xlu0 %555
    %557 = vrot.lane.b32.xlu0 %v453, 112
    %v558 = vpop.permute.xlu0 %557
    %559 = vrot.lane.b32.xlu0 %v454, 112
    %v560 = vpop.permute.xlu0 %559
    %561 = vrot.lane.b32.xlu0 %v455, 112
    %v562 = vpop.permute.xlu0 %561
    %563 = vrot.lane.b32.xlu0 %v456, 112
    %v564 = vpop.permute.xlu0 %563
    %565 = vrot.lane.b32.xlu0 %v457, 112
    %v566 = vpop.permute.xlu0 %565
    %567 = vrot.lane.b32.xlu0 %v458, 112
    %v568 = vpop.permute.xlu0 %567
    %569 = vrot.lane.b32.xlu0 %v459, 112
    %v570 = vpop.permute.xlu0 %569
    %571 = vrot.lane.b32.xlu0 %v460, 112
    %v572 = vpop.permute.xlu0 %571
    %573 = vrot.lane.b32.xlu0 %v461, 112
    %v574 = vpop.permute.xlu0 %573
    %575 = vrot.lane.b32.xlu0 %v462, 112
    %v576 = vpop.permute.xlu0 %575
    %577 = vrot.lane.b32.xlu0 %v463, 112
    %v578 = vpop.permute.xlu0 %577
    %579 = vrot.lane.b32.xlu0 %v464, 112
    %v580 = vpop.permute.xlu0 %579
    %581 = vrot.lane.b32.xlu0 %v465, 112
    %v582 = vpop.permute.xlu0 %581
    %583 = vrot.lane.b32.xlu0 %v466, 112
    %v584 = vpop.permute.xlu0 %583
    %585 = vrot.lane.b32.xlu0 %v467, 112
    %v586 = vpop.permute.xlu0 %585
    %587 = vrot.lane.b32.xlu0 %v468, 112
    %v588 = vpop.permute.xlu0 %587
    %589 = vrot.lane.b32.xlu0 %v469, 112
    %v590 = vpop.permute.xlu0 %589
    %591 = vrot.lane.b32.xlu0 %v470, 112
    %v592 = vpop.permute.xlu0 %591
    %593 = vrot.lane.b32.xlu0 %v471, 112
    %v594 = vpop.permute.xlu0 %593
    %595 = vrot.lane.b32.xlu0 %v472, 112
    %v596 = vpop.permute.xlu0 %595
    %597 = vrot.lane.b32.xlu0 %v473, 112
    %v598 = vpop.permute.xlu0 %597
    %599 = vrot.lane.b32.xlu0 %v474, 112
    %v600 = vpop.permute.xlu0 %599
    %601 = vrot.lane.b32.xlu0 %v475, 112
    %v602 = vpop.permute.xlu0 %601
    %603 = vrot.lane.b32.xlu0 %v476, 112
    %v604 = vpop.permute.xlu0 %603
    %vm669 = vcmask 1040384
    %v670 = vsel %vm669, 0.0, %v478
    %v671 = vsel %vm669, 0.0, %v480
    %v672 = vsel %vm669, 0.0, %v482
    %v673 = vsel %vm669, 0.0, %v484
    %v674 = vsel %vm669, 0.0, %v486
    %v675 = vsel %vm669, 0.0, %v488
    %v676 = vsel %vm669, 0.0, %v490
    %v677 = vsel %vm669, 0.0, %v492
    %v678 = vsel %vm669, 0.0, %v494
    %v679 = vsel %vm669, 0.0, %v496
    %v680 = vsel %vm669, 0.0, %v498
    %v681 = vsel %vm669, 0.0, %v500
    %v682 = vsel %vm669, 0.0, %v502
    %v683 = vsel %vm669, 0.0, %v504
    %v684 = vsel %vm669, 0.0, %v506
    %v685 = vsel %vm669, 0.0, %v508
    %v686 = vsel %vm669, 0.0, %v510
    %v687 = vsel %vm669, 0.0, %v512
    %v688 = vsel %vm669, 0.0, %v514
    %v689 = vsel %vm669, 0.0, %v516
    %v690 = vsel %vm669, 0.0, %v518
    %v691 = vsel %vm669, 0.0, %v520
    %v692 = vsel %vm669, 0.0, %v522
    %v693 = vsel %vm669, 0.0, %v524
    %v694 = vsel %vm669, 0.0, %v526
    %v695 = vsel %vm669, 0.0, %v528
    %v696 = vsel %vm669, 0.0, %v530
    %v697 = vsel %vm669, 0.0, %v532
    %v698 = vsel %vm669, 0.0, %v534
    %v699 = vsel %vm669, 0.0, %v536
    %v700 = vsel %vm669, 0.0, %v538
    %v701 = vsel %vm669, 0.0, %v540
    %v702 = vsel %vm669, 0.0, %v542
    %v703 = vsel %vm669, 0.0, %v544
    %v704 = vsel %vm669, 0.0, %v546
    %v705 = vsel %vm669, 0.0, %v548
    %v706 = vsel %vm669, 0.0, %v550
    %v707 = vsel %vm669, 0.0, %v552
    %v708 = vsel %vm669, 0.0, %v554
    %v709 = vsel %vm669, 0.0, %v556
    %v710 = vsel %vm669, 0.0, %v558
    %v711 = vsel %vm669, 0.0, %v560
    %v712 = vsel %vm669, 0.0, %v562
    %v713 = vsel %vm669, 0.0, %v564
    %v714 = vsel %vm669, 0.0, %v566
    %v715 = vsel %vm669, 0.0, %v568
    %v716 = vsel %vm669, 0.0, %v570
    %v717 = vsel %vm669, 0.0, %v572
    %v718 = vsel %vm669, 0.0, %v574
    %v719 = vsel %vm669, 0.0, %v576
    %v720 = vsel %vm669, 0.0, %v578
    %v721 = vsel %vm669, 0.0, %v580
    %v722 = vsel %vm669, 0.0, %v582
    %v723 = vsel %vm669, 0.0, %v584
    %v724 = vsel %vm669, 0.0, %v586
    %v725 = vsel %vm669, 0.0, %v588
    %v726 = vsel %vm669, 0.0, %v590
    %v727 = vsel %vm669, 0.0, %v592
    %v728 = vsel %vm669, 0.0, %v594
    %v729 = vsel %vm669, 0.0, %v596
    %v730 = vsel %vm669, 0.0, %v598
    %v731 = vsel %vm669, 0.0, %v600
    %v732 = vsel %vm669, 0.0, %v602
    %v733 = vsel %vm669, 0.0, %v604
    %734 = vrot.lane.b32.xlu0 %v285, 112
    %v735 = vpop.permute.xlu0 %734
    %736 = vrot.lane.b32.xlu0 %v286, 112
    %v737 = vpop.permute.xlu0 %736
    %738 = vrot.lane.b32.xlu0 %v287, 112
    %v739 = vpop.permute.xlu0 %738
    %740 = vrot.lane.b32.xlu0 %v288, 112
    %v741 = vpop.permute.xlu0 %740
    %742 = vrot.lane.b32.xlu0 %v289, 112
    %v743 = vpop.permute.xlu0 %742
    %744 = vrot.lane.b32.xlu0 %v290, 112
    %v745 = vpop.permute.xlu0 %744
    %746 = vrot.lane.b32.xlu0 %v291, 112
    %v747 = vpop.permute.xlu0 %746
    %748 = vrot.lane.b32.xlu0 %v292, 112
    %v749 = vpop.permute.xlu0 %748
    %750 = vrot.lane.b32.xlu0 %v293, 112
    %v751 = vpop.permute.xlu0 %750
    %752 = vrot.lane.b32.xlu0 %v294, 112
    %v753 = vpop.permute.xlu0 %752
    %754 = vrot.lane.b32.xlu0 %v295, 112
    %v755 = vpop.permute.xlu0 %754
    %756 = vrot.lane.b32.xlu0 %v296, 112
    %v757 = vpop.permute.xlu0 %756
    %758 = vrot.lane.b32.xlu0 %v297, 112
    %v759 = vpop.permute.xlu0 %758
    %760 = vrot.lane.b32.xlu0 %v298, 112
    %v761 = vpop.permute.xlu0 %760
    %762 = vrot.lane.b32.xlu0 %v299, 112
    %v763 = vpop.permute.xlu0 %762
    %764 = vrot.lane.b32.xlu0 %v300, 112
    %v765 = vpop.permute.xlu0 %764
    %766 = vrot.lane.b32.xlu0 %v301, 112
    %v767 = vpop.permute.xlu0 %766
    %768 = vrot.lane.b32.xlu0 %v302, 112
    %v769 = vpop.permute.xlu0 %768
    %770 = vrot.lane.b32.xlu0 %v303, 112
    %v771 = vpop.permute.xlu0 %770
    %772 = vrot.lane.b32.xlu0 %v304, 112
    %v773 = vpop.permute.xlu0 %772
    %774 = vrot.lane.b32.xlu0 %v305, 112
    %v775 = vpop.permute.xlu0 %774
    %776 = vrot.lane.b32.xlu0 %v306, 112
    %v777 = vpop.permute.xlu0 %776
    %778 = vrot.lane.b32.xlu0 %v307, 112
    %v779 = vpop.permute.xlu0 %778
    %780 = vrot.lane.b32.xlu0 %v308, 112
    %v781 = vpop.permute.xlu0 %780
    %782 = vrot.lane.b32.xlu0 %v309, 112
    %v783 = vpop.permute.xlu0 %782
    %784 = vrot.lane.b32.xlu0 %v310, 112
    %v785 = vpop.permute.xlu0 %784
    %786 = vrot.lane.b32.xlu0 %v311, 112
    %v787 = vpop.permute.xlu0 %786
    %788 = vrot.lane.b32.xlu0 %v312, 112
    %v789 = vpop.permute.xlu0 %788
    %790 = vrot.lane.b32.xlu0 %v313, 112
    %v791 = vpop.permute.xlu0 %790
    %792 = vrot.lane.b32.xlu0 %v314, 112
    %v793 = vpop.permute.xlu0 %792
    %794 = vrot.lane.b32.xlu0 %v315, 112
    %v795 = vpop.permute.xlu0 %794
    %796 = vrot.lane.b32.xlu0 %v316, 112
    %v797 = vpop.permute.xlu0 %796
    %798 = vrot.lane.b32.xlu0 %v317, 112
    %v799 = vpop.permute.xlu0 %798
    %800 = vrot.lane.b32.xlu0 %v318, 112
    %v801 = vpop.permute.xlu0 %800
    %802 = vrot.lane.b32.xlu0 %v319, 112
    %v803 = vpop.permute.xlu0 %802
    %804 = vrot.lane.b32.xlu0 %v320, 112
    %v805 = vpop.permute.xlu0 %804
    %806 = vrot.lane.b32.xlu0 %v321, 112
    %v807 = vpop.permute.xlu0 %806
    %808 = vrot.lane.b32.xlu0 %v322, 112
    %v809 = vpop.permute.xlu0 %808
    %810 = vrot.lane.b32.xlu0 %v323, 112
    %v811 = vpop.permute.xlu0 %810
    %812 = vrot.lane.b32.xlu0 %v324, 112
    %v813 = vpop.permute.xlu0 %812
    %814 = vrot.lane.b32.xlu0 %v325, 112
    %v815 = vpop.permute.xlu0 %814
    %816 = vrot.lane.b32.xlu0 %v326, 112
    %v817 = vpop.permute.xlu0 %816
    %818 = vrot.lane.b32.xlu0 %v327, 112
    %v819 = vpop.permute.xlu0 %818
    %820 = vrot.lane.b32.xlu0 %v328, 112
    %v821 = vpop.permute.xlu0 %820
    %822 = vrot.lane.b32.xlu0 %v329, 112
    %v823 = vpop.permute.xlu0 %822
    %824 = vrot.lane.b32.xlu0 %v330, 112
    %v825 = vpop.permute.xlu0 %824
    %826 = vrot.lane.b32.xlu0 %v331, 112
    %v827 = vpop.permute.xlu0 %826
    %828 = vrot.lane.b32.xlu0 %v332, 112
    %v829 = vpop.permute.xlu0 %828
    %830 = vrot.lane.b32.xlu0 %v333, 112
    %v831 = vpop.permute.xlu0 %830
    %832 = vrot.lane.b32.xlu0 %v334, 112
    %v833 = vpop.permute.xlu0 %832
    %834 = vrot.lane.b32.xlu0 %v335, 112
    %v835 = vpop.permute.xlu0 %834
    %836 = vrot.lane.b32.xlu0 %v336, 112
    %v837 = vpop.permute.xlu0 %836
    %838 = vrot.lane.b32.xlu0 %v337, 112
    %v839 = vpop.permute.xlu0 %838
    %840 = vrot.lane.b32.xlu0 %v338, 112
    %v841 = vpop.permute.xlu0 %840
    %842 = vrot.lane.b32.xlu0 %v339, 112
    %v843 = vpop.permute.xlu0 %842
    %844 = vrot.lane.b32.xlu0 %v340, 112
    %v845 = vpop.permute.xlu0 %844
    %846 = vrot.lane.b32.xlu0 %v341, 112
    %v847 = vpop.permute.xlu0 %846
    %848 = vrot.lane.b32.xlu0 %v342, 112
    %v849 = vpop.permute.xlu0 %848
    %850 = vrot.lane.b32.xlu0 %v343, 112
    %v851 = vpop.permute.xlu0 %850
    %852 = vrot.lane.b32.xlu0 %v344, 112
    %v853 = vpop.permute.xlu0 %852
    %854 = vrot.lane.b32.xlu0 %v345, 112
    %v855 = vpop.permute.xlu0 %854
    %856 = vrot.lane.b32.xlu0 %v346, 112
    %v857 = vpop.permute.xlu0 %856
    %858 = vrot.lane.b32.xlu0 %v347, 112
    %v859 = vpop.permute.xlu0 %858
    %860 = vrot.lane.b32.xlu0 %v348, 112
    %v861 = vpop.permute.xlu0 %860
    %v926 = vmax.f32 %v285, %v735
    %v927 = vmax.f32 %v286, %v737
    %v928 = vmax.f32 %v287, %v739
    %v929 = vmax.f32 %v288, %v741
    %v930 = vmax.f32 %v289, %v743
    %v931 = vmax.f32 %v290, %v745
    %v932 = vmax.f32 %v291, %v747
    %v933 = vmax.f32 %v292, %v749
    %v934 = vmax.f32 %v293, %v751
    %v935 = vmax.f32 %v294, %v753
    %v936 = vmax.f32 %v295, %v755
    %v937 = vmax.f32 %v296, %v757
    %v938 = vmax.f32 %v297, %v759
    %v939 = vmax.f32 %v298, %v761
    %v940 = vmax.f32 %v299, %v763
    %v941 = vmax.f32 %v300, %v765
    %v942 = vmax.f32 %v301, %v767
    %v943 = vmax.f32 %v302, %v769
    %v944 = vmax.f32 %v303, %v771
    %v945 = vmax.f32 %v304, %v773
    %v946 = vmax.f32 %v305, %v775
    %v947 = vmax.f32 %v306, %v777
    %v948 = vmax.f32 %v307, %v779
    %v949 = vmax.f32 %v308, %v781
    %v950 = vmax.f32 %v309, %v783
    %v951 = vmax.f32 %v310, %v785
    %v952 = vmax.f32 %v311, %v787
    %v953 = vmax.f32 %v312, %v789
    %v954 = vmax.f32 %v313, %v791
    %v955 = vmax.f32 %v314, %v793
    %v956 = vmax.f32 %v315, %v795
    %v957 = vmax.f32 %v316, %v797
    %v958 = vmax.f32 %v317, %v799
    %v959 = vmax.f32 %v318, %v801
    %v960 = vmax.f32 %v319, %v803
    %v961 = vmax.f32 %v320, %v805
    %v962 = vmax.f32 %v321, %v807
    %v963 = vmax.f32 %v322, %v809
    %v964 = vmax.f32 %v323, %v811
    %v965 = vmax.f32 %v324, %v813
    %v966 = vmax.f32 %v325, %v815
    %v967 = vmax.f32 %v326, %v817
    %v968 = vmax.f32 %v327, %v819
    %v969 = vmax.f32 %v328, %v821
    %v970 = vmax.f32 %v329, %v823
    %v971 = vmax.f32 %v330, %v825
    %v972 = vmax.f32 %v331, %v827
    %v973 = vmax.f32 %v332, %v829
    %v974 = vmax.f32 %v333, %v831
    %v975 = vmax.f32 %v334, %v833
    %v976 = vmax.f32 %v335, %v835
    %v977 = vmax.f32 %v336, %v837
    %v978 = vmax.f32 %v337, %v839
    %v979 = vmax.f32 %v338, %v841
    %v980 = vmax.f32 %v339, %v843
    %v981 = vmax.f32 %v340, %v845
    %v982 = vmax.f32 %v341, %v847
    %v983 = vmax.f32 %v342, %v849
    %v984 = vmax.f32 %v343, %v851
    %v985 = vmax.f32 %v344, %v853
    %v986 = vmax.f32 %v345, %v855
    %v987 = vmax.f32 %v346, %v857
    %v988 = vmax.f32 %v347, %v859
    %v989 = vmax.f32 %v348, %v861
    %v990 = vmax.f32 %v926, %v670
    %v991 = vmax.f32 %v927, %v671
    %v992 = vmax.f32 %v928, %v672
    %v993 = vmax.f32 %v929, %v673
    %v994 = vmax.f32 %v930, %v674
    %v995 = vmax.f32 %v931, %v675
    %v996 = vmax.f32 %v932, %v676
    %v997 = vmax.f32 %v933, %v677
    %v998 = vmax.f32 %v934, %v678
    %v999 = vmax.f32 %v935, %v679
    %v1000 = vmax.f32 %v936, %v680
    %v1001 = vmax.f32 %v937, %v681
    %v1002 = vmax.f32 %v938, %v682
    %v1003 = vmax.f32 %v939, %v683
    %v1004 = vmax.f32 %v940, %v684
    %v1005 = vmax.f32 %v941, %v685
    %v1006 = vmax.f32 %v942, %v686
    %v1007 = vmax.f32 %v943, %v687
    %v1008 = vmax.f32 %v944, %v688
    %v1009 = vmax.f32 %v945, %v689
    %v1010 = vmax.f32 %v946, %v690
    %v1011 = vmax.f32 %v947, %v691
    %v1012 = vmax.f32 %v948, %v692
    %v1013 = vmax.f32 %v949, %v693
    %v1014 = vmax.f32 %v950, %v694
    %v1015 = vmax.f32 %v951, %v695
    %v1016 = vmax.f32 %v952, %v696
    %v1017 = vmax.f32 %v953, %v697
    %v1018 = vmax.f32 %v954, %v698
    %v1019 = vmax.f32 %v955, %v699
    %v1020 = vmax.f32 %v956, %v700
    %v1021 = vmax.f32 %v957, %v701
    %v1022 = vmax.f32 %v958, %v702
    %v1023 = vmax.f32 %v959, %v703
    %v1024 = vmax.f32 %v960, %v704
    %v1025 = vmax.f32 %v961, %v705
    %v1026 = vmax.f32 %v962, %v706
    %v1027 = vmax.f32 %v963, %v707
    %v1028 = vmax.f32 %v964, %v708
    %v1029 = vmax.f32 %v965, %v709
    %v1030 = vmax.f32 %v966, %v710
    %v1031 = vmax.f32 %v967, %v711
    %v1032 = vmax.f32 %v968, %v712
    %v1033 = vmax.f32 %v969, %v713
    %v1034 = vmax.f32 %v970, %v714
    %v1035 = vmax.f32 %v971, %v715
    %v1036 = vmax.f32 %v972, %v716
    %v1037 = vmax.f32 %v973, %v717
    %v1038 = vmax.f32 %v974, %v718
    %v1039 = vmax.f32 %v975, %v719
    %v1040 = vmax.f32 %v976, %v720
    %v1041 = vmax.f32 %v977, %v721
    %v1042 = vmax.f32 %v978, %v722
    %v1043 = vmax.f32 %v979, %v723
    %v1044 = vmax.f32 %v980, %v724
    %v1045 = vmax.f32 %v981, %v725
    %v1046 = vmax.f32 %v982, %v726
    %v1047 = vmax.f32 %v983, %v727
    %v1048 = vmax.f32 %v984, %v728
    %v1049 = vmax.f32 %v985, %v729
    %v1050 = vmax.f32 %v986, %v730
    %v1051 = vmax.f32 %v987, %v731
    %v1052 = vmax.f32 %v988, %v732
    %v1053 = vmax.f32 %v989, %v733
    %v1054 = vmax.f32 %v990, %v991
    %v1055 = vmax.f32 %v992, %v993
    %v1056 = vmax.f32 %v994, %v995
    %v1057 = vmax.f32 %v996, %v997
    %v1058 = vmax.f32 %v998, %v999
    %v1059 = vmax.f32 %v1000, %v1001
    %v1060 = vmax.f32 %v1002, %v1003
    %v1061 = vmax.f32 %v1004, %v1005
    %v1062 = vmax.f32 %v1006, %v1007
    %v1063 = vmax.f32 %v1008, %v1009
    %v1064 = vmax.f32 %v1010, %v1011
    %v1065 = vmax.f32 %v1012, %v1013
    %v1066 = vmax.f32 %v1014, %v1015
    %v1067 = vmax.f32 %v1016, %v1017
    %v1068 = vmax.f32 %v1018, %v1019
    %v1069 = vmax.f32 %v1020, %v1021
    %v1070 = vmax.f32 %v1022, %v1023
    %v1071 = vmax.f32 %v1024, %v1025
    %v1072 = vmax.f32 %v1026, %v1027
    %v1073 = vmax.f32 %v1028, %v1029
    %v1074 = vmax.f32 %v1030, %v1031
    %v1075 = vmax.f32 %v1032, %v1033
    %v1076 = vmax.f32 %v1034, %v1035
    %v1077 = vmax.f32 %v1036, %v1037
    %v1078 = vmax.f32 %v1038, %v1039
    %v1079 = vmax.f32 %v1040, %v1041
    %v1080 = vmax.f32 %v1042, %v1043
    %v1081 = vmax.f32 %v1044, %v1045
    %v1082 = vmax.f32 %v1046, %v1047
    %v1083 = vmax.f32 %v1048, %v1049
    %v1084 = vmax.f32 %v1050, %v1051
    %v1085 = vmax.f32 %v1052, %v1053
    %v1086 = vmax.f32 %v1054, 0.0
    %v1087 = vmax.f32 %v1055, %v991
    %v1088 = vmax.f32 %v1056, %v993
    %v1089 = vmax.f32 %v1057, %v995
    %v1090 = vmax.f32 %v1058, 0.0
    %v1091 = vmax.f32 %v1059, %v999
    %v1092 = vmax.f32 %v1060, %v1001
    %v1093 = vmax.f32 %v1061, %v1003
    %v1094 = vmax.f32 %v1062, 0.0
    %v1095 = vmax.f32 %v1063, %v1007
    %v1096 = vmax.f32 %v1064, %v1009
    %v1097 = vmax.f32 %v1065, %v1011
    %v1098 = vmax.f32 %v1066, 0.0
    %v1099 = vmax.f32 %v1067, %v1015
    %v1100 = vmax.f32 %v1068, %v1017
    %v1101 = vmax.f32 %v1069, %v1019
    %v1102 = vmax.f32 %v1070, 0.0
    %v1103 = vmax.f32 %v1071, %v1023
    %v1104 = vmax.f32 %v1072, %v1025
    %v1105 = vmax.f32 %v1073, %v1027
    %v1106 = vmax.f32 %v1074, 0.0
    %v1107 = vmax.f32 %v1075, %v1031
    %v1108 = vmax.f32 %v1076, %v1033
    %v1109 = vmax.f32 %v1077, %v1035
    %v1110 = vmax.f32 %v1078, 0.0
    %v1111 = vmax.f32 %v1079, %v1039
    %v1112 = vmax.f32 %v1080, %v1041
    %v1113 = vmax.f32 %v1081, %v1043
    %v1114 = vmax.f32 %v1082, 0.0
    %v1115 = vmax.f32 %v1083, %v1047
    %v1116 = vmax.f32 %v1084, %v1049
    %v1117 = vmax.f32 %v1085, %v1051
    %vm1118 = vcmask 125952
    %1119 = vst.msk [vmem:[#allocation2] sm:$0xf] %vm1118, %v1086
    %1120 = vst.msk [vmem:[#allocation2 + $0x4] sm:$0xf] %vm1118, %v1087
    %1121 = vst.msk [vmem:[#allocation2 + $0x8] sm:$0xf] %vm1118, %v1088
    %1122 = vst.msk [vmem:[#allocation2 + $0xc] sm:$0xf] %vm1118, %v1089
    %1123 = vst.msk [vmem:[#allocation2 + $0x10] sm:$0xf] %vm1118, %v1090
    %1124 = vst.msk [vmem:[#allocation2 + $0x14] sm:$0xf] %vm1118, %v1091
    %1125 = vst.msk [vmem:[#allocation2 + $0x18] sm:$0xf] %vm1118, %v1092
    %1126 = vst.msk [vmem:[#allocation2 + $0x1c] sm:$0xf] %vm1118, %v1093
    %1127 = vst.msk [vmem:[#allocation2 + $0x20] sm:$0xf] %vm1118, %v1094
    %1128 = vst.msk [vmem:[#allocation2 + $0x24] sm:$0xf] %vm1118, %v1095
    %1129 = vst.msk [vmem:[#allocation2 + $0x28] sm:$0xf] %vm1118, %v1096
    %1130 = vst.msk [vmem:[#allocation2 + $0x2c] sm:$0xf] %vm1118, %v1097
    %1131 = vst.msk [vmem:[#allocation2 + $0x30] sm:$0xf] %vm1118, %v1098
    %1132 = vst.msk [vmem:[#allocation2 + $0x34] sm:$0xf] %vm1118, %v1099
    %1133 = vst.msk [vmem:[#allocation2 + $0x38] sm:$0xf] %vm1118, %v1100
    %1134 = vst.msk [vmem:[#allocation2 + $0x3c] sm:$0xf] %vm1118, %v1101
    %1135 = vst.msk [vmem:[#allocation2 + $0x40] sm:$0xf] %vm1118, %v1102
    %1136 = vst.msk [vmem:[#allocation2 + $0x44] sm:$0xf] %vm1118, %v1103
    %1137 = vst.msk [vmem:[#allocation2 + $0x48] sm:$0xf] %vm1118, %v1104
    %1138 = vst.msk [vmem:[#allocation2 + $0x4c] sm:$0xf] %vm1118, %v1105
    %1139 = vst.msk [vmem:[#allocation2 + $0x50] sm:$0xf] %vm1118, %v1106
    %1140 = vst.msk [vmem:[#allocation2 + $0x54] sm:$0xf] %vm1118, %v1107
    %1141 = vst.msk [vmem:[#allocation2 + $0x58] sm:$0xf] %vm1118, %v1108
    %1142 = vst.msk [vmem:[#allocation2 + $0x5c] sm:$0xf] %vm1118, %v1109
    %1143 = vst.msk [vmem:[#allocation2 + $0x60] sm:$0xf] %vm1118, %v1110
    %1144 = vst.msk [vmem:[#allocation2 + $0x64] sm:$0xf] %vm1118, %v1111
    %1145 = vst.msk [vmem:[#allocation2 + $0x68] sm:$0xf] %vm1118, %v1112
    %1146 = vst.msk [vmem:[#allocation2 + $0x6c] sm:$0xf] %vm1118, %v1113
    %1147 = vst.msk [vmem:[#allocation2 + $0x70] sm:$0xf] %vm1118, %v1114
    %1148 = vst.msk [vmem:[#allocation2 + $0x74] sm:$0xf] %vm1118, %v1115
    %1149 = vst.msk [vmem:[#allocation2 + $0x78] sm:$0xf] %vm1118, %v1116
    %1150 = vst.msk [vmem:[#allocation2 + $0x7c] sm:$0xf] %vm1118, %v1117
    // Predicated region
    $region14: #{stem_forward.3} parent=1 // pred_check
      _
    $region15: #{stem_forward.3} parent=1 // pred_check_branch
      %1152 = sbr.rel (0) target = $region17
    $region16: #{stem_forward.3} parent=1 // pred_region
      %s1154 = ssub.s32 2048, 2048
      %1155 = vsyncadd [#allocation3], %s1154
      %s1156 = sshll.u32 [#allocation2], 4
      %s1157 = int_to_ptr.vmem [resolvable:$true] %s1156
      %1162 = dma.vmem_to_hbm [thread:$0]  %s1157, 2048, %s3, [#allocation3], 64, 64, 4
    $region17: #{stem_forward.3} parent=1 // pred_fallthru
      _
    // Predicated region
    $region18: #{stem_forward.3} parent=1 // pred_check
      _
    $region19: #{stem_forward.3} parent=1 // pred_check_branch
      %1164 = sbr.rel (0) target = $region21
    $region20: #{stem_forward.3} parent=1 // pred_region
      %1165 = dma.done [#allocation3], 2048
    $region21: #{stem_forward.3} parent=1 // pred_fallthru
      _
    %1166 = vsyncpa [#allocation3], 1

// kernel: stem_forward.2
$region0: #{stem_forward.2}
  #allocation0 [shape = 'u32[]', space=smem, size = 0x4, offset = 0x4, fixed_abs, tag = 'smem constant byte address 0x4 - core index']
  #allocation1 [shape = 'u32[144,128]{1,0:T(1,128)}', space=vmem, size = 0x12000, scoped, tag = 'internal scratch']
  #allocation2 [shape = 'f32[64,16]{1,0:T(8,128)}', space=vmem, size = 0x8000, scoped, tag = 'scratch operand']
  %s0 = inlined_call_operand.vmem [shape: bf16[2,4,11,11,12], index: 0, kind: input, shape index: {}]
  %s1 = inlined_call_operand.vmem [shape: bf16[1,49,3,16], index: 1, kind: input, shape index: {}]
  %s2 = inlined_call_operand.vmem [shape: bf16[8,64,16], index: 2, kind: output, shape index: {0}]
  %s3 = inlined_call_operand.vmem [shape: f32[8,1,16], index: 3, kind: output, shape index: {1}]
  %s4 = inlined_call_operand.vmem [shape: f32[8,1,16], index: 4, kind: output, shape index: {2}]
  %5 = xla_tuple %s2, %s3, %s4
  %s6 = sld [smem:[#allocation0]]
  $region65: #{stem_forward.2} parent=0
    _
  %s8 = ssub.s32 1, %s6
  %s9 = scalar_select 0, %s8, %s6
  loop: start=0, step=1, limit=10
  $region2: #{stem_forward.2} parent=0 // loop_pre_header
    _
  $region3: #{stem_forward.2} parent=0 // loop_header
    %s11 = sphi 0, %s15
    %p12 = scmp.ge.s32.totalorder %s11, 10
    %s18 = sphi 0, %s37
    %s19 = sphi 0, %s33
    %s20 = sphi 0, %s29
    %s21 = sphi 0, %s18
    %s22 = sphi 0, %s19
    %s23 = sphi 0, %s20
    %s24 = sphi 0, %s21
    %s25 = sphi 0, %s22
    %s26 = sphi 0, %s23
    %s44 = sphi 0, %s46
    %s47 = sphi 0, %s44
    %s48 = sphi 0, %s47
    %s64 = sphi 0, %s48
    %s70 = sphi 0, %s72
    %s73 = sphi 0, %s70
    %s74 = sphi 0, %s73
    %s90 = sphi 0, %s74
    %s100 = sphi 0, %s102
    %s103 = sphi 0, %s100
    %s104 = sphi 0, %s103
    %s120 = sphi 0, %s104
    %s130 = sphi 0, %s132
    %s133 = sphi 0, %s130
    %s134 = sphi 0, %s133
    %s150 = sphi 0, %s134
    %s160 = sphi 0, %s162
    %s163 = sphi 0, %s160
    %s164 = sphi 0, %s163
    %s180 = sphi 0, %s164
  $region4: #{stem_forward.2} parent=0 // loop_header_branch
    %14 = sbr.rel (%p12) target = $region8
  $region5: #{stem_forward.2} parent=0 // loop_body
    %s16 = ssub.s32 %s11, 1
    %s17 = ssub.s32 %s11, 2
    %s27 = sadd.s32 1, %s20
    %p28 = scmp.ge.s32.totalorder %s27, 1
    %s29 = scalar_select %p28, 0, %s27
    %s30 = sadd.s32 1, %s19
    %s31 = scalar_select %p28, %s30, %s19
    %p32 = scmp.ge.s32.totalorder %s31, 4
    %s33 = scalar_select %p32, 0, %s31
    %s34 = sadd.s32 1, %s18
    %s35 = scalar_select %p32, %s34, %s18
    %p36 = scmp.ge.s32.totalorder %s35, 2
    %s37 = scalar_select %p36, 0, %s35
    %s38 = sadd.s32 %s19, %s20
    %s39 = sadd.s32 %s33, %s29
    %s40 = ssub.s32 %s18, %s37
    %s41 = ssub.s32 %s38, %s39
    %s42 = sor.u32 %s40, %s41
    %p43 = scmp.eq.s32.totalorder %s42, 0
    %s45 = sadd.s32 %s44, 1
    %s46 = scalar_select %p43, %s44, %s45
    %p49 = pneg %p43
    %p50 = scmp.eq.s32.totalorder %s11, 7
    %p51 = por %p49, %p50
    %p52 = scmp.ne.s32.totalorder %s44, %s47
    %p53 = scmp.eq.s32.totalorder %s11, 0
    %p54 = por %p52, %p53
    %p55 = scmp.ne.s32.totalorder %s44, %s47
    %p56 = scmp.eq.s32.totalorder %s16, 7
    %p57 = por %p55, %p56
    %p58 = scmp.ne.s32.totalorder %s47, %s48
    %p59 = scmp.eq.s32.totalorder %s16, 0
    %p60 = por %p58, %p59
    %p61 = scmp.ne.s32.totalorder %s47, %s48
    %p62 = scmp.eq.s32.totalorder %s17, 7
    %p63 = por %p61, %p62
    %p65 = scmp.ne.s32.totalorder %s48, %s64
    %p66 = scmp.eq.s32.totalorder %s17, 0
    %p67 = por %p65, %p66
    %s68 = ssub.s32 %s20, %s29
    %p69 = scmp.eq.s32.totalorder %s68, 0
    %s71 = sadd.s32 %s70, 1
    %s72 = scalar_select %p69, %s70, %s71
    %p75 = pneg %p69
    %p76 = scmp.eq.s32.totalorder %s11, 7
    %p77 = por %p75, %p76
    %p78 = scmp.ne.s32.totalorder %s70, %s73
    %p79 = scmp.eq.s32.totalorder %s11, 0
    %p80 = por %p78, %p79
    %p81 = scmp.ne.s32.totalorder %s70, %s73
    %p82 = scmp.eq.s32.totalorder %s16, 7
    %p83 = por %p81, %p82
    %p84 = scmp.ne.s32.totalorder %s73, %s74
    %p85 = scmp.eq.s32.totalorder %s16, 0
    %p86 = por %p84, %p85
    %p87 = scmp.ne.s32.totalorder %s73, %s74
    %p88 = scmp.eq.s32.totalorder %s17, 7
    %p89 = por %p87, %p88
    %p91 = scmp.ne.s32.totalorder %s74, %s90
    %p92 = scmp.eq.s32.totalorder %s17, 0
    %p93 = por %p91, %p92
    %s94 = smul.u32 %s18, 4
    %s95 = sadd.s32 %s94, %s19
    %s96 = smul.u32 %s37, 4
    %s97 = sadd.s32 %s96, %s33
    %s98 = ssub.s32 %s95, %s97
    %p99 = scmp.eq.s32.totalorder %s98, 0
    %s101 = sadd.s32 %s100, 1
    %s102 = scalar_select %p99, %s100, %s101
    %p105 = pneg %p99
    %p106 = scmp.eq.s32.totalorder %s11, 7
    %p107 = por %p105, %p106
    %p108 = scmp.ne.s32.totalorder %s100, %s103
    %p109 = scmp.eq.s32.totalorder %s11, 0
    %p110 = por %p108, %p109
    %p111 = scmp.ne.s32.totalorder %s100, %s103
    %p112 = scmp.eq.s32.totalorder %s16, 7
    %p113 = por %p111, %p112
    %p114 = scmp.ne.s32.totalorder %s103, %s104
    %p115 = scmp.eq.s32.totalorder %s16, 0
    %p116 = por %p114, %p115
    %p117 = scmp.ne.s32.totalorder %s103, %s104
    %p118 = scmp.eq.s32.totalorder %s17, 7
    %p119 = por %p117, %p118
    %p121 = scmp.ne.s32.totalorder %s104, %s120
    %p122 = scmp.eq.s32.totalorder %s17, 0
    %p123 = por %p121, %p122
    %s124 = smul.u32 %s18, 4
    %s125 = sadd.s32 %s124, %s19
    %s126 = smul.u32 %s37, 4
    %s127 = sadd.s32 %s126, %s33
    %s128 = ssub.s32 %s125, %s127
    %p129 = scmp.eq.s32.totalorder %s128, 0
    %s131 = sadd.s32 %s130, 1
    %s132 = scalar_select %p129, %s130, %s131
    %p135 = pneg %p129
    %p136 = scmp.eq.s32.totalorder %s11, 7
    %p137 = por %p135, %p136
    %p138 = scmp.ne.s32.totalorder %s130, %s133
    %p139 = scmp.eq.s32.totalorder %s11, 0
    %p140 = por %p138, %p139
    %p141 = scmp.ne.s32.totalorder %s130, %s133
    %p142 = scmp.eq.s32.totalorder %s16, 7
    %p143 = por %p141, %p142
    %p144 = scmp.ne.s32.totalorder %s133, %s134
    %p145 = scmp.eq.s32.totalorder %s16, 0
    %p146 = por %p144, %p145
    %p147 = scmp.ne.s32.totalorder %s133, %s134
    %p148 = scmp.eq.s32.totalorder %s17, 7
    %p149 = por %p147, %p148
    %p151 = scmp.ne.s32.totalorder %s134, %s150
    %p152 = scmp.eq.s32.totalorder %s17, 0
    %p153 = por %p151, %p152
    %s154 = smul.u32 %s18, 4
    %s155 = sadd.s32 %s154, %s19
    %s156 = smul.u32 %s37, 4
    %s157 = sadd.s32 %s156, %s33
    %s158 = ssub.s32 %s155, %s157
    %p159 = scmp.eq.s32.totalorder %s158, 0
    %s161 = sadd.s32 %s160, 1
    %s162 = scalar_select %p159, %s160, %s161
    %p165 = pneg %p159
    %p166 = scmp.eq.s32.totalorder %s11, 7
    %p167 = por %p165, %p166
    %p168 = scmp.ne.s32.totalorder %s160, %s163
    %p169 = scmp.eq.s32.totalorder %s11, 0
    %p170 = por %p168, %p169
    %p171 = scmp.ne.s32.totalorder %s160, %s163
    %p172 = scmp.eq.s32.totalorder %s16, 7
    %p173 = por %p171, %p172
    %p174 = scmp.ne.s32.totalorder %s163, %s164
    %p175 = scmp.eq.s32.totalorder %s16, 0
    %p176 = por %p174, %p175
    %p177 = scmp.ne.s32.totalorder %s163, %s164
    %p178 = scmp.eq.s32.totalorder %s17, 7
    %p179 = por %p177, %p178
    %p181 = scmp.ne.s32.totalorder %s164, %s180
    %p182 = scmp.eq.s32.totalorder %s17, 0
    %p183 = por %p181, %p182
    %p184 = scmp.le.s32.totalorder 1, %s11
    %p185 = scmp.lt.s32.totalorder %s11, 9
    %p186 = pnand %p184, %p185
    %p187 = pneg %p186
    // Predicated region
    $region9: #{stem_forward.2} parent=5 // pred_check
      _
    $region10: #{stem_forward.2} parent=5 // pred_check_branch
      %189 = sbr.rel (%p186) target = $region12
    $region11: #{stem_forward.2} parent=5 // pred_region
      %s190 = ssub.s32 %s11, 1
      // Predicated region
      $region13: #{stem_forward.2} parent=11 // pred_check
        %p191 = pneg %p86
      $region14: #{stem_forward.2} parent=11 // pred_check_branch
        %193 = sbr.rel (%p191) target = $region16
      $region15: #{stem_forward.2} parent=11 // pred_region
        %p194 = scmp.lt.s32.totalorder %s23, 0
        %s195 = scalar_select %p194, %s23, 0
        %s196 = smul.addr %s195, 49
        %s197 = smul.addr %s196, 2
        %s198 = scalar_lea.vmem %s1, %s197
      $region16: #{stem_forward.2} parent=11 // pred_fallthru
        _
    $region12: #{stem_forward.2} parent=5 // pred_fallthru
      _
    %p199 = scmp.lt.s32.totalorder %s11, 8
    // Predicated region
    $region17: #{stem_forward.2} parent=5 // pred_check
      %p200 = pneg %p199
    $region18: #{stem_forward.2} parent=5 // pred_check_branch
      %202 = sbr.rel (%p200) target = $region20
    $region19: #{stem_forward.2} parent=5 // pred_region
      // Predicated region
      $region21: #{stem_forward.2} parent=19 // pred_check
        %p203 = pneg %p54
      $region22: #{stem_forward.2} parent=19 // pred_check_branch
        %205 = sbr.rel (%p203) target = $region24
      $region23: #{stem_forward.2} parent=19 // pred_region
        %s206 = sadd.s32 %s19, %s20
        %p207 = scmp.lt.s32.totalorder %s18, 1
        %s208 = scalar_select %p207, %s18, 1
        %p209 = scmp.lt.s32.totalorder %s206, 3
        %s210 = scalar_select %p209, %s206, 3
        %s211 = smul.addr %s210, 22
        %s212 = smul.addr %s208, 88
        %s213 = sadd.s32 %s211, %s212
        %s214 = smul.addr %s213, 4
        %s215 = scalar_lea.vmem %s0, %s214
        %s216 = sadd.s32 %s19, %s20
      $region24: #{stem_forward.2} parent=19 // pred_fallthru
        _
    $region20: #{stem_forward.2} parent=5 // pred_fallthru
      _
    %p217 = scmp.le.s32.totalorder 1, %s11
    %p218 = scmp.lt.s32.totalorder %s11, 9
    %p219 = pnand %p217, %p218
    %p220 = pneg %p219
    // Predicated region
    $region25: #{stem_forward.2} parent=5 // pred_check
      _
    $region26: #{stem_forward.2} parent=5 // pred_check_branch
      %222 = sbr.rel (%p219) target = $region28
    $region27: #{stem_forward.2} parent=5 // pred_region
      %s223 = ssub.s32 %s11, 1
      %s224 = sadd.s32 %s22, %s23
      %p225 = scmp.lt.s32.totalorder %s21, 1
      %s226 = scalar_select %p225, %s21, 1
      %p227 = scmp.lt.s32.totalorder %s224, 3
      %s228 = scalar_select %p227, %s224, 3
      %s229 = smul.addr %s228, 22
      %s230 = smul.addr %s226, 88
      %s231 = sadd.s32 %s229, %s230
      %s232 = smul.addr %s231, 4
      %s233 = scalar_lea.vmem %s0, %s232
      %p234 = pneg %p60
      %p235 = pneg %p57
      %p236 = scmp.lt.s32.totalorder %s23, 0
      %s237 = scalar_select %p236, %s23, 0
      %s238 = smul.addr %s237, 49
      %s239 = smul.addr %s238, 2
      %s240 = scalar_lea.vmem %s1, %s239
      %p241 = pneg %p86
      %p242 = pneg %p83
      %p243 = pneg %p116
      %p244 = pneg %p113
      %s245 = smul.u32 %s21, 4
      %s246 = sadd.s32 %s245, %s22
      %p247 = scmp.lt.s32.totalorder %s246, 7
      %s248 = scalar_select %p247, %s246, 7
      %s249 = smul.addr %s248, 8
      %s250 = smul.addr %s249, 4
      %s251 = scalar_lea.vmem %s2, %s250
      %p252 = pneg %p146
      %p253 = pneg %p143
      %s254 = smul.u32 %s21, 4
      %s255 = sadd.s32 %s254, %s22
      %p256 = scmp.lt.s32.totalorder %s255, 7
      %s257 = scalar_select %p256, %s255, 7
      %s258 = scalar_lea.vmem %s3, %s257
      %p259 = pneg %p176
      %p260 = pneg %p173
      %s261 = smul.u32 %s21, 4
      %s262 = sadd.s32 %s261, %s22
      %p263 = scmp.lt.s32.totalorder %s262, 7
      %s264 = scalar_select %p263, %s262, 7
      %s265 = scalar_lea.vmem %s4, %s264
      %s266 = sadd.s32 %s22, %s23
      %p267 = scmp.lt.s32.totalorder %s21, 1
      %s268 = scalar_select %p267, %s21, 1
      %p269 = scmp.lt.s32.totalorder %s266, 3
      %s270 = scalar_select %p269, %s266, 3
      %s271 = smul.addr %s270, 22
      %s272 = smul.addr %s268, 88
      %s273 = sadd.s32 %s271, %s272
      %s274 = smul.addr %s273, 4
      %s275 = scalar_lea.vmem %s0, %s274
      %s276 = sadd.s32 %s22, %s23
      %p277 = scmp.lt.s32.totalorder %s23, 0
      %s278 = scalar_select %p277, %s23, 0
      %s279 = smul.addr %s278, 49
      %s280 = smul.addr %s279, 2
      %s281 = scalar_lea.vmem %s1, %s280
      %s282 = smul.u32 %s21, 4
      %s283 = sadd.s32 %s282, %s22
      %p284 = scmp.lt.s32.totalorder %s283, 7
      %s285 = scalar_select %p284, %s283, 7
      %s286 = smul.addr %s285, 8
      %s287 = smul.addr %s286, 4
      %s288 = scalar_lea.vmem %s2, %s287
      %s289 = smul.u32 %s21, 4
      %s290 = sadd.s32 %s289, %s22
      %s291 = smul.u32 %s21, 4
      %s292 = sadd.s32 %s291, %s22
      %p293 = scmp.lt.s32.totalorder %s292, 7
      %s294 = scalar_select %p293, %s292, 7
      %s295 = scalar_lea.vmem %s3, %s294
      %s296 = smul.u32 %s21, 4
      %s297 = sadd.s32 %s296, %s22
      %s298 = smul.u32 %s21, 4
      %s299 = sadd.s32 %s298, %s22
      %p300 = scmp.lt.s32.totalorder %s299, 7
      %s301 = scalar_select %p300, %s299, 7
      %s302 = scalar_lea.vmem %s4, %s301
      %s303 = smul.u32 %s21, 4
      %s304 = sadd.s32 %s303, %s22
      %p306 = scmp.eq.s32.totalorder %s23, 0
      // Predicated region
      $region29: #{stem_forward.2} parent=27 // pred_check
        %p307 = pneg %p306
      $region30: #{stem_forward.2} parent=27 // pred_check_branch
        %309 = sbr.rel (%p307) target = $region32
      $region31: #{stem_forward.2} parent=27 // pred_region
        %vm310 = vcmask 130048
        %311 = vst.msk [vmem:[#allocation2] sm:$0xff] %vm310, 0.0
        %312 = vst.msk [vmem:[#allocation2 + $0x8] sm:$0xff] %vm310, 0.0
        %313 = vst.msk [vmem:[#allocation2 + $0x10] sm:$0xff] %vm310, 0.0
        %314 = vst.msk [vmem:[#allocation2 + $0x18] sm:$0xff] %vm310, 0.0
        %315 = vst.msk [vmem:[#allocation2 + $0x20] sm:$0xff] %vm310, 0.0
        %316 = vst.msk [vmem:[#allocation2 + $0x28] sm:$0xff] %vm310, 0.0
        %317 = vst.msk [vmem:[#allocation2 + $0x30] sm:$0xff] %vm310, 0.0
        %318 = vst.msk [vmem:[#allocation2 + $0x38] sm:$0xff] %vm310, 0.0
      $region32: #{stem_forward.2} parent=27 // pred_fallthru
        _
      %v319 = vld [vmem:[%s275] sm:$0xf]
      %v320 = vld [vmem:[%s275 + $0x4] sm:$0x3]
      %v321 = vld [vmem:[%s275 + $0x8] sm:$0xf]
      %v322 = vld [vmem:[%s275 + $0xc] sm:$0x3]
      %v323 = vld [vmem:[%s275 + $0x10] sm:$0xf]
      %v324 = vld [vmem:[%s275 + $0x14] sm:$0x3]
      %v325 = vld [vmem:[%s275 + $0x18] sm:$0xf]
      %v326 = vld [vmem:[%s275 + $0x1c] sm:$0x3]
      %v327 = vld [vmem:[%s275 + $0x20] sm:$0xf]
      %v328 = vld [vmem:[%s275 + $0x24] sm:$0x3]
      %v329 = vld [vmem:[%s275 + $0x28] sm:$0xf]
      %v330 = vld [vmem:[%s275 + $0x2c] sm:$0x3]
      %v331 = vld [vmem:[%s275 + $0x30] sm:$0xf]
      %v332 = vld [vmem:[%s275 + $0x34] sm:$0x3]
      %v333 = vld [vmem:[%s275 + $0x38] sm:$0xf]
      %v334 = vld [vmem:[%s275 + $0x3c] sm:$0x3]
      %v335 = vld [vmem:[%s275 + $0x40] sm:$0xf]
      %v336 = vld [vmem:[%s275 + $0x44] sm:$0x3]
      %v337 = vld [vmem:[%s275 + $0x48] sm:$0xf]
      %v338 = vld [vmem:[%s275 + $0x4c] sm:$0x3]
      %v339 = vld [vmem:[%s275 + $0x50] sm:$0xf]
      %v340 = vld [vmem:[%s275 + $0x54] sm:$0x3]
      %v341 = vld [vmem:[%s281] sm:$0x3]
      %v342 = vld [vmem:[%s281 + $0x2] sm:$0x3]
      %v343 = vld [vmem:[%s281 + $0x4] sm:$0x3]
      %v344 = vld [vmem:[%s281 + $0x6] sm:$0x3]
      %v345 = vld [vmem:[%s281 + $0x8] sm:$0x3]
      %v346 = vld [vmem:[%s281 + $0xa] sm:$0x3]
      %v347 = vld [vmem:[%s281 + $0xc] sm:$0x3]
      %v348 = vld [vmem:[%s281 + $0xe] sm:$0x3]
      %v349 = vld [vmem:[%s281 + $0x10] sm:$0x3]
      %v350 = vld [vmem:[%s281 + $0x12] sm:$0x3]
      %v351 = vld [vmem:[%s281 + $0x14] sm:$0x3]
      %v352 = vld [vmem:[%s281 + $0x16] sm:$0x3]
      %v353 = vld [vmem:[%s281 + $0x18] sm:$0x3]
      %v354 = vld [vmem:[%s281 + $0x1a] sm:$0x3]
      %v355 = vld [vmem:[%s281 + $0x1c] sm:$0x3]
      %v356 = vld [vmem:[%s281 + $0x1e] sm:$0x3]
      %v357 = vld [vmem:[%s281 + $0x20] sm:$0x3]
      %v358 = vld [vmem:[%s281 + $0x22] sm:$0x3]
      %v359 = vld [vmem:[%s281 + $0x24] sm:$0x3]
      %v360 = vld [vmem:[%s281 + $0x26] sm:$0x3]
      %v361 = vld [vmem:[%s281 + $0x28] sm:$0x3]
      %v362 = vld [vmem:[%s281 + $0x2a] sm:$0x3]
      %v363 = vld [vmem:[%s281 + $0x2c] sm:$0x3]
      %v364 = vld [vmem:[%s281 + $0x2e] sm:$0x3]
      %v365 = vld [vmem:[%s281 + $0x30] sm:$0x3]
      %v366 = vld [vmem:[%s281 + $0x32] sm:$0x3]
      %v367 = vld [vmem:[%s281 + $0x34] sm:$0x3]
      %v368 = vld [vmem:[%s281 + $0x36] sm:$0x3]
      %v369 = vld [vmem:[%s281 + $0x38] sm:$0x3]
      %v370 = vld [vmem:[%s281 + $0x3a] sm:$0x3]
      %v371 = vld [vmem:[%s281 + $0x3c] sm:$0x3]
      %v372 = vld [vmem:[%s281 + $0x3e] sm:$0x3]
      %v373 = vld [vmem:[%s281 + $0x40] sm:$0x3]
      %v374 = vld [vmem:[%s281 + $0x42] sm:$0x3]
      %v375 = vld [vmem:[%s281 + $0x44] sm:$0x3]
      %v376 = vld [vmem:[%s281 + $0x46] sm:$0x3]
      %v377 = vld [vmem:[%s281 + $0x48] sm:$0x3]
      %v378 = vld [vmem:[%s281 + $0x4a] sm:$0x3]
      %v379 = vld [vmem:[%s281 + $0x4c] sm:$0x3]
      %v380 = vld [vmem:[%s281 + $0x4e] sm:$0x3]
      %v381 = vld [vmem:[%s281 + $0x50] sm:$0x3]
      %v382 = vld [vmem:[%s281 + $0x52] sm:$0x3]
      %v383 = vld [vmem:[%s281 + $0x54] sm:$0x3]
      %v384 = vld [vmem:[%s281 + $0x56] sm:$0x3]
      %v385 = vld [vmem:[%s281 + $0x58] sm:$0x3]
      %v386 = vld [vmem:[%s281 + $0x5a] sm:$0x3]
      %v387 = vld [vmem:[%s281 + $0x5c] sm:$0x3]
      %v388 = vld [vmem:[%s281 + $0x5e] sm:$0x3]
      %v389 = vld [vmem:[%s281 + $0x60] sm:$0x3]
      %v398 = vunpack.c.l.b16 %v319
      %v399 = vunpack.c.l.b16 %v321
      %v400 = vunpack.c.l.b16 %v323
      %v401 = vunpack.c.l.b16 %v325
      %v402 = vunpack.c.l.b16 %v327
      %v403 = vunpack.c.l.b16 %v329
      %v404 = vunpack.c.l.b16 %v331
      %v405 = vunpack.c.l.b16 %v333
      %v406 = vpack.c.b16 %v399, %v398
      %v407 = vpack.c.b16 %v401, %v400
      %v408 = vpack.c.b16 %v403, %v402
      %v409 = vpack.c.b16 %v405, %v404
      %410 = vrot.lane.b32.xlu0 %v406, 125
      %v411 = vpop.permute.xlu0 %410
      %412 = vrot.lane.b32.xlu0 %v407, 125
      %v413 = vpop.permute.xlu0 %412
      %414 = vrot.lane.b32.xlu0 %v408, 125
      %v415 = vpop.permute.xlu0 %414
      %416 = vrot.lane.b32.xlu0 %v409, 125
      %v417 = vpop.permute.xlu0 %416
      %vm418 = vcmask 23552
      %v420 = vsel %vm418, %v411, 0
      %v423 = vsel %vm418, %v413, 0
      %v426 = vsel %vm418, %v415, 0
      %v429 = vsel %vm418, %v417, 0
      %vm431 = vcmask 1040384
      %vm432 = vcmask 1041408
      %v433 = vsel %vm431, 4294967295, 65535
      %v434 = vsel %vm432, %v433, 0
      %v436 = vand.u32 %v342, %v434
      %438 = vmatprep.subr.bf16.mxu0 0
      %439 = vmatpush1.bf16.msra.mxu0 %v436
      %440 = vmatprep.subr.bf16.mxu0 0
      %441 = vmatpush1.bf16.msra.mxu0 0
      %442 = vmatprep.subr.bf16.mxu0 0
      %443 = vmatpush1.bf16.msra.mxu0 0
      %444 = vmatprep.subr.bf16.mxu0 0
      %445 = vmatpush1.bf16.msra.mxu0 0
      %446 = vmatprep.subr.bf16.mxu0 0
      %447 = vmatpush1.bf16.msra.mxu0 0
      %448 = vmatprep.subr.bf16.mxu0 0
      %449 = vmatpush1.bf16.msra.mxu0 0
      %450 = vmatprep.subr.bf16.mxu0 0
      %451 = vmatpush1.bf16.msra.mxu0 0
      %452 = vmatprep.subr.bf16.mxu0 0
      %453 = vmatpush1.bf16.msra.mxu0 0
      %454 = vmatprep.subr.bf16.mxu0 0
      %455 = vmatpush1.bf16.msra.mxu0 0
      %456 = vmatprep.subr.bf16.mxu0 0
      %457 = vmatpush1.bf16.msra.mxu0 0
      %458 = vmatprep.subr.bf16.mxu0 0
      %459 = vmatpush1.bf16.msra.mxu0 0
      %460 = vmatprep.subr.bf16.mxu0 0
      %461 = vmatpush1.bf16.msra.mxu0 0
      %462 = vmatprep.subr.bf16.mxu0 0
      %463 = vmatpush1.bf16.msra.mxu0 0
      %464 = vmatprep.subr.bf16.mxu0 0
      %465 = vmatpush1.bf16.msra.mxu0 0
      %466 = vmatprep.subr.bf16.mxu0 0
      %467 = vmatpush1.bf16.msra.mxu0 0
      %468 = vmatprep.subr.bf16.mxu0 0
      %469 = vmatpush1.bf16.msra.mxu0 0
      %470 = vmatprep.mubr.bf16.mxu0 0
      %471 = vmatmul.mubr.bf16.gmra.mrb[0].mxu0 %v420
      %v472 = vpop.f32.mrb[0].mxu0
      %v473 = vadd.f32 0.0, %v472
      %v474 = vpop.f32.mrb[0].mxu0
      %v475 = vpop.f32.mrb[0].mxu0
      %v476 = vadd.f32 0.0, %v475
      %v477 = vpop.f32.mrb[0].mxu0
      %478 = vmatprep.mubr.bf16.mxu0 0
      %479 = vmatmul.mubr.bf16.gmra.mrb[0].mxu0 %v423
      %v480 = vpop.f32.mrb[0].mxu0
      %v481 = vadd.f32 0.0, %v480
      %v482 = vpop.f32.mrb[0].mxu0
      %v483 = vpop.f32.mrb[0].mxu0
      %v484 = vadd.f32 0.0, %v483
      %v485 = vpop.f32.mrb[0].mxu0
      %486 = vmatprep.mubr.bf16.mxu0 0
      %487 = vmatmul.mubr.bf16.gmra.mrb[0].mxu0 %v426
      %v488 = vpop.f32.mrb[0].mxu0
      %v489 = vadd.f32 0.0, %v488
      %v490 = vpop.f32.mrb[0].mxu0
      %v491 = vpop.f32.mrb[0].mxu0
      %v492 = vadd.f32 0.0, %v491
      %v493 = vpop.f32.mrb[0].mxu0
      %494 = vmatprep.mubr.bf16.mxu0 0
      %495 = vmatmul.mubr.bf16.gmra.mrb[0].mxu0 %v429
      %v496 = vpop.f32.mrb[0].mxu0
      %v497 = vadd.f32 0.0, %v496
      %v498 = vpop.f32.mrb[0].mxu0
      %v499 = vpop.f32.mrb[0].mxu0
      %v500 = vadd.f32 0.0, %v499
      %v501 = vpop.f32.mrb[0].mxu0
      %502 = vdwg.mxu0
      %v504 = vsel %vm418, %v406, 0
      %v507 = vsel %vm418, %v407, 0
      %v510 = vsel %vm418, %v408, 0
      %v513 = vsel %vm418, %v409, 0
      %v516 = vand.u32 %v341, %v434
      %518 = vmatprep.subr.bf16.mxu0 0
      %519 = vmatpush1.bf16.msra.mxu0 %v516
      %520 = vmatprep.subr.bf16.mxu0 0
      %521 = vmatpush1.bf16.msra.mxu0 0
      %522 = vmatprep.subr.bf16.mxu0 0
      %523 = vmatpush1.bf16.msra.mxu0 0
      %524 = vmatprep.subr.bf16.mxu0 0
      %525 = vmatpush1.bf16.msra.mxu0 0
      %526 = vmatprep.subr.bf16.mxu0 0
      %527 = vmatpush1.bf16.msra.mxu0 0
      %528 = vmatprep.subr.bf16.mxu0 0
      %529 = vmatpush1.bf16.msra.mxu0 0
      %530 = vmatprep.subr.bf16.mxu0 0
      %531 = vmatpush1.bf16.msra.mxu0 0
      %532 = vmatprep.subr.bf16.mxu0 0
      %533 = vmatpush1.bf16.msra.mxu0 0
      %534 = vmatprep.subr.bf16.mxu0 0
      %535 = vmatpush1.bf16.msra.mxu0 0
      %536 = vmatprep.subr.bf16.mxu0 0
      %537 = vmatpush1.bf16.msra.mxu0 0
      %538 = vmatprep.subr.bf16.mxu0 0
      %539 = vmatpush1.bf16.msra.mxu0 0
      %540 = vmatprep.subr.bf16.mxu0 0
      %541 = vmatpush1.bf16.msra.mxu0 0
      %542 = vmatprep.subr.bf16.mxu0 0
      %543 = vmatpush1.bf16.msra.mxu0 0
      %544 = vmatprep.subr.bf16.mxu0 0
      %545 = vmatpush1.bf16.msra.mxu0 0
      %546 = vmatprep.subr.bf16.mxu0 0
      %547 = vmatpush1.bf16.msra.mxu0 0
      %548 = vmatprep.subr.bf16.mxu0 0
      %549 = vmatpush1.bf16.msra.mxu0 0
      %550 = vmatprep.mubr.bf16.mxu0 0
      %551 = vmatmul.mubr.bf16.gmra.mrb[0].mxu0 %v504
      %v552 = vpop.f32.mrb[0].mxu0
      %v553 = vadd.f32 %v473, %v552
      %v554 = vpop.f32.mrb[0].mxu0
      %v555 = vpop.f32.mrb[0].mxu0
      %v556 = vadd.f32 %v476, %v555
      %v557 = vpop.f32.mrb[0].mxu0
      %558 = vmatprep.mubr.bf16.mxu0 0
      %559 = vmatmul.mubr.bf16.gmra.mrb[0].mxu0 %v507
      %v560 = vpop.f32.mrb[0].mxu0
      %v561 = vadd.f32 %v481, %v560
      %v562 = vpop.f32.mrb[0].mxu0
      %v563 = vpop.f32.mrb[0].mxu0
      %v564 = vadd.f32 %v484, %v563
      %v565 = vpop.f32.mrb[0].mxu0
      %566 = vmatprep.mubr.bf16.mxu0 0
      %567 = vmatmul.mubr.bf16.gmra.mrb[0].mxu0 %v510
      %v568 = vpop.f32.mrb[0].mxu0
      %v569 = vadd.f32 %v489, %v568
      %v570 = vpop.f32.mrb[0].mxu0
      %v571 = vpop.f32.mrb[0].mxu0
      %v572 = vadd.f32 %v492, %v571
      %v573 = vpop.f32.mrb[0].mxu0
      %574 = vmatprep.mubr.bf16.mxu0 0
      %575 = vmatmul.mubr.bf16.gmra.mrb[0].mxu0 %v513
      %v576 = vpop.f32.mrb[0].mxu0
      %v577 = vadd.f32 %v497, %v576
      %v578 = vpop.f32.mrb[0].mxu0
      %v579 = vpop.f32.mrb[0].mxu0
      %v580 = vadd.f32 %v500, %v579
      %v581 = vpop.f32.mrb[0].mxu0
      %582 = vdwg.mxu0
      %vm583 = vsmask.f32 3328
      %vm584 = vsmask.f32 7440
      %vm585 = vmor %vm583, %vm584
      %v587 = vshrl.u32 %v319, 16
      %v589 = vrot.slane %v587, 4
      %v590 = vshll.u32 %v319, 16
      %v592 = vrot.slane %v590, 5
      %v593 = vor.u32 %v589, %v592
      %v594 = vrot.slane %v593, 4
      %v596 = vshll.u32 %v320, 16
      %v598 = vrot.slane %v596, 5
      %v599 = vsel %vm585, %v594, %v598
      %v601 = vshrl.u32 %v321, 16
      %v603 = vrot.slane %v601, 4
      %v604 = vshll.u32 %v321, 16
      %v606 = vrot.slane %v604, 5
      %v607 = vor.u32 %v603, %v606
      %v608 = vrot.slane %v607, 4
      %v610 = vshll.u32 %v322, 16
      %v612 = vrot.slane %v610, 5
      %v613 = vsel %vm585, %v608, %v612
      %v615 = vshrl.u32 %v323, 16
      %v617 = vrot.slane %v615, 4
      %v618 = vshll.u32 %v323, 16
      %v620 = vrot.slane %v618, 5
      %v621 = vor.u32 %v617, %v620
      %v622 = vrot.slane %v621, 4
      %v624 = vshll.u32 %v324, 16
      %v626 = vrot.slane %v624, 5
      %v627 = vsel %vm585, %v622, %v626
      %v629 = vshrl.u32 %v325, 16
      %v631 = vrot.slane %v629, 4
      %v632 = vshll.u32 %v325, 16
      %v634 = vrot.slane %v632, 5
      %v635 = vor.u32 %v631, %v634
      %v636 = vrot.slane %v635, 4
      %v638 = vshll.u32 %v326, 16
      %v640 = vrot.slane %v638, 5
      %v641 = vsel %vm585, %v636, %v640
      %v643 = vshrl.u32 %v327, 16
      %v645 = vrot.slane %v643, 4
      %v646 = vshll.u32 %v327, 16
      %v648 = vrot.slane %v646, 5
      %v649 = vor.u32 %v645, %v648
      %v650 = vrot.slane %v649, 4
      %v652 = vshll.u32 %v328, 16
      %v654 = vrot.slane %v652, 5
      %v655 = vsel %vm585, %v650, %v654
      %v657 = vshrl.u32 %v329, 16
      %v659 = vrot.slane %v657, 4
      %v660 = vshll.u32 %v329, 16
      %v662 = vrot.slane %v660, 5
      %v663 = vor.u32 %v659, %v662
      %v664 = vrot.slane %v663, 4
      %v666 = vshll.u32 %v330, 16
      %v668 = vrot.slane %v666, 5
      %v669 = vsel %vm585, %v664, %v668
      %v671 = vshrl.u32 %v331, 16
      %v673 = vrot.slane %v671, 4
      %v674 = vshll.u32 %v331, 16
      %v676 = vrot.slane %v674, 5
      %v677 = vor.u32 %v673, %v676
      %v678 = vrot.slane %v677, 4
      %v680 = vshll.u32 %v332, 16
      %v682 = vrot.slane %v680, 5
      %v683 = vsel %vm585, %v678, %v682
      %v685 = vshrl.u32 %v333, 16
      %v687 = vrot.slane %v685, 4
      %v688 = vshll.u32 %v333, 16
      %v690 = vrot.slane %v688, 5
      %v691 = vor.u32 %v687, %v690
      %v692 = vrot.slane %v691, 4
      %v694 = vshll.u32 %v334, 16
      %v696 = vrot.slane %v694, 5
      %v697 = vsel %vm585, %v692, %v696
      %v698 = vunpack.c.l.b16 %v599
      %v699 = vunpack.c.l.b16 %v613
      %v700 = vunpack.c.l.b16 %v627
      %v701 = vunpack.c.l.b16 %v641
      %v702 = vunpack.c.l.b16 %v655
      %v703 = vunpack.c.l.b16 %v669
      %v704 = vunpack.c.l.b16 %v683
      %v705 = vunpack.c.l.b16 %v697
      %v706 = vpack.c.b16 %v699, %v698
      %v707 = vpack.c.b16 %v701, %v700
      %v708 = vpack.c.b16 %v703, %v702
      %v709 = vpack.c.b16 %v705, %v704
      %v711 = vsel %vm418, %v706, 0
      %v714 = vsel %vm418, %v707, 0
      %v717 = vsel %vm418, %v708, 0
      %v720 = vsel %vm418, %v709, 0
      %v723 = vand.u32 %v343, %v434
      %725 = vmatprep.subr.bf16.mxu0 0
      %726 = vmatpush1.bf16.msra.mxu0 %v723
      %727 = vmatprep.subr.bf16.mxu0 0
      %728 = vmatpush1.bf16.msra.mxu0 0
      %729 = vmatprep.subr.bf16.mxu0 0
      %730 = vmatpush1.bf16.msra.mxu0 0
      %731 = vmatprep.subr.bf16.mxu0 0
      %732 = vmatpush1.bf16.msra.mxu0 0
      %733 = vmatprep.subr.bf16.mxu0 0
      %734 = vmatpush1.bf16.msra.mxu0 0
      %735 = vmatprep.subr.bf16.mxu0 0
      %736 = vmatpush1.bf16.msra.mxu0 0
      %737 = vmatprep.subr.bf16.mxu0 0
      %738 = vmatpush1.bf16.msra.mxu0 0
      %739 = vmatprep.subr.bf16.mxu0 0
      %740 = vmatpush1.bf16.msra.mxu0 0
      %741 = vmatprep.subr.bf16.mxu0 0
      %742 = vmatpush1.bf16.msra.mxu0 0
      %743 = vmatprep.subr.bf16.mxu0 0
      %744 = vmatpush1.bf16.msra.mxu0 0
      %745 = vmatprep.subr.bf16.mxu0 0
      %746 = vmatpush1.bf16.msra.mxu0 0
      %747 = vmatprep.subr.bf16.mxu0 0
      %748 = vmatpush1.bf16.msra.mxu0 0
      %749 = vmatprep.subr.bf16.mxu0 0
      %750 = vmatpush1.bf16.msra.mxu0 0
      %751 = vmatprep.subr.bf16.mxu0 0
      %752 = vmatpush1.bf16.msra.mxu0 0
      %753 = vmatprep.subr.bf16.mxu0 0
      %754 = vmatpush1.bf16.msra.mxu0 0
      %755 = vmatprep.subr.bf16.mxu0 0
      %756 = vmatpush1.bf16.msra.mxu0 0
      %757 = vmatprep.mubr.bf16.mxu0 0
      %758 = vmatmul.mubr.bf16.gmra.mrb[0].mxu0 %v711
      %v759 = vpop.f32.mrb[0].mxu0
      %v760 = vadd.f32 0.0, %v759
      %v761 = vpop.f32.mrb[0].mxu0
      %v762 = vpop.f32.mrb[0].mxu0
      %v763 = vadd.f32 0.0, %v762
      %v764 = vpop.f32.mrb[0].mxu0
      %765 = vmatprep.mubr.bf16.mxu0 0
      %766 = vmatmul.mubr.bf16.gmra.mrb[0].mxu0 %v714
      %v767 = vpop.f32.mrb[0].mxu0
      %v768 = vadd.f32 0.0, %v767
      %v769 = vpop.f32.mrb[0].mxu0
      %v770 = vpop.f32.mrb[0].mxu0
      %v771 = vadd.f32 0.0, %v770
      %v772 = vpop.f32.mrb[0].mxu0
      %773 = vmatprep.mubr.bf16.mxu0 0
      %774 = vmatmul.mubr.bf16.gmra.mrb[0].mxu0 %v717
      %v775 = vpop.f32.mrb[0].mxu0
      %v776 = vadd.f32 0.0, %v775
      %v777 = vpop.f32.mrb[0].mxu0
      %v778 = vpop.f32.mrb[0].mxu0
      %v779 = vadd.f32 0.0, %v778
      %v780 = vpop.f32.mrb[0].mxu0
      %781 = vmatprep.mubr.bf16.mxu0 0
      %782 = vmatmul.mubr.bf16.gmra.mrb[0].mxu0 %v720
      %v783 = vpop.f32.mrb[0].mxu0
      %v784 = vadd.f32 0.0, %v783
      %v785 = vpop.f32.mrb[0].mxu0
      %v786 = vpop.f32.mrb[0].mxu0
      %v787 = vadd.f32 0.0, %v786
      %v788 = vpop.f32.mrb[0].mxu0
      %789 = vdwg.mxu0
      %v790 = vadd.f32 %v553, %v760
      %v791 = vadd.f32 %v556, %v763
      %v792 = vadd.f32 %v561, %v768
      %v793 = vadd.f32 %v564, %v771
      %v794 = vadd.f32 %v569, %v776
      %v795 = vadd.f32 %v572, %v779
      %v796 = vadd.f32 %v577, %v784
      %v797 = vadd.f32 %v580, %v787
      %798 = vrot.lane.b32.xlu0 %v706, 125
      %v799 = vpop.permute.xlu0 %798
      %800 = vrot.lane.b32.xlu0 %v707, 125
      %v801 = vpop.permute.xlu0 %800
      %802 = vrot.lane.b32.xlu0 %v708, 125
      %v803 = vpop.permute.xlu0 %802
      %804 = vrot.lane.b32.xlu0 %v709, 125
      %v805 = vpop.permute.xlu0 %804
      %v807 = vsel %vm418, %v799, 0
      %v810 = vsel %vm418, %v801, 0
      %v813 = vsel %vm418, %v803, 0
      %v816 = vsel %vm418, %v805, 0
      %v819 = vand.u32 %v344, %v434
      %821 = vmatprep.subr.bf16.mxu0 0
      %822 = vmatpush1.bf16.msra.mxu0 %v819
      %823 = vmatprep.subr.bf16.mxu0 0
      %824 = vmatpush1.bf16.msra.mxu0 0
      %825 = vmatprep.subr.bf16.mxu0 0
      %826 = vmatpush1.bf16.msra.mxu0 0
      %827 = vmatprep.subr.bf16.mxu0 0
      %828 = vmatpush1.bf16.msra.mxu0 0
      %829 = vmatprep.subr.bf16.mxu0 0
      %830 = vmatpush1.bf16.msra.mxu0 0
      %831 = vmatprep.subr.bf16.mxu0 0
      %832 = vmatpush1.bf16.msra.mxu0 0
      %833 = vmatprep.subr.bf16.mxu0 0
      %834 = vmatpush1.bf16.msra.mxu0 0
      %835 = vmatprep.subr.bf16.mxu0 0
      %836 = vmatpush1.bf16.msra.mxu0 0
      %837 = vmatprep.subr.bf16.mxu0 0
      %838 = vmatpush1.bf16.msra.mxu0 0
      %839 = vmatprep.subr.bf16.mxu0 0
      %840 = vmatpush1.bf16.msra.mxu0 0
      %841 = vmatprep.subr.bf16.mxu0 0
      %842 = vmatpush1.bf16.msra.mxu0 0
      %843 = vmatprep.subr.bf16.mxu0 0
      %844 = vmatpush1.bf16.msra.mxu0 0
      %845 = vmatprep.subr.bf16.mxu0 0
      %846 = vmatpush1.bf16.msra.mxu0 0
      %847 = vmatprep.subr.bf16.mxu0 0
      %848 = vmatpush1.bf16.msra.mxu0 0
      %849 = vmatprep.subr.bf16.mxu0 0
      %850 = vmatpush1.bf16.msra.mxu0 0
      %851 = vmatprep.subr.bf16.mxu0 0
      %852 = vmatpush1.bf16.msra.mxu0 0
      %853 = vmatprep.mubr.bf16.mxu0 0
      %854 = vmatmul.mubr.bf16.gmra.mrb[0].mxu0 %v807
      %v855 = vpop.f32.mrb[0].mxu0
      %v856 = vadd.f32 0.0, %v855
      %v857 = vpop.f32.mrb[0].mxu0
      %v858 = vpop.f32.mrb[0].mxu0
      %v859 = vadd.f32 0.0, %v858
      %v860 = vpop.f32.mrb[0].mxu0
      %861 = vmatprep.mubr.bf16.mxu0 0
      %862 = vmatmul.mubr.bf16.gmra.mrb[0].mxu0 %v810
      %v863 = vpop.f32.mrb[0].mxu0
      %v864 = vadd.f32 0.0, %v863
      %v865 = vpop.f32.mrb[0].mxu0
      %v866 = vpop.f32.mrb[0].mxu0
      %v867 = vadd.f32 0.0, %v866
      %v868 = vpop.f32.mrb[0].mxu0
      %869 = vmatprep.mubr.bf16.mxu0 0
      %870 = vmatmul.mubr.bf16.gmra.mrb[0].mxu0 %v813
      %v871 = vpop.f32.mrb[0].mxu0
      %v872 = vadd.f32 0.0, %v871
      %v873 = vpop.f32.mrb[0].mxu0
      %v874 = vpop.f32.mrb[0].mxu0
      %v875 = vadd.f32 0.0, %v874
      %v876 = vpop.f32.mrb[0].mxu0
      %877 = vmatprep.mubr.bf16.mxu0 0
      %878 = vmatmul.mubr.bf16.gmra.mrb[0].mxu0 %v816
      %v879 = vpop.f32.mrb[0].mxu0
      %v880 = vadd.f32 0.0, %v879
      %v881 = vpop.f32.mrb[0].mxu0
      %v882 = vpop.f32.mrb[0].mxu0
      %v883 = vadd.f32 0.0, %v882
      %v884 = vpop.f32.mrb[0].mxu0
      %885 = vdwg.mxu0
      %v886 = vadd.f32 %v790, %v856
      %v887 = vadd.f32 %v791, %v859
      %v888 = vadd.f32 %v792, %v864
      %v889 = vadd.f32 %v793, %v867
      %v890 = vadd.f32 %v794, %v872
      %v891 = vadd.f32 %v795, %v875
      %v892 = vadd.f32 %v796, %v880
      %v893 = vadd.f32 %v797, %v883
      %vm902 = vcmask 1042432
      %vm903 = vcmask 1046532
      %vm904 = vmor %vm902, %vm903
      %v905 = vrot.slane %v319, 5
      %v906 = vrot.slane %v905, 4
      %v907 = vrot.slane %v320, 5
      %v908 = vsel %vm904, %v906, %v907
      %v909 = vrot.slane %v321, 5
      %v910 = vrot.slane %v909, 4
      %v911 = vrot.slane %v322, 5
      %v912 = vsel %vm904, %v910, %v911
      %v913 = vrot.slane %v323, 5
      %v914 = vrot.slane %v913, 4
      %v915 = vrot.slane %v324, 5
      %v916 = vsel %vm904, %v914, %v915
      %v917 = vrot.slane %v325, 5
      %v918 = vrot.slane %v917, 4
      %v919 = vrot.slane %v326, 5
      %v920 = vsel %vm904, %v918, %v919
      %v921 = vrot.slane %v327, 5
      %v922 = vrot.slane %v921, 4
      %v923 = vrot.slane %v328, 5
      %v924 = vsel %vm904, %v922, %v923
      %v925 = vrot.slane %v329, 5
      %v926 = vrot.slane %v925, 4
      %v927 = vrot.slane %v330, 5
      %v928 = vsel %vm904, %v926, %v927
      %v929 = vrot.slane %v331, 5
      %v930 = vrot.slane %v929, 4
      %v931 = vrot.slane %v332, 5
      %v932 = vsel %vm904, %v930, %v931
      %v933 = vrot.slane %v333, 5
      %v934 = vrot.slane %v933, 4
      %v935 = vrot.slane %v334, 5
      %v936 = vsel %vm904, %v934, %v935
      %v937 = vunpack.c.l.b16 %v908
      %v938 = vunpack.c.l.b16 %v912
      %v939 = vunpack.c.l.b16 %v916
      %v940 = vunpack.c.l.b16 %v920
      %v941 = vunpack.c.l.b16 %v924
      %v942 = vunpack.c.l.b16 %v928
      %v943 = vunpack.c.l.b16 %v932
      %v944 = vunpack.c.l.b16 %v936
      %v945 = vpack.c.b16 %v938, %v937
      %v946 = vpack.c.b16 %v940, %v939
      %v947 = vpack.c.b16 %v942, %v941
      %v948 = vpack.c.b16 %v944, %v943
      %v950 = vsel %vm418, %v945, 0
      %v953 = vsel %vm418, %v946, 0
      %v956 = vsel %vm418, %v947, 0
      %v959 = vsel %vm418, %v948, 0
      %v962 = vand.u32 %v345, %v434
      %964 = vmatprep.subr.bf16.mxu0 0
      %965 = vmatpush1.bf16.msra.mxu0 %v962
      %966 = vmatprep.subr.bf16.mxu0 0
      %967 = vmatpush1.bf16.msra.mxu0 0
      %968 = vmatprep.subr.bf16.mxu0 0
      %969 = vmatpush1.bf16.msra.mxu0 0
      %970 = vmatprep.subr.bf16.mxu0 0
      %971 = vmatpush1.bf16.msra.mxu0 0
      %972 = vmatprep.subr.bf16.mxu0 0
      %973 = vmatpush1.bf16.msra.mxu0 0
      %974 = vmatprep.subr.bf16.mxu0 0
      %975 = vmatpush1.bf16.msra.mxu0 0
      %976 = vmatprep.subr.bf16.mxu0 0
      %977 = vmatpush1.bf16.msra.mxu0 0
      %978 = vmatprep.subr.bf16.mxu0 0
      %979 = vmatpush1.bf16.msra.mxu0 0
      %980 = vmatprep.subr.bf16.mxu0 0
      %981 = vmatpush1.bf16.msra.mxu0 0
      %982 = vmatprep.subr.bf16.mxu0 0
      %983 = vmatpush1.bf16.msra.mxu0 0
      %984 = vmatprep.subr.bf16.mxu0 0
      %985 = vmatpush1.bf16.msra.mxu0 0
      %986 = vmatprep.subr.bf16.mxu0 0
      %987 = vmatpush1.bf16.msra.mxu0 0
      %988 = vmatprep.subr.bf16.mxu0 0
      %989 = vmatpush1.bf16.msra.mxu0 0
      %990 = vmatprep.subr.bf16.mxu0 0
      %991 = vmatpush1.bf16.msra.mxu0 0
      %992 = vmatprep.subr.bf16.mxu0 0
      %993 = vmatpush1.bf16.msra.mxu0 0
      %994 = vmatprep.subr.bf16.mxu0 0
      %995 = vmatpush1.bf16.msra.mxu0 0
      %996 = vmatprep.mubr.bf16.mxu0 0
      %997 = vmatmul.mubr.bf16.gmra.mrb[0].mxu0 %v950
      %v998 = vpop.f32.mrb[0].mxu0
      %v999 = vadd.f32 0.0, %v998
      %v1000 = vpop.f32.mrb[0].mxu0
      %v1001 = vpop.f32.mrb[0].mxu0
      %v1002 = vadd.f32 0.0, %v1001
      %v1003 = vpop.f32.mrb[0].mxu0
      %1004 = vmatprep.mubr.bf16.mxu0 0
      %1005 = vmatmul.mubr.bf16.gmra.mrb[0].mxu0 %v953
      %v1006 = vpop.f32.mrb[0].mxu0
      %v1007 = vadd.f32 0.0, %v1006
      %v1008 = vpop.f32.mrb[0].mxu0
      %v1009 = vpop.f32.mrb[0].mxu0
      %v1010 = vadd.f32 0.0, %v1009
      %v1011 = vpop.f32.mrb[0].mxu0
      %1012 = vmatprep.mubr.bf16.mxu0 0
      %1013 = vmatmul.mubr.bf16.gmra.mrb[0].mxu0 %v956
      %v1014 = vpop.f32.mrb[0].mxu0
      %v1015 = vadd.f32 0.0, %v1014
      %v1016 = vpop.f32.mrb[0].mxu0
      %v1017 = vpop.f32.mrb[0].mxu0
      %v1018 = vadd.f32 0.0, %v1017
      %v1019 = vpop.f32.mrb[0].mxu0
      %1020 = vmatprep.mubr.bf16.mxu0 0
      %1021 = vmatmul.mubr.bf16.gmra.mrb[0].mxu0 %v959
      %v1022 = vpop.f32.mrb[0].mxu0
      %v1023 = vadd.f32 0.0, %v1022
      %v1024 = vpop.f32.mrb[0].mxu0
      %v1025 = vpop.f32.mrb[0].mxu0
      %v1026 = vadd.f32 0.0, %v1025
      %v1027 = vpop.f32.mrb[0].mxu0
      %1028 = vdwg.mxu0
      %v1029 = vadd.f32 %v886, %v999
      %v1030 = vadd.f32 %v887, %v1002
      %v1031 = vadd.f32 %v888, %v1007
      %v1032 = vadd.f32 %v889, %v1010
      %v1033 = vadd.f32 %v890, %v1015
      %v1034 = vadd.f32 %v891, %v1018
      %v1035 = vadd.f32 %v892, %v1023
      %v1036 = vadd.f32 %v893, %v1026
      %1037 = vrot.lane.b32.xlu0 %v945, 125
      %v1038 = vpop.permute.xlu0 %1037
      %1039 = vrot.lane.b32.xlu0 %v946, 125
      %v1040 = vpop.permute.xlu0 %1039
      %1041 = vrot.lane.b32.xlu0 %v947, 125
      %v1042 = vpop.permute.xlu0 %1041
      %1043 = vrot.lane.b32.xlu0 %v948, 125
      %v1044 = vpop.permute.xlu0 %1043
      %v1046 = vsel %vm418, %v1038, 0
      %v1049 = vsel %vm418, %v1040, 0
      %v1052 = vsel %vm418, %v1042, 0
      %v1055 = vsel %vm418, %v1044, 0
      %v1058 = vand.u32 %v346, %v434
      %1060 = vmatprep.subr.bf16.mxu0 0
      %1061 = vmatpush1.bf16.msra.mxu0 %v1058
      %1062 = vmatprep.subr.bf16.mxu0 0
      %1063 = vmatpush1.bf16.msra.mxu0 0
      %1064 = vmatprep.subr.bf16.mxu0 0
      %1065 = vmatpush1.bf16.msra.mxu0 0
      %1066 = vmatprep.subr.bf16.mxu0 0
      %1067 = vmatpush1.bf16.msra.mxu0 0
      %1068 = vmatprep.subr.bf16.mxu0 0
      %1069 = vmatpush1.bf16.msra.mxu0 0
      %1070 = vmatprep.subr.bf16.mxu0 0
      %1071 = vmatpush1.bf16.msra.mxu0 0
      %1072 = vmatprep.subr.bf16.mxu0 0
      %1073 = vmatpush1.bf16.msra.mxu0 0
      %1074 = vmatprep.subr.bf16.mxu0 0
      %1075 = vmatpush1.bf16.msra.mxu0 0
      %1076 = vmatprep.subr.bf16.mxu0 0
      %1077 = vmatpush1.bf16.msra.mxu0 0
      %1078 = vmatprep.subr.bf16.mxu0 0
      %1079 = vmatpush1.bf16.msra.mxu0 0
      %1080 = vmatprep.subr.bf16.mxu0 0
      %1081 = vmatpush1.bf16.msra.mxu0 0
      %1082 = vmatprep.subr.bf16.mxu0 0
      %1083 = vmatpush1.bf16.msra.mxu0 0
      %1084 = vmatprep.subr.bf16.mxu0 0
      %1085 = vmatpush1.bf16.msra.mxu0 0
      %1086 = vmatprep.subr.bf16.mxu0 0
      %1087 = vmatpush1.bf16.msra.mxu0 0
      %1088 = vmatprep.subr.bf16.mxu0 0
      %1089 = vmatpush1.bf16.msra.mxu0 0
      %1090 = vmatprep.subr.bf16.mxu0 0
      %1091 = vmatpush1.bf16.msra.mxu0 0
      %1092 = vmatprep.mubr.bf16.mxu0 0
      %1093 = vmatmul.mubr.bf16.gmra.mrb[0].mxu0 %v1046
      %v1094 = vpop.f32.mrb[0].mxu0
      %v1095 = vadd.f32 0.0, %v1094
      %v1096 = vpop.f32.mrb[0].mxu0
      %v1097 = vpop.f32.mrb[0].mxu0
      %v1098 = vadd.f32 0.0, %v1097
      %v1099 = vpop.f32.mrb[0].mxu0
      %1100 = vmatprep.mubr.bf16.mxu0 0
      %1101 = vmatmul.mubr.bf16.gmra.mrb[0].mxu0 %v1049
      %v1102 = vpop.f32.mrb[0].mxu0
      %v1103 = vadd.f32 0.0, %v1102
      %v1104 = vpop.f32.mrb[0].mxu0
      %v1105 = vpop.f32.mrb[0].mxu0
      %v1106 = vadd.f32 0.0, %v1105
      %v1107 = vpop.f32.mrb[0].mxu0
      %1108 = vmatprep.mubr.bf16.mxu0 0
      %1109 = vmatmul.mubr.bf16.gmra.mrb[0].mxu0 %v1052
      %v1110 = vpop.f32.mrb[0].mxu0
      %v1111 = vadd.f32 0.0, %v1110
      %v1112 = vpop.f32.mrb[0].mxu0
      %v1113 = vpop.f32.mrb[0].mxu0
      %v1114 = vadd.f32 0.0, %v1113
      %v1115 = vpop.f32.mrb[0].mxu0
      %1116 = vmatprep.mubr.bf16.mxu0 0
      %1117 = vmatmul.mubr.bf16.gmra.mrb[0].mxu0 %v1055
      %v1118 = vpop.f32.mrb[0].mxu0
      %v1119 = vadd.f32 0.0, %v1118
      %v1120 = vpop.f32.mrb[0].mxu0
      %v1121 = vpop.f32.mrb[0].mxu0
      %v1122 = vadd.f32 0.0, %v1121
      %v1123 = vpop.f32.mrb[0].mxu0
      %1124 = vdwg.mxu0
      %v1125 = vadd.f32 %v1029, %v1095
      %v1126 = vadd.f32 %v1030, %v1098
      %v1127 = vadd.f32 %v1031, %v1103
      %v1128 = vadd.f32 %v1032, %v1106
      %v1129 = vadd.f32 %v1033, %v1111
      %v1130 = vadd.f32 %v1034, %v1114
      %v1131 = vadd.f32 %v1035, %v1119
      %v1132 = vadd.f32 %v1036, %v1122
      %vm1133 = vsmask.f32 2304
      %vm1134 = vsmask.f32 6416
      %vm1135 = vmor %vm1133, %vm1134
      %v1136 = vrot.slane %v587, 5
      %v1137 = vrot.slane %v590, 6
      %v1138 = vor.u32 %v1136, %v1137
      %v1139 = vrot.slane %v1138, 4
      %v1140 = vshrl.u32 %v320, 16
      %v1142 = vrot.slane %v1140, 5
      %v1143 = vrot.slane %v596, 6
      %v1144 = vor.u32 %v1142, %v1143
      %v1145 = vsel %vm1135, %v1139, %v1144
      %v1146 = vrot.slane %v601, 5
      %v1147 = vrot.slane %v604, 6
      %v1148 = vor.u32 %v1146, %v1147
      %v1149 = vrot.slane %v1148, 4
      %v1150 = vshrl.u32 %v322, 16
      %v1152 = vrot.slane %v1150, 5
      %v1153 = vrot.slane %v610, 6
      %v1154 = vor.u32 %v1152, %v1153
      %v1155 = vsel %vm1135, %v1149, %v1154
      %v1156 = vrot.slane %v615, 5
      %v1157 = vrot.slane %v618, 6
      %v1158 = vor.u32 %v1156, %v1157
      %v1159 = vrot.slane %v1158, 4
      %v1160 = vshrl.u32 %v324, 16
      %v1162 = vrot.slane %v1160, 5
      %v1163 = vrot.slane %v624, 6
      %v1164 = vor.u32 %v1162, %v1163
      %v1165 = vsel %vm1135, %v1159, %v1164
      %v1166 = vrot.slane %v629, 5
      %v1167 = vrot.slane %v632, 6
      %v1168 = vor.u32 %v1166, %v1167
      %v1169 = vrot.slane %v1168, 4
      %v1170 = vshrl.u32 %v326, 16
      %v1172 = vrot.slane %v1170, 5
      %v1173 = vrot.slane %v638, 6
      %v1174 = vor.u32 %v1172, %v1173
      %v1175 = vsel %vm1135, %v1169, %v1174
      %v1176 = vrot.slane %v643, 5
      %v1177 = vrot.slane %v646, 6
      %v1178 = vor.u32 %v1176, %v1177
      %v1179 = vrot.slane %v1178, 4
      %v1180 = vshrl.u32 %v328, 16
      %v1182 = vrot.slane %v1180, 5
      %v1183 = vrot.slane %v652, 6
      %v1184 = vor.u32 %v1182, %v1183
      %v1185 = vsel %vm1135, %v1179, %v1184
      %v1186 = vrot.slane %v657, 5
      %v1187 = vrot.slane %v660, 6
      %v1188 = vor.u32 %v1186, %v1187
      %v1189 = vrot.slane %v1188, 4
      %v1190 = vshrl.u32 %v330, 16
      %v1192 = vrot.slane %v1190, 5
      %v1193 = vrot.slane %v666, 6
      %v1194 = vor.u32 %v1192, %v1193
      %v1195 = vsel %vm1135, %v1189, %v1194
      %v1196 = vrot.slane %v671, 5
      %v1197 = vrot.slane %v674, 6
      %v1198 = vor.u32 %v1196, %v1197
      %v1199 = vrot.slane %v1198, 4
      %v1200 = vshrl.u32 %v332, 16
      %v1202 = vrot.slane %v1200, 5
      %v1203 = vrot.slane %v680, 6
      %v1204 = vor.u32 %v1202, %v1203
      %v1205 = vsel %vm1135, %v1199, %v1204
      %v1206 = vrot.slane %v685, 5
      %v1207 = vrot.slane %v688, 6
      %v1208 = vor.u32 %v1206, %v1207
      %v1209 = vrot.slane %v1208, 4
      %v1210 = vshrl.u32 %v334, 16
      %v1212 = vrot.slane %v1210, 5
      %v1213 = vrot.slane %v694, 6
      %v1214 = vor.u32 %v1212, %v1213
      %v1215 = vsel %vm1135, %v1209, %v1214
      %v1216 = vunpack.c.l.b16 %v1145
      %v1217 = vunpack.c.l.b16 %v1155
      %v1218 = vunpack.c.l.b16 %v1165
      %v1219 = vunpack.c.l.b16 %v1175
      %v1220 = vunpack.c.l.b16 %v1185
      %v1221 = vunpack.c.l.b16 %v1195
      %v1222 = vunpack.c.l.b16 %v1205
      %v1223 = vunpack.c.l.b16 %v1215
      %v1224 = vpack.c.b16 %v1217, %v1216
      %v1225 = vpack.c.b16 %v1219, %v1218
      %v1226 = vpack.c.b16 %v1221, %v1220
      %v1227 = vpack.c.b16 %v1223, %v1222
      %v1229 = vsel %vm418, %v1224, 0
      %v1232 = vsel %vm418, %v1225, 0
      %v1235 = vsel %vm418, %v1226, 0
      %v1238 = vsel %vm418, %v1227, 0
      %v1241 = vand.u32 %v347, %v434
      %1243 = vmatprep.subr.bf16.mxu0 0
      %1244 = vmatpush1.bf16.msra.mxu0 %v1241
      %1245 = vmatprep.subr.bf16.mxu0 0
      %1246 = vmatpush1.bf16.msra.mxu0 0
      %1247 = vmatprep.subr.bf16.mxu0 0
      %1248 = vmatpush1.bf16.msra.mxu0 0
      %1249 = vmatprep.subr.bf16.mxu0 0
      %1250 = vmatpush1.bf16.msra.mxu0 0
      %1251 = vmatprep.subr.bf16.mxu0 0
      %1252 = vmatpush1.bf16.msra.mxu0 0
      %1253 = vmatprep.subr.bf16.mxu0 0
      %1254 = vmatpush1.bf16.msra.mxu0 0
      %1255 = vmatprep.subr.bf16.mxu0 0
      %1256 = vmatpush1.bf16.msra.mxu0 0
      %1257 = vmatprep.subr.bf16.mxu0 0
      %1258 = vmatpush1.bf16.msra.mxu0 0
      %1259 = vmatprep.subr.bf16.mxu0 0
      %1260 = vmatpush1.bf16.msra.mxu0 0
      %1261 = vmatprep.subr.bf16.mxu0 0
      %1262 = vmatpush1.bf16.msra.mxu0 0
      %1263 = vmatprep.subr.bf16.mxu0 0
      %1264 = vmatpush1.bf16.msra.mxu0 0
      %1265 = vmatprep.subr.bf16.mxu0 0
      %1266 = vmatpush1.bf16.msra.mxu0 0
      %1267 = vmatprep.subr.bf16.mxu0 0
      %1268 = vmatpush1.bf16.msra.mxu0 0
      %1269 = vmatprep.subr.bf16.mxu0 0
      %1270 = vmatpush1.bf16.msra.mxu0 0
      %1271 = vmatprep.subr.bf16.mxu0 0
      %1272 = vmatpush1.bf16.msra.mxu0 0
      %1273 = vmatprep.subr.bf16.mxu0 0
      %1274 = vmatpush1.bf16.msra.mxu0 0
      %1275 = vmatprep.mubr.bf16.mxu0 0
      %1276 = vmatmul.mubr.bf16.gmra.mrb[0].mxu0 %v1229
      %v1277 = vpop.f32.mrb[0].mxu0
      %v1278 = vadd.f32 0.0, %v1277
      %v1279 = vpop.f32.mrb[0].mxu0
      %v1280 = vpop.f32.mrb[0].mxu0
      %v1281 = vadd.f32 0.0, %v1280
      %v1282 = vpop.f32.mrb[0].mxu0
      %1283 = vmatprep.mubr.bf16.mxu0 0
      %1284 = vmatmul.mubr.bf16.gmra.mrb[0].mxu0 %v1232
      %v1285 = vpop.f32.mrb[0].mxu0
      %v1286 = vadd.f32 0.0, %v1285
      %v1287 = vpop.f32.mrb[0].mxu0
      %v1288 = vpop.f32.mrb[0].mxu0
      %v1289 = vadd.f32 0.0, %v1288
      %v1290 = vpop.f32.mrb[0].mxu0
      %1291 = vmatprep.mubr.bf16.mxu0 0
      %1292 = vmatmul.mubr.bf16.gmra.mrb[0].mxu0 %v1235
      %v1293 = vpop.f32.mrb[0].mxu0
      %v1294 = vadd.f32 0.0, %v1293
      %v1295 = vpop.f32.mrb[0].mxu0
      %v1296 = vpop.f32.mrb[0].mxu0
      %v1297 = vadd.f32 0.0, %v1296
      %v1298 = vpop.f32.mrb[0].mxu0
      %1299 = vmatprep.mubr.bf16.mxu0 0
      %1300 = vmatmul.mubr.bf16.gmra.mrb[0].mxu0 %v1238
      %v1301 = vpop.f32.mrb[0].mxu0
      %v1302 = vadd.f32 0.0, %v1301
      %v1303 = vpop.f32.mrb[0].mxu0
      %v1304 = vpop.f32.mrb[0].mxu0
      %v1305 = vadd.f32 0.0, %v1304
      %v1306 = vpop.f32.mrb[0].mxu0
      %1307 = vdwg.mxu0
      %v1308 = vadd.f32 %v1125, %v1278
      %v1309 = vadd.f32 %v1126, %v1281
      %v1310 = vadd.f32 %v1127, %v1286
      %v1311 = vadd.f32 %v1128, %v1289
      %v1312 = vadd.f32 %v1129, %v1294
      %v1313 = vadd.f32 %v1130, %v1297
      %v1314 = vadd.f32 %v1131, %v1302
      %v1315 = vadd.f32 %v1132, %v1305
      %1316 = vrot.lane.b32.xlu0 %v406, 122
      %v1317 = vpop.permute.xlu0 %1316
      %1318 = vrot.lane.b32.xlu0 %v407, 122
      %v1319 = vpop.permute.xlu0 %1318
      %1320 = vrot.lane.b32.xlu0 %v408, 122
      %v1321 = vpop.permute.xlu0 %1320
      %1322 = vrot.lane.b32.xlu0 %v409, 122
      %v1323 = vpop.permute.xlu0 %1322
      %v1325 = vsel %vm418, %v1317, 0
      %v1328 = vsel %vm418, %v1319, 0
      %v1331 = vsel %vm418, %v1321, 0
      %v1334 = vsel %vm418, %v1323, 0
      %v1337 = vand.u32 %v348, %v434
      %1339 = vmatprep.subr.bf16.mxu0 0
      %1340 = vmatpush1.bf16.msra.mxu0 %v1337
      %1341 = vmatprep.subr.bf16.mxu0 0
      %1342 = vmatpush1.bf16.msra.mxu0 0
      %1343 = vmatprep.subr.bf16.mxu0 0
      %1344 = vmatpush1.bf16.msra.mxu0 0
      %1345 = vmatprep.subr.bf16.mxu0 0
      %1346 = vmatpush1.bf16.msra.mxu0 0
      %1347 = vmatprep.subr.bf16.mxu0 0
      %1348 = vmatpush1.bf16.msra.mxu0 0
      %1349 = vmatprep.subr.bf16.mxu0 0
      %1350 = vmatpush1.bf16.msra.mxu0 0
      %1351 = vmatprep.subr.bf16.mxu0 0
      %1352 = vmatpush1.bf16.msra.mxu0 0
      %1353 = vmatprep.subr.bf16.mxu0 0
      %1354 = vmatpush1.bf16.msra.mxu0 0
      %1355 = vmatprep.subr.bf16.mxu0 0
      %1356 = vmatpush1.bf16.msra.mxu0 0
      %1357 = vmatprep.subr.bf16.mxu0 0
      %1358 = vmatpush1.bf16.msra.mxu0 0
      %1359 = vmatprep.subr.bf16.mxu0 0
      %1360 = vmatpush1.bf16.msra.mxu0 0
      %1361 = vmatprep.subr.bf16.mxu0 0
      %1362 = vmatpush1.bf16.msra.mxu0 0
      %1363 = vmatprep.subr.bf16.mxu0 0
      %1364 = vmatpush1.bf16.msra.mxu0 0
      %1365 = vmatprep.subr.bf16.mxu0 0
      %1366 = vmatpush1.bf16.msra.mxu0 0
      %1367 = vmatprep.subr.bf16.mxu0 0
      %1368 = vmatpush1.bf16.msra.mxu0 0
      %1369 = vmatprep.subr.bf16.mxu0 0
      %1370 = vmatpush1.bf16.msra.mxu0 0
      %1371 = vmatprep.mubr.bf16.mxu0 0
      %1372 = vmatmul.mubr.bf16.gmra.mrb[0].mxu0 %v1325
      %v1373 = vpop.f32.mrb[0].mxu0
      %v1374 = vadd.f32 0.0, %v1373
      %v1375 = vpop.f32.mrb[0].mxu0
      %v1376 = vpop.f32.mrb[0].mxu0
      %v1377 = vadd.f32 0.0, %v1376
      %v1378 = vpop.f32.mrb[0].mxu0
      %1379 = vmatprep.mubr.bf16.mxu0 0
      %1380 = vmatmul.mubr.bf16.gmra.mrb[0].mxu0 %v1328
      %v1381 = vpop.f32.mrb[0].mxu0
      %v1382 = vadd.f32 0.0, %v1381
      %v1383 = vpop.f32.mrb[0].mxu0
      %v1384 = vpop.f32.mrb[0].mxu0
      %v1385 = vadd.f32 0.0, %v1384
      %v1386 = vpop.f32.mrb[0].mxu0
      %1387 = vmatprep.mubr.bf16.mxu0 0
      %1388 = vmatmul.mubr.bf16.gmra.mrb[0].mxu0 %v1331
      %v1389 = vpop.f32.mrb[0].mxu0
      %v1390 = vadd.f32 0.0, %v1389
      %v1391 = vpop.f32.mrb[0].mxu0
      %v1392 = vpop.f32.mrb[0].mxu0
      %v1393 = vadd.f32 0.0, %v1392
      %v1394 = vpop.f32.mrb[0].mxu0
      %1395 = vmatprep.mubr.bf16.mxu0 0
      %1396 = vmatmul.mubr.bf16.gmra.mrb[0].mxu0 %v1334
      %v1397 = vpop.f32.mrb[0].mxu0
      %v1398 = vadd.f32 0.0, %v1397
      %v1399 = vpop.f32.mrb[0].mxu0
      %v1400 = vpop.f32.mrb[0].mxu0
      %v1401 = vadd.f32 0.0, %v1400
      %v1402 = vpop.f32.mrb[0].mxu0
      %1403 = vdwg.mxu0
      %v1404 = vadd.f32 %v1308, %v1374
      %v1405 = vadd.f32 %v1309, %v1377
      %v1406 = vadd.f32 %v1310, %v1382
      %v1407 = vadd.f32 %v1311, %v1385
      %v1408 = vadd.f32 %v1312, %v1390
      %v1409 = vadd.f32 %v1313, %v1393
      %v1410 = vadd.f32 %v1314, %v1398
      %v1411 = vadd.f32 %v1315, %v1401
      %1412 = vrot.lane.b32.xlu0 %v406, 119
      %v1413 = vpop.permute.xlu0 %1412
      %1414 = vrot.lane.b32.xlu0 %v407, 119
      %v1415 = vpop.permute.xlu0 %1414
      %1416 = vrot.lane.b32.xlu0 %v408, 119
      %v1417 = vpop.permute.xlu0 %1416
      %1418 = vrot.lane.b32.xlu0 %v409, 119
      %v1419 = vpop.permute.xlu0 %1418
      %v1421 = vsel %vm418, %v1413, 0
      %v1424 = vsel %vm418, %v1415, 0
      %v1427 = vsel %vm418, %v1417, 0
      %v1430 = vsel %vm418, %v1419, 0
      %v1433 = vand.u32 %v349, %v434
      %1435 = vmatprep.subr.bf16.mxu0 0
      %1436 = vmatpush1.bf16.msra.mxu0 %v1433
      %1437 = vmatprep.subr.bf16.mxu0 0
      %1438 = vmatpush1.bf16.msra.mxu0 0
      %1439 = vmatprep.subr.bf16.mxu0 0
      %1440 = vmatpush1.bf16.msra.mxu0 0
      %1441 = vmatprep.subr.bf16.mxu0 0
      %1442 = vmatpush1.bf16.msra.mxu0 0
      %1443 = vmatprep.subr.bf16.mxu0 0
      %1444 = vmatpush1.bf16.msra.mxu0 0
      %1445 = vmatprep.subr.bf16.mxu0 0
      %1446 = vmatpush1.bf16.msra.mxu0 0
      %1447 = vmatprep.subr.bf16.mxu0 0
      %1448 = vmatpush1.bf16.msra.mxu0 0
      %1449 = vmatprep.subr.bf16.mxu0 0
      %1450 = vmatpush1.bf16.msra.mxu0 0
      %1451 = vmatprep.subr.bf16.mxu0 0
      %1452 = vmatpush1.bf16.msra.mxu0 0
      %1453 = vmatprep.subr.bf16.mxu0 0
      %1454 = vmatpush1.bf16.msra.mxu0 0
      %1455 = vmatprep.subr.bf16.mxu0 0
      %1456 = vmatpush1.bf16.msra.mxu0 0
      %1457 = vmatprep.subr.bf16.mxu0 0
      %1458 = vmatpush1.bf16.msra.mxu0 0
      %1459 = vmatprep.subr.bf16.mxu0 0
      %1460 = vmatpush1.bf16.msra.mxu0 0
      %1461 = vmatprep.subr.bf16.mxu0 0
      %1462 = vmatpush1.bf16.msra.mxu0 0
      %1463 = vmatprep.subr.bf16.mxu0 0
      %1464 = vmatpush1.bf16.msra.mxu0 0
      %1465 = vmatprep.subr.bf16.mxu0 0
      %1466 = vmatpush1.bf16.msra.mxu0 0
      %1467 = vmatprep.mubr.bf16.mxu0 0
      %1468 = vmatmul.mubr.bf16.gmra.mrb[0].mxu0 %v1421
      %v1469 = vpop.f32.mrb[0].mxu0
      %v1470 = vadd.f32 0.0, %v1469
      %v1471 = vpop.f32.mrb[0].mxu0
      %v1472 = vpop.f32.mrb[0].mxu0
      %v1473 = vadd.f32 0.0, %v1472
      %v1474 = vpop.f32.mrb[0].mxu0
      %1475 = vmatprep.mubr.bf16.mxu0 0
      %1476 = vmatmul.mubr.bf16.gmra.mrb[0].mxu0 %v1424
      %v1477 = vpop.f32.mrb[0].mxu0
      %v1478 = vadd.f32 0.0, %v1477
      %v1479 = vpop.f32.mrb[0].mxu0
      %v1480 = vpop.f32.mrb[0].mxu0
      %v1481 = vadd.f32 0.0, %v1480
      %v1482 = vpop.f32.mrb[0].mxu0
      %1483 = vmatprep.mubr.bf16.mxu0 0
      %1484 = vmatmul.mubr.bf16.gmra.mrb[0].mxu0 %v1427
      %v1485 = vpop.f32.mrb[0].mxu0
      %v1486 = vadd.f32 0.0, %v1485
      %v1487 = vpop.f32.mrb[0].mxu0
      %v1488 = vpop.f32.mrb[0].mxu0
      %v1489 = vadd.f32 0.0, %v1488
      %v1490 = vpop.f32.mrb[0].mxu0
      %1491 = vmatprep.mubr.bf16.mxu0 0
      %1492 = vmatmul.mubr.bf16.gmra.mrb[0].mxu0 %v1430
      %v1493 = vpop.f32.mrb[0].mxu0
      %v1494 = vadd.f32 0.0, %v1493
      %v1495 = vpop.f32.mrb[0].mxu0
      %v1496 = vpop.f32.mrb[0].mxu0
      %v1497 = vadd.f32 0.0, %v1496
      %v1498 = vpop.f32.mrb[0].mxu0
      %1499 = vdwg.mxu0
      %v1500 = vadd.f32 %v1404, %v1470
      %v1501 = vadd.f32 %v1405, %v1473
      %v1502 = vadd.f32 %v1406, %v1478
      %v1503 = vadd.f32 %v1407, %v1481
      %v1504 = vadd.f32 %v1408, %v1486
      %v1505 = vadd.f32 %v1409, %v1489
      %v1506 = vadd.f32 %v1410, %v1494
      %v1507 = vadd.f32 %v1411, %v1497
      %1508 = vrot.lane.b32.xlu0 %v706, 122
      %v1509 = vpop.permute.xlu0 %1508
      %1510 = vrot.lane.b32.xlu0 %v707, 122
      %v1511 = vpop.permute.xlu0 %1510
      %1512 = vrot.lane.b32.xlu0 %v708, 122
      %v1513 = vpop.permute.xlu0 %1512
      %1514 = vrot.lane.b32.xlu0 %v709, 122
      %v1515 = vpop.permute.xlu0 %1514
      %v1517 = vsel %vm418, %v1509, 0
      %v1520 = vsel %vm418, %v1511, 0
      %v1523 = vsel %vm418, %v1513, 0
      %v1526 = vsel %vm418, %v1515, 0
      %v1529 = vand.u32 %v350, %v434
      %1531 = vmatprep.subr.bf16.mxu0 0
      %1532 = vmatpush1.bf16.msra.mxu0 %v1529
      %1533 = vmatprep.subr.bf16.mxu0 0
      %1534 = vmatpush1.bf16.msra.mxu0 0
      %1535 = vmatprep.subr.bf16.mxu0 0
      %1536 = vmatpush1.bf16.msra.mxu0 0
      %1537 = vmatprep.subr.bf16.mxu0 0
      %1538 = vmatpush1.bf16.msra.mxu0 0
      %1539 = vmatprep.subr.bf16.mxu0 0
      %1540 = vmatpush1.bf16.msra.mxu0 0
      %1541 = vmatprep.subr.bf16.mxu0 0
      %1542 = vmatpush1.bf16.msra.mxu0 0
      %1543 = vmatprep.subr.bf16.mxu0 0
      %1544 = vmatpush1.bf16.msra.mxu0 0
      %1545 = vmatprep.subr.bf16.mxu0 0
      %1546 = vmatpush1.bf16.msra.mxu0 0
      %1547 = vmatprep.subr.bf16.mxu0 0
      %1548 = vmatpush1.bf16.msra.mxu0 0
      %1549 = vmatprep.subr.bf16.mxu0 0
      %1550 = vmatpush1.bf16.msra.mxu0 0
      %1551 = vmatprep.subr.bf16.mxu0 0
      %1552 = vmatpush1.bf16.msra.mxu0 0
      %1553 = vmatprep.subr.bf16.mxu0 0
      %1554 = vmatpush1.bf16.msra.mxu0 0
      %1555 = vmatprep.subr.bf16.mxu0 0
      %1556 = vmatpush1.bf16.msra.mxu0 0
      %1557 = vmatprep.subr.bf16.mxu0 0
      %1558 = vmatpush1.bf16.msra.mxu0 0
      %1559 = vmatprep.subr.bf16.mxu0 0
      %1560 = vmatpush1.bf16.msra.mxu0 0
      %1561 = vmatprep.subr.bf16.mxu0 0
      %1562 = vmatpush1.bf16.msra.mxu0 0
      %1563 = vmatprep.mubr.bf16.mxu0 0
      %1564 = vmatmul.mubr.bf16.gmra.mrb[0].mxu0 %v1517
      %v1565 = vpop.f32.mrb[0].mxu0
      %v1566 = vadd.f32 0.0, %v1565
      %v1567 = vpop.f32.mrb[0].mxu0
      %v1568 = vpop.f32.mrb[0].mxu0
      %v1569 = vadd.f32 0.0, %v1568
      %v1570 = vpop.f32.mrb[0].mxu0
      %1571 = vmatprep.mubr.bf16.mxu0 0
      %1572 = vmatmul.mubr.bf16.gmra.mrb[0].mxu0 %v1520
      %v1573 = vpop.f32.mrb[0].mxu0
      %v1574 = vadd.f32 0.0, %v1573
      %v1575 = vpop.f32.mrb[0].mxu0
      %v1576 = vpop.f32.mrb[0].mxu0
      %v1577 = vadd.f32 0.0, %v1576
      %v1578 = vpop.f32.mrb[0].mxu0
      %1579 = vmatprep.mubr.bf16.mxu0 0
      %1580 = vmatmul.mubr.bf16.gmra.mrb[0].mxu0 %v1523
      %v1581 = vpop.f32.mrb[0].mxu0
      %v1582 = vadd.f32 0.0, %v1581
      %v1583 = vpop.f32.mrb[0].mxu0
      %v1584 = vpop.f32.mrb[0].mxu0
      %v1585 = vadd.f32 0.0, %v1584
      %v1586 = vpop.f32.mrb[0].mxu0
      %1587 = vmatprep.mubr.bf16.mxu0 0
      %1588 = vmatmul.mubr.bf16.gmra.mrb[0].mxu0 %v1526
      %v1589 = vpop.f32.mrb[0].mxu0
      %v1590 = vadd.f32 0.0, %v1589
      %v1591 = vpop.f32.mrb[0].mxu0
      %v1592 = vpop.f32.mrb[0].mxu0
      %v1593 = vadd.f32 0.0, %v1592
      %v1594 = vpop.f32.mrb[0].mxu0
      %1595 = vdwg.mxu0
      %v1596 = vadd.f32 %v1500, %v1566
      %v1597 = vadd.f32 %v1501, %v1569
      %v1598 = vadd.f32 %v1502, %v1574
      %v1599 = vadd.f32 %v1503, %v1577
      %v1600 = vadd.f32 %v1504, %v1582
      %v1601 = vadd.f32 %v1505, %v1585
      %v1602 = vadd.f32 %v1506, %v1590
      %v1603 = vadd.f32 %v1507, %v1593
      %1604 = vrot.lane.b32.xlu0 %v706, 119
      %v1605 = vpop.permute.xlu0 %1604
      %1606 = vrot.lane.b32.xlu0 %v707, 119
      %v1607 = vpop.permute.xlu0 %1606
      %1608 = vrot.lane.b32.xlu0 %v708, 119
      %v1609 = vpop.permute.xlu0 %1608
      %1610 = vrot.lane.b32.xlu0 %v709, 119
      %v1611 = vpop.permute.xlu0 %1610
      %v1613 = vsel %vm418, %v1605, 0
      %v1616 = vsel %vm418, %v1607, 0
      %v1619 = vsel %vm418, %v1609, 0
      %v1622 = vsel %vm418, %v1611, 0
      %v1625 = vand.u32 %v351, %v434
      %1627 = vmatprep.subr.bf16.mxu0 0
      %1628 = vmatpush1.bf16.msra.mxu0 %v1625
      %1629 = vmatprep.subr.bf16.mxu0 0
      %1630 = vmatpush1.bf16.msra.mxu0 0
      %1631 = vmatprep.subr.bf16.mxu0 0
      %1632 = vmatpush1.bf16.msra.mxu0 0
      %1633 = vmatprep.subr.bf16.mxu0 0
      %1634 = vmatpush1.bf16.msra.mxu0 0
      %1635 = vmatprep.subr.bf16.mxu0 0
      %1636 = vmatpush1.bf16.msra.mxu0 0
      %1637 = vmatprep.subr.bf16.mxu0 0
      %1638 = vmatpush1.bf16.msra.mxu0 0
      %1639 = vmatprep.subr.bf16.mxu0 0
      %1640 = vmatpush1.bf16.msra.mxu0 0
      %1641 = vmatprep.subr.bf16.mxu0 0
      %1642 = vmatpush1.bf16.msra.mxu0 0
      %1643 = vmatprep.subr.bf16.mxu0 0
      %1644 = vmatpush1.bf16.msra.mxu0 0
      %1645 = vmatprep.subr.bf16.mxu0 0
      %1646 = vmatpush1.bf16.msra.mxu0 0
      %1647 = vmatprep.subr.bf16.mxu0 0
      %1648 = vmatpush1.bf16.msra.mxu0 0
      %1649 = vmatprep.subr.bf16.mxu0 0
      %1650 = vmatpush1.bf16.msra.mxu0 0
      %1651 = vmatprep.subr.bf16.mxu0 0
      %1652 = vmatpush1.bf16.msra.mxu0 0
      %1653 = vmatprep.subr.bf16.mxu0 0
      %1654 = vmatpush1.bf16.msra.mxu0 0
      %1655 = vmatprep.subr.bf16.mxu0 0
      %1656 = vmatpush1.bf16.msra.mxu0 0
      %1657 = vmatprep.subr.bf16.mxu0 0
      %1658 = vmatpush1.bf16.msra.mxu0 0
      %1659 = vmatprep.mubr.bf16.mxu0 0
      %1660 = vmatmul.mubr.bf16.gmra.mrb[0].mxu0 %v1613
      %v1661 = vpop.f32.mrb[0].mxu0
      %v1662 = vadd.f32 0.0, %v1661
      %v1663 = vpop.f32.mrb[0].mxu0
      %v1664 = vpop.f32.mrb[0].mxu0
      %v1665 = vadd.f32 0.0, %v1664
      %v1666 = vpop.f32.mrb[0].mxu0
      %1667 = vmatprep.mubr.bf16.mxu0 0
      %1668 = vmatmul.mubr.bf16.gmra.mrb[0].mxu0 %v1616
      %v1669 = vpop.f32.mrb[0].mxu0
      %v1670 = vadd.f32 0.0, %v1669
      %v1671 = vpop.f32.mrb[0].mxu0
      %v1672 = vpop.f32.mrb[0].mxu0
      %v1673 = vadd.f32 0.0, %v1672
      %v1674 = vpop.f32.mrb[0].mxu0
      %1675 = vmatprep.mubr.bf16.mxu0 0
      %1676 = vmatmul.mubr.bf16.gmra.mrb[0].mxu0 %v1619
      %v1677 = vpop.f32.mrb[0].mxu0
      %v1678 = vadd.f32 0.0, %v1677
      %v1679 = vpop.f32.mrb[0].mxu0
      %v1680 = vpop.f32.mrb[0].mxu0
      %v1681 = vadd.f32 0.0, %v1680
      %v1682 = vpop.f32.mrb[0].mxu0
      %1683 = vmatprep.mubr.bf16.mxu0 0
      %1684 = vmatmul.mubr.bf16.gmra.mrb[0].mxu0 %v1622
      %v1685 = vpop.f32.mrb[0].mxu0
      %v1686 = vadd.f32 0.0, %v1685
      %v1687 = vpop.f32.mrb[0].mxu0
      %v1688 = vpop.f32.mrb[0].mxu0
      %v1689 = vadd.f32 0.0, %v1688
      %v1690 = vpop.f32.mrb[0].mxu0
      %1691 = vdwg.mxu0
      %v1692 = vadd.f32 %v1596, %v1662
      %v1693 = vadd.f32 %v1597, %v1665
      %v1694 = vadd.f32 %v1598, %v1670
      %v1695 = vadd.f32 %v1599, %v1673
      %v1696 = vadd.f32 %v1600, %v1678
      %v1697 = vadd.f32 %v1601, %v1681
      %v1698 = vadd.f32 %v1602, %v1686
      %v1699 = vadd.f32 %v1603, %v1689
      %1700 = vrot.lane.b32.xlu0 %v945, 122
      %v1701 = vpop.permute.xlu0 %1700
      %1702 = vrot.lane.b32.xlu0 %v946, 122
      %v1703 = vpop.permute.xlu0 %1702
      %1704 = vrot.lane.b32.xlu0 %v947, 122
      %v1705 = vpop.permute.xlu0 %1704
      %1706 = vrot.lane.b32.xlu0 %v948, 122
      %v1707 = vpop.permute.xlu0 %1706
      %v1709 = vsel %vm418, %v1701, 0
      %v1712 = vsel %vm418, %v1703, 0
      %v1715 = vsel %vm418, %v1705, 0
      %v1718 = vsel %vm418, %v1707, 0
      %v1721 = vand.u32 %v352, %v434
      %1723 = vmatprep.subr.bf16.mxu0 0
      %1724 = vmatpush1.bf16.msra.mxu0 %v1721
      %1725 = vmatprep.subr.bf16.mxu0 0
      %1726 = vmatpush1.bf16.msra.mxu0 0
      %1727 = vmatprep.subr.bf16.mxu0 0
      %1728 = vmatpush1.bf16.msra.mxu0 0
      %1729 = vmatprep.subr.bf16.mxu0 0
      %1730 = vmatpush1.bf16.msra.mxu0 0
      %1731 = vmatprep.subr.bf16.mxu0 0
      %1732 = vmatpush1.bf16.msra.mxu0 0
      %1733 = vmatprep.subr.bf16.mxu0 0
      %1734 = vmatpush1.bf16.msra.mxu0 0
      %1735 = vmatprep.subr.bf16.mxu0 0
      %1736 = vmatpush1.bf16.msra.mxu0 0
      %1737 = vmatprep.subr.bf16.mxu0 0
      %1738 = vmatpush1.bf16.msra.mxu0 0
      %1739 = vmatprep.subr.bf16.mxu0 0
      %1740 = vmatpush1.bf16.msra.mxu0 0
      %1741 = vmatprep.subr.bf16.mxu0 0
      %1742 = vmatpush1.bf16.msra.mxu0 0
      %1743 = vmatprep.subr.bf16.mxu0 0
      %1744 = vmatpush1.bf16.msra.mxu0 0
      %1745 = vmatprep.subr.bf16.mxu0 0
      %1746 = vmatpush1.bf16.msra.mxu0 0
      %1747 = vmatprep.subr.bf16.mxu0 0
      %1748 = vmatpush1.bf16.msra.mxu0 0
      %1749 = vmatprep.subr.bf16.mxu0 0
      %1750 = vmatpush1.bf16.msra.mxu0 0
      %1751 = vmatprep.subr.bf16.mxu0 0
      %1752 = vmatpush1.bf16.msra.mxu0 0
      %1753 = vmatprep.subr.bf16.mxu0 0
      %1754 = vmatpush1.bf16.msra.mxu0 0
      %1755 = vmatprep.mubr.bf16.mxu0 0
      %1756 = vmatmul.mubr.bf16.gmra.mrb[0].mxu0 %v1709
      %v1757 = vpop.f32.mrb[0].mxu0
      %v1758 = vadd.f32 0.0, %v1757
      %v1759 = vpop.f32.mrb[0].mxu0
      %v1760 = vpop.f32.mrb[0].mxu0
      %v1761 = vadd.f32 0.0, %v1760
      %v1762 = vpop.f32.mrb[0].mxu0
      %1763 = vmatprep.mubr.bf16.mxu0 0
      %1764 = vmatmul.mubr.bf16.gmra.mrb[0].mxu0 %v1712
      %v1765 = vpop.f32.mrb[0].mxu0
      %v1766 = vadd.f32 0.0, %v1765
      %v1767 = vpop.f32.mrb[0].mxu0
      %v1768 = vpop.f32.mrb[0].mxu0
      %v1769 = vadd.f32 0.0, %v1768
      %v1770 = vpop.f32.mrb[0].mxu0
      %1771 = vmatprep.mubr.bf16.mxu0 0
      %1772 = vmatmul.mubr.bf16.gmra.mrb[0].mxu0 %v1715
      %v1773 = vpop.f32.mrb[0].mxu0
      %v1774 = vadd.f32 0.0, %v1773
      %v1775 = vpop.f32.mrb[0].mxu0
      %v1776 = vpop.f32.mrb[0].mxu0
      %v1777 = vadd.f32 0.0, %v1776
      %v1778 = vpop.f32.mrb[0].mxu0
      %1779 = vmatprep.mubr.bf16.mxu0 0
      %1780 = vmatmul.mubr.bf16.gmra.mrb[0].mxu0 %v1718
      %v1781 = vpop.f32.mrb[0].mxu0
      %v1782 = vadd.f32 0.0, %v1781
      %v1783 = vpop.f32.mrb[0].mxu0
      %v1784 = vpop.f32.mrb[0].mxu0
      %v1785 = vadd.f32 0.0, %v1784
      %v1786 = vpop.f32.mrb[0].mxu0
      %1787 = vdwg.mxu0
      %v1788 = vadd.f32 %v1692, %v1758
      %v1789 = vadd.f32 %v1693, %v1761
      %v1790 = vadd.f32 %v1694, %v1766
      %v1791 = vadd.f32 %v1695, %v1769
      %v1792 = vadd.f32 %v1696, %v1774
      %v1793 = vadd.f32 %v1697, %v1777
      %v1794 = vadd.f32 %v1698, %v1782
      %v1795 = vadd.f32 %v1699, %v1785
      %1796 = vrot.lane.b32.xlu0 %v945, 119
      %v1797 = vpop.permute.xlu0 %1796
      %1798 = vrot.lane.b32.xlu0 %v946, 119
      %v1799 = vpop.permute.xlu0 %1798
      %1800 = vrot.lane.b32.xlu0 %v947, 119
      %v1801 = vpop.permute.xlu0 %1800
      %1802 = vrot.lane.b32.xlu0 %v948, 119
      %v1803 = vpop.permute.xlu0 %1802
      %v1805 = vsel %vm418, %v1797, 0
      %v1808 = vsel %vm418, %v1799, 0
      %v1811 = vsel %vm418, %v1801, 0
      %v1814 = vsel %vm418, %v1803, 0
      %v1817 = vand.u32 %v353, %v434
      %1819 = vmatprep.subr.bf16.mxu0 0
      %1820 = vmatpush1.bf16.msra.mxu0 %v1817
      %1821 = vmatprep.subr.bf16.mxu0 0
      %1822 = vmatpush1.bf16.msra.mxu0 0
      %1823 = vmatprep.subr.bf16.mxu0 0
      %1824 = vmatpush1.bf16.msra.mxu0 0
      %1825 = vmatprep.subr.bf16.mxu0 0
      %1826 = vmatpush1.bf16.msra.mxu0 0
      %1827 = vmatprep.subr.bf16.mxu0 0
      %1828 = vmatpush1.bf16.msra.mxu0 0
      %1829 = vmatprep.subr.bf16.mxu0 0
      %1830 = vmatpush1.bf16.msra.mxu0 0
      %1831 = vmatprep.subr.bf16.mxu0 0
      %1832 = vmatpush1.bf16.msra.mxu0 0
      %1833 = vmatprep.subr.bf16.mxu0 0
      %1834 = vmatpush1.bf16.msra.mxu0 0
      %1835 = vmatprep.subr.bf16.mxu0 0
      %1836 = vmatpush1.bf16.msra.mxu0 0
      %1837 = vmatprep.subr.bf16.mxu0 0
      %1838 = vmatpush1.bf16.msra.mxu0 0
      %1839 = vmatprep.subr.bf16.mxu0 0
      %1840 = vmatpush1.bf16.msra.mxu0 0
      %1841 = vmatprep.subr.bf16.mxu0 0
      %1842 = vmatpush1.bf16.msra.mxu0 0
      %1843 = vmatprep.subr.bf16.mxu0 0
      %1844 = vmatpush1.bf16.msra.mxu0 0
      %1845 = vmatprep.subr.bf16.mxu0 0
      %1846 = vmatpush1.bf16.msra.mxu0 0
      %1847 = vmatprep.subr.bf16.mxu0 0
      %1848 = vmatpush1.bf16.msra.mxu0 0
      %1849 = vmatprep.subr.bf16.mxu0 0
      %1850 = vmatpush1.bf16.msra.mxu0 0
      %1851 = vmatprep.mubr.bf16.mxu0 0
      %1852 = vmatmul.mubr.bf16.gmra.mrb[0].mxu0 %v1805
      %v1853 = vpop.f32.mrb[0].mxu0
      %v1854 = vadd.f32 0.0, %v1853
      %v1855 = vpop.f32.mrb[0].mxu0
      %v1856 = vpop.f32.mrb[0].mxu0
      %v1857 = vadd.f32 0.0, %v1856
      %v1858 = vpop.f32.mrb[0].mxu0
      %1859 = vmatprep.mubr.bf16.mxu0 0
      %1860 = vmatmul.mubr.bf16.gmra.mrb[0].mxu0 %v1808
      %v1861 = vpop.f32.mrb[0].mxu0
      %v1862 = vadd.f32 0.0, %v1861
      %v1863 = vpop.f32.mrb[0].mxu0
      %v1864 = vpop.f32.mrb[0].mxu0
      %v1865 = vadd.f32 0.0, %v1864
      %v1866 = vpop.f32.mrb[0].mxu0
      %1867 = vmatprep.mubr.bf16.mxu0 0
      %1868 = vmatmul.mubr.bf16.gmra.mrb[0].mxu0 %v1811
      %v1869 = vpop.f32.mrb[0].mxu0
      %v1870 = vadd.f32 0.0, %v1869
      %v1871 = vpop.f32.mrb[0].mxu0
      %v1872 = vpop.f32.mrb[0].mxu0
      %v1873 = vadd.f32 0.0, %v1872
      %v1874 = vpop.f32.mrb[0].mxu0
      %1875 = vmatprep.mubr.bf16.mxu0 0
      %1876 = vmatmul.mubr.bf16.gmra.mrb[0].mxu0 %v1814
      %v1877 = vpop.f32.mrb[0].mxu0
      %v1878 = vadd.f32 0.0, %v1877
      %v1879 = vpop.f32.mrb[0].mxu0
      %v1880 = vpop.f32.mrb[0].mxu0
      %v1881 = vadd.f32 0.0, %v1880
      %v1882 = vpop.f32.mrb[0].mxu0
      %1883 = vdwg.mxu0
      %v1884 = vadd.f32 %v1788, %v1854
      %v1885 = vadd.f32 %v1789, %v1857
      %v1886 = vadd.f32 %v1790, %v1862
      %v1887 = vadd.f32 %v1791, %v1865
      %v1888 = vadd.f32 %v1792, %v1870
      %v1889 = vadd.f32 %v1793, %v1873
      %v1890 = vadd.f32 %v1794, %v1878
      %v1891 = vadd.f32 %v1795, %v1881
      %1892 = vrot.lane.b32.xlu0 %v1224, 122
      %v1893 = vpop.permute.xlu0 %1892
      %1894 = vrot.lane.b32.xlu0 %v1225, 122
      %v1895 = vpop.permute.xlu0 %1894
      %1896 = vrot.lane.b32.xlu0 %v1226, 122
      %v1897 = vpop.permute.xlu0 %1896
      %1898 = vrot.lane.b32.xlu0 %v1227, 122
      %v1899 = vpop.permute.xlu0 %1898
      %v1901 = vsel %vm418, %v1893, 0
      %v1904 = vsel %vm418, %v1895, 0
      %v1907 = vsel %vm418, %v1897, 0
      %v1910 = vsel %vm418, %v1899, 0
      %v1913 = vand.u32 %v354, %v434
      %1915 = vmatprep.subr.bf16.mxu0 0
      %1916 = vmatpush1.bf16.msra.mxu0 %v1913
      %1917 = vmatprep.subr.bf16.mxu0 0
      %1918 = vmatpush1.bf16.msra.mxu0 0
      %1919 = vmatprep.subr.bf16.mxu0 0
      %1920 = vmatpush1.bf16.msra.mxu0 0
      %1921 = vmatprep.subr.bf16.mxu0 0
      %1922 = vmatpush1.bf16.msra.mxu0 0
      %1923 = vmatprep.subr.bf16.mxu0 0
      %1924 = vmatpush1.bf16.msra.mxu0 0
      %1925 = vmatprep.subr.bf16.mxu0 0
      %1926 = vmatpush1.bf16.msra.mxu0 0
      %1927 = vmatprep.subr.bf16.mxu0 0
      %1928 = vmatpush1.bf16.msra.mxu0 0
      %1929 = vmatprep.subr.bf16.mxu0 0
      %1930 = vmatpush1.bf16.msra.mxu0 0
      %1931 = vmatprep.subr.bf16.mxu0 0
      %1932 = vmatpush1.bf16.msra.mxu0 0
      %1933 = vmatprep.subr.bf16.mxu0 0
      %1934 = vmatpush1.bf16.msra.mxu0 0
      %1935 = vmatprep.subr.bf16.mxu0 0
      %1936 = vmatpush1.bf16.msra.mxu0 0
      %1937 = vmatprep.subr.bf16.mxu0 0
      %1938 = vmatpush1.bf16.msra.mxu0 0
      %1939 = vmatprep.subr.bf16.mxu0 0
      %1940 = vmatpush1.bf16.msra.mxu0 0
      %1941 = vmatprep.subr.bf16.mxu0 0
      %1942 = vmatpush1.bf16.msra.mxu0 0
      %1943 = vmatprep.subr.bf16.mxu0 0
      %1944 = vmatpush1.bf16.msra.mxu0 0
      %1945 = vmatprep.subr.bf16.mxu0 0
      %1946 = vmatpush1.bf16.msra.mxu0 0
      %1947 = vmatprep.mubr.bf16.mxu0 0
      %1948 = vmatmul.mubr.bf16.gmra.mrb[0].mxu0 %v1901
      %v1949 = vpop.f32.mrb[0].mxu0
      %v1950 = vadd.f32 0.0, %v1949
      %v1951 = vpop.f32.mrb[0].mxu0
      %v1952 = vpop.f32.mrb[0].mxu0
      %v1953 = vadd.f32 0.0, %v1952
      %v1954 = vpop.f32.mrb[0].mxu0
      %1955 = vmatprep.mubr.bf16.mxu0 0
      %1956 = vmatmul.mubr.bf16.gmra.mrb[0].mxu0 %v1904
      %v1957 = vpop.f32.mrb[0].mxu0
      %v1958 = vadd.f32 0.0, %v1957
      %v1959 = vpop.f32.mrb[0].mxu0
      %v1960 = vpop.f32.mrb[0].mxu0
      %v1961 = vadd.f32 0.0, %v1960
      %v1962 = vpop.f32.mrb[0].mxu0
      %1963 = vmatprep.mubr.bf16.mxu0 0
      %1964 = vmatmul.mubr.bf16.gmra.mrb[0].mxu0 %v1907
      %v1965 = vpop.f32.mrb[0].mxu0
      %v1966 = vadd.f32 0.0, %v1965
      %v1967 = vpop.f32.mrb[0].mxu0
      %v1968 = vpop.f32.mrb[0].mxu0
      %v1969 = vadd.f32 0.0, %v1968
      %v1970 = vpop.f32.mrb[0].mxu0
      %1971 = vmatprep.mubr.bf16.mxu0 0
      %1972 = vmatmul.mubr.bf16.gmra.mrb[0].mxu0 %v1910
      %v1973 = vpop.f32.mrb[0].mxu0
      %v1974 = vadd.f32 0.0, %v1973
      %v1975 = vpop.f32.mrb[0].mxu0
      %v1976 = vpop.f32.mrb[0].mxu0
      %v1977 = vadd.f32 0.0, %v1976
      %v1978 = vpop.f32.mrb[0].mxu0
      %1979 = vdwg.mxu0
      %v1980 = vadd.f32 %v1884, %v1950
      %v1981 = vadd.f32 %v1885, %v1953
      %v1982 = vadd.f32 %v1886, %v1958
      %v1983 = vadd.f32 %v1887, %v1961
      %v1984 = vadd.f32 %v1888, %v1966
      %v1985 = vadd.f32 %v1889, %v1969
      %v1986 = vadd.f32 %v1890, %v1974
      %v1987 = vadd.f32 %v1891, %v1977
      %v1989 = vunpack.c.l.b16 %v335
      %v1990 = vpack.c.b16 %v400, %v399
      %v1991 = vpack.c.b16 %v402, %v401
      %v1992 = vpack.c.b16 %v404, %v403
      %v1993 = vpack.c.b16 %v1989, %v405
      %v1995 = vsel %vm418, %v1990, 0
      %v1998 = vsel %vm418, %v1991, 0
      %v2001 = vsel %vm418, %v1992, 0
      %v2004 = vsel %vm418, %v1993, 0
      %v2007 = vand.u32 %v355, %v434
      %2009 = vmatprep.subr.bf16.mxu0 0
      %2010 = vmatpush1.bf16.msra.mxu0 %v2007
      %2011 = vmatprep.subr.bf16.mxu0 0
      %2012 = vmatpush1.bf16.msra.mxu0 0
      %2013 = vmatprep.subr.bf16.mxu0 0
      %2014 = vmatpush1.bf16.msra.mxu0 0
      %2015 = vmatprep.subr.bf16.mxu0 0
      %2016 = vmatpush1.bf16.msra.mxu0 0
      %2017 = vmatprep.subr.bf16.mxu0 0
      %2018 = vmatpush1.bf16.msra.mxu0 0
      %2019 = vmatprep.subr.bf16.mxu0 0
      %2020 = vmatpush1.bf16.msra.mxu0 0
      %2021 = vmatprep.subr.bf16.mxu0 0
      %2022 = vmatpush1.bf16.msra.mxu0 0
      %2023 = vmatprep.subr.bf16.mxu0 0
      %2024 = vmatpush1.bf16.msra.mxu0 0
      %2025 = vmatprep.subr.bf16.mxu0 0
      %2026 = vmatpush1.bf16.msra.mxu0 0
      %2027 = vmatprep.subr.bf16.mxu0 0
      %2028 = vmatpush1.bf16.msra.mxu0 0
      %2029 = vmatprep.subr.bf16.mxu0 0
      %2030 = vmatpush1.bf16.msra.mxu0 0
      %2031 = vmatprep.subr.bf16.mxu0 0
      %2032 = vmatpush1.bf16.msra.mxu0 0
      %2033 = vmatprep.subr.bf16.mxu0 0
      %2034 = vmatpush1.bf16.msra.mxu0 0
      %2035 = vmatprep.subr.bf16.mxu0 0
      %2036 = vmatpush1.bf16.msra.mxu0 0
      %2037 = vmatprep.subr.bf16.mxu0 0
      %2038 = vmatpush1.bf16.msra.mxu0 0
      %2039 = vmatprep.subr.bf16.mxu0 0
      %2040 = vmatpush1.bf16.msra.mxu0 0
      %2041 = vmatprep.mubr.bf16.mxu0 0
      %2042 = vmatmul.mubr.bf16.gmra.mrb[0].mxu0 %v1995
      %v2043 = vpop.f32.mrb[0].mxu0
      %v2044 = vadd.f32 0.0, %v2043
      %v2045 = vpop.f32.mrb[0].mxu0
      %v2046 = vpop.f32.mrb[0].mxu0
      %v2047 = vadd.f32 0.0, %v2046
      %v2048 = vpop.f32.mrb[0].mxu0
      %2049 = vmatprep.mubr.bf16.mxu0 0
      %2050 = vmatmul.mubr.bf16.gmra.mrb[0].mxu0 %v1998
      %v2051 = vpop.f32.mrb[0].mxu0
      %v2052 = vadd.f32 0.0, %v2051
      %v2053 = vpop.f32.mrb[0].mxu0
      %v2054 = vpop.f32.mrb[0].mxu0
      %v2055 = vadd.f32 0.0, %v2054
      %v2056 = vpop.f32.mrb[0].mxu0
      %2057 = vmatprep.mubr.bf16.mxu0 0
      %2058 = vmatmul.mubr.bf16.gmra.mrb[0].mxu0 %v2001
      %v2059 = vpop.f32.mrb[0].mxu0
      %v2060 = vadd.f32 0.0, %v2059
      %v2061 = vpop.f32.mrb[0].mxu0
      %v2062 = vpop.f32.mrb[0].mxu0
      %v2063 = vadd.f32 0.0, %v2062
      %v2064 = vpop.f32.mrb[0].mxu0
      %2065 = vmatprep.mubr.bf16.mxu0 0
      %2066 = vmatmul.mubr.bf16.gmra.mrb[0].mxu0 %v2004
      %v2067 = vpop.f32.mrb[0].mxu0
      %v2068 = vadd.f32 0.0, %v2067
      %v2069 = vpop.f32.mrb[0].mxu0
      %v2070 = vpop.f32.mrb[0].mxu0
      %v2071 = vadd.f32 0.0, %v2070
      %v2072 = vpop.f32.mrb[0].mxu0
      %2073 = vdwg.mxu0
      %v2074 = vadd.f32 %v1980, %v2044
      %v2075 = vadd.f32 %v1981, %v2047
      %v2076 = vadd.f32 %v1982, %v2052
      %v2077 = vadd.f32 %v1983, %v2055
      %v2078 = vadd.f32 %v1984, %v2060
      %v2079 = vadd.f32 %v1985, %v2063
      %v2080 = vadd.f32 %v1986, %v2068
      %v2081 = vadd.f32 %v1987, %v2071
      %2082 = vrot.lane.b32.xlu0 %v1990, 125
      %v2083 = vpop.permute.xlu0 %2082
      %2084 = vrot.lane.b32.xlu0 %v1991, 125
      %v2085 = vpop.permute.xlu0 %2084
      %2086 = vrot.lane.b32.xlu0 %v1992, 125
      %v2087 = vpop.permute.xlu0 %2086
      %2088 = vrot.lane.b32.xlu0 %v1993, 125
      %v2089 = vpop.permute.xlu0 %2088
      %v2091 = vsel %vm418, %v2083, 0
      %v2094 = vsel %vm418, %v2085, 0
      %v2097 = vsel %vm418, %v2087, 0
      %v2100 = vsel %vm418, %v2089, 0
      %v2103 = vand.u32 %v356, %v434
      %2105 = vmatprep.subr.bf16.mxu0 0
      %2106 = vmatpush1.bf16.msra.mxu0 %v2103
      %2107 = vmatprep.subr.bf16.mxu0 0
      %2108 = vmatpush1.bf16.msra.mxu0 0
      %2109 = vmatprep.subr.bf16.mxu0 0
      %2110 = vmatpush1.bf16.msra.mxu0 0
      %2111 = vmatprep.subr.bf16.mxu0 0
      %2112 = vmatpush1.bf16.msra.mxu0 0
      %2113 = vmatprep.subr.bf16.mxu0 0
      %2114 = vmatpush1.bf16.msra.mxu0 0
      %2115 = vmatprep.subr.bf16.mxu0 0
      %2116 = vmatpush1.bf16.msra.mxu0 0
      %2117 = vmatprep.subr.bf16.mxu0 0
      %2118 = vmatpush1.bf16.msra.mxu0 0
      %2119 = vmatprep.subr.bf16.mxu0 0
      %2120 = vmatpush1.bf16.msra.mxu0 0
      %2121 = vmatprep.subr.bf16.mxu0 0
      %2122 = vmatpush1.bf16.msra.mxu0 0
      %2123 = vmatprep.subr.bf16.mxu0 0
      %2124 = vmatpush1.bf16.msra.mxu0 0
      %2125 = vmatprep.subr.bf16.mxu0 0
      %2126 = vmatpush1.bf16.msra.mxu0 0
      %2127 = vmatprep.subr.bf16.mxu0 0
      %2128 = vmatpush1.bf16.msra.mxu0 0
      %2129 = vmatprep.subr.bf16.mxu0 0
      %2130 = vmatpush1.bf16.msra.mxu0 0
      %2131 = vmatprep.subr.bf16.mxu0 0
      %2132 = vmatpush1.bf16.msra.mxu0 0
      %2133 = vmatprep.subr.bf16.mxu0 0
      %2134 = vmatpush1.bf16.msra.mxu0 0
      %2135 = vmatprep.subr.bf16.mxu0 0
      %2136 = vmatpush1.bf16.msra.mxu0 0
      %2137 = vmatprep.mubr.bf16.mxu0 0
      %2138 = vmatmul.mubr.bf16.gmra.mrb[0].mxu0 %v2091
      %v2139 = vpop.f32.mrb[0].mxu0
      %v2140 = vadd.f32 0.0, %v2139
      %v2141 = vpop.f32.mrb[0].mxu0
      %v2142 = vpop.f32.mrb[0].mxu0
      %v2143 = vadd.f32 0.0, %v2142
      %v2144 = vpop.f32.mrb[0].mxu0
      %2145 = vmatprep.mubr.bf16.mxu0 0
      %2146 = vmatmul.mubr.bf16.gmra.mrb[0].mxu0 %v2094
      %v2147 = vpop.f32.mrb[0].mxu0
      %v2148 = vadd.f32 0.0, %v2147
      %v2149 = vpop.f32.mrb[0].mxu0
      %v2150 = vpop.f32.mrb[0].mxu0
      %v2151 = vadd.f32 0.0, %v2150
      %v2152 = vpop.f32.mrb[0].mxu0
      %2153 = vmatprep.mubr.bf16.mxu0 0
      %2154 = vmatmul.mubr.bf16.gmra.mrb[0].mxu0 %v2097
      %v2155 = vpop.f32.mrb[0].mxu0
      %v2156 = vadd.f32 0.0, %v2155
      %v2157 = vpop.f32.mrb[0].mxu0
      %v2158 = vpop.f32.mrb[0].mxu0
      %v2159 = vadd.f32 0.0, %v2158
      %v2160 = vpop.f32.mrb[0].mxu0
      %2161 = vmatprep.mubr.bf16.mxu0 0
      %2162 = vmatmul.mubr.bf16.gmra.mrb[0].mxu0 %v2100
      %v2163 = vpop.f32.mrb[0].mxu0
      %v2164 = vadd.f32 0.0, %v2163
      %v2165 = vpop.f32.mrb[0].mxu0
      %v2166 = vpop.f32.mrb[0].mxu0
      %v2167 = vadd.f32 0.0, %v2166
      %v2168 = vpop.f32.mrb[0].mxu0
      %2169 = vdwg.mxu0
      %v2170 = vadd.f32 %v2074, %v2140
      %v2171 = vadd.f32 %v2075, %v2143
      %v2172 = vadd.f32 %v2076, %v2148
      %v2173 = vadd.f32 %v2077, %v2151
      %v2174 = vadd.f32 %v2078, %v2156
      %v2175 = vadd.f32 %v2079, %v2159
      %v2176 = vadd.f32 %v2080, %v2164
      %v2177 = vadd.f32 %v2081, %v2167
      %v2179 = vshrl.u32 %v335, 16
      %v2181 = vrot.slane %v2179, 4
      %v2182 = vshll.u32 %v335, 16
      %v2184 = vrot.slane %v2182, 5
      %v2185 = vor.u32 %v2181, %v2184
      %v2186 = vrot.slane %v2185, 4
      %v2188 = vshll.u32 %v336, 16
      %v2190 = vrot.slane %v2188, 5
      %v2191 = vsel %vm585, %v2186, %v2190
      %v2192 = vunpack.c.l.b16 %v2191
      %v2193 = vpack.c.b16 %v700, %v699
      %v2194 = vpack.c.b16 %v702, %v701
      %v2195 = vpack.c.b16 %v704, %v703
      %v2196 = vpack.c.b16 %v2192, %v705
      %v2198 = vsel %vm418, %v2193, 0
      %v2201 = vsel %vm418, %v2194, 0
      %v2204 = vsel %vm418, %v2195, 0
      %v2207 = vsel %vm418, %v2196, 0
      %v2210 = vand.u32 %v357, %v434
      %2212 = vmatprep.subr.bf16.mxu0 0
      %2213 = vmatpush1.bf16.msra.mxu0 %v2210
      %2214 = vmatprep.subr.bf16.mxu0 0
      %2215 = vmatpush1.bf16.msra.mxu0 0
      %2216 = vmatprep.subr.bf16.mxu0 0
      %2217 = vmatpush1.bf16.msra.mxu0 0
      %2218 = vmatprep.subr.bf16.mxu0 0
      %2219 = vmatpush1.bf16.msra.mxu0 0
      %2220 = vmatprep.subr.bf16.mxu0 0
      %2221 = vmatpush1.bf16.msra.mxu0 0
      %2222 = vmatprep.subr.bf16.mxu0 0
      %2223 = vmatpush1.bf16.msra.mxu0 0
      %2224 = vmatprep.subr.bf16.mxu0 0
      %2225 = vmatpush1.bf16.msra.mxu0 0
      %2226 = vmatprep.subr.bf16.mxu0 0
      %2227 = vmatpush1.bf16.msra.mxu0 0
      %2228 = vmatprep.subr.bf16.mxu0 0
      %2229 = vmatpush1.bf16.msra.mxu0 0
      %2230 = vmatprep.subr.bf16.mxu0 0
      %2231 = vmatpush1.bf16.msra.mxu0 0
      %2232 = vmatprep.subr.bf16.mxu0 0
      %2233 = vmatpush1.bf16.msra.mxu0 0
      %2234 = vmatprep.subr.bf16.mxu0 0
      %2235 = vmatpush1.bf16.msra.mxu0 0
      %2236 = vmatprep.subr.bf16.mxu0 0
      %2237 = vmatpush1.bf16.msra.mxu0 0
      %2238 = vmatprep.subr.bf16.mxu0 0
      %2239 = vmatpush1.bf16.msra.mxu0 0
      %2240 = vmatprep.subr.bf16.mxu0 0
      %2241 = vmatpush1.bf16.msra.mxu0 0
      %2242 = vmatprep.subr.bf16.mxu0 0
      %2243 = vmatpush1.bf16.msra.mxu0 0
      %2244 = vmatprep.mubr.bf16.mxu0 0
      %2245 = vmatmul.mubr.bf16.gmra.mrb[0].mxu0 %v2198
      %v2246 = vpop.f32.mrb[0].mxu0
      %v2247 = vadd.f32 0.0, %v2246
      %v2248 = vpop.f32.mrb[0].mxu0
      %v2249 = vpop.f32.mrb[0].mxu0
      %v2250 = vadd.f32 0.0, %v2249
      %v2251 = vpop.f32.mrb[0].mxu0
      %2252 = vmatprep.mubr.bf16.mxu0 0
      %2253 = vmatmul.mubr.bf16.gmra.mrb[0].mxu0 %v2201
      %v2254 = vpop.f32.mrb[0].mxu0
      %v2255 = vadd.f32 0.0, %v2254
      %v2256 = vpop.f32.mrb[0].mxu0
      %v2257 = vpop.f32.mrb[0].mxu0
      %v2258 = vadd.f32 0.0, %v2257
      %v2259 = vpop.f32.mrb[0].mxu0
      %2260 = vmatprep.mubr.bf16.mxu0 0
      %2261 = vmatmul.mubr.bf16.gmra.mrb[0].mxu0 %v2204
      %v2262 = vpop.f32.mrb[0].mxu0
      %v2263 = vadd.f32 0.0, %v2262
      %v2264 = vpop.f32.mrb[0].mxu0
      %v2265 = vpop.f32.mrb[0].mxu0
      %v2266 = vadd.f32 0.0, %v2265
      %v2267 = vpop.f32.mrb[0].mxu0
      %2268 = vmatprep.mubr.bf16.mxu0 0
      %2269 = vmatmul.mubr.bf16.gmra.mrb[0].mxu0 %v2207
      %v2270 = vpop.f32.mrb[0].mxu0
      %v2271 = vadd.f32 0.0, %v2270
      %v2272 = vpop.f32.mrb[0].mxu0
      %v2273 = vpop.f32.mrb[0].mxu0
      %v2274 = vadd.f32 0.0, %v2273
      %v2275 = vpop.f32.mrb[0].mxu0
      %2276 = vdwg.mxu0
      %v2277 = vadd.f32 %v2170, %v2247
      %v2278 = vadd.f32 %v2171, %v2250
      %v2279 = vadd.f32 %v2172, %v2255
      %v2280 = vadd.f32 %v2173, %v2258
      %v2281 = vadd.f32 %v2174, %v2263
      %v2282 = vadd.f32 %v2175, %v2266
      %v2283 = vadd.f32 %v2176, %v2271
      %v2284 = vadd.f32 %v2177, %v2274
      %2285 = vrot.lane.b32.xlu0 %v2193, 125
      %v2286 = vpop.permute.xlu0 %2285
      %2287 = vrot.lane.b32.xlu0 %v2194, 125
      %v2288 = vpop.permute.xlu0 %2287
      %2289 = vrot.lane.b32.xlu0 %v2195, 125
      %v2290 = vpop.permute.xlu0 %2289
      %2291 = vrot.lane.b32.xlu0 %v2196, 125
      %v2292 = vpop.permute.xlu0 %2291
      %v2294 = vsel %vm418, %v2286, 0
      %v2297 = vsel %vm418, %v2288, 0
      %v2300 = vsel %vm418, %v2290, 0
      %v2303 = vsel %vm418, %v2292, 0
      %v2306 = vand.u32 %v358, %v434
      %2308 = vmatprep.subr.bf16.mxu0 0
      %2309 = vmatpush1.bf16.msra.mxu0 %v2306
      %2310 = vmatprep.subr.bf16.mxu0 0
      %2311 = vmatpush1.bf16.msra.mxu0 0
      %2312 = vmatprep.subr.bf16.mxu0 0
      %2313 = vmatpush1.bf16.msra.mxu0 0
      %2314 = vmatprep.subr.bf16.mxu0 0
      %2315 = vmatpush1.bf16.msra.mxu0 0
      %2316 = vmatprep.subr.bf16.mxu0 0
      %2317 = vmatpush1.bf16.msra.mxu0 0
      %2318 = vmatprep.subr.bf16.mxu0 0
      %2319 = vmatpush1.bf16.msra.mxu0 0
      %2320 = vmatprep.subr.bf16.mxu0 0
      %2321 = vmatpush1.bf16.msra.mxu0 0
      %2322 = vmatprep.subr.bf16.mxu0 0
      %2323 = vmatpush1.bf16.msra.mxu0 0
      %2324 = vmatprep.subr.bf16.mxu0 0
      %2325 = vmatpush1.bf16.msra.mxu0 0
      %2326 = vmatprep.subr.bf16.mxu0 0
      %2327 = vmatpush1.bf16.msra.mxu0 0
      %2328 = vmatprep.subr.bf16.mxu0 0
      %2329 = vmatpush1.bf16.msra.mxu0 0
      %2330 = vmatprep.subr.bf16.mxu0 0
      %2331 = vmatpush1.bf16.msra.mxu0 0
      %2332 = vmatprep.subr.bf16.mxu0 0
      %2333 = vmatpush1.bf16.msra.mxu0 0
      %2334 = vmatprep.subr.bf16.mxu0 0
      %2335 = vmatpush1.bf16.msra.mxu0 0
      %2336 = vmatprep.subr.bf16.mxu0 0
      %2337 = vmatpush1.bf16.msra.mxu0 0
      %2338 = vmatprep.subr.bf16.mxu0 0
      %2339 = vmatpush1.bf16.msra.mxu0 0
      %2340 = vmatprep.mubr.bf16.mxu0 0
      %2341 = vmatmul.mubr.bf16.gmra.mrb[0].mxu0 %v2294
      %v2342 = vpop.f32.mrb[0].mxu0
      %v2343 = vadd.f32 0.0, %v2342
      %v2344 = vpop.f32.mrb[0].mxu0
      %v2345 = vpop.f32.mrb[0].mxu0
      %v2346 = vadd.f32 0.0, %v2345
      %v2347 = vpop.f32.mrb[0].mxu0
      %2348 = vmatprep.mubr.bf16.mxu0 0
      %2349 = vmatmul.mubr.bf16.gmra.mrb[0].mxu0 %v2297
      %v2350 = vpop.f32.mrb[0].mxu0
      %v2351 = vadd.f32 0.0, %v2350
      %v2352 = vpop.f32.mrb[0].mxu0
      %v2353 = vpop.f32.mrb[0].mxu0
      %v2354 = vadd.f32 0.0, %v2353
      %v2355 = vpop.f32.mrb[0].mxu0
      %2356 = vmatprep.mubr.bf16.mxu0 0
      %2357 = vmatmul.mubr.bf16.gmra.mrb[0].mxu0 %v2300
      %v2358 = vpop.f32.mrb[0].mxu0
      %v2359 = vadd.f32 0.0, %v2358
      %v2360 = vpop.f32.mrb[0].mxu0
      %v2361 = vpop.f32.mrb[0].mxu0
      %v2362 = vadd.f32 0.0, %v2361
      %v2363 = vpop.f32.mrb[0].mxu0
      %2364 = vmatprep.mubr.bf16.mxu0 0
      %2365 = vmatmul.mubr.bf16.gmra.mrb[0].mxu0 %v2303
      %v2366 = vpop.f32.mrb[0].mxu0
      %v2367 = vadd.f32 0.0, %v2366
      %v2368 = vpop.f32.mrb[0].mxu0
      %v2369 = vpop.f32.mrb[0].mxu0
      %v2370 = vadd.f32 0.0, %v2369
      %v2371 = vpop.f32.mrb[0].mxu0
      %2372 = vdwg.mxu0
      %v2373 = vadd.f32 %v2277, %v2343
      %v2374 = vadd.f32 %v2278, %v2346
      %v2375 = vadd.f32 %v2279, %v2351
      %v2376 = vadd.f32 %v2280, %v2354
      %v2377 = vadd.f32 %v2281, %v2359
      %v2378 = vadd.f32 %v2282, %v2362
      %v2379 = vadd.f32 %v2283, %v2367
      %v2380 = vadd.f32 %v2284, %v2370
      %v2382 = vrot.slane %v335, 5
      %v2383 = vrot.slane %v2382, 4
      %v2384 = vrot.slane %v336, 5
      %v2385 = vsel %vm904, %v2383, %v2384
      %v2386 = vunpack.c.l.b16 %v2385
      %v2387 = vpack.c.b16 %v939, %v938
      %v2388 = vpack.c.b16 %v941, %v940
      %v2389 = vpack.c.b16 %v943, %v942
      %v2390 = vpack.c.b16 %v2386, %v944
      %v2392 = vsel %vm418, %v2387, 0
      %v2395 = vsel %vm418, %v2388, 0
      %v2398 = vsel %vm418, %v2389, 0
      %v2401 = vsel %vm418, %v2390, 0
      %v2404 = vand.u32 %v359, %v434
      %2406 = vmatprep.subr.bf16.mxu0 0
      %2407 = vmatpush1.bf16.msra.mxu0 %v2404
      %2408 = vmatprep.subr.bf16.mxu0 0
      %2409 = vmatpush1.bf16.msra.mxu0 0
      %2410 = vmatprep.subr.bf16.mxu0 0
      %2411 = vmatpush1.bf16.msra.mxu0 0
      %2412 = vmatprep.subr.bf16.mxu0 0
      %2413 = vmatpush1.bf16.msra.mxu0 0
      %2414 = vmatprep.subr.bf16.mxu0 0
      %2415 = vmatpush1.bf16.msra.mxu0 0
      %2416 = vmatprep.subr.bf16.mxu0 0
      %2417 = vmatpush1.bf16.msra.mxu0 0
      %2418 = vmatprep.subr.bf16.mxu0 0
      %2419 = vmatpush1.bf16.msra.mxu0 0
      %2420 = vmatprep.subr.bf16.mxu0 0
      %2421 = vmatpush1.bf16.msra.mxu0 0
      %2422 = vmatprep.subr.bf16.mxu0 0
      %2423 = vmatpush1.bf16.msra.mxu0 0
      %2424 = vmatprep.subr.bf16.mxu0 0
      %2425 = vmatpush1.bf16.msra.mxu0 0
      %2426 = vmatprep.subr.bf16.mxu0 0
      %2427 = vmatpush1.bf16.msra.mxu0 0
      %2428 = vmatprep.subr.bf16.mxu0 0
      %2429 = vmatpush1.bf16.msra.mxu0 0
      %2430 = vmatprep.subr.bf16.mxu0 0
      %2431 = vmatpush1.bf16.msra.mxu0 0
      %2432 = vmatprep.subr.bf16.mxu0 0
      %2433 = vmatpush1.bf16.msra.mxu0 0
      %2434 = vmatprep.subr.bf16.mxu0 0
      %2435 = vmatpush1.bf16.msra.mxu0 0
      %2436 = vmatprep.subr.bf16.mxu0 0
      %2437 = vmatpush1.bf16.msra.mxu0 0
      %2438 = vmatprep.mubr.bf16.mxu0 0
      %2439 = vmatmul.mubr.bf16.gmra.mrb[0].mxu0 %v2392
      %v2440 = vpop.f32.mrb[0].mxu0
      %v2441 = vadd.f32 0.0, %v2440
      %v2442 = vpop.f32.mrb[0].mxu0
      %v2443 = vpop.f32.mrb[0].mxu0
      %v2444 = vadd.f32 0.0, %v2443
      %v2445 = vpop.f32.mrb[0].mxu0
      %2446 = vmatprep.mubr.bf16.mxu0 0
      %2447 = vmatmul.mubr.bf16.gmra.mrb[0].mxu0 %v2395
      %v2448 = vpop.f32.mrb[0].mxu0
      %v2449 = vadd.f32 0.0, %v2448
      %v2450 = vpop.f32.mrb[0].mxu0
      %v2451 = vpop.f32.mrb[0].mxu0
      %v2452 = vadd.f32 0.0, %v2451
      %v2453 = vpop.f32.mrb[0].mxu0
      %2454 = vmatprep.mubr.bf16.mxu0 0
      %2455 = vmatmul.mubr.bf16.gmra.mrb[0].mxu0 %v2398
      %v2456 = vpop.f32.mrb[0].mxu0
      %v2457 = vadd.f32 0.0, %v2456
      %v2458 = vpop.f32.mrb[0].mxu0
      %v2459 = vpop.f32.mrb[0].mxu0
      %v2460 = vadd.f32 0.0, %v2459
      %v2461 = vpop.f32.mrb[0].mxu0
      %2462 = vmatprep.mubr.bf16.mxu0 0
      %2463 = vmatmul.mubr.bf16.gmra.mrb[0].mxu0 %v2401
      %v2464 = vpop.f32.mrb[0].mxu0
      %v2465 = vadd.f32 0.0, %v2464
      %v2466 = vpop.f32.mrb[0].mxu0
      %v2467 = vpop.f32.mrb[0].mxu0
      %v2468 = vadd.f32 0.0, %v2467
      %v2469 = vpop.f32.mrb[0].mxu0
      %2470 = vdwg.mxu0
      %v2471 = vadd.f32 %v2373, %v2441
      %v2472 = vadd.f32 %v2374, %v2444
      %v2473 = vadd.f32 %v2375, %v2449
      %v2474 = vadd.f32 %v2376, %v2452
      %v2475 = vadd.f32 %v2377, %v2457
      %v2476 = vadd.f32 %v2378, %v2460
      %v2477 = vadd.f32 %v2379, %v2465
      %v2478 = vadd.f32 %v2380, %v2468
      %2479 = vrot.lane.b32.xlu0 %v2387, 125
      %v2480 = vpop.permute.xlu0 %2479
      %2481 = vrot.lane.b32.xlu0 %v2388, 125
      %v2482 = vpop.permute.xlu0 %2481
      %2483 = vrot.lane.b32.xlu0 %v2389, 125
      %v2484 = vpop.permute.xlu0 %2483
      %2485 = vrot.lane.b32.xlu0 %v2390, 125
      %v2486 = vpop.permute.xlu0 %2485
      %v2488 = vsel %vm418, %v2480, 0
      %v2491 = vsel %vm418, %v2482, 0
      %v2494 = vsel %vm418, %v2484, 0
      %v2497 = vsel %vm418, %v2486, 0
      %v2500 = vand.u32 %v360, %v434
      %2502 = vmatprep.subr.bf16.mxu0 0
      %2503 = vmatpush1.bf16.msra.mxu0 %v2500
      %2504 = vmatprep.subr.bf16.mxu0 0
      %2505 = vmatpush1.bf16.msra.mxu0 0
      %2506 = vmatprep.subr.bf16.mxu0 0
      %2507 = vmatpush1.bf16.msra.mxu0 0
      %2508 = vmatprep.subr.bf16.mxu0 0
      %2509 = vmatpush1.bf16.msra.mxu0 0
      %2510 = vmatprep.subr.bf16.mxu0 0
      %2511 = vmatpush1.bf16.msra.mxu0 0
      %2512 = vmatprep.subr.bf16.mxu0 0
      %2513 = vmatpush1.bf16.msra.mxu0 0
      %2514 = vmatprep.subr.bf16.mxu0 0
      %2515 = vmatpush1.bf16.msra.mxu0 0
      %2516 = vmatprep.subr.bf16.mxu0 0
      %2517 = vmatpush1.bf16.msra.mxu0 0
      %2518 = vmatprep.subr.bf16.mxu0 0
      %2519 = vmatpush1.bf16.msra.mxu0 0
      %2520 = vmatprep.subr.bf16.mxu0 0
      %2521 = vmatpush1.bf16.msra.mxu0 0
      %2522 = vmatprep.subr.bf16.mxu0 0
      %2523 = vmatpush1.bf16.msra.mxu0 0
      %2524 = vmatprep.subr.bf16.mxu0 0
      %2525 = vmatpush1.bf16.msra.mxu0 0
      %2526 = vmatprep.subr.bf16.mxu0 0
      %2527 = vmatpush1.bf16.msra.mxu0 0
      %2528 = vmatprep.subr.bf16.mxu0 0
      %2529 = vmatpush1.bf16.msra.mxu0 0
      %2530 = vmatprep.subr.bf16.mxu0 0
      %2531 = vmatpush1.bf16.msra.mxu0 0
      %2532 = vmatprep.subr.bf16.mxu0 0
      %2533 = vmatpush1.bf16.msra.mxu0 0
      %2534 = vmatprep.mubr.bf16.mxu0 0
      %2535 = vmatmul.mubr.bf16.gmra.mrb[0].mxu0 %v2488
      %v2536 = vpop.f32.mrb[0].mxu0
      %v2537 = vadd.f32 0.0, %v2536
      %v2538 = vpop.f32.mrb[0].mxu0
      %v2539 = vpop.f32.mrb[0].mxu0
      %v2540 = vadd.f32 0.0, %v2539
      %v2541 = vpop.f32.mrb[0].mxu0
      %2542 = vmatprep.mubr.bf16.mxu0 0
      %2543 = vmatmul.mubr.bf16.gmra.mrb[0].mxu0 %v2491
      %v2544 = vpop.f32.mrb[0].mxu0
      %v2545 = vadd.f32 0.0, %v2544
      %v2546 = vpop.f32.mrb[0].mxu0
      %v2547 = vpop.f32.mrb[0].mxu0
      %v2548 = vadd.f32 0.0, %v2547
      %v2549 = vpop.f32.mrb[0].mxu0
      %2550 = vmatprep.mubr.bf16.mxu0 0
      %2551 = vmatmul.mubr.bf16.gmra.mrb[0].mxu0 %v2494
      %v2552 = vpop.f32.mrb[0].mxu0
      %v2553 = vadd.f32 0.0, %v2552
      %v2554 = vpop.f32.mrb[0].mxu0
      %v2555 = vpop.f32.mrb[0].mxu0
      %v2556 = vadd.f32 0.0, %v2555
      %v2557 = vpop.f32.mrb[0].mxu0
      %2558 = vmatprep.mubr.bf16.mxu0 0
      %2559 = vmatmul.mubr.bf16.gmra.mrb[0].mxu0 %v2497
      %v2560 = vpop.f32.mrb[0].mxu0
      %v2561 = vadd.f32 0.0, %v2560
      %v2562 = vpop.f32.mrb[0].mxu0
      %v2563 = vpop.f32.mrb[0].mxu0
      %v2564 = vadd.f32 0.0, %v2563
      %v2565 = vpop.f32.mrb[0].mxu0
      %2566 = vdwg.mxu0
      %v2567 = vadd.f32 %v2471, %v2537
      %v2568 = vadd.f32 %v2472, %v2540
      %v2569 = vadd.f32 %v2473, %v2545
      %v2570 = vadd.f32 %v2474, %v2548
      %v2571 = vadd.f32 %v2475, %v2553
      %v2572 = vadd.f32 %v2476, %v2556
      %v2573 = vadd.f32 %v2477, %v2561
      %v2574 = vadd.f32 %v2478, %v2564
      %v2575 = vrot.slane %v2179, 5
      %v2576 = vrot.slane %v2182, 6
      %v2577 = vor.u32 %v2575, %v2576
      %v2578 = vrot.slane %v2577, 4
      %v2579 = vshrl.u32 %v336, 16
      %v2581 = vrot.slane %v2579, 5
      %v2582 = vrot.slane %v2188, 6
      %v2583 = vor.u32 %v2581, %v2582
      %v2584 = vsel %vm1135, %v2578, %v2583
      %v2585 = vunpack.c.l.b16 %v2584
      %v2586 = vpack.c.b16 %v1218, %v1217
      %v2587 = vpack.c.b16 %v1220, %v1219
      %v2588 = vpack.c.b16 %v1222, %v1221
      %v2589 = vpack.c.b16 %v2585, %v1223
      %v2591 = vsel %vm418, %v2586, 0
      %v2594 = vsel %vm418, %v2587, 0
      %v2597 = vsel %vm418, %v2588, 0
      %v2600 = vsel %vm418, %v2589, 0
      %v2603 = vand.u32 %v361, %v434
      %2605 = vmatprep.subr.bf16.mxu0 0
      %2606 = vmatpush1.bf16.msra.mxu0 %v2603
      %2607 = vmatprep.subr.bf16.mxu0 0
      %2608 = vmatpush1.bf16.msra.mxu0 0
      %2609 = vmatprep.subr.bf16.mxu0 0
      %2610 = vmatpush1.bf16.msra.mxu0 0
      %2611 = vmatprep.subr.bf16.mxu0 0
      %2612 = vmatpush1.bf16.msra.mxu0 0
      %2613 = vmatprep.subr.bf16.mxu0 0
      %2614 = vmatpush1.bf16.msra.mxu0 0
      %2615 = vmatprep.subr.bf16.mxu0 0
      %2616 = vmatpush1.bf16.msra.mxu0 0
      %2617 = vmatprep.subr.bf16.mxu0 0
      %2618 = vmatpush1.bf16.msra.mxu0 0
      %2619 = vmatprep.subr.bf16.mxu0 0
      %2620 = vmatpush1.bf16.msra.mxu0 0
      %2621 = vmatprep.subr.bf16.mxu0 0
      %2622 = vmatpush1.bf16.msra.mxu0 0
      %2623 = vmatprep.subr.bf16.mxu0 0
      %2624 = vmatpush1.bf16.msra.mxu0 0
      %2625 = vmatprep.subr.bf16.mxu0 0
      %2626 = vmatpush1.bf16.msra.mxu0 0
      %2627 = vmatprep.subr.bf16.mxu0 0
      %2628 = vmatpush1.bf16.msra.mxu0 0
      %2629 = vmatprep.subr.bf16.mxu0 0
      %2630 = vmatpush1.bf16.msra.mxu0 0
      %2631 = vmatprep.subr.bf16.mxu0 0
      %2632 = vmatpush1.bf16.msra.mxu0 0
      %2633 = vmatprep.subr.bf16.mxu0 0
      %2634 = vmatpush1.bf16.msra.mxu0 0
      %2635 = vmatprep.subr.bf16.mxu0 0
      %2636 = vmatpush1.bf16.msra.mxu0 0
      %2637 = vmatprep.mubr.bf16.mxu0 0
      %2638 = vmatmul.mubr.bf16.gmra.mrb[0].mxu0 %v2591
      %v2639 = vpop.f32.mrb[0].mxu0
      %v2640 = vadd.f32 0.0, %v2639
      %v2641 = vpop.f32.mrb[0].mxu0
      %v2642 = vpop.f32.mrb[0].mxu0
      %v2643 = vadd.f32 0.0, %v2642
      %v2644 = vpop.f32.mrb[0].mxu0
      %2645 = vmatprep.mubr.bf16.mxu0 0
      %2646 = vmatmul.mubr.bf16.gmra.mrb[0].mxu0 %v2594
      %v2647 = vpop.f32.mrb[0].mxu0
      %v2648 = vadd.f32 0.0, %v2647
      %v2649 = vpop.f32.mrb[0].mxu0
      %v2650 = vpop.f32.mrb[0].mxu0
      %v2651 = vadd.f32 0.0, %v2650
      %v2652 = vpop.f32.mrb[0].mxu0
      %2653 = vmatprep.mubr.bf16.mxu0 0
      %2654 = vmatmul.mubr.bf16.gmra.mrb[0].mxu0 %v2597
      %v2655 = vpop.f32.mrb[0].mxu0
      %v2656 = vadd.f32 0.0, %v2655
      %v2657 = vpop.f32.mrb[0].mxu0
      %v2658 = vpop.f32.mrb[0].mxu0
      %v2659 = vadd.f32 0.0, %v2658
      %v2660 = vpop.f32.mrb[0].mxu0
      %2661 = vmatprep.mubr.bf16.mxu0 0
      %2662 = vmatmul.mubr.bf16.gmra.mrb[0].mxu0 %v2600
      %v2663 = vpop.f32.mrb[0].mxu0
      %v2664 = vadd.f32 0.0, %v2663
      %v2665 = vpop.f32.mrb[0].mxu0
      %v2666 = vpop.f32.mrb[0].mxu0
      %v2667 = vadd.f32 0.0, %v2666
      %v2668 = vpop.f32.mrb[0].mxu0
      %2669 = vdwg.mxu0
      %v2670 = vadd.f32 %v2567, %v2640
      %v2671 = vadd.f32 %v2568, %v2643
      %v2672 = vadd.f32 %v2569, %v2648
      %v2673 = vadd.f32 %v2570, %v2651
      %v2674 = vadd.f32 %v2571, %v2656
      %v2675 = vadd.f32 %v2572, %v2659
      %v2676 = vadd.f32 %v2573, %v2664
      %v2677 = vadd.f32 %v2574, %v2667
      %2678 = vrot.lane.b32.xlu0 %v1990, 122
      %v2679 = vpop.permute.xlu0 %2678
      %2680 = vrot.lane.b32.xlu0 %v1991, 122
      %v2681 = vpop.permute.xlu0 %2680
      %2682 = vrot.lane.b32.xlu0 %v1992, 122
      %v2683 = vpop.permute.xlu0 %2682
      %2684 = vrot.lane.b32.xlu0 %v1993, 122
      %v2685 = vpop.permute.xlu0 %2684
      %v2687 = vsel %vm418, %v2679, 0
      %v2690 = vsel %vm418, %v2681, 0
      %v2693 = vsel %vm418, %v2683, 0
      %v2696 = vsel %vm418, %v2685, 0
      %v2699 = vand.u32 %v362, %v434
      %2701 = vmatprep.subr.bf16.mxu0 0
      %2702 = vmatpush1.bf16.msra.mxu0 %v2699
      %2703 = vmatprep.subr.bf16.mxu0 0
      %2704 = vmatpush1.bf16.msra.mxu0 0
      %2705 = vmatprep.subr.bf16.mxu0 0
      %2706 = vmatpush1.bf16.msra.mxu0 0
      %2707 = vmatprep.subr.bf16.mxu0 0
      %2708 = vmatpush1.bf16.msra.mxu0 0
      %2709 = vmatprep.subr.bf16.mxu0 0
      %2710 = vmatpush1.bf16.msra.mxu0 0
      %2711 = vmatprep.subr.bf16.mxu0 0
      %2712 = vmatpush1.bf16.msra.mxu0 0
      %2713 = vmatprep.subr.bf16.mxu0 0
      %2714 = vmatpush1.bf16.msra.mxu0 0
      %2715 = vmatprep.subr.bf16.mxu0 0
      %2716 = vmatpush1.bf16.msra.mxu0 0
      %2717 = vmatprep.subr.bf16.mxu0 0
      %2718 = vmatpush1.bf16.msra.mxu0 0
      %2719 = vmatprep.subr.bf16.mxu0 0
      %2720 = vmatpush1.bf16.msra.mxu0 0
      %2721 = vmatprep.subr.bf16.mxu0 0
      %2722 = vmatpush1.bf16.msra.mxu0 0
      %2723 = vmatprep.subr.bf16.mxu0 0
      %2724 = vmatpush1.bf16.msra.mxu0 0
      %2725 = vmatprep.subr.bf16.mxu0 0
      %2726 = vmatpush1.bf16.msra.mxu0 0
      %2727 = vmatprep.subr.bf16.mxu0 0
      %2728 = vmatpush1.bf16.msra.mxu0 0
      %2729 = vmatprep.subr.bf16.mxu0 0
      %2730 = vmatpush1.bf16.msra.mxu0 0
      %2731 = vmatprep.subr.bf16.mxu0 0
      %2732 = vmatpush1.bf16.msra.mxu0 0
      %2733 = vmatprep.mubr.bf16.mxu0 0
      %2734 = vmatmul.mubr.bf16.gmra.mrb[0].mxu0 %v2687
      %v2735 = vpop.f32.mrb[0].mxu0
      %v2736 = vadd.f32 0.0, %v2735
      %v2737 = vpop.f32.mrb[0].mxu0
      %v2738 = vpop.f32.mrb[0].mxu0
      %v2739 = vadd.f32 0.0, %v2738
      %v2740 = vpop.f32.mrb[0].mxu0
      %2741 = vmatprep.mubr.bf16.mxu0 0
      %2742 = vmatmul.mubr.bf16.gmra.mrb[0].mxu0 %v2690
      %v2743 = vpop.f32.mrb[0].mxu0
      %v2744 = vadd.f32 0.0, %v2743
      %v2745 = vpop.f32.mrb[0].mxu0
      %v2746 = vpop.f32.mrb[0].mxu0
      %v2747 = vadd.f32 0.0, %v2746
      %v2748 = vpop.f32.mrb[0].mxu0
      %2749 = vmatprep.mubr.bf16.mxu0 0
      %2750 = vmatmul.mubr.bf16.gmra.mrb[0].mxu0 %v2693
      %v2751 = vpop.f32.mrb[0].mxu0
      %v2752 = vadd.f32 0.0, %v2751
      %v2753 = vpop.f32.mrb[0].mxu0
      %v2754 = vpop.f32.mrb[0].mxu0
      %v2755 = vadd.f32 0.0, %v2754
      %v2756 = vpop.f32.mrb[0].mxu0
      %2757 = vmatprep.mubr.bf16.mxu0 0
      %2758 = vmatmul.mubr.bf16.gmra.mrb[0].mxu0 %v2696
      %v2759 = vpop.f32.mrb[0].mxu0
      %v2760 = vadd.f32 0.0, %v2759
      %v2761 = vpop.f32.mrb[0].mxu0
      %v2762 = vpop.f32.mrb[0].mxu0
      %v2763 = vadd.f32 0.0, %v2762
      %v2764 = vpop.f32.mrb[0].mxu0
      %2765 = vdwg.mxu0
      %v2766 = vadd.f32 %v2670, %v2736
      %v2767 = vadd.f32 %v2671, %v2739
      %v2768 = vadd.f32 %v2672, %v2744
      %v2769 = vadd.f32 %v2673, %v2747
      %v2770 = vadd.f32 %v2674, %v2752
      %v2771 = vadd.f32 %v2675, %v2755
      %v2772 = vadd.f32 %v2676, %v2760
      %v2773 = vadd.f32 %v2677, %v2763
      %2774 = vrot.lane.b32.xlu0 %v1990, 119
      %v2775 = vpop.permute.xlu0 %2774
      %2776 = vrot.lane.b32.xlu0 %v1991, 119
      %v2777 = vpop.permute.xlu0 %2776
      %2778 = vrot.lane.b32.xlu0 %v1992, 119
      %v2779 = vpop.permute.xlu0 %2778
      %2780 = vrot.lane.b32.xlu0 %v1993, 119
      %v2781 = vpop.permute.xlu0 %2780
      %v2783 = vsel %vm418, %v2775, 0
      %v2786 = vsel %vm418, %v2777, 0
      %v2789 = vsel %vm418, %v2779, 0
      %v2792 = vsel %vm418, %v2781, 0
      %v2795 = vand.u32 %v363, %v434
      %2797 = vmatprep.subr.bf16.mxu0 0
      %2798 = vmatpush1.bf16.msra.mxu0 %v2795
      %2799 = vmatprep.subr.bf16.mxu0 0
      %2800 = vmatpush1.bf16.msra.mxu0 0
      %2801 = vmatprep.subr.bf16.mxu0 0
      %2802 = vmatpush1.bf16.msra.mxu0 0
      %2803 = vmatprep.subr.bf16.mxu0 0
      %2804 = vmatpush1.bf16.msra.mxu0 0
      %2805 = vmatprep.subr.bf16.mxu0 0
      %2806 = vmatpush1.bf16.msra.mxu0 0
      %2807 = vmatprep.subr.bf16.mxu0 0
      %2808 = vmatpush1.bf16.msra.mxu0 0
      %2809 = vmatprep.subr.bf16.mxu0 0
      %2810 = vmatpush1.bf16.msra.mxu0 0
      %2811 = vmatprep.subr.bf16.mxu0 0
      %2812 = vmatpush1.bf16.msra.mxu0 0
      %2813 = vmatprep.subr.bf16.mxu0 0
      %2814 = vmatpush1.bf16.msra.mxu0 0
      %2815 = vmatprep.subr.bf16.mxu0 0
      %2816 = vmatpush1.bf16.msra.mxu0 0
      %2817 = vmatprep.subr.bf16.mxu0 0
      %2818 = vmatpush1.bf16.msra.mxu0 0
      %2819 = vmatprep.subr.bf16.mxu0 0
      %2820 = vmatpush1.bf16.msra.mxu0 0
      %2821 = vmatprep.subr.bf16.mxu0 0
      %2822 = vmatpush1.bf16.msra.mxu0 0
      %2823 = vmatprep.subr.bf16.mxu0 0
      %2824 = vmatpush1.bf16.msra.mxu0 0
      %2825 = vmatprep.subr.bf16.mxu0 0
      %2826 = vmatpush1.bf16.msra.mxu0 0
      %2827 = vmatprep.subr.bf16.mxu0 0
      %2828 = vmatpush1.bf16.msra.mxu0 0
      %2829 = vmatprep.mubr.bf16.mxu0 0
      %2830 = vmatmul.mubr.bf16.gmra.mrb[0].mxu0 %v2783
      %v2831 = vpop.f32.mrb[0].mxu0
      %v2832 = vadd.f32 0.0, %v2831
      %v2833 = vpop.f32.mrb[0].mxu0
      %v2834 = vpop.f32.mrb[0].mxu0
      %v2835 = vadd.f32 0.0, %v2834
      %v2836 = vpop.f32.mrb[0].mxu0
      %2837 = vmatprep.mubr.bf16.mxu0 0
      %2838 = vmatmul.mubr.bf16.gmra.mrb[0].mxu0 %v2786
      %v2839 = vpop.f32.mrb[0].mxu0
      %v2840 = vadd.f32 0.0, %v2839
      %v2841 = vpop.f32.mrb[0].mxu0
      %v2842 = vpop.f32.mrb[0].mxu0
      %v2843 = vadd.f32 0.0, %v2842
      %v2844 = vpop.f32.mrb[0].mxu0
      %2845 = vmatprep.mubr.bf16.mxu0 0
      %2846 = vmatmul.mubr.bf16.gmra.mrb[0].mxu0 %v2789
      %v2847 = vpop.f32.mrb[0].mxu0
      %v2848 = vadd.f32 0.0, %v2847
      %v2849 = vpop.f32.mrb[0].mxu0
      %v2850 = vpop.f32.mrb[0].mxu0
      %v2851 = vadd.f32 0.0, %v2850
      %v2852 = vpop.f32.mrb[0].mxu0
      %2853 = vmatprep.mubr.bf16.mxu0 0
      %2854 = vmatmul.mubr.bf16.gmra.mrb[0].mxu0 %v2792
      %v2855 = vpop.f32.mrb[0].mxu0
      %v2856 = vadd.f32 0.0, %v2855
      %v2857 = vpop.f32.mrb[0].mxu0
      %v2858 = vpop.f32.mrb[0].mxu0
      %v2859 = vadd.f32 0.0, %v2858
      %v2860 = vpop.f32.mrb[0].mxu0
      %2861 = vdwg.mxu0
      %v2862 = vadd.f32 %v2766, %v2832
      %v2863 = vadd.f32 %v2767, %v2835
      %v2864 = vadd.f32 %v2768, %v2840
      %v2865 = vadd.f32 %v2769, %v2843
      %v2866 = vadd.f32 %v2770, %v2848
      %v2867 = vadd.f32 %v2771, %v2851
      %v2868 = vadd.f32 %v2772, %v2856
      %v2869 = vadd.f32 %v2773, %v2859
      %2870 = vrot.lane.b32.xlu0 %v2193, 122
      %v2871 = vpop.permute.xlu0 %2870
      %2872 = vrot.lane.b32.xlu0 %v2194, 122
      %v2873 = vpop.permute.xlu0 %2872
      %2874 = vrot.lane.b32.xlu0 %v2195, 122
      %v2875 = vpop.permute.xlu0 %2874
      %2876 = vrot.lane.b32.xlu0 %v2196, 122
      %v2877 = vpop.permute.xlu0 %2876
      %v2879 = vsel %vm418, %v2871, 0
      %v2882 = vsel %vm418, %v2873, 0
      %v2885 = vsel %vm418, %v2875, 0
      %v2888 = vsel %vm418, %v2877, 0
      %v2891 = vand.u32 %v364, %v434
      %2893 = vmatprep.subr.bf16.mxu0 0
      %2894 = vmatpush1.bf16.msra.mxu0 %v2891
      %2895 = vmatprep.subr.bf16.mxu0 0
      %2896 = vmatpush1.bf16.msra.mxu0 0
      %2897 = vmatprep.subr.bf16.mxu0 0
      %2898 = vmatpush1.bf16.msra.mxu0 0
      %2899 = vmatprep.subr.bf16.mxu0 0
      %2900 = vmatpush1.bf16.msra.mxu0 0
      %2901 = vmatprep.subr.bf16.mxu0 0
      %2902 = vmatpush1.bf16.msra.mxu0 0
      %2903 = vmatprep.subr.bf16.mxu0 0
      %2904 = vmatpush1.bf16.msra.mxu0 0
      %2905 = vmatprep.subr.bf16.mxu0 0
      %2906 = vmatpush1.bf16.msra.mxu0 0
      %2907 = vmatprep.subr.bf16.mxu0 0
      %2908 = vmatpush1.bf16.msra.mxu0 0
      %2909 = vmatprep.subr.bf16.mxu0 0
      %2910 = vmatpush1.bf16.msra.mxu0 0
      %2911 = vmatprep.subr.bf16.mxu0 0
      %2912 = vmatpush1.bf16.msra.mxu0 0
      %2913 = vmatprep.subr.bf16.mxu0 0
      %2914 = vmatpush1.bf16.msra.mxu0 0
      %2915 = vmatprep.subr.bf16.mxu0 0
      %2916 = vmatpush1.bf16.msra.mxu0 0
      %2917 = vmatprep.subr.bf16.mxu0 0
      %2918 = vmatpush1.bf16.msra.mxu0 0
      %2919 = vmatprep.subr.bf16.mxu0 0
      %2920 = vmatpush1.bf16.msra.mxu0 0
      %2921 = vmatprep.subr.bf16.mxu0 0
      %2922 = vmatpush1.bf16.msra.mxu0 0
      %2923 = vmatprep.subr.bf16.mxu0 0
      %2924 = vmatpush1.bf16.msra.mxu0 0
      %2925 = vmatprep.mubr.bf16.mxu0 0
      %2926 = vmatmul.mubr.bf16.gmra.mrb[0].mxu0 %v2879
      %v2927 = vpop.f32.mrb[0].mxu0
      %v2928 = vadd.f32 0.0, %v2927
      %v2929 = vpop.f32.mrb[0].mxu0
      %v2930 = vpop.f32.mrb[0].mxu0
      %v2931 = vadd.f32 0.0, %v2930
      %v2932 = vpop.f32.mrb[0].mxu0
      %2933 = vmatprep.mubr.bf16.mxu0 0
      %2934 = vmatmul.mubr.bf16.gmra.mrb[0].mxu0 %v2882
      %v2935 = vpop.f32.mrb[0].mxu0
      %v2936 = vadd.f32 0.0, %v2935
      %v2937 = vpop.f32.mrb[0].mxu0
      %v2938 = vpop.f32.mrb[0].mxu0
      %v2939 = vadd.f32 0.0, %v2938
      %v2940 = vpop.f32.mrb[0].mxu0
      %2941 = vmatprep.mubr.bf16.mxu0 0
      %2942 = vmatmul.mubr.bf16.gmra.mrb[0].mxu0 %v2885
      %v2943 = vpop.f32.mrb[0].mxu0
      %v2944 = vadd.f32 0.0, %v2943
      %v2945 = vpop.f32.mrb[0].mxu0
      %v2946 = vpop.f32.mrb[0].mxu0
      %v2947 = vadd.f32 0.0, %v2946
      %v2948 = vpop.f32.mrb[0].mxu0
      %2949 = vmatprep.mubr.bf16.mxu0 0
      %2950 = vmatmul.mubr.bf16.gmra.mrb[0].mxu0 %v2888
      %v2951 = vpop.f32.mrb[0].mxu0
      %v2952 = vadd.f32 0.0, %v2951
      %v2953 = vpop.f32.mrb[0].mxu0
      %v2954 = vpop.f32.mrb[0].mxu0
      %v2955 = vadd.f32 0.0, %v2954
      %v2956 = vpop.f32.mrb[0].mxu0
      %2957 = vdwg.mxu0
      %v2958 = vadd.f32 %v2862, %v2928
      %v2959 = vadd.f32 %v2863, %v2931
      %v2960 = vadd.f32 %v2864, %v2936
      %v2961 = vadd.f32 %v2865, %v2939
      %v2962 = vadd.f32 %v2866, %v2944
      %v2963 = vadd.f32 %v2867, %v2947
      %v2964 = vadd.f32 %v2868, %v2952
      %v2965 = vadd.f32 %v2869, %v2955
      %2966 = vrot.lane.b32.xlu0 %v2193, 119
      %v2967 = vpop.permute.xlu0 %2966
      %2968 = vrot.lane.b32.xlu0 %v2194, 119
      %v2969 = vpop.permute.xlu0 %2968
      %2970 = vrot.lane.b32.xlu0 %v2195, 119
      %v2971 = vpop.permute.xlu0 %2970
      %2972 = vrot.lane.b32.xlu0 %v2196, 119
      %v2973 = vpop.permute.xlu0 %2972
      %v2975 = vsel %vm418, %v2967, 0
      %v2978 = vsel %vm418, %v2969, 0
      %v2981 = vsel %vm418, %v2971, 0
      %v2984 = vsel %vm418, %v2973, 0
      %v2987 = vand.u32 %v365, %v434
      %2989 = vmatprep.subr.bf16.mxu0 0
      %2990 = vmatpush1.bf16.msra.mxu0 %v2987
      %2991 = vmatprep.subr.bf16.mxu0 0
      %2992 = vmatpush1.bf16.msra.mxu0 0
      %2993 = vmatprep.subr.bf16.mxu0 0
      %2994 = vmatpush1.bf16.msra.mxu0 0
      %2995 = vmatprep.subr.bf16.mxu0 0
      %2996 = vmatpush1.bf16.msra.mxu0 0
      %2997 = vmatprep.subr.bf16.mxu0 0
      %2998 = vmatpush1.bf16.msra.mxu0 0
      %2999 = vmatprep.subr.bf16.mxu0 0
      %3000 = vmatpush1.bf16.msra.mxu0 0
      %3001 = vmatprep.subr.bf16.mxu0 0
      %3002 = vmatpush1.bf16.msra.mxu0 0
      %3003 = vmatprep.subr.bf16.mxu0 0
      %3004 = vmatpush1.bf16.msra.mxu0 0
      %3005 = vmatprep.subr.bf16.mxu0 0
      %3006 = vmatpush1.bf16.msra.mxu0 0
      %3007 = vmatprep.subr.bf16.mxu0 0
      %3008 = vmatpush1.bf16.msra.mxu0 0
      %3009 = vmatprep.subr.bf16.mxu0 0
      %3010 = vmatpush1.bf16.msra.mxu0 0
      %3011 = vmatprep.subr.bf16.mxu0 0
      %3012 = vmatpush1.bf16.msra.mxu0 0
      %3013 = vmatprep.subr.bf16.mxu0 0
      %3014 = vmatpush1.bf16.msra.mxu0 0
      %3015 = vmatprep.subr.bf16.mxu0 0
      %3016 = vmatpush1.bf16.msra.mxu0 0
      %3017 = vmatprep.subr.bf16.mxu0 0
      %3018 = vmatpush1.bf16.msra.mxu0 0
      %3019 = vmatprep.subr.bf16.mxu0 0
      %3020 = vmatpush1.bf16.msra.mxu0 0
      %3021 = vmatprep.mubr.bf16.mxu0 0
      %3022 = vmatmul.mubr.bf16.gmra.mrb[0].mxu0 %v2975
      %v3023 = vpop.f32.mrb[0].mxu0
      %v3024 = vadd.f32 0.0, %v3023
      %v3025 = vpop.f32.mrb[0].mxu0
      %v3026 = vpop.f32.mrb[0].mxu0
      %v3027 = vadd.f32 0.0, %v3026
      %v3028 = vpop.f32.mrb[0].mxu0
      %3029 = vmatprep.mubr.bf16.mxu0 0
      %3030 = vmatmul.mubr.bf16.gmra.mrb[0].mxu0 %v2978
      %v3031 = vpop.f32.mrb[0].mxu0
      %v3032 = vadd.f32 0.0, %v3031
      %v3033 = vpop.f32.mrb[0].mxu0
      %v3034 = vpop.f32.mrb[0].mxu0
      %v3035 = vadd.f32 0.0, %v3034
      %v3036 = vpop.f32.mrb[0].mxu0
      %3037 = vmatprep.mubr.bf16.mxu0 0
      %3038 = vmatmul.mubr.bf16.gmra.mrb[0].mxu0 %v2981
      %v3039 = vpop.f32.mrb[0].mxu0
      %v3040 = vadd.f32 0.0, %v3039
      %v3041 = vpop.f32.mrb[0].mxu0
      %v3042 = vpop.f32.mrb[0].mxu0
      %v3043 = vadd.f32 0.0, %v3042
      %v3044 = vpop.f32.mrb[0].mxu0
      %3045 = vmatprep.mubr.bf16.mxu0 0
      %3046 = vmatmul.mubr.bf16.gmra.mrb[0].mxu0 %v2984
      %v3047 = vpop.f32.mrb[0].mxu0
      %v3048 = vadd.f32 0.0, %v3047
      %v3049 = vpop.f32.mrb[0].mxu0
      %v3050 = vpop.f32.mrb[0].mxu0
      %v3051 = vadd.f32 0.0, %v3050
      %v3052 = vpop.f32.mrb[0].mxu0
      %3053 = vdwg.mxu0
      %v3054 = vadd.f32 %v2958, %v3024
      %v3055 = vadd.f32 %v2959, %v3027
      %v3056 = vadd.f32 %v2960, %v3032
      %v3057 = vadd.f32 %v2961, %v3035
      %v3058 = vadd.f32 %v2962, %v3040
      %v3059 = vadd.f32 %v2963, %v3043
      %v3060 = vadd.f32 %v2964, %v3048
      %v3061 = vadd.f32 %v2965, %v3051
      %3062 = vrot.lane.b32.xlu0 %v2387, 122
      %v3063 = vpop.permute.xlu0 %3062
      %3064 = vrot.lane.b32.xlu0 %v2388, 122
      %v3065 = vpop.permute.xlu0 %3064
      %3066 = vrot.lane.b32.xlu0 %v2389, 122
      %v3067 = vpop.permute.xlu0 %3066
      %3068 = vrot.lane.b32.xlu0 %v2390, 122
      %v3069 = vpop.permute.xlu0 %3068
      %v3071 = vsel %vm418, %v3063, 0
      %v3074 = vsel %vm418, %v3065, 0
      %v3077 = vsel %vm418, %v3067, 0
      %v3080 = vsel %vm418, %v3069, 0
      %v3083 = vand.u32 %v366, %v434
      %3085 = vmatprep.subr.bf16.mxu0 0
      %3086 = vmatpush1.bf16.msra.mxu0 %v3083
      %3087 = vmatprep.subr.bf16.mxu0 0
      %3088 = vmatpush1.bf16.msra.mxu0 0
      %3089 = vmatprep.subr.bf16.mxu0 0
      %3090 = vmatpush1.bf16.msra.mxu0 0
      %3091 = vmatprep.subr.bf16.mxu0 0
      %3092 = vmatpush1.bf16.msra.mxu0 0
      %3093 = vmatprep.subr.bf16.mxu0 0
      %3094 = vmatpush1.bf16.msra.mxu0 0
      %3095 = vmatprep.subr.bf16.mxu0 0
      %3096 = vmatpush1.bf16.msra.mxu0 0
      %3097 = vmatprep.subr.bf16.mxu0 0
      %3098 = vmatpush1.bf16.msra.mxu0 0
      %3099 = vmatprep.subr.bf16.mxu0 0
      %3100 = vmatpush1.bf16.msra.mxu0 0
      %3101 = vmatprep.subr.bf16.mxu0 0
      %3102 = vmatpush1.bf16.msra.mxu0 0
      %3103 = vmatprep.subr.bf16.mxu0 0
      %3104 = vmatpush1.bf16.msra.mxu0 0
      %3105 = vmatprep.subr.bf16.mxu0 0
      %3106 = vmatpush1.bf16.msra.mxu0 0
      %3107 = vmatprep.subr.bf16.mxu0 0
      %3108 = vmatpush1.bf16.msra.mxu0 0
      %3109 = vmatprep.subr.bf16.mxu0 0
      %3110 = vmatpush1.bf16.msra.mxu0 0
      %3111 = vmatprep.subr.bf16.mxu0 0
      %3112 = vmatpush1.bf16.msra.mxu0 0
      %3113 = vmatprep.subr.bf16.mxu0 0
      %3114 = vmatpush1.bf16.msra.mxu0 0
      %3115 = vmatprep.subr.bf16.mxu0 0
      %3116 = vmatpush1.bf16.msra.mxu0 0
      %3117 = vmatprep.mubr.bf16.mxu0 0
      %3118 = vmatmul.mubr.bf16.gmra.mrb[0].mxu0 %v3071
      %v3119 = vpop.f32.mrb[0].mxu0
      %v3120 = vadd.f32 0.0, %v3119
      %v3121 = vpop.f32.mrb[0].mxu0
      %v3122 = vpop.f32.mrb[0].mxu0
      %v3123 = vadd.f32 0.0, %v3122
      %v3124 = vpop.f32.mrb[0].mxu0
      %3125 = vmatprep.mubr.bf16.mxu0 0
      %3126 = vmatmul.mubr.bf16.gmra.mrb[0].mxu0 %v3074
      %v3127 = vpop.f32.mrb[0].mxu0
      %v3128 = vadd.f32 0.0, %v3127
      %v3129 = vpop.f32.mrb[0].mxu0
      %v3130 = vpop.f32.mrb[0].mxu0
      %v3131 = vadd.f32 0.0, %v3130
      %v3132 = vpop.f32.mrb[0].mxu0
      %3133 = vmatprep.mubr.bf16.mxu0 0
      %3134 = vmatmul.mubr.bf16.gmra.mrb[0].mxu0 %v3077
      %v3135 = vpop.f32.mrb[0].mxu0
      %v3136 = vadd.f32 0.0, %v3135
      %v3137 = vpop.f32.mrb[0].mxu0
      %v3138 = vpop.f32.mrb[0].mxu0
      %v3139 = vadd.f32 0.0, %v3138
      %v3140 = vpop.f32.mrb[0].mxu0
      %3141 = vmatprep.mubr.bf16.mxu0 0
      %3142 = vmatmul.mubr.bf16.gmra.mrb[0].mxu0 %v3080
      %v3143 = vpop.f32.mrb[0].mxu0
      %v3144 = vadd.f32 0.0, %v3143
      %v3145 = vpop.f32.mrb[0].mxu0
      %v3146 = vpop.f32.mrb[0].mxu0
      %v3147 = vadd.f32 0.0, %v3146
      %v3148 = vpop.f32.mrb[0].mxu0
      %3149 = vdwg.mxu0
      %v3150 = vadd.f32 %v3054, %v3120
      %v3151 = vadd.f32 %v3055, %v3123
      %v3152 = vadd.f32 %v3056, %v3128
      %v3153 = vadd.f32 %v3057, %v3131
      %v3154 = vadd.f32 %v3058, %v3136
      %v3155 = vadd.f32 %v3059, %v3139
      %v3156 = vadd.f32 %v3060, %v3144
      %v3157 = vadd.f32 %v3061, %v3147
      %3158 = vrot.lane.b32.xlu0 %v2387, 119
      %v3159 = vpop.permute.xlu0 %3158
      %3160 = vrot.lane.b32.xlu0 %v2388, 119
      %v3161 = vpop.permute.xlu0 %3160
      %3162 = vrot.lane.b32.xlu0 %v2389, 119
      %v3163 = vpop.permute.xlu0 %3162
      %3164 = vrot.lane.b32.xlu0 %v2390, 119
      %v3165 = vpop.permute.xlu0 %3164
      %v3167 = vsel %vm418, %v3159, 0
      %v3170 = vsel %vm418, %v3161, 0
      %v3173 = vsel %vm418, %v3163, 0
      %v3176 = vsel %vm418, %v3165, 0
      %v3179 = vand.u32 %v367, %v434
      %3181 = vmatprep.subr.bf16.mxu0 0
      %3182 = vmatpush1.bf16.msra.mxu0 %v3179
      %3183 = vmatprep.subr.bf16.mxu0 0
      %3184 = vmatpush1.bf16.msra.mxu0 0
      %3185 = vmatprep.subr.bf16.mxu0 0
      %3186 = vmatpush1.bf16.msra.mxu0 0
      %3187 = vmatprep.subr.bf16.mxu0 0
      %3188 = vmatpush1.bf16.msra.mxu0 0
      %3189 = vmatprep.subr.bf16.mxu0 0
      %3190 = vmatpush1.bf16.msra.mxu0 0
      %3191 = vmatprep.subr.bf16.mxu0 0
      %3192 = vmatpush1.bf16.msra.mxu0 0
      %3193 = vmatprep.subr.bf16.mxu0 0
      %3194 = vmatpush1.bf16.msra.mxu0 0
      %3195 = vmatprep.subr.bf16.mxu0 0
      %3196 = vmatpush1.bf16.msra.mxu0 0
      %3197 = vmatprep.subr.bf16.mxu0 0
      %3198 = vmatpush1.bf16.msra.mxu0 0
      %3199 = vmatprep.subr.bf16.mxu0 0
      %3200 = vmatpush1.bf16.msra.mxu0 0
      %3201 = vmatprep.subr.bf16.mxu0 0
      %3202 = vmatpush1.bf16.msra.mxu0 0
      %3203 = vmatprep.subr.bf16.mxu0 0
      %3204 = vmatpush1.bf16.msra.mxu0 0
      %3205 = vmatprep.subr.bf16.mxu0 0
      %3206 = vmatpush1.bf16.msra.mxu0 0
      %3207 = vmatprep.subr.bf16.mxu0 0
      %3208 = vmatpush1.bf16.msra.mxu0 0
      %3209 = vmatprep.subr.bf16.mxu0 0
      %3210 = vmatpush1.bf16.msra.mxu0 0
      %3211 = vmatprep.subr.bf16.mxu0 0
      %3212 = vmatpush1.bf16.msra.mxu0 0
      %3213 = vmatprep.mubr.bf16.mxu0 0
      %3214 = vmatmul.mubr.bf16.gmra.mrb[0].mxu0 %v3167
      %v3215 = vpop.f32.mrb[0].mxu0
      %v3216 = vadd.f32 0.0, %v3215
      %v3217 = vpop.f32.mrb[0].mxu0
      %v3218 = vpop.f32.mrb[0].mxu0
      %v3219 = vadd.f32 0.0, %v3218
      %v3220 = vpop.f32.mrb[0].mxu0
      %3221 = vmatprep.mubr.bf16.mxu0 0
      %3222 = vmatmul.mubr.bf16.gmra.mrb[0].mxu0 %v3170
      %v3223 = vpop.f32.mrb[0].mxu0
      %v3224 = vadd.f32 0.0, %v3223
      %v3225 = vpop.f32.mrb[0].mxu0
      %v3226 = vpop.f32.mrb[0].mxu0
      %v3227 = vadd.f32 0.0, %v3226
      %v3228 = vpop.f32.mrb[0].mxu0
      %3229 = vmatprep.mubr.bf16.mxu0 0
      %3230 = vmatmul.mubr.bf16.gmra.mrb[0].mxu0 %v3173
      %v3231 = vpop.f32.mrb[0].mxu0
      %v3232 = vadd.f32 0.0, %v3231
      %v3233 = vpop.f32.mrb[0].mxu0
      %v3234 = vpop.f32.mrb[0].mxu0
      %v3235 = vadd.f32 0.0, %v3234
      %v3236 = vpop.f32.mrb[0].mxu0
      %3237 = vmatprep.mubr.bf16.mxu0 0
      %3238 = vmatmul.mubr.bf16.gmra.mrb[0].mxu0 %v3176
      %v3239 = vpop.f32.mrb[0].mxu0
      %v3240 = vadd.f32 0.0, %v3239
      %v3241 = vpop.f32.mrb[0].mxu0
      %v3242 = vpop.f32.mrb[0].mxu0
      %v3243 = vadd.f32 0.0, %v3242
      %v3244 = vpop.f32.mrb[0].mxu0
      %3245 = vdwg.mxu0
      %v3246 = vadd.f32 %v3150, %v3216
      %v3247 = vadd.f32 %v3151, %v3219
      %v3248 = vadd.f32 %v3152, %v3224
      %v3249 = vadd.f32 %v3153, %v3227
      %v3250 = vadd.f32 %v3154, %v3232
      %v3251 = vadd.f32 %v3155, %v3235
      %v3252 = vadd.f32 %v3156, %v3240
      %v3253 = vadd.f32 %v3157, %v3243
      %3254 = vrot.lane.b32.xlu0 %v2586, 122
      %v3255 = vpop.permute.xlu0 %3254
      %3256 = vrot.lane.b32.xlu0 %v2587, 122
      %v3257 = vpop.permute.xlu0 %3256
      %3258 = vrot.lane.b32.xlu0 %v2588, 122
      %v3259 = vpop.permute.xlu0 %3258
      %3260 = vrot.lane.b32.xlu0 %v2589, 122
      %v3261 = vpop.permute.xlu0 %3260
      %v3263 = vsel %vm418, %v3255, 0
      %v3266 = vsel %vm418, %v3257, 0
      %v3269 = vsel %vm418, %v3259, 0
      %v3272 = vsel %vm418, %v3261, 0
      %v3275 = vand.u32 %v368, %v434
      %3277 = vmatprep.subr.bf16.mxu0 0
      %3278 = vmatpush1.bf16.msra.mxu0 %v3275
      %3279 = vmatprep.subr.bf16.mxu0 0
      %3280 = vmatpush1.bf16.msra.mxu0 0
      %3281 = vmatprep.subr.bf16.mxu0 0
      %3282 = vmatpush1.bf16.msra.mxu0 0
      %3283 = vmatprep.subr.bf16.mxu0 0
      %3284 = vmatpush1.bf16.msra.mxu0 0
      %3285 = vmatprep.subr.bf16.mxu0 0
      %3286 = vmatpush1.bf16.msra.mxu0 0
      %3287 = vmatprep.subr.bf16.mxu0 0
      %3288 = vmatpush1.bf16.msra.mxu0 0
      %3289 = vmatprep.subr.bf16.mxu0 0
      %3290 = vmatpush1.bf16.msra.mxu0 0
      %3291 = vmatprep.subr.bf16.mxu0 0
      %3292 = vmatpush1.bf16.msra.mxu0 0
      %3293 = vmatprep.subr.bf16.mxu0 0
      %3294 = vmatpush1.bf16.msra.mxu0 0
      %3295 = vmatprep.subr.bf16.mxu0 0
      %3296 = vmatpush1.bf16.msra.mxu0 0
      %3297 = vmatprep.subr.bf16.mxu0 0
      %3298 = vmatpush1.bf16.msra.mxu0 0
      %3299 = vmatprep.subr.bf16.mxu0 0
      %3300 = vmatpush1.bf16.msra.mxu0 0
      %3301 = vmatprep.subr.bf16.mxu0 0
      %3302 = vmatpush1.bf16.msra.mxu0 0
      %3303 = vmatprep.subr.bf16.mxu0 0
      %3304 = vmatpush1.bf16.msra.mxu0 0
      %3305 = vmatprep.subr.bf16.mxu0 0
      %3306 = vmatpush1.bf16.msra.mxu0 0
      %3307 = vmatprep.subr.bf16.mxu0 0
      %3308 = vmatpush1.bf16.msra.mxu0 0
      %3309 = vmatprep.mubr.bf16.mxu0 0
      %3310 = vmatmul.mubr.bf16.gmra.mrb[0].mxu0 %v3263
      %v3311 = vpop.f32.mrb[0].mxu0
      %v3312 = vadd.f32 0.0, %v3311
      %v3313 = vpop.f32.mrb[0].mxu0
      %v3314 = vpop.f32.mrb[0].mxu0
      %v3315 = vadd.f32 0.0, %v3314
      %v3316 = vpop.f32.mrb[0].mxu0
      %3317 = vmatprep.mubr.bf16.mxu0 0
      %3318 = vmatmul.mubr.bf16.gmra.mrb[0].mxu0 %v3266
      %v3319 = vpop.f32.mrb[0].mxu0
      %v3320 = vadd.f32 0.0, %v3319
      %v3321 = vpop.f32.mrb[0].mxu0
      %v3322 = vpop.f32.mrb[0].mxu0
      %v3323 = vadd.f32 0.0, %v3322
      %v3324 = vpop.f32.mrb[0].mxu0
      %3325 = vmatprep.mubr.bf16.mxu0 0
      %3326 = vmatmul.mubr.bf16.gmra.mrb[0].mxu0 %v3269
      %v3327 = vpop.f32.mrb[0].mxu0
      %v3328 = vadd.f32 0.0, %v3327
      %v3329 = vpop.f32.mrb[0].mxu0
      %v3330 = vpop.f32.mrb[0].mxu0
      %v3331 = vadd.f32 0.0, %v3330
      %v3332 = vpop.f32.mrb[0].mxu0
      %3333 = vmatprep.mubr.bf16.mxu0 0
      %3334 = vmatmul.mubr.bf16.gmra.mrb[0].mxu0 %v3272
      %v3335 = vpop.f32.mrb[0].mxu0
      %v3336 = vadd.f32 0.0, %v3335
      %v3337 = vpop.f32.mrb[0].mxu0
      %v3338 = vpop.f32.mrb[0].mxu0
      %v3339 = vadd.f32 0.0, %v3338
      %v3340 = vpop.f32.mrb[0].mxu0
      %3341 = vdwg.mxu0
      %v3342 = vadd.f32 %v3246, %v3312
      %v3343 = vadd.f32 %v3247, %v3315
      %v3344 = vadd.f32 %v3248, %v3320
      %v3345 = vadd.f32 %v3249, %v3323
      %v3346 = vadd.f32 %v3250, %v3328
      %v3347 = vadd.f32 %v3251, %v3331
      %v3348 = vadd.f32 %v3252, %v3336
      %v3349 = vadd.f32 %v3253, %v3339
      %v3351 = vunpack.c.l.b16 %v337
      %v3352 = vpack.c.b16 %v3351, %v1989
      %v3354 = vsel %vm418, %v3352, 0
      %v3357 = vand.u32 %v369, %v434
      %3359 = vmatprep.subr.bf16.mxu0 0
      %3360 = vmatpush1.bf16.msra.mxu0 %v3357
      %3361 = vmatprep.subr.bf16.mxu0 0
      %3362 = vmatpush1.bf16.msra.mxu0 0
      %3363 = vmatprep.subr.bf16.mxu0 0
      %3364 = vmatpush1.bf16.msra.mxu0 0
      %3365 = vmatprep.subr.bf16.mxu0 0
      %3366 = vmatpush1.bf16.msra.mxu0 0
      %3367 = vmatprep.subr.bf16.mxu0 0
      %3368 = vmatpush1.bf16.msra.mxu0 0
      %3369 = vmatprep.subr.bf16.mxu0 0
      %3370 = vmatpush1.bf16.msra.mxu0 0
      %3371 = vmatprep.subr.bf16.mxu0 0
      %3372 = vmatpush1.bf16.msra.mxu0 0
      %3373 = vmatprep.subr.bf16.mxu0 0
      %3374 = vmatpush1.bf16.msra.mxu0 0
      %3375 = vmatprep.subr.bf16.mxu0 0
      %3376 = vmatpush1.bf16.msra.mxu0 0
      %3377 = vmatprep.subr.bf16.mxu0 0
      %3378 = vmatpush1.bf16.msra.mxu0 0
      %3379 = vmatprep.subr.bf16.mxu0 0
      %3380 = vmatpush1.bf16.msra.mxu0 0
      %3381 = vmatprep.subr.bf16.mxu0 0
      %3382 = vmatpush1.bf16.msra.mxu0 0
      %3383 = vmatprep.subr.bf16.mxu0 0
      %3384 = vmatpush1.bf16.msra.mxu0 0
      %3385 = vmatprep.subr.bf16.mxu0 0
      %3386 = vmatpush1.bf16.msra.mxu0 0
      %3387 = vmatprep.subr.bf16.mxu0 0
      %3388 = vmatpush1.bf16.msra.mxu0 0
      %3389 = vmatprep.subr.bf16.mxu0 0
      %3390 = vmatpush1.bf16.msra.mxu0 0
      %3391 = vmatprep.mubr.bf16.mxu0 0
      %3392 = vmatmul.mubr.bf16.gmra.mrb[0].mxu0 %v507
      %v3393 = vpop.f32.mrb[0].mxu0
      %v3394 = vadd.f32 0.0, %v3393
      %v3395 = vpop.f32.mrb[0].mxu0
      %v3396 = vpop.f32.mrb[0].mxu0
      %v3397 = vadd.f32 0.0, %v3396
      %v3398 = vpop.f32.mrb[0].mxu0
      %3399 = vmatprep.mubr.bf16.mxu0 0
      %3400 = vmatmul.mubr.bf16.gmra.mrb[0].mxu0 %v510
      %v3401 = vpop.f32.mrb[0].mxu0
      %v3402 = vadd.f32 0.0, %v3401
      %v3403 = vpop.f32.mrb[0].mxu0
      %v3404 = vpop.f32.mrb[0].mxu0
      %v3405 = vadd.f32 0.0, %v3404
      %v3406 = vpop.f32.mrb[0].mxu0
      %3407 = vmatprep.mubr.bf16.mxu0 0
      %3408 = vmatmul.mubr.bf16.gmra.mrb[0].mxu0 %v513
      %v3409 = vpop.f32.mrb[0].mxu0
      %v3410 = vadd.f32 0.0, %v3409
      %v3411 = vpop.f32.mrb[0].mxu0
      %v3412 = vpop.f32.mrb[0].mxu0
      %v3413 = vadd.f32 0.0, %v3412
      %v3414 = vpop.f32.mrb[0].mxu0
      %3415 = vmatprep.mubr.bf16.mxu0 0
      %3416 = vmatmul.mubr.bf16.gmra.mrb[0].mxu0 %v3354
      %v3417 = vpop.f32.mrb[0].mxu0
      %v3418 = vadd.f32 0.0, %v3417
      %v3419 = vpop.f32.mrb[0].mxu0
      %v3420 = vpop.f32.mrb[0].mxu0
      %v3421 = vadd.f32 0.0, %v3420
      %v3422 = vpop.f32.mrb[0].mxu0
      %3423 = vdwg.mxu0
      %v3424 = vadd.f32 %v3342, %v3394
      %v3425 = vadd.f32 %v3343, %v3397
      %v3426 = vadd.f32 %v3344, %v3402
      %v3427 = vadd.f32 %v3345, %v3405
      %v3428 = vadd.f32 %v3346, %v3410
      %v3429 = vadd.f32 %v3347, %v3413
      %v3430 = vadd.f32 %v3348, %v3418
      %v3431 = vadd.f32 %v3349, %v3421
      %3432 = vrot.lane.b32.xlu0 %v3352, 125
      %v3433 = vpop.permute.xlu0 %3432
      %v3435 = vsel %vm418, %v3433, 0
      %v3438 = vand.u32 %v370, %v434
      %3440 = vmatprep.subr.bf16.mxu0 0
      %3441 = vmatpush1.bf16.msra.mxu0 %v3438
      %3442 = vmatprep.subr.bf16.mxu0 0
      %3443 = vmatpush1.bf16.msra.mxu0 0
      %3444 = vmatprep.subr.bf16.mxu0 0
      %3445 = vmatpush1.bf16.msra.mxu0 0
      %3446 = vmatprep.subr.bf16.mxu0 0
      %3447 = vmatpush1.bf16.msra.mxu0 0
      %3448 = vmatprep.subr.bf16.mxu0 0
      %3449 = vmatpush1.bf16.msra.mxu0 0
      %3450 = vmatprep.subr.bf16.mxu0 0
      %3451 = vmatpush1.bf16.msra.mxu0 0
      %3452 = vmatprep.subr.bf16.mxu0 0
      %3453 = vmatpush1.bf16.msra.mxu0 0
      %3454 = vmatprep.subr.bf16.mxu0 0
      %3455 = vmatpush1.bf16.msra.mxu0 0
      %3456 = vmatprep.subr.bf16.mxu0 0
      %3457 = vmatpush1.bf16.msra.mxu0 0
      %3458 = vmatprep.subr.bf16.mxu0 0
      %3459 = vmatpush1.bf16.msra.mxu0 0
      %3460 = vmatprep.subr.bf16.mxu0 0
      %3461 = vmatpush1.bf16.msra.mxu0 0
      %3462 = vmatprep.subr.bf16.mxu0 0
      %3463 = vmatpush1.bf16.msra.mxu0 0
      %3464 = vmatprep.subr.bf16.mxu0 0
      %3465 = vmatpush1.bf16.msra.mxu0 0
      %3466 = vmatprep.subr.bf16.mxu0 0
      %3467 = vmatpush1.bf16.msra.mxu0 0
      %3468 = vmatprep.subr.bf16.mxu0 0
      %3469 = vmatpush1.bf16.msra.mxu0 0
      %3470 = vmatprep.subr.bf16.mxu0 0
      %3471 = vmatpush1.bf16.msra.mxu0 0
      %3472 = vmatprep.mubr.bf16.mxu0 0
      %3473 = vmatmul.mubr.bf16.gmra.mrb[0].mxu0 %v423
      %v3474 = vpop.f32.mrb[0].mxu0
      %v3475 = vadd.f32 0.0, %v3474
      %v3476 = vpop.f32.mrb[0].mxu0
      %v3477 = vpop.f32.mrb[0].mxu0
      %v3478 = vadd.f32 0.0, %v3477
      %v3479 = vpop.f32.mrb[0].mxu0
      %3480 = vmatprep.mubr.bf16.mxu0 0
      %3481 = vmatmul.mubr.bf16.gmra.mrb[0].mxu0 %v426
      %v3482 = vpop.f32.mrb[0].mxu0
      %v3483 = vadd.f32 0.0, %v3482
      %v3484 = vpop.f32.mrb[0].mxu0
      %v3485 = vpop.f32.mrb[0].mxu0
      %v3486 = vadd.f32 0.0, %v3485
      %v3487 = vpop.f32.mrb[0].mxu0
      %3488 = vmatprep.mubr.bf16.mxu0 0
      %3489 = vmatmul.mubr.bf16.gmra.mrb[0].mxu0 %v429
      %v3490 = vpop.f32.mrb[0].mxu0
      %v3491 = vadd.f32 0.0, %v3490
      %v3492 = vpop.f32.mrb[0].mxu0
      %v3493 = vpop.f32.mrb[0].mxu0
      %v3494 = vadd.f32 0.0, %v3493
      %v3495 = vpop.f32.mrb[0].mxu0
      %3496 = vmatprep.mubr.bf16.mxu0 0
      %3497 = vmatmul.mubr.bf16.gmra.mrb[0].mxu0 %v3435
      %v3498 = vpop.f32.mrb[0].mxu0
      %v3499 = vadd.f32 0.0, %v3498
      %v3500 = vpop.f32.mrb[0].mxu0
      %v3501 = vpop.f32.mrb[0].mxu0
      %v3502 = vadd.f32 0.0, %v3501
      %v3503 = vpop.f32.mrb[0].mxu0
      %3504 = vdwg.mxu0
      %v3505 = vadd.f32 %v3424, %v3475
      %v3506 = vadd.f32 %v3425, %v3478
      %v3507 = vadd.f32 %v3426, %v3483
      %v3508 = vadd.f32 %v3427, %v3486
      %v3509 = vadd.f32 %v3428, %v3491
      %v3510 = vadd.f32 %v3429, %v3494
      %v3511 = vadd.f32 %v3430, %v3499
      %v3512 = vadd.f32 %v3431, %v3502
      %v3514 = vshrl.u32 %v337, 16
      %v3516 = vrot.slane %v3514, 4
      %v3517 = vshll.u32 %v337, 16
      %v3519 = vrot.slane %v3517, 5
      %v3520 = vor.u32 %v3516, %v3519
      %v3521 = vrot.slane %v3520, 4
      %v3523 = vshll.u32 %v338, 16
      %v3525 = vrot.slane %v3523, 5
      %v3526 = vsel %vm585, %v3521, %v3525
      %v3527 = vunpack.c.l.b16 %v3526
      %v3528 = vpack.c.b16 %v3527, %v2192
      %v3530 = vsel %vm418, %v3528, 0
      %v3533 = vand.u32 %v371, %v434
      %3535 = vmatprep.subr.bf16.mxu0 0
      %3536 = vmatpush1.bf16.msra.mxu0 %v3533
      %3537 = vmatprep.subr.bf16.mxu0 0
      %3538 = vmatpush1.bf16.msra.mxu0 0
      %3539 = vmatprep.subr.bf16.mxu0 0
      %3540 = vmatpush1.bf16.msra.mxu0 0
      %3541 = vmatprep.subr.bf16.mxu0 0
      %3542 = vmatpush1.bf16.msra.mxu0 0
      %3543 = vmatprep.subr.bf16.mxu0 0
      %3544 = vmatpush1.bf16.msra.mxu0 0
      %3545 = vmatprep.subr.bf16.mxu0 0
      %3546 = vmatpush1.bf16.msra.mxu0 0
      %3547 = vmatprep.subr.bf16.mxu0 0
      %3548 = vmatpush1.bf16.msra.mxu0 0
      %3549 = vmatprep.subr.bf16.mxu0 0
      %3550 = vmatpush1.bf16.msra.mxu0 0
      %3551 = vmatprep.subr.bf16.mxu0 0
      %3552 = vmatpush1.bf16.msra.mxu0 0
      %3553 = vmatprep.subr.bf16.mxu0 0
      %3554 = vmatpush1.bf16.msra.mxu0 0
      %3555 = vmatprep.subr.bf16.mxu0 0
      %3556 = vmatpush1.bf16.msra.mxu0 0
      %3557 = vmatprep.subr.bf16.mxu0 0
      %3558 = vmatpush1.bf16.msra.mxu0 0
      %3559 = vmatprep.subr.bf16.mxu0 0
      %3560 = vmatpush1.bf16.msra.mxu0 0
      %3561 = vmatprep.subr.bf16.mxu0 0
      %3562 = vmatpush1.bf16.msra.mxu0 0
      %3563 = vmatprep.subr.bf16.mxu0 0
      %3564 = vmatpush1.bf16.msra.mxu0 0
      %3565 = vmatprep.subr.bf16.mxu0 0
      %3566 = vmatpush1.bf16.msra.mxu0 0
      %3567 = vmatprep.mubr.bf16.mxu0 0
      %3568 = vmatmul.mubr.bf16.gmra.mrb[0].mxu0 %v714
      %v3569 = vpop.f32.mrb[0].mxu0
      %v3570 = vadd.f32 0.0, %v3569
      %v3571 = vpop.f32.mrb[0].mxu0
      %v3572 = vpop.f32.mrb[0].mxu0
      %v3573 = vadd.f32 0.0, %v3572
      %v3574 = vpop.f32.mrb[0].mxu0
      %3575 = vmatprep.mubr.bf16.mxu0 0
      %3576 = vmatmul.mubr.bf16.gmra.mrb[0].mxu0 %v717
      %v3577 = vpop.f32.mrb[0].mxu0
      %v3578 = vadd.f32 0.0, %v3577
      %v3579 = vpop.f32.mrb[0].mxu0
      %v3580 = vpop.f32.mrb[0].mxu0
      %v3581 = vadd.f32 0.0, %v3580
      %v3582 = vpop.f32.mrb[0].mxu0
      %3583 = vmatprep.mubr.bf16.mxu0 0
      %3584 = vmatmul.mubr.bf16.gmra.mrb[0].mxu0 %v720
      %v3585 = vpop.f32.mrb[0].mxu0
      %v3586 = vadd.f32 0.0, %v3585
      %v3587 = vpop.f32.mrb[0].mxu0
      %v3588 = vpop.f32.mrb[0].mxu0
      %v3589 = vadd.f32 0.0, %v3588
      %v3590 = vpop.f32.mrb[0].mxu0
      %3591 = vmatprep.mubr.bf16.mxu0 0
      %3592 = vmatmul.mubr.bf16.gmra.mrb[0].mxu0 %v3530
      %v3593 = vpop.f32.mrb[0].mxu0
      %v3594 = vadd.f32 0.0, %v3593
      %v3595 = vpop.f32.mrb[0].mxu0
      %v3596 = vpop.f32.mrb[0].mxu0
      %v3597 = vadd.f32 0.0, %v3596
      %v3598 = vpop.f32.mrb[0].mxu0
      %3599 = vdwg.mxu0
      %v3600 = vadd.f32 %v3505, %v3570
      %v3601 = vadd.f32 %v3506, %v3573
      %v3602 = vadd.f32 %v3507, %v3578
      %v3603 = vadd.f32 %v3508, %v3581
      %v3604 = vadd.f32 %v3509, %v3586
      %v3605 = vadd.f32 %v3510, %v3589
      %v3606 = vadd.f32 %v3511, %v3594
      %v3607 = vadd.f32 %v3512, %v3597
      %3608 = vrot.lane.b32.xlu0 %v3528, 125
      %v3609 = vpop.permute.xlu0 %3608
      %v3611 = vsel %vm418, %v3609, 0
      %v3614 = vand.u32 %v372, %v434
      %3616 = vmatprep.subr.bf16.mxu0 0
      %3617 = vmatpush1.bf16.msra.mxu0 %v3614
      %3618 = vmatprep.subr.bf16.mxu0 0
      %3619 = vmatpush1.bf16.msra.mxu0 0
      %3620 = vmatprep.subr.bf16.mxu0 0
      %3621 = vmatpush1.bf16.msra.mxu0 0
      %3622 = vmatprep.subr.bf16.mxu0 0
      %3623 = vmatpush1.bf16.msra.mxu0 0
      %3624 = vmatprep.subr.bf16.mxu0 0
      %3625 = vmatpush1.bf16.msra.mxu0 0
      %3626 = vmatprep.subr.bf16.mxu0 0
      %3627 = vmatpush1.bf16.msra.mxu0 0
      %3628 = vmatprep.subr.bf16.mxu0 0
      %3629 = vmatpush1.bf16.msra.mxu0 0
      %3630 = vmatprep.subr.bf16.mxu0 0
      %3631 = vmatpush1.bf16.msra.mxu0 0
      %3632 = vmatprep.subr.bf16.mxu0 0
      %3633 = vmatpush1.bf16.msra.mxu0 0
      %3634 = vmatprep.subr.bf16.mxu0 0
      %3635 = vmatpush1.bf16.msra.mxu0 0
      %3636 = vmatprep.subr.bf16.mxu0 0
      %3637 = vmatpush1.bf16.msra.mxu0 0
      %3638 = vmatprep.subr.bf16.mxu0 0
      %3639 = vmatpush1.bf16.msra.mxu0 0
      %3640 = vmatprep.subr.bf16.mxu0 0
      %3641 = vmatpush1.bf16.msra.mxu0 0
      %3642 = vmatprep.subr.bf16.mxu0 0
      %3643 = vmatpush1.bf16.msra.mxu0 0
      %3644 = vmatprep.subr.bf16.mxu0 0
      %3645 = vmatpush1.bf16.msra.mxu0 0
      %3646 = vmatprep.subr.bf16.mxu0 0
      %3647 = vmatpush1.bf16.msra.mxu0 0
      %3648 = vmatprep.mubr.bf16.mxu0 0
      %3649 = vmatmul.mubr.bf16.gmra.mrb[0].mxu0 %v810
      %v3650 = vpop.f32.mrb[0].mxu0
      %v3651 = vadd.f32 0.0, %v3650
      %v3652 = vpop.f32.mrb[0].mxu0
      %v3653 = vpop.f32.mrb[0].mxu0
      %v3654 = vadd.f32 0.0, %v3653
      %v3655 = vpop.f32.mrb[0].mxu0
      %3656 = vmatprep.mubr.bf16.mxu0 0
      %3657 = vmatmul.mubr.bf16.gmra.mrb[0].mxu0 %v813
      %v3658 = vpop.f32.mrb[0].mxu0
      %v3659 = vadd.f32 0.0, %v3658
      %v3660 = vpop.f32.mrb[0].mxu0
      %v3661 = vpop.f32.mrb[0].mxu0
      %v3662 = vadd.f32 0.0, %v3661
      %v3663 = vpop.f32.mrb[0].mxu0
      %3664 = vmatprep.mubr.bf16.mxu0 0
      %3665 = vmatmul.mubr.bf16.gmra.mrb[0].mxu0 %v816
      %v3666 = vpop.f32.mrb[0].mxu0
      %v3667 = vadd.f32 0.0, %v3666
      %v3668 = vpop.f32.mrb[0].mxu0
      %v3669 = vpop.f32.mrb[0].mxu0
      %v3670 = vadd.f32 0.0, %v3669
      %v3671 = vpop.f32.mrb[0].mxu0
      %3672 = vmatprep.mubr.bf16.mxu0 0
      %3673 = vmatmul.mubr.bf16.gmra.mrb[0].mxu0 %v3611
      %v3674 = vpop.f32.mrb[0].mxu0
      %v3675 = vadd.f32 0.0, %v3674
      %v3676 = vpop.f32.mrb[0].mxu0
      %v3677 = vpop.f32.mrb[0].mxu0
      %v3678 = vadd.f32 0.0, %v3677
      %v3679 = vpop.f32.mrb[0].mxu0
      %3680 = vdwg.mxu0
      %v3681 = vadd.f32 %v3600, %v3651
      %v3682 = vadd.f32 %v3601, %v3654
      %v3683 = vadd.f32 %v3602, %v3659
      %v3684 = vadd.f32 %v3603, %v3662
      %v3685 = vadd.f32 %v3604, %v3667
      %v3686 = vadd.f32 %v3605, %v3670
      %v3687 = vadd.f32 %v3606, %v3675
      %v3688 = vadd.f32 %v3607, %v3678
      %v3690 = vrot.slane %v337, 5
      %v3691 = vrot.slane %v3690, 4
      %v3692 = vrot.slane %v338, 5
      %v3693 = vsel %vm904, %v3691, %v3692
      %v3694 = vunpack.c.l.b16 %v3693
      %v3695 = vpack.c.b16 %v3694, %v2386
      %v3697 = vsel %vm418, %v3695, 0
      %v3700 = vand.u32 %v373, %v434
      %3702 = vmatprep.subr.bf16.mxu0 0
      %3703 = vmatpush1.bf16.msra.mxu0 %v3700
      %3704 = vmatprep.subr.bf16.mxu0 0
      %3705 = vmatpush1.bf16.msra.mxu0 0
      %3706 = vmatprep.subr.bf16.mxu0 0
      %3707 = vmatpush1.bf16.msra.mxu0 0
      %3708 = vmatprep.subr.bf16.mxu0 0
      %3709 = vmatpush1.bf16.msra.mxu0 0
      %3710 = vmatprep.subr.bf16.mxu0 0
      %3711 = vmatpush1.bf16.msra.mxu0 0
      %3712 = vmatprep.subr.bf16.mxu0 0
      %3713 = vmatpush1.bf16.msra.mxu0 0
      %3714 = vmatprep.subr.bf16.mxu0 0
      %3715 = vmatpush1.bf16.msra.mxu0 0
      %3716 = vmatprep.subr.bf16.mxu0 0
      %3717 = vmatpush1.bf16.msra.mxu0 0
      %3718 = vmatprep.subr.bf16.mxu0 0
      %3719 = vmatpush1.bf16.msra.mxu0 0
      %3720 = vmatprep.subr.bf16.mxu0 0
      %3721 = vmatpush1.bf16.msra.mxu0 0
      %3722 = vmatprep.subr.bf16.mxu0 0
      %3723 = vmatpush1.bf16.msra.mxu0 0
      %3724 = vmatprep.subr.bf16.mxu0 0
      %3725 = vmatpush1.bf16.msra.mxu0 0
      %3726 = vmatprep.subr.bf16.mxu0 0
      %3727 = vmatpush1.bf16.msra.mxu0 0
      %3728 = vmatprep.subr.bf16.mxu0 0
      %3729 = vmatpush1.bf16.msra.mxu0 0
      %3730 = vmatprep.subr.bf16.mxu0 0
      %3731 = vmatpush1.bf16.msra.mxu0 0
      %3732 = vmatprep.subr.bf16.mxu0 0
      %3733 = vmatpush1.bf16.msra.mxu0 0
      %3734 = vmatprep.mubr.bf16.mxu0 0
      %3735 = vmatmul.mubr.bf16.gmra.mrb[0].mxu0 %v953
      %v3736 = vpop.f32.mrb[0].mxu0
      %v3737 = vadd.f32 0.0, %v3736
      %v3738 = vpop.f32.mrb[0].mxu0
      %v3739 = vpop.f32.mrb[0].mxu0
      %v3740 = vadd.f32 0.0, %v3739
      %v3741 = vpop.f32.mrb[0].mxu0
      %3742 = vmatprep.mubr.bf16.mxu0 0
      %3743 = vmatmul.mubr.bf16.gmra.mrb[0].mxu0 %v956
      %v3744 = vpop.f32.mrb[0].mxu0
      %v3745 = vadd.f32 0.0, %v3744
      %v3746 = vpop.f32.mrb[0].mxu0
      %v3747 = vpop.f32.mrb[0].mxu0
      %v3748 = vadd.f32 0.0, %v3747
      %v3749 = vpop.f32.mrb[0].mxu0
      %3750 = vmatprep.mubr.bf16.mxu0 0
      %3751 = vmatmul.mubr.bf16.gmra.mrb[0].mxu0 %v959
      %v3752 = vpop.f32.mrb[0].mxu0
      %v3753 = vadd.f32 0.0, %v3752
      %v3754 = vpop.f32.mrb[0].mxu0
      %v3755 = vpop.f32.mrb[0].mxu0
      %v3756 = vadd.f32 0.0, %v3755
      %v3757 = vpop.f32.mrb[0].mxu0
      %3758 = vmatprep.mubr.bf16.mxu0 0
      %3759 = vmatmul.mubr.bf16.gmra.mrb[0].mxu0 %v3697
      %v3760 = vpop.f32.mrb[0].mxu0
      %v3761 = vadd.f32 0.0, %v3760
      %v3762 = vpop.f32.mrb[0].mxu0
      %v3763 = vpop.f32.mrb[0].mxu0
      %v3764 = vadd.f32 0.0, %v3763
      %v3765 = vpop.f32.mrb[0].mxu0
      %3766 = vdwg.mxu0
      %v3767 = vadd.f32 %v3681, %v3737
      %v3768 = vadd.f32 %v3682, %v3740
      %v3769 = vadd.f32 %v3683, %v3745
      %v3770 = vadd.f32 %v3684, %v3748
      %v3771 = vadd.f32 %v3685, %v3753
      %v3772 = vadd.f32 %v3686, %v3756
      %v3773 = vadd.f32 %v3687, %v3761
      %v3774 = vadd.f32 %v3688, %v3764
      %3775 = vrot.lane.b32.xlu0 %v3695, 125
      %v3776 = vpop.permute.xlu0 %3775
      %v3778 = vsel %vm418, %v3776, 0
      %v3781 = vand.u32 %v374, %v434
      %3783 = vmatprep.subr.bf16.mxu0 0
      %3784 = vmatpush1.bf16.msra.mxu0 %v3781
      %3785 = vmatprep.subr.bf16.mxu0 0
      %3786 = vmatpush1.bf16.msra.mxu0 0
      %3787 = vmatprep.subr.bf16.mxu0 0
      %3788 = vmatpush1.bf16.msra.mxu0 0
      %3789 = vmatprep.subr.bf16.mxu0 0
      %3790 = vmatpush1.bf16.msra.mxu0 0
      %3791 = vmatprep.subr.bf16.mxu0 0
      %3792 = vmatpush1.bf16.msra.mxu0 0
      %3793 = vmatprep.subr.bf16.mxu0 0
      %3794 = vmatpush1.bf16.msra.mxu0 0
      %3795 = vmatprep.subr.bf16.mxu0 0
      %3796 = vmatpush1.bf16.msra.mxu0 0
      %3797 = vmatprep.subr.bf16.mxu0 0
      %3798 = vmatpush1.bf16.msra.mxu0 0
      %3799 = vmatprep.subr.bf16.mxu0 0
      %3800 = vmatpush1.bf16.msra.mxu0 0
      %3801 = vmatprep.subr.bf16.mxu0 0
      %3802 = vmatpush1.bf16.msra.mxu0 0
      %3803 = vmatprep.subr.bf16.mxu0 0
      %3804 = vmatpush1.bf16.msra.mxu0 0
      %3805 = vmatprep.subr.bf16.mxu0 0
      %3806 = vmatpush1.bf16.msra.mxu0 0
      %3807 = vmatprep.subr.bf16.mxu0 0
      %3808 = vmatpush1.bf16.msra.mxu0 0
      %3809 = vmatprep.subr.bf16.mxu0 0
      %3810 = vmatpush1.bf16.msra.mxu0 0
      %3811 = vmatprep.subr.bf16.mxu0 0
      %3812 = vmatpush1.bf16.msra.mxu0 0
      %3813 = vmatprep.subr.bf16.mxu0 0
      %3814 = vmatpush1.bf16.msra.mxu0 0
      %3815 = vmatprep.mubr.bf16.mxu0 0
      %3816 = vmatmul.mubr.bf16.gmra.mrb[0].mxu0 %v1049
      %v3817 = vpop.f32.mrb[0].mxu0
      %v3818 = vadd.f32 0.0, %v3817
      %v3819 = vpop.f32.mrb[0].mxu0
      %v3820 = vpop.f32.mrb[0].mxu0
      %v3821 = vadd.f32 0.0, %v3820
      %v3822 = vpop.f32.mrb[0].mxu0
      %3823 = vmatprep.mubr.bf16.mxu0 0
      %3824 = vmatmul.mubr.bf16.gmra.mrb[0].mxu0 %v1052
      %v3825 = vpop.f32.mrb[0].mxu0
      %v3826 = vadd.f32 0.0, %v3825
      %v3827 = vpop.f32.mrb[0].mxu0
      %v3828 = vpop.f32.mrb[0].mxu0
      %v3829 = vadd.f32 0.0, %v3828
      %v3830 = vpop.f32.mrb[0].mxu0
      %3831 = vmatprep.mubr.bf16.mxu0 0
      %3832 = vmatmul.mubr.bf16.gmra.mrb[0].mxu0 %v1055
      %v3833 = vpop.f32.mrb[0].mxu0
      %v3834 = vadd.f32 0.0, %v3833
      %v3835 = vpop.f32.mrb[0].mxu0
      %v3836 = vpop.f32.mrb[0].mxu0
      %v3837 = vadd.f32 0.0, %v3836
      %v3838 = vpop.f32.mrb[0].mxu0
      %3839 = vmatprep.mubr.bf16.mxu0 0
      %3840 = vmatmul.mubr.bf16.gmra.mrb[0].mxu0 %v3778
      %v3841 = vpop.f32.mrb[0].mxu0
      %v3842 = vadd.f32 0.0, %v3841
      %v3843 = vpop.f32.mrb[0].mxu0
      %v3844 = vpop.f32.mrb[0].mxu0
      %v3845 = vadd.f32 0.0, %v3844
      %v3846 = vpop.f32.mrb[0].mxu0
      %3847 = vdwg.mxu0
      %v3848 = vadd.f32 %v3767, %v3818
      %v3849 = vadd.f32 %v3768, %v3821
      %v3850 = vadd.f32 %v3769, %v3826
      %v3851 = vadd.f32 %v3770, %v3829
      %v3852 = vadd.f32 %v3771, %v3834
      %v3853 = vadd.f32 %v3772, %v3837
      %v3854 = vadd.f32 %v3773, %v3842
      %v3855 = vadd.f32 %v3774, %v3845
      %v3856 = vrot.slane %v3514, 5
      %v3857 = vrot.slane %v3517, 6
      %v3858 = vor.u32 %v3856, %v3857
      %v3859 = vrot.slane %v3858, 4
      %v3860 = vshrl.u32 %v338, 16
      %v3862 = vrot.slane %v3860, 5
      %v3863 = vrot.slane %v3523, 6
      %v3864 = vor.u32 %v3862, %v3863
      %v3865 = vsel %vm1135, %v3859, %v3864
      %v3866 = vunpack.c.l.b16 %v3865
      %v3867 = vpack.c.b16 %v3866, %v2585
      %v3869 = vsel %vm418, %v3867, 0
      %v3872 = vand.u32 %v375, %v434
      %3874 = vmatprep.subr.bf16.mxu0 0
      %3875 = vmatpush1.bf16.msra.mxu0 %v3872
      %3876 = vmatprep.subr.bf16.mxu0 0
      %3877 = vmatpush1.bf16.msra.mxu0 0
      %3878 = vmatprep.subr.bf16.mxu0 0
      %3879 = vmatpush1.bf16.msra.mxu0 0
      %3880 = vmatprep.subr.bf16.mxu0 0
      %3881 = vmatpush1.bf16.msra.mxu0 0
      %3882 = vmatprep.subr.bf16.mxu0 0
      %3883 = vmatpush1.bf16.msra.mxu0 0
      %3884 = vmatprep.subr.bf16.mxu0 0
      %3885 = vmatpush1.bf16.msra.mxu0 0
      %3886 = vmatprep.subr.bf16.mxu0 0
      %3887 = vmatpush1.bf16.msra.mxu0 0
      %3888 = vmatprep.subr.bf16.mxu0 0
      %3889 = vmatpush1.bf16.msra.mxu0 0
      %3890 = vmatprep.subr.bf16.mxu0 0
      %3891 = vmatpush1.bf16.msra.mxu0 0
      %3892 = vmatprep.subr.bf16.mxu0 0
      %3893 = vmatpush1.bf16.msra.mxu0 0
      %3894 = vmatprep.subr.bf16.mxu0 0
      %3895 = vmatpush1.bf16.msra.mxu0 0
      %3896 = vmatprep.subr.bf16.mxu0 0
      %3897 = vmatpush1.bf16.msra.mxu0 0
      %3898 = vmatprep.subr.bf16.mxu0 0
      %3899 = vmatpush1.bf16.msra.mxu0 0
      %3900 = vmatprep.subr.bf16.mxu0 0
      %3901 = vmatpush1.bf16.msra.mxu0 0
      %3902 = vmatprep.subr.bf16.mxu0 0
      %3903 = vmatpush1.bf16.msra.mxu0 0
      %3904 = vmatprep.subr.bf16.mxu0 0
      %3905 = vmatpush1.bf16.msra.mxu0 0
      %3906 = vmatprep.mubr.bf16.mxu0 0
      %3907 = vmatmul.mubr.bf16.gmra.mrb[0].mxu0 %v1232
      %v3908 = vpop.f32.mrb[0].mxu0
      %v3909 = vadd.f32 0.0, %v3908
      %v3910 = vpop.f32.mrb[0].mxu0
      %v3911 = vpop.f32.mrb[0].mxu0
      %v3912 = vadd.f32 0.0, %v3911
      %v3913 = vpop.f32.mrb[0].mxu0
      %3914 = vmatprep.mubr.bf16.mxu0 0
      %3915 = vmatmul.mubr.bf16.gmra.mrb[0].mxu0 %v1235
      %v3916 = vpop.f32.mrb[0].mxu0
      %v3917 = vadd.f32 0.0, %v3916
      %v3918 = vpop.f32.mrb[0].mxu0
      %v3919 = vpop.f32.mrb[0].mxu0
      %v3920 = vadd.f32 0.0, %v3919
      %v3921 = vpop.f32.mrb[0].mxu0
      %3922 = vmatprep.mubr.bf16.mxu0 0
      %3923 = vmatmul.mubr.bf16.gmra.mrb[0].mxu0 %v1238
      %v3924 = vpop.f32.mrb[0].mxu0
      %v3925 = vadd.f32 0.0, %v3924
      %v3926 = vpop.f32.mrb[0].mxu0
      %v3927 = vpop.f32.mrb[0].mxu0
      %v3928 = vadd.f32 0.0, %v3927
      %v3929 = vpop.f32.mrb[0].mxu0
      %3930 = vmatprep.mubr.bf16.mxu0 0
      %3931 = vmatmul.mubr.bf16.gmra.mrb[0].mxu0 %v3869
      %v3932 = vpop.f32.mrb[0].mxu0
      %v3933 = vadd.f32 0.0, %v3932
      %v3934 = vpop.f32.mrb[0].mxu0
      %v3935 = vpop.f32.mrb[0].mxu0
      %v3936 = vadd.f32 0.0, %v3935
      %v3937 = vpop.f32.mrb[0].mxu0
      %3938 = vdwg.mxu0
      %v3939 = vadd.f32 %v3848, %v3909
      %v3940 = vadd.f32 %v3849, %v3912
      %v3941 = vadd.f32 %v3850, %v3917
      %v3942 = vadd.f32 %v3851, %v3920
      %v3943 = vadd.f32 %v3852, %v3925
      %v3944 = vadd.f32 %v3853, %v3928
      %v3945 = vadd.f32 %v3854, %v3933
      %v3946 = vadd.f32 %v3855, %v3936
      %3947 = vrot.lane.b32.xlu0 %v3352, 122
      %v3948 = vpop.permute.xlu0 %3947
      %v3950 = vsel %vm418, %v3948, 0
      %v3953 = vand.u32 %v376, %v434
      %3955 = vmatprep.subr.bf16.mxu0 0
      %3956 = vmatpush1.bf16.msra.mxu0 %v3953
      %3957 = vmatprep.subr.bf16.mxu0 0
      %3958 = vmatpush1.bf16.msra.mxu0 0
      %3959 = vmatprep.subr.bf16.mxu0 0
      %3960 = vmatpush1.bf16.msra.mxu0 0
      %3961 = vmatprep.subr.bf16.mxu0 0
      %3962 = vmatpush1.bf16.msra.mxu0 0
      %3963 = vmatprep.subr.bf16.mxu0 0
      %3964 = vmatpush1.bf16.msra.mxu0 0
      %3965 = vmatprep.subr.bf16.mxu0 0
      %3966 = vmatpush1.bf16.msra.mxu0 0
      %3967 = vmatprep.subr.bf16.mxu0 0
      %3968 = vmatpush1.bf16.msra.mxu0 0
      %3969 = vmatprep.subr.bf16.mxu0 0
      %3970 = vmatpush1.bf16.msra.mxu0 0
      %3971 = vmatprep.subr.bf16.mxu0 0
      %3972 = vmatpush1.bf16.msra.mxu0 0
      %3973 = vmatprep.subr.bf16.mxu0 0
      %3974 = vmatpush1.bf16.msra.mxu0 0
      %3975 = vmatprep.subr.bf16.mxu0 0
      %3976 = vmatpush1.bf16.msra.mxu0 0
      %3977 = vmatprep.subr.bf16.mxu0 0
      %3978 = vmatpush1.bf16.msra.mxu0 0
      %3979 = vmatprep.subr.bf16.mxu0 0
      %3980 = vmatpush1.bf16.msra.mxu0 0
      %3981 = vmatprep.subr.bf16.mxu0 0
      %3982 = vmatpush1.bf16.msra.mxu0 0
      %3983 = vmatprep.subr.bf16.mxu0 0
      %3984 = vmatpush1.bf16.msra.mxu0 0
      %3985 = vmatprep.subr.bf16.mxu0 0
      %3986 = vmatpush1.bf16.msra.mxu0 0
      %3987 = vmatprep.mubr.bf16.mxu0 0
      %3988 = vmatmul.mubr.bf16.gmra.mrb[0].mxu0 %v1328
      %v3989 = vpop.f32.mrb[0].mxu0
      %v3990 = vadd.f32 0.0, %v3989
      %v3991 = vpop.f32.mrb[0].mxu0
      %v3992 = vpop.f32.mrb[0].mxu0
      %v3993 = vadd.f32 0.0, %v3992
      %v3994 = vpop.f32.mrb[0].mxu0
      %3995 = vmatprep.mubr.bf16.mxu0 0
      %3996 = vmatmul.mubr.bf16.gmra.mrb[0].mxu0 %v1331
      %v3997 = vpop.f32.mrb[0].mxu0
      %v3998 = vadd.f32 0.0, %v3997
      %v3999 = vpop.f32.mrb[0].mxu0
      %v4000 = vpop.f32.mrb[0].mxu0
      %v4001 = vadd.f32 0.0, %v4000
      %v4002 = vpop.f32.mrb[0].mxu0
      %4003 = vmatprep.mubr.bf16.mxu0 0
      %4004 = vmatmul.mubr.bf16.gmra.mrb[0].mxu0 %v1334
      %v4005 = vpop.f32.mrb[0].mxu0
      %v4006 = vadd.f32 0.0, %v4005
      %v4007 = vpop.f32.mrb[0].mxu0
      %v4008 = vpop.f32.mrb[0].mxu0
      %v4009 = vadd.f32 0.0, %v4008
      %v4010 = vpop.f32.mrb[0].mxu0
      %4011 = vmatprep.mubr.bf16.mxu0 0
      %4012 = vmatmul.mubr.bf16.gmra.mrb[0].mxu0 %v3950
      %v4013 = vpop.f32.mrb[0].mxu0
      %v4014 = vadd.f32 0.0, %v4013
      %v4015 = vpop.f32.mrb[0].mxu0
      %v4016 = vpop.f32.mrb[0].mxu0
      %v4017 = vadd.f32 0.0, %v4016
      %v4018 = vpop.f32.mrb[0].mxu0
      %4019 = vdwg.mxu0
      %v4020 = vadd.f32 %v3939, %v3990
      %v4021 = vadd.f32 %v3940, %v3993
      %v4022 = vadd.f32 %v3941, %v3998
      %v4023 = vadd.f32 %v3942, %v4001
      %v4024 = vadd.f32 %v3943, %v4006
      %v4025 = vadd.f32 %v3944, %v4009
      %v4026 = vadd.f32 %v3945, %v4014
      %v4027 = vadd.f32 %v3946, %v4017
      %4028 = vrot.lane.b32.xlu0 %v3352, 119
      %v4029 = vpop.permute.xlu0 %4028
      %v4031 = vsel %vm418, %v4029, 0
      %v4034 = vand.u32 %v377, %v434
      %4036 = vmatprep.subr.bf16.mxu0 0
      %4037 = vmatpush1.bf16.msra.mxu0 %v4034
      %4038 = vmatprep.subr.bf16.mxu0 0
      %4039 = vmatpush1.bf16.msra.mxu0 0
      %4040 = vmatprep.subr.bf16.mxu0 0
      %4041 = vmatpush1.bf16.msra.mxu0 0
      %4042 = vmatprep.subr.bf16.mxu0 0
      %4043 = vmatpush1.bf16.msra.mxu0 0
      %4044 = vmatprep.subr.bf16.mxu0 0
      %4045 = vmatpush1.bf16.msra.mxu0 0
      %4046 = vmatprep.subr.bf16.mxu0 0
      %4047 = vmatpush1.bf16.msra.mxu0 0
      %4048 = vmatprep.subr.bf16.mxu0 0
      %4049 = vmatpush1.bf16.msra.mxu0 0
      %4050 = vmatprep.subr.bf16.mxu0 0
      %4051 = vmatpush1.bf16.msra.mxu0 0
      %4052 = vmatprep.subr.bf16.mxu0 0
      %4053 = vmatpush1.bf16.msra.mxu0 0
      %4054 = vmatprep.subr.bf16.mxu0 0
      %4055 = vmatpush1.bf16.msra.mxu0 0
      %4056 = vmatprep.subr.bf16.mxu0 0
      %4057 = vmatpush1.bf16.msra.mxu0 0
      %4058 = vmatprep.subr.bf16.mxu0 0
      %4059 = vmatpush1.bf16.msra.mxu0 0
      %4060 = vmatprep.subr.bf16.mxu0 0
      %4061 = vmatpush1.bf16.msra.mxu0 0
      %4062 = vmatprep.subr.bf16.mxu0 0
      %4063 = vmatpush1.bf16.msra.mxu0 0
      %4064 = vmatprep.subr.bf16.mxu0 0
      %4065 = vmatpush1.bf16.msra.mxu0 0
      %4066 = vmatprep.subr.bf16.mxu0 0
      %4067 = vmatpush1.bf16.msra.mxu0 0
      %4068 = vmatprep.mubr.bf16.mxu0 0
      %4069 = vmatmul.mubr.bf16.gmra.mrb[0].mxu0 %v1424
      %v4070 = vpop.f32.mrb[0].mxu0
      %v4071 = vadd.f32 0.0, %v4070
      %v4072 = vpop.f32.mrb[0].mxu0
      %v4073 = vpop.f32.mrb[0].mxu0
      %v4074 = vadd.f32 0.0, %v4073
      %v4075 = vpop.f32.mrb[0].mxu0
      %4076 = vmatprep.mubr.bf16.mxu0 0
      %4077 = vmatmul.mubr.bf16.gmra.mrb[0].mxu0 %v1427
      %v4078 = vpop.f32.mrb[0].mxu0
      %v4079 = vadd.f32 0.0, %v4078
      %v4080 = vpop.f32.mrb[0].mxu0
      %v4081 = vpop.f32.mrb[0].mxu0
      %v4082 = vadd.f32 0.0, %v4081
      %v4083 = vpop.f32.mrb[0].mxu0
      %4084 = vmatprep.mubr.bf16.mxu0 0
      %4085 = vmatmul.mubr.bf16.gmra.mrb[0].mxu0 %v1430
      %v4086 = vpop.f32.mrb[0].mxu0
      %v4087 = vadd.f32 0.0, %v4086
      %v4088 = vpop.f32.mrb[0].mxu0
      %v4089 = vpop.f32.mrb[0].mxu0
      %v4090 = vadd.f32 0.0, %v4089
      %v4091 = vpop.f32.mrb[0].mxu0
      %4092 = vmatprep.mubr.bf16.mxu0 0
      %4093 = vmatmul.mubr.bf16.gmra.mrb[0].mxu0 %v4031
      %v4094 = vpop.f32.mrb[0].mxu0
      %v4095 = vadd.f32 0.0, %v4094
      %v4096 = vpop.f32.mrb[0].mxu0
      %v4097 = vpop.f32.mrb[0].mxu0
      %v4098 = vadd.f32 0.0, %v4097
      %v4099 = vpop.f32.mrb[0].mxu0
      %4100 = vdwg.mxu0
      %v4101 = vadd.f32 %v4020, %v4071
      %v4102 = vadd.f32 %v4021, %v4074
      %v4103 = vadd.f32 %v4022, %v4079
      %v4104 = vadd.f32 %v4023, %v4082
      %v4105 = vadd.f32 %v4024, %v4087
      %v4106 = vadd.f32 %v4025, %v4090
      %v4107 = vadd.f32 %v4026, %v4095
      %v4108 = vadd.f32 %v4027, %v4098
      %4109 = vrot.lane.b32.xlu0 %v3528, 122
      %v4110 = vpop.permute.xlu0 %4109
      %v4112 = vsel %vm418, %v4110, 0
      %v4115 = vand.u32 %v378, %v434
      %4117 = vmatprep.subr.bf16.mxu0 0
      %4118 = vmatpush1.bf16.msra.mxu0 %v4115
      %4119 = vmatprep.subr.bf16.mxu0 0
      %4120 = vmatpush1.bf16.msra.mxu0 0
      %4121 = vmatprep.subr.bf16.mxu0 0
      %4122 = vmatpush1.bf16.msra.mxu0 0
      %4123 = vmatprep.subr.bf16.mxu0 0
      %4124 = vmatpush1.bf16.msra.mxu0 0
      %4125 = vmatprep.subr.bf16.mxu0 0
      %4126 = vmatpush1.bf16.msra.mxu0 0
      %4127 = vmatprep.subr.bf16.mxu0 0
      %4128 = vmatpush1.bf16.msra.mxu0 0
      %4129 = vmatprep.subr.bf16.mxu0 0
      %4130 = vmatpush1.bf16.msra.mxu0 0
      %4131 = vmatprep.subr.bf16.mxu0 0
      %4132 = vmatpush1.bf16.msra.mxu0 0
      %4133 = vmatprep.subr.bf16.mxu0 0
      %4134 = vmatpush1.bf16.msra.mxu0 0
      %4135 = vmatprep.subr.bf16.mxu0 0
      %4136 = vmatpush1.bf16.msra.mxu0 0
      %4137 = vmatprep.subr.bf16.mxu0 0
      %4138 = vmatpush1.bf16.msra.mxu0 0
      %4139 = vmatprep.subr.bf16.mxu0 0
      %4140 = vmatpush1.bf16.msra.mxu0 0
      %4141 = vmatprep.subr.bf16.mxu0 0
      %4142 = vmatpush1.bf16.msra.mxu0 0
      %4143 = vmatprep.subr.bf16.mxu0 0
      %4144 = vmatpush1.bf16.msra.mxu0 0
      %4145 = vmatprep.subr.bf16.mxu0 0
      %4146 = vmatpush1.bf16.msra.mxu0 0
      %4147 = vmatprep.subr.bf16.mxu0 0
      %4148 = vmatpush1.bf16.msra.mxu0 0
      %4149 = vmatprep.mubr.bf16.mxu0 0
      %4150 = vmatmul.mubr.bf16.gmra.mrb[0].mxu0 %v1520
      %v4151 = vpop.f32.mrb[0].mxu0
      %v4152 = vadd.f32 0.0, %v4151
      %v4153 = vpop.f32.mrb[0].mxu0
      %v4154 = vpop.f32.mrb[0].mxu0
      %v4155 = vadd.f32 0.0, %v4154
      %v4156 = vpop.f32.mrb[0].mxu0
      %4157 = vmatprep.mubr.bf16.mxu0 0
      %4158 = vmatmul.mubr.bf16.gmra.mrb[0].mxu0 %v1523
      %v4159 = vpop.f32.mrb[0].mxu0
      %v4160 = vadd.f32 0.0, %v4159
      %v4161 = vpop.f32.mrb[0].mxu0
      %v4162 = vpop.f32.mrb[0].mxu0
      %v4163 = vadd.f32 0.0, %v4162
      %v4164 = vpop.f32.mrb[0].mxu0
      %4165 = vmatprep.mubr.bf16.mxu0 0
      %4166 = vmatmul.mubr.bf16.gmra.mrb[0].mxu0 %v1526
      %v4167 = vpop.f32.mrb[0].mxu0
      %v4168 = vadd.f32 0.0, %v4167
      %v4169 = vpop.f32.mrb[0].mxu0
      %v4170 = vpop.f32.mrb[0].mxu0
      %v4171 = vadd.f32 0.0, %v4170
      %v4172 = vpop.f32.mrb[0].mxu0
      %4173 = vmatprep.mubr.bf16.mxu0 0
      %4174 = vmatmul.mubr.bf16.gmra.mrb[0].mxu0 %v4112
      %v4175 = vpop.f32.mrb[0].mxu0
      %v4176 = vadd.f32 0.0, %v4175
      %v4177 = vpop.f32.mrb[0].mxu0
      %v4178 = vpop.f32.mrb[0].mxu0
      %v4179 = vadd.f32 0.0, %v4178
      %v4180 = vpop.f32.mrb[0].mxu0
      %4181 = vdwg.mxu0
      %v4182 = vadd.f32 %v4101, %v4152
      %v4183 = vadd.f32 %v4102, %v4155
      %v4184 = vadd.f32 %v4103, %v4160
      %v4185 = vadd.f32 %v4104, %v4163
      %v4186 = vadd.f32 %v4105, %v4168
      %v4187 = vadd.f32 %v4106, %v4171
      %v4188 = vadd.f32 %v4107, %v4176
      %v4189 = vadd.f32 %v4108, %v4179
      %4190 = vrot.lane.b32.xlu0 %v3528, 119
      %v4191 = vpop.permute.xlu0 %4190
      %v4193 = vsel %vm418, %v4191, 0
      %v4196 = vand.u32 %v379, %v434
      %4198 = vmatprep.subr.bf16.mxu0 0
      %4199 = vmatpush1.bf16.msra.mxu0 %v4196
      %4200 = vmatprep.subr.bf16.mxu0 0
      %4201 = vmatpush1.bf16.msra.mxu0 0
      %4202 = vmatprep.subr.bf16.mxu0 0
      %4203 = vmatpush1.bf16.msra.mxu0 0
      %4204 = vmatprep.subr.bf16.mxu0 0
      %4205 = vmatpush1.bf16.msra.mxu0 0
      %4206 = vmatprep.subr.bf16.mxu0 0
      %4207 = vmatpush1.bf16.msra.mxu0 0
      %4208 = vmatprep.subr.bf16.mxu0 0
      %4209 = vmatpush1.bf16.msra.mxu0 0
      %4210 = vmatprep.subr.bf16.mxu0 0
      %4211 = vmatpush1.bf16.msra.mxu0 0
      %4212 = vmatprep.subr.bf16.mxu0 0
      %4213 = vmatpush1.bf16.msra.mxu0 0
      %4214 = vmatprep.subr.bf16.mxu0 0
      %4215 = vmatpush1.bf16.msra.mxu0 0
      %4216 = vmatprep.subr.bf16.mxu0 0
      %4217 = vmatpush1.bf16.msra.mxu0 0
      %4218 = vmatprep.subr.bf16.mxu0 0
      %4219 = vmatpush1.bf16.msra.mxu0 0
      %4220 = vmatprep.subr.bf16.mxu0 0
      %4221 = vmatpush1.bf16.msra.mxu0 0
      %4222 = vmatprep.subr.bf16.mxu0 0
      %4223 = vmatpush1.bf16.msra.mxu0 0
      %4224 = vmatprep.subr.bf16.mxu0 0
      %4225 = vmatpush1.bf16.msra.mxu0 0
      %4226 = vmatprep.subr.bf16.mxu0 0
      %4227 = vmatpush1.bf16.msra.mxu0 0
      %4228 = vmatprep.subr.bf16.mxu0 0
      %4229 = vmatpush1.bf16.msra.mxu0 0
      %4230 = vmatprep.mubr.bf16.mxu0 0
      %4231 = vmatmul.mubr.bf16.gmra.mrb[0].mxu0 %v1616
      %v4232 = vpop.f32.mrb[0].mxu0
      %v4233 = vadd.f32 0.0, %v4232
      %v4234 = vpop.f32.mrb[0].mxu0
      %v4235 = vpop.f32.mrb[0].mxu0
      %v4236 = vadd.f32 0.0, %v4235
      %v4237 = vpop.f32.mrb[0].mxu0
      %4238 = vmatprep.mubr.bf16.mxu0 0
      %4239 = vmatmul.mubr.bf16.gmra.mrb[0].mxu0 %v1619
      %v4240 = vpop.f32.mrb[0].mxu0
      %v4241 = vadd.f32 0.0, %v4240
      %v4242 = vpop.f32.mrb[0].mxu0
      %v4243 = vpop.f32.mrb[0].mxu0
      %v4244 = vadd.f32 0.0, %v4243
      %v4245 = vpop.f32.mrb[0].mxu0
      %4246 = vmatprep.mubr.bf16.mxu0 0
      %4247 = vmatmul.mubr.bf16.gmra.mrb[0].mxu0 %v1622
      %v4248 = vpop.f32.mrb[0].mxu0
      %v4249 = vadd.f32 0.0, %v4248
      %v4250 = vpop.f32.mrb[0].mxu0
      %v4251 = vpop.f32.mrb[0].mxu0
      %v4252 = vadd.f32 0.0, %v4251
      %v4253 = vpop.f32.mrb[0].mxu0
      %4254 = vmatprep.mubr.bf16.mxu0 0
      %4255 = vmatmul.mubr.bf16.gmra.mrb[0].mxu0 %v4193
      %v4256 = vpop.f32.mrb[0].mxu0
      %v4257 = vadd.f32 0.0, %v4256
      %v4258 = vpop.f32.mrb[0].mxu0
      %v4259 = vpop.f32.mrb[0].mxu0
      %v4260 = vadd.f32 0.0, %v4259
      %v4261 = vpop.f32.mrb[0].mxu0
      %4262 = vdwg.mxu0
      %v4263 = vadd.f32 %v4182, %v4233
      %v4264 = vadd.f32 %v4183, %v4236
      %v4265 = vadd.f32 %v4184, %v4241
      %v4266 = vadd.f32 %v4185, %v4244
      %v4267 = vadd.f32 %v4186, %v4249
      %v4268 = vadd.f32 %v4187, %v4252
      %v4269 = vadd.f32 %v4188, %v4257
      %v4270 = vadd.f32 %v4189, %v4260
      %4271 = vrot.lane.b32.xlu0 %v3695, 122
      %v4272 = vpop.permute.xlu0 %4271
      %v4274 = vsel %vm418, %v4272, 0
      %v4277 = vand.u32 %v380, %v434
      %4279 = vmatprep.subr.bf16.mxu0 0
      %4280 = vmatpush1.bf16.msra.mxu0 %v4277
      %4281 = vmatprep.subr.bf16.mxu0 0
      %4282 = vmatpush1.bf16.msra.mxu0 0
      %4283 = vmatprep.subr.bf16.mxu0 0
      %4284 = vmatpush1.bf16.msra.mxu0 0
      %4285 = vmatprep.subr.bf16.mxu0 0
      %4286 = vmatpush1.bf16.msra.mxu0 0
      %4287 = vmatprep.subr.bf16.mxu0 0
      %4288 = vmatpush1.bf16.msra.mxu0 0
      %4289 = vmatprep.subr.bf16.mxu0 0
      %4290 = vmatpush1.bf16.msra.mxu0 0
      %4291 = vmatprep.subr.bf16.mxu0 0
      %4292 = vmatpush1.bf16.msra.mxu0 0
      %4293 = vmatprep.subr.bf16.mxu0 0
      %4294 = vmatpush1.bf16.msra.mxu0 0
      %4295 = vmatprep.subr.bf16.mxu0 0
      %4296 = vmatpush1.bf16.msra.mxu0 0
      %4297 = vmatprep.subr.bf16.mxu0 0
      %4298 = vmatpush1.bf16.msra.mxu0 0
      %4299 = vmatprep.subr.bf16.mxu0 0
      %4300 = vmatpush1.bf16.msra.mxu0 0
      %4301 = vmatprep.subr.bf16.mxu0 0
      %4302 = vmatpush1.bf16.msra.mxu0 0
      %4303 = vmatprep.subr.bf16.mxu0 0
      %4304 = vmatpush1.bf16.msra.mxu0 0
      %4305 = vmatprep.subr.bf16.mxu0 0
      %4306 = vmatpush1.bf16.msra.mxu0 0
      %4307 = vmatprep.subr.bf16.mxu0 0
      %4308 = vmatpush1.bf16.msra.mxu0 0
      %4309 = vmatprep.subr.bf16.mxu0 0
      %4310 = vmatpush1.bf16.msra.mxu0 0
      %4311 = vmatprep.mubr.bf16.mxu0 0
      %4312 = vmatmul.mubr.bf16.gmra.mrb[0].mxu0 %v1712
      %v4313 = vpop.f32.mrb[0].mxu0
      %v4314 = vadd.f32 0.0, %v4313
      %v4315 = vpop.f32.mrb[0].mxu0
      %v4316 = vpop.f32.mrb[0].mxu0
      %v4317 = vadd.f32 0.0, %v4316
      %v4318 = vpop.f32.mrb[0].mxu0
      %4319 = vmatprep.mubr.bf16.mxu0 0
      %4320 = vmatmul.mubr.bf16.gmra.mrb[0].mxu0 %v1715
      %v4321 = vpop.f32.mrb[0].mxu0
      %v4322 = vadd.f32 0.0, %v4321
      %v4323 = vpop.f32.mrb[0].mxu0
      %v4324 = vpop.f32.mrb[0].mxu0
      %v4325 = vadd.f32 0.0, %v4324
      %v4326 = vpop.f32.mrb[0].mxu0
      %4327 = vmatprep.mubr.bf16.mxu0 0
      %4328 = vmatmul.mubr.bf16.gmra.mrb[0].mxu0 %v1718
      %v4329 = vpop.f32.mrb[0].mxu0
      %v4330 = vadd.f32 0.0, %v4329
      %v4331 = vpop.f32.mrb[0].mxu0
      %v4332 = vpop.f32.mrb[0].mxu0
      %v4333 = vadd.f32 0.0, %v4332
      %v4334 = vpop.f32.mrb[0].mxu0
      %4335 = vmatprep.mubr.bf16.mxu0 0
      %4336 = vmatmul.mubr.bf16.gmra.mrb[0].mxu0 %v4274
      %v4337 = vpop.f32.mrb[0].mxu0
      %v4338 = vadd.f32 0.0, %v4337
      %v4339 = vpop.f32.mrb[0].mxu0
      %v4340 = vpop.f32.mrb[0].mxu0
      %v4341 = vadd.f32 0.0, %v4340
      %v4342 = vpop.f32.mrb[0].mxu0
      %4343 = vdwg.mxu0
      %v4344 = vadd.f32 %v4263, %v4314
      %v4345 = vadd.f32 %v4264, %v4317
      %v4346 = vadd.f32 %v4265, %v4322
      %v4347 = vadd.f32 %v4266, %v4325
      %v4348 = vadd.f32 %v4267, %v4330
      %v4349 = vadd.f32 %v4268, %v4333
      %v4350 = vadd.f32 %v4269, %v4338
      %v4351 = vadd.f32 %v4270, %v4341
      %4352 = vrot.lane.b32.xlu0 %v3695, 119
      %v4353 = vpop.permute.xlu0 %4352
      %v4355 = vsel %vm418, %v4353, 0
      %v4358 = vand.u32 %v381, %v434
      %4360 = vmatprep.subr.bf16.mxu0 0
      %4361 = vmatpush1.bf16.msra.mxu0 %v4358
      %4362 = vmatprep.subr.bf16.mxu0 0
      %4363 = vmatpush1.bf16.msra.mxu0 0
      %4364 = vmatprep.subr.bf16.mxu0 0
      %4365 = vmatpush1.bf16.msra.mxu0 0
      %4366 = vmatprep.subr.bf16.mxu0 0
      %4367 = vmatpush1.bf16.msra.mxu0 0
      %4368 = vmatprep.subr.bf16.mxu0 0
      %4369 = vmatpush1.bf16.msra.mxu0 0
      %4370 = vmatprep.subr.bf16.mxu0 0
      %4371 = vmatpush1.bf16.msra.mxu0 0
      %4372 = vmatprep.subr.bf16.mxu0 0
      %4373 = vmatpush1.bf16.msra.mxu0 0
      %4374 = vmatprep.subr.bf16.mxu0 0
      %4375 = vmatpush1.bf16.msra.mxu0 0
      %4376 = vmatprep.subr.bf16.mxu0 0
      %4377 = vmatpush1.bf16.msra.mxu0 0
      %4378 = vmatprep.subr.bf16.mxu0 0
      %4379 = vmatpush1.bf16.msra.mxu0 0
      %4380 = vmatprep.subr.bf16.mxu0 0
      %4381 = vmatpush1.bf16.msra.mxu0 0
      %4382 = vmatprep.subr.bf16.mxu0 0
      %4383 = vmatpush1.bf16.msra.mxu0 0
      %4384 = vmatprep.subr.bf16.mxu0 0
      %4385 = vmatpush1.bf16.msra.mxu0 0
      %4386 = vmatprep.subr.bf16.mxu0 0
      %4387 = vmatpush1.bf16.msra.mxu0 0
      %4388 = vmatprep.subr.bf16.mxu0 0
      %4389 = vmatpush1.bf16.msra.mxu0 0
      %4390 = vmatprep.subr.bf16.mxu0 0
      %4391 = vmatpush1.bf16.msra.mxu0 0
      %4392 = vmatprep.mubr.bf16.mxu0 0
      %4393 = vmatmul.mubr.bf16.gmra.mrb[0].mxu0 %v1808
      %v4394 = vpop.f32.mrb[0].mxu0
      %v4395 = vadd.f32 0.0, %v4394
      %v4396 = vpop.f32.mrb[0].mxu0
      %v4397 = vpop.f32.mrb[0].mxu0
      %v4398 = vadd.f32 0.0, %v4397
      %v4399 = vpop.f32.mrb[0].mxu0
      %4400 = vmatprep.mubr.bf16.mxu0 0
      %4401 = vmatmul.mubr.bf16.gmra.mrb[0].mxu0 %v1811
      %v4402 = vpop.f32.mrb[0].mxu0
      %v4403 = vadd.f32 0.0, %v4402
      %v4404 = vpop.f32.mrb[0].mxu0
      %v4405 = vpop.f32.mrb[0].mxu0
      %v4406 = vadd.f32 0.0, %v4405
      %v4407 = vpop.f32.mrb[0].mxu0
      %4408 = vmatprep.mubr.bf16.mxu0 0
      %4409 = vmatmul.mubr.bf16.gmra.mrb[0].mxu0 %v1814
      %v4410 = vpop.f32.mrb[0].mxu0
      %v4411 = vadd.f32 0.0, %v4410
      %v4412 = vpop.f32.mrb[0].mxu0
      %v4413 = vpop.f32.mrb[0].mxu0
      %v4414 = vadd.f32 0.0, %v4413
      %v4415 = vpop.f32.mrb[0].mxu0
      %4416 = vmatprep.mubr.bf16.mxu0 0
      %4417 = vmatmul.mubr.bf16.gmra.mrb[0].mxu0 %v4355
      %v4418 = vpop.f32.mrb[0].mxu0
      %v4419 = vadd.f32 0.0, %v4418
      %v4420 = vpop.f32.mrb[0].mxu0
      %v4421 = vpop.f32.mrb[0].mxu0
      %v4422 = vadd.f32 0.0, %v4421
      %v4423 = vpop.f32.mrb[0].mxu0
      %4424 = vdwg.mxu0
      %v4425 = vadd.f32 %v4344, %v4395
      %v4426 = vadd.f32 %v4345, %v4398
      %v4427 = vadd.f32 %v4346, %v4403
      %v4428 = vadd.f32 %v4347, %v4406
      %v4429 = vadd.f32 %v4348, %v4411
      %v4430 = vadd.f32 %v4349, %v4414
      %v4431 = vadd.f32 %v4350, %v4419
      %v4432 = vadd.f32 %v4351, %v4422
      %4433 = vrot.lane.b32.xlu0 %v3867, 122
      %v4434 = vpop.permute.xlu0 %4433
      %v4436 = vsel %vm418, %v4434, 0
      %v4439 = vand.u32 %v382, %v434
      %4441 = vmatprep.subr.bf16.mxu0 0
      %4442 = vmatpush1.bf16.msra.mxu0 %v4439
      %4443 = vmatprep.subr.bf16.mxu0 0
      %4444 = vmatpush1.bf16.msra.mxu0 0
      %4445 = vmatprep.subr.bf16.mxu0 0
      %4446 = vmatpush1.bf16.msra.mxu0 0
      %4447 = vmatprep.subr.bf16.mxu0 0
      %4448 = vmatpush1.bf16.msra.mxu0 0
      %4449 = vmatprep.subr.bf16.mxu0 0
      %4450 = vmatpush1.bf16.msra.mxu0 0
      %4451 = vmatprep.subr.bf16.mxu0 0
      %4452 = vmatpush1.bf16.msra.mxu0 0
      %4453 = vmatprep.subr.bf16.mxu0 0
      %4454 = vmatpush1.bf16.msra.mxu0 0
      %4455 = vmatprep.subr.bf16.mxu0 0
      %4456 = vmatpush1.bf16.msra.mxu0 0
      %4457 = vmatprep.subr.bf16.mxu0 0
      %4458 = vmatpush1.bf16.msra.mxu0 0
      %4459 = vmatprep.subr.bf16.mxu0 0
      %4460 = vmatpush1.bf16.msra.mxu0 0
      %4461 = vmatprep.subr.bf16.mxu0 0
      %4462 = vmatpush1.bf16.msra.mxu0 0
      %4463 = vmatprep.subr.bf16.mxu0 0
      %4464 = vmatpush1.bf16.msra.mxu0 0
      %4465 = vmatprep.subr.bf16.mxu0 0
      %4466 = vmatpush1.bf16.msra.mxu0 0
      %4467 = vmatprep.subr.bf16.mxu0 0
      %4468 = vmatpush1.bf16.msra.mxu0 0
      %4469 = vmatprep.subr.bf16.mxu0 0
      %4470 = vmatpush1.bf16.msra.mxu0 0
      %4471 = vmatprep.subr.bf16.mxu0 0
      %4472 = vmatpush1.bf16.msra.mxu0 0
      %4473 = vmatprep.mubr.bf16.mxu0 0
      %4474 = vmatmul.mubr.bf16.gmra.mrb[0].mxu0 %v1904
      %v4475 = vpop.f32.mrb[0].mxu0
      %v4476 = vadd.f32 0.0, %v4475
      %v4477 = vpop.f32.mrb[0].mxu0
      %v4478 = vpop.f32.mrb[0].mxu0
      %v4479 = vadd.f32 0.0, %v4478
      %v4480 = vpop.f32.mrb[0].mxu0
      %4481 = vmatprep.mubr.bf16.mxu0 0
      %4482 = vmatmul.mubr.bf16.gmra.mrb[0].mxu0 %v1907
      %v4483 = vpop.f32.mrb[0].mxu0
      %v4484 = vadd.f32 0.0, %v4483
      %v4485 = vpop.f32.mrb[0].mxu0
      %v4486 = vpop.f32.mrb[0].mxu0
      %v4487 = vadd.f32 0.0, %v4486
      %v4488 = vpop.f32.mrb[0].mxu0
      %4489 = vmatprep.mubr.bf16.mxu0 0
      %4490 = vmatmul.mubr.bf16.gmra.mrb[0].mxu0 %v1910
      %v4491 = vpop.f32.mrb[0].mxu0
      %v4492 = vadd.f32 0.0, %v4491
      %v4493 = vpop.f32.mrb[0].mxu0
      %v4494 = vpop.f32.mrb[0].mxu0
      %v4495 = vadd.f32 0.0, %v4494
      %v4496 = vpop.f32.mrb[0].mxu0
      %4497 = vmatprep.mubr.bf16.mxu0 0
      %4498 = vmatmul.mubr.bf16.gmra.mrb[0].mxu0 %v4436
      %v4499 = vpop.f32.mrb[0].mxu0
      %v4500 = vadd.f32 0.0, %v4499
      %v4501 = vpop.f32.mrb[0].mxu0
      %v4502 = vpop.f32.mrb[0].mxu0
      %v4503 = vadd.f32 0.0, %v4502
      %v4504 = vpop.f32.mrb[0].mxu0
      %4505 = vdwg.mxu0
      %v4506 = vadd.f32 %v4425, %v4476
      %v4507 = vadd.f32 %v4426, %v4479
      %v4508 = vadd.f32 %v4427, %v4484
      %v4509 = vadd.f32 %v4428, %v4487
      %v4510 = vadd.f32 %v4429, %v4492
      %v4511 = vadd.f32 %v4430, %v4495
      %v4512 = vadd.f32 %v4431, %v4500
      %v4513 = vadd.f32 %v4432, %v4503
      %v4515 = vunpack.c.l.b16 %v339
      %v4516 = vpack.c.b16 %v4515, %v3351
      %v4518 = vsel %vm418, %v4516, 0
      %v4521 = vand.u32 %v383, %v434
      %4523 = vmatprep.subr.bf16.mxu0 0
      %4524 = vmatpush1.bf16.msra.mxu0 %v4521
      %4525 = vmatprep.subr.bf16.mxu0 0
      %4526 = vmatpush1.bf16.msra.mxu0 0
      %4527 = vmatprep.subr.bf16.mxu0 0
      %4528 = vmatpush1.bf16.msra.mxu0 0
      %4529 = vmatprep.subr.bf16.mxu0 0
      %4530 = vmatpush1.bf16.msra.mxu0 0
      %4531 = vmatprep.subr.bf16.mxu0 0
      %4532 = vmatpush1.bf16.msra.mxu0 0
      %4533 = vmatprep.subr.bf16.mxu0 0
      %4534 = vmatpush1.bf16.msra.mxu0 0
      %4535 = vmatprep.subr.bf16.mxu0 0
      %4536 = vmatpush1.bf16.msra.mxu0 0
      %4537 = vmatprep.subr.bf16.mxu0 0
      %4538 = vmatpush1.bf16.msra.mxu0 0
      %4539 = vmatprep.subr.bf16.mxu0 0
      %4540 = vmatpush1.bf16.msra.mxu0 0
      %4541 = vmatprep.subr.bf16.mxu0 0
      %4542 = vmatpush1.bf16.msra.mxu0 0
      %4543 = vmatprep.subr.bf16.mxu0 0
      %4544 = vmatpush1.bf16.msra.mxu0 0
      %4545 = vmatprep.subr.bf16.mxu0 0
      %4546 = vmatpush1.bf16.msra.mxu0 0
      %4547 = vmatprep.subr.bf16.mxu0 0
      %4548 = vmatpush1.bf16.msra.mxu0 0
      %4549 = vmatprep.subr.bf16.mxu0 0
      %4550 = vmatpush1.bf16.msra.mxu0 0
      %4551 = vmatprep.subr.bf16.mxu0 0
      %4552 = vmatpush1.bf16.msra.mxu0 0
      %4553 = vmatprep.subr.bf16.mxu0 0
      %4554 = vmatpush1.bf16.msra.mxu0 0
      %4555 = vmatprep.mubr.bf16.mxu0 0
      %4556 = vmatmul.mubr.bf16.gmra.mrb[0].mxu0 %v1998
      %v4557 = vpop.f32.mrb[0].mxu0
      %v4558 = vadd.f32 0.0, %v4557
      %v4559 = vpop.f32.mrb[0].mxu0
      %v4560 = vpop.f32.mrb[0].mxu0
      %v4561 = vadd.f32 0.0, %v4560
      %v4562 = vpop.f32.mrb[0].mxu0
      %4563 = vmatprep.mubr.bf16.mxu0 0
      %4564 = vmatmul.mubr.bf16.gmra.mrb[0].mxu0 %v2001
      %v4565 = vpop.f32.mrb[0].mxu0
      %v4566 = vadd.f32 0.0, %v4565
      %v4567 = vpop.f32.mrb[0].mxu0
      %v4568 = vpop.f32.mrb[0].mxu0
      %v4569 = vadd.f32 0.0, %v4568
      %v4570 = vpop.f32.mrb[0].mxu0
      %4571 = vmatprep.mubr.bf16.mxu0 0
      %4572 = vmatmul.mubr.bf16.gmra.mrb[0].mxu0 %v2004
      %v4573 = vpop.f32.mrb[0].mxu0
      %v4574 = vadd.f32 0.0, %v4573
      %v4575 = vpop.f32.mrb[0].mxu0
      %v4576 = vpop.f32.mrb[0].mxu0
      %v4577 = vadd.f32 0.0, %v4576
      %v4578 = vpop.f32.mrb[0].mxu0
      %4579 = vmatprep.mubr.bf16.mxu0 0
      %4580 = vmatmul.mubr.bf16.gmra.mrb[0].mxu0 %v4518
      %v4581 = vpop.f32.mrb[0].mxu0
      %v4582 = vadd.f32 0.0, %v4581
      %v4583 = vpop.f32.mrb[0].mxu0
      %v4584 = vpop.f32.mrb[0].mxu0
      %v4585 = vadd.f32 0.0, %v4584
      %v4586 = vpop.f32.mrb[0].mxu0
      %4587 = vdwg.mxu0
      %v4588 = vadd.f32 %v4506, %v4558
      %v4589 = vadd.f32 %v4507, %v4561
      %v4590 = vadd.f32 %v4508, %v4566
      %v4591 = vadd.f32 %v4509, %v4569
      %v4592 = vadd.f32 %v4510, %v4574
      %v4593 = vadd.f32 %v4511, %v4577
      %v4594 = vadd.f32 %v4512, %v4582
      %v4595 = vadd.f32 %v4513, %v4585
      %4596 = vrot.lane.b32.xlu0 %v4516, 125
      %v4597 = vpop.permute.xlu0 %4596
      %v4599 = vsel %vm418, %v4597, 0
      %v4602 = vand.u32 %v384, %v434
      %4604 = vmatprep.subr.bf16.mxu0 0
      %4605 = vmatpush1.bf16.msra.mxu0 %v4602
      %4606 = vmatprep.subr.bf16.mxu0 0
      %4607 = vmatpush1.bf16.msra.mxu0 0
      %4608 = vmatprep.subr.bf16.mxu0 0
      %4609 = vmatpush1.bf16.msra.mxu0 0
      %4610 = vmatprep.subr.bf16.mxu0 0
      %4611 = vmatpush1.bf16.msra.mxu0 0
      %4612 = vmatprep.subr.bf16.mxu0 0
      %4613 = vmatpush1.bf16.msra.mxu0 0
      %4614 = vmatprep.subr.bf16.mxu0 0
      %4615 = vmatpush1.bf16.msra.mxu0 0
      %4616 = vmatprep.subr.bf16.mxu0 0
      %4617 = vmatpush1.bf16.msra.mxu0 0
      %4618 = vmatprep.subr.bf16.mxu0 0
      %4619 = vmatpush1.bf16.msra.mxu0 0
      %4620 = vmatprep.subr.bf16.mxu0 0
      %4621 = vmatpush1.bf16.msra.mxu0 0
      %4622 = vmatprep.subr.bf16.mxu0 0
      %4623 = vmatpush1.bf16.msra.mxu0 0
      %4624 = vmatprep.subr.bf16.mxu0 0
      %4625 = vmatpush1.bf16.msra.mxu0 0
      %4626 = vmatprep.subr.bf16.mxu0 0
      %4627 = vmatpush1.bf16.msra.mxu0 0
      %4628 = vmatprep.subr.bf16.mxu0 0
      %4629 = vmatpush1.bf16.msra.mxu0 0
      %4630 = vmatprep.subr.bf16.mxu0 0
      %4631 = vmatpush1.bf16.msra.mxu0 0
      %4632 = vmatprep.subr.bf16.mxu0 0
      %4633 = vmatpush1.bf16.msra.mxu0 0
      %4634 = vmatprep.subr.bf16.mxu0 0
      %4635 = vmatpush1.bf16.msra.mxu0 0
      %4636 = vmatprep.mubr.bf16.mxu0 0
      %4637 = vmatmul.mubr.bf16.gmra.mrb[0].mxu0 %v2094
      %v4638 = vpop.f32.mrb[0].mxu0
      %v4639 = vadd.f32 0.0, %v4638
      %v4640 = vpop.f32.mrb[0].mxu0
      %v4641 = vpop.f32.mrb[0].mxu0
      %v4642 = vadd.f32 0.0, %v4641
      %v4643 = vpop.f32.mrb[0].mxu0
      %4644 = vmatprep.mubr.bf16.mxu0 0
      %4645 = vmatmul.mubr.bf16.gmra.mrb[0].mxu0 %v2097
      %v4646 = vpop.f32.mrb[0].mxu0
      %v4647 = vadd.f32 0.0, %v4646
      %v4648 = vpop.f32.mrb[0].mxu0
      %v4649 = vpop.f32.mrb[0].mxu0
      %v4650 = vadd.f32 0.0, %v4649
      %v4651 = vpop.f32.mrb[0].mxu0
      %4652 = vmatprep.mubr.bf16.mxu0 0
      %4653 = vmatmul.mubr.bf16.gmra.mrb[0].mxu0 %v2100
      %v4654 = vpop.f32.mrb[0].mxu0
      %v4655 = vadd.f32 0.0, %v4654
      %v4656 = vpop.f32.mrb[0].mxu0
      %v4657 = vpop.f32.mrb[0].mxu0
      %v4658 = vadd.f32 0.0, %v4657
      %v4659 = vpop.f32.mrb[0].mxu0
      %4660 = vmatprep.mubr.bf16.mxu0 0
      %4661 = vmatmul.mubr.bf16.gmra.mrb[0].mxu0 %v4599
      %v4662 = vpop.f32.mrb[0].mxu0
      %v4663 = vadd.f32 0.0, %v4662
      %v4664 = vpop.f32.mrb[0].mxu0
      %v4665 = vpop.f32.mrb[0].mxu0
      %v4666 = vadd.f32 0.0, %v4665
      %v4667 = vpop.f32.mrb[0].mxu0
      %4668 = vdwg.mxu0
      %v4669 = vadd.f32 %v4588, %v4639
      %v4670 = vadd.f32 %v4589, %v4642
      %v4671 = vadd.f32 %v4590, %v4647
      %v4672 = vadd.f32 %v4591, %v4650
      %v4673 = vadd.f32 %v4592, %v4655
      %v4674 = vadd.f32 %v4593, %v4658
      %v4675 = vadd.f32 %v4594, %v4663
      %v4676 = vadd.f32 %v4595, %v4666
      %v4678 = vshrl.u32 %v339, 16
      %v4680 = vrot.slane %v4678, 4
      %v4681 = vshll.u32 %v339, 16
      %v4683 = vrot.slane %v4681, 5
      %v4684 = vor.u32 %v4680, %v4683
      %v4685 = vrot.slane %v4684, 4
      %v4687 = vshll.u32 %v340, 16
      %v4689 = vrot.slane %v4687, 5
      %v4690 = vsel %vm585, %v4685, %v4689
      %v4691 = vunpack.c.l.b16 %v4690
      %v4692 = vpack.c.b16 %v4691, %v3527
      %v4694 = vsel %vm418, %v4692, 0
      %v4697 = vand.u32 %v385, %v434
      %4699 = vmatprep.subr.bf16.mxu0 0
      %4700 = vmatpush1.bf16.msra.mxu0 %v4697
      %4701 = vmatprep.subr.bf16.mxu0 0
      %4702 = vmatpush1.bf16.msra.mxu0 0
      %4703 = vmatprep.subr.bf16.mxu0 0
      %4704 = vmatpush1.bf16.msra.mxu0 0
      %4705 = vmatprep.subr.bf16.mxu0 0
      %4706 = vmatpush1.bf16.msra.mxu0 0
      %4707 = vmatprep.subr.bf16.mxu0 0
      %4708 = vmatpush1.bf16.msra.mxu0 0
      %4709 = vmatprep.subr.bf16.mxu0 0
      %4710 = vmatpush1.bf16.msra.mxu0 0
      %4711 = vmatprep.subr.bf16.mxu0 0
      %4712 = vmatpush1.bf16.msra.mxu0 0
      %4713 = vmatprep.subr.bf16.mxu0 0
      %4714 = vmatpush1.bf16.msra.mxu0 0
      %4715 = vmatprep.subr.bf16.mxu0 0
      %4716 = vmatpush1.bf16.msra.mxu0 0
      %4717 = vmatprep.subr.bf16.mxu0 0
      %4718 = vmatpush1.bf16.msra.mxu0 0
      %4719 = vmatprep.subr.bf16.mxu0 0
      %4720 = vmatpush1.bf16.msra.mxu0 0
      %4721 = vmatprep.subr.bf16.mxu0 0
      %4722 = vmatpush1.bf16.msra.mxu0 0
      %4723 = vmatprep.subr.bf16.mxu0 0
      %4724 = vmatpush1.bf16.msra.mxu0 0
      %4725 = vmatprep.subr.bf16.mxu0 0
      %4726 = vmatpush1.bf16.msra.mxu0 0
      %4727 = vmatprep.subr.bf16.mxu0 0
      %4728 = vmatpush1.bf16.msra.mxu0 0
      %4729 = vmatprep.subr.bf16.mxu0 0
      %4730 = vmatpush1.bf16.msra.mxu0 0
      %4731 = vmatprep.mubr.bf16.mxu0 0
      %4732 = vmatmul.mubr.bf16.gmra.mrb[0].mxu0 %v2201
      %v4733 = vpop.f32.mrb[0].mxu0
      %v4734 = vadd.f32 0.0, %v4733
      %v4735 = vpop.f32.mrb[0].mxu0
      %v4736 = vpop.f32.mrb[0].mxu0
      %v4737 = vadd.f32 0.0, %v4736
      %v4738 = vpop.f32.mrb[0].mxu0
      %4739 = vmatprep.mubr.bf16.mxu0 0
      %4740 = vmatmul.mubr.bf16.gmra.mrb[0].mxu0 %v2204
      %v4741 = vpop.f32.mrb[0].mxu0
      %v4742 = vadd.f32 0.0, %v4741
      %v4743 = vpop.f32.mrb[0].mxu0
      %v4744 = vpop.f32.mrb[0].mxu0
      %v4745 = vadd.f32 0.0, %v4744
      %v4746 = vpop.f32.mrb[0].mxu0
      %4747 = vmatprep.mubr.bf16.mxu0 0
      %4748 = vmatmul.mubr.bf16.gmra.mrb[0].mxu0 %v2207
      %v4749 = vpop.f32.mrb[0].mxu0
      %v4750 = vadd.f32 0.0, %v4749
      %v4751 = vpop.f32.mrb[0].mxu0
      %v4752 = vpop.f32.mrb[0].mxu0
      %v4753 = vadd.f32 0.0, %v4752
      %v4754 = vpop.f32.mrb[0].mxu0
      %4755 = vmatprep.mubr.bf16.mxu0 0
      %4756 = vmatmul.mubr.bf16.gmra.mrb[0].mxu0 %v4694
      %v4757 = vpop.f32.mrb[0].mxu0
      %v4758 = vadd.f32 0.0, %v4757
      %v4759 = vpop.f32.mrb[0].mxu0
      %v4760 = vpop.f32.mrb[0].mxu0
      %v4761 = vadd.f32 0.0, %v4760
      %v4762 = vpop.f32.mrb[0].mxu0
      %4763 = vdwg.mxu0
      %v4764 = vadd.f32 %v4669, %v4734
      %v4765 = vadd.f32 %v4670, %v4737
      %v4766 = vadd.f32 %v4671, %v4742
      %v4767 = vadd.f32 %v4672, %v4745
      %v4768 = vadd.f32 %v4673, %v4750
      %v4769 = vadd.f32 %v4674, %v4753
      %v4770 = vadd.f32 %v4675, %v4758
      %v4771 = vadd.f32 %v4676, %v4761
      %4772 = vrot.lane.b32.xlu0 %v4692, 125
      %v4773 = vpop.permute.xlu0 %4772
      %v4775 = vsel %vm418, %v4773, 0
      %v4778 = vand.u32 %v386, %v434
      %4780 = vmatprep.subr.bf16.mxu0 0
      %4781 = vmatpush1.bf16.msra.mxu0 %v4778
      %4782 = vmatprep.subr.bf16.mxu0 0
      %4783 = vmatpush1.bf16.msra.mxu0 0
      %4784 = vmatprep.subr.bf16.mxu0 0
      %4785 = vmatpush1.bf16.msra.mxu0 0
      %4786 = vmatprep.subr.bf16.mxu0 0
      %4787 = vmatpush1.bf16.msra.mxu0 0
      %4788 = vmatprep.subr.bf16.mxu0 0
      %4789 = vmatpush1.bf16.msra.mxu0 0
      %4790 = vmatprep.subr.bf16.mxu0 0
      %4791 = vmatpush1.bf16.msra.mxu0 0
      %4792 = vmatprep.subr.bf16.mxu0 0
      %4793 = vmatpush1.bf16.msra.mxu0 0
      %4794 = vmatprep.subr.bf16.mxu0 0
      %4795 = vmatpush1.bf16.msra.mxu0 0
      %4796 = vmatprep.subr.bf16.mxu0 0
      %4797 = vmatpush1.bf16.msra.mxu0 0
      %4798 = vmatprep.subr.bf16.mxu0 0
      %4799 = vmatpush1.bf16.msra.mxu0 0
      %4800 = vmatprep.subr.bf16.mxu0 0
      %4801 = vmatpush1.bf16.msra.mxu0 0
      %4802 = vmatprep.subr.bf16.mxu0 0
      %4803 = vmatpush1.bf16.msra.mxu0 0
      %4804 = vmatprep.subr.bf16.mxu0 0
      %4805 = vmatpush1.bf16.msra.mxu0 0
      %4806 = vmatprep.subr.bf16.mxu0 0
      %4807 = vmatpush1.bf16.msra.mxu0 0
      %4808 = vmatprep.subr.bf16.mxu0 0
      %4809 = vmatpush1.bf16.msra.mxu0 0
      %4810 = vmatprep.subr.bf16.mxu0 0
      %4811 = vmatpush1.bf16.msra.mxu0 0
      %4812 = vmatprep.mubr.bf16.mxu0 0
      %4813 = vmatmul.mubr.bf16.gmra.mrb[0].mxu0 %v2297
      %v4814 = vpop.f32.mrb[0].mxu0
      %v4815 = vadd.f32 0.0, %v4814
      %v4816 = vpop.f32.mrb[0].mxu0
      %v4817 = vpop.f32.mrb[0].mxu0
      %v4818 = vadd.f32 0.0, %v4817
      %v4819 = vpop.f32.mrb[0].mxu0
      %4820 = vmatprep.mubr.bf16.mxu0 0
      %4821 = vmatmul.mubr.bf16.gmra.mrb[0].mxu0 %v2300
      %v4822 = vpop.f32.mrb[0].mxu0
      %v4823 = vadd.f32 0.0, %v4822
      %v4824 = vpop.f32.mrb[0].mxu0
      %v4825 = vpop.f32.mrb[0].mxu0
      %v4826 = vadd.f32 0.0, %v4825
      %v4827 = vpop.f32.mrb[0].mxu0
      %4828 = vmatprep.mubr.bf16.mxu0 0
      %4829 = vmatmul.mubr.bf16.gmra.mrb[0].mxu0 %v2303
      %v4830 = vpop.f32.mrb[0].mxu0
      %v4831 = vadd.f32 0.0, %v4830
      %v4832 = vpop.f32.mrb[0].mxu0
      %v4833 = vpop.f32.mrb[0].mxu0
      %v4834 = vadd.f32 0.0, %v4833
      %v4835 = vpop.f32.mrb[0].mxu0
      %4836 = vmatprep.mubr.bf16.mxu0 0
      %4837 = vmatmul.mubr.bf16.gmra.mrb[0].mxu0 %v4775
      %v4838 = vpop.f32.mrb[0].mxu0
      %v4839 = vadd.f32 0.0, %v4838
      %v4840 = vpop.f32.mrb[0].mxu0
      %v4841 = vpop.f32.mrb[0].mxu0
      %v4842 = vadd.f32 0.0, %v4841
      %v4843 = vpop.f32.mrb[0].mxu0
      %4844 = vdwg.mxu0
      %v4845 = vadd.f32 %v4764, %v4815
      %v4846 = vadd.f32 %v4765, %v4818
      %v4847 = vadd.f32 %v4766, %v4823
      %v4848 = vadd.f32 %v4767, %v4826
      %v4849 = vadd.f32 %v4768, %v4831
      %v4850 = vadd.f32 %v4769, %v4834
      %v4851 = vadd.f32 %v4770, %v4839
      %v4852 = vadd.f32 %v4771, %v4842
      %v4854 = vrot.slane %v339, 5
      %v4855 = vrot.slane %v4854, 4
      %v4856 = vrot.slane %v340, 5
      %v4857 = vsel %vm904, %v4855, %v4856
      %v4858 = vunpack.c.l.b16 %v4857
      %v4859 = vpack.c.b16 %v4858, %v3694
      %v4861 = vsel %vm418, %v4859, 0
      %v4864 = vand.u32 %v387, %v434
      %4866 = vmatprep.subr.bf16.mxu0 0
      %4867 = vmatpush1.bf16.msra.mxu0 %v4864
      %4868 = vmatprep.subr.bf16.mxu0 0
      %4869 = vmatpush1.bf16.msra.mxu0 0
      %4870 = vmatprep.subr.bf16.mxu0 0
      %4871 = vmatpush1.bf16.msra.mxu0 0
      %4872 = vmatprep.subr.bf16.mxu0 0
      %4873 = vmatpush1.bf16.msra.mxu0 0
      %4874 = vmatprep.subr.bf16.mxu0 0
      %4875 = vmatpush1.bf16.msra.mxu0 0
      %4876 = vmatprep.subr.bf16.mxu0 0
      %4877 = vmatpush1.bf16.msra.mxu0 0
      %4878 = vmatprep.subr.bf16.mxu0 0
      %4879 = vmatpush1.bf16.msra.mxu0 0
      %4880 = vmatprep.subr.bf16.mxu0 0
      %4881 = vmatpush1.bf16.msra.mxu0 0
      %4882 = vmatprep.subr.bf16.mxu0 0
      %4883 = vmatpush1.bf16.msra.mxu0 0
      %4884 = vmatprep.subr.bf16.mxu0 0
      %4885 = vmatpush1.bf16.msra.mxu0 0
      %4886 = vmatprep.subr.bf16.mxu0 0
      %4887 = vmatpush1.bf16.msra.mxu0 0
      %4888 = vmatprep.subr.bf16.mxu0 0
      %4889 = vmatpush1.bf16.msra.mxu0 0
      %4890 = vmatprep.subr.bf16.mxu0 0
      %4891 = vmatpush1.bf16.msra.mxu0 0
      %4892 = vmatprep.subr.bf16.mxu0 0
      %4893 = vmatpush1.bf16.msra.mxu0 0
      %4894 = vmatprep.subr.bf16.mxu0 0
      %4895 = vmatpush1.bf16.msra.mxu0 0
      %4896 = vmatprep.subr.bf16.mxu0 0
      %4897 = vmatpush1.bf16.msra.mxu0 0
      %4898 = vmatprep.mubr.bf16.mxu0 0
      %4899 = vmatmul.mubr.bf16.gmra.mrb[0].mxu0 %v2395
      %v4900 = vpop.f32.mrb[0].mxu0
      %v4901 = vadd.f32 0.0, %v4900
      %v4902 = vpop.f32.mrb[0].mxu0
      %v4903 = vpop.f32.mrb[0].mxu0
      %v4904 = vadd.f32 0.0, %v4903
      %v4905 = vpop.f32.mrb[0].mxu0
      %4906 = vmatprep.mubr.bf16.mxu0 0
      %4907 = vmatmul.mubr.bf16.gmra.mrb[0].mxu0 %v2398
      %v4908 = vpop.f32.mrb[0].mxu0
      %v4909 = vadd.f32 0.0, %v4908
      %v4910 = vpop.f32.mrb[0].mxu0
      %v4911 = vpop.f32.mrb[0].mxu0
      %v4912 = vadd.f32 0.0, %v4911
      %v4913 = vpop.f32.mrb[0].mxu0
      %4914 = vmatprep.mubr.bf16.mxu0 0
      %4915 = vmatmul.mubr.bf16.gmra.mrb[0].mxu0 %v2401
      %v4916 = vpop.f32.mrb[0].mxu0
      %v4917 = vadd.f32 0.0, %v4916
      %v4918 = vpop.f32.mrb[0].mxu0
      %v4919 = vpop.f32.mrb[0].mxu0
      %v4920 = vadd.f32 0.0, %v4919
      %v4921 = vpop.f32.mrb[0].mxu0
      %4922 = vmatprep.mubr.bf16.mxu0 0
      %4923 = vmatmul.mubr.bf16.gmra.mrb[0].mxu0 %v4861
      %v4924 = vpop.f32.mrb[0].mxu0
      %v4925 = vadd.f32 0.0, %v4924
      %v4926 = vpop.f32.mrb[0].mxu0
      %v4927 = vpop.f32.mrb[0].mxu0
      %v4928 = vadd.f32 0.0, %v4927
      %v4929 = vpop.f32.mrb[0].mxu0
      %4930 = vdwg.mxu0
      %v4931 = vadd.f32 %v4845, %v4901
      %v4932 = vadd.f32 %v4846, %v4904
      %v4933 = vadd.f32 %v4847, %v4909
      %v4934 = vadd.f32 %v4848, %v4912
      %v4935 = vadd.f32 %v4849, %v4917
      %v4936 = vadd.f32 %v4850, %v4920
      %v4937 = vadd.f32 %v4851, %v4925
      %v4938 = vadd.f32 %v4852, %v4928
      %4939 = vrot.lane.b32.xlu0 %v4859, 125
      %v4940 = vpop.permute.xlu0 %4939
      %v4942 = vsel %vm418, %v4940, 0
      %v4945 = vand.u32 %v388, %v434
      %4947 = vmatprep.subr.bf16.mxu0 0
      %4948 = vmatpush1.bf16.msra.mxu0 %v4945
      %4949 = vmatprep.subr.bf16.mxu0 0
      %4950 = vmatpush1.bf16.msra.mxu0 0
      %4951 = vmatprep.subr.bf16.mxu0 0
      %4952 = vmatpush1.bf16.msra.mxu0 0
      %4953 = vmatprep.subr.bf16.mxu0 0
      %4954 = vmatpush1.bf16.msra.mxu0 0
      %4955 = vmatprep.subr.bf16.mxu0 0
      %4956 = vmatpush1.bf16.msra.mxu0 0
      %4957 = vmatprep.subr.bf16.mxu0 0
      %4958 = vmatpush1.bf16.msra.mxu0 0
      %4959 = vmatprep.subr.bf16.mxu0 0
      %4960 = vmatpush1.bf16.msra.mxu0 0
      %4961 = vmatprep.subr.bf16.mxu0 0
      %4962 = vmatpush1.bf16.msra.mxu0 0
      %4963 = vmatprep.subr.bf16.mxu0 0
      %4964 = vmatpush1.bf16.msra.mxu0 0
      %4965 = vmatprep.subr.bf16.mxu0 0
      %4966 = vmatpush1.bf16.msra.mxu0 0
      %4967 = vmatprep.subr.bf16.mxu0 0
      %4968 = vmatpush1.bf16.msra.mxu0 0
      %4969 = vmatprep.subr.bf16.mxu0 0
      %4970 = vmatpush1.bf16.msra.mxu0 0
      %4971 = vmatprep.subr.bf16.mxu0 0
      %4972 = vmatpush1.bf16.msra.mxu0 0
      %4973 = vmatprep.subr.bf16.mxu0 0
      %4974 = vmatpush1.bf16.msra.mxu0 0
      %4975 = vmatprep.subr.bf16.mxu0 0
      %4976 = vmatpush1.bf16.msra.mxu0 0
      %4977 = vmatprep.subr.bf16.mxu0 0
      %4978 = vmatpush1.bf16.msra.mxu0 0
      %4979 = vmatprep.mubr.bf16.mxu0 0
      %4980 = vmatmul.mubr.bf16.gmra.mrb[0].mxu0 %v2491
      %v4981 = vpop.f32.mrb[0].mxu0
      %v4982 = vadd.f32 0.0, %v4981
      %v4983 = vpop.f32.mrb[0].mxu0
      %v4984 = vpop.f32.mrb[0].mxu0
      %v4985 = vadd.f32 0.0, %v4984
      %v4986 = vpop.f32.mrb[0].mxu0
      %4987 = vmatprep.mubr.bf16.mxu0 0
      %4988 = vmatmul.mubr.bf16.gmra.mrb[0].mxu0 %v2494
      %v4989 = vpop.f32.mrb[0].mxu0
      %v4990 = vadd.f32 0.0, %v4989
      %v4991 = vpop.f32.mrb[0].mxu0
      %v4992 = vpop.f32.mrb[0].mxu0
      %v4993 = vadd.f32 0.0, %v4992
      %v4994 = vpop.f32.mrb[0].mxu0
      %4995 = vmatprep.mubr.bf16.mxu0 0
      %4996 = vmatmul.mubr.bf16.gmra.mrb[0].mxu0 %v2497
      %v4997 = vpop.f32.mrb[0].mxu0
      %v4998 = vadd.f32 0.0, %v4997
      %v4999 = vpop.f32.mrb[0].mxu0
      %v5000 = vpop.f32.mrb[0].mxu0
      %v5001 = vadd.f32 0.0, %v5000
      %v5002 = vpop.f32.mrb[0].mxu0
      %5003 = vmatprep.mubr.bf16.mxu0 0
      %5004 = vmatmul.mubr.bf16.gmra.mrb[0].mxu0 %v4942
      %v5005 = vpop.f32.mrb[0].mxu0
      %v5006 = vadd.f32 0.0, %v5005
      %v5007 = vpop.f32.mrb[0].mxu0
      %v5008 = vpop.f32.mrb[0].mxu0
      %v5009 = vadd.f32 0.0, %v5008
      %v5010 = vpop.f32.mrb[0].mxu0
      %5011 = vdwg.mxu0
      %v5012 = vadd.f32 %v4931, %v4982
      %v5013 = vadd.f32 %v4932, %v4985
      %v5014 = vadd.f32 %v4933, %v4990
      %v5015 = vadd.f32 %v4934, %v4993
      %v5016 = vadd.f32 %v4935, %v4998
      %v5017 = vadd.f32 %v4936, %v5001
      %v5018 = vadd.f32 %v4937, %v5006
      %v5019 = vadd.f32 %v4938, %v5009
      %v5020 = vrot.slane %v4678, 5
      %v5021 = vrot.slane %v4681, 6
      %v5022 = vor.u32 %v5020, %v5021
      %v5023 = vrot.slane %v5022, 4
      %v5024 = vshrl.u32 %v340, 16
      %v5026 = vrot.slane %v5024, 5
      %v5027 = vrot.slane %v4687, 6
      %v5028 = vor.u32 %v5026, %v5027
      %v5029 = vsel %vm1135, %v5023, %v5028
      %v5030 = vunpack.c.l.b16 %v5029
      %v5031 = vpack.c.b16 %v5030, %v3866
      %v5033 = vsel %vm418, %v5031, 0
      %v5036 = vand.u32 %v389, %v434
      %5038 = vmatprep.subr.bf16.mxu0 0
      %5039 = vmatpush1.bf16.msra.mxu0 %v5036
      %5040 = vmatprep.subr.bf16.mxu0 0
      %5041 = vmatpush1.bf16.msra.mxu0 0
      %5042 = vmatprep.subr.bf16.mxu0 0
      %5043 = vmatpush1.bf16.msra.mxu0 0
      %5044 = vmatprep.subr.bf16.mxu0 0
      %5045 = vmatpush1.bf16.msra.mxu0 0
      %5046 = vmatprep.subr.bf16.mxu0 0
      %5047 = vmatpush1.bf16.msra.mxu0 0
      %5048 = vmatprep.subr.bf16.mxu0 0
      %5049 = vmatpush1.bf16.msra.mxu0 0
      %5050 = vmatprep.subr.bf16.mxu0 0
      %5051 = vmatpush1.bf16.msra.mxu0 0
      %5052 = vmatprep.subr.bf16.mxu0 0
      %5053 = vmatpush1.bf16.msra.mxu0 0
      %5054 = vmatprep.subr.bf16.mxu0 0
      %5055 = vmatpush1.bf16.msra.mxu0 0
      %5056 = vmatprep.subr.bf16.mxu0 0
      %5057 = vmatpush1.bf16.msra.mxu0 0
      %5058 = vmatprep.subr.bf16.mxu0 0
      %5059 = vmatpush1.bf16.msra.mxu0 0
      %5060 = vmatprep.subr.bf16.mxu0 0
      %5061 = vmatpush1.bf16.msra.mxu0 0
      %5062 = vmatprep.subr.bf16.mxu0 0
      %5063 = vmatpush1.bf16.msra.mxu0 0
      %5064 = vmatprep.subr.bf16.mxu0 0
      %5065 = vmatpush1.bf16.msra.mxu0 0
      %5066 = vmatprep.subr.bf16.mxu0 0
      %5067 = vmatpush1.bf16.msra.mxu0 0
      %5068 = vmatprep.subr.bf16.mxu0 0
      %5069 = vmatpush1.bf16.msra.mxu0 0
      %5070 = vmatprep.mubr.bf16.mxu0 0
      %5071 = vmatmul.mubr.bf16.gmra.mrb[0].mxu0 %v2594
      %v5072 = vpop.f32.mrb[0].mxu0
      %v5073 = vadd.f32 0.0, %v5072
      %v5074 = vpop.f32.mrb[0].mxu0
      %v5075 = vpop.f32.mrb[0].mxu0
      %v5076 = vadd.f32 0.0, %v5075
      %v5077 = vpop.f32.mrb[0].mxu0
      %5078 = vmatprep.mubr.bf16.mxu0 0
      %5079 = vmatmul.mubr.bf16.gmra.mrb[0].mxu0 %v2597
      %v5080 = vpop.f32.mrb[0].mxu0
      %v5081 = vadd.f32 0.0, %v5080
      %v5082 = vpop.f32.mrb[0].mxu0
      %v5083 = vpop.f32.mrb[0].mxu0
      %v5084 = vadd.f32 0.0, %v5083
      %v5085 = vpop.f32.mrb[0].mxu0
      %5086 = vmatprep.mubr.bf16.mxu0 0
      %5087 = vmatmul.mubr.bf16.gmra.mrb[0].mxu0 %v2600
      %v5088 = vpop.f32.mrb[0].mxu0
      %v5089 = vadd.f32 0.0, %v5088
      %v5090 = vpop.f32.mrb[0].mxu0
      %v5091 = vpop.f32.mrb[0].mxu0
      %v5092 = vadd.f32 0.0, %v5091
      %v5093 = vpop.f32.mrb[0].mxu0
      %5094 = vmatprep.mubr.bf16.mxu0 0
      %5095 = vmatmul.mubr.bf16.gmra.mrb[0].mxu0 %v5033
      %v5096 = vpop.f32.mrb[0].mxu0
      %v5097 = vadd.f32 0.0, %v5096
      %v5098 = vpop.f32.mrb[0].mxu0
      %v5099 = vpop.f32.mrb[0].mxu0
      %v5100 = vadd.f32 0.0, %v5099
      %v5101 = vpop.f32.mrb[0].mxu0
      %5102 = vdwg.mxu0
      %v5103 = vadd.f32 %v5012, %v5073
      %v5104 = vadd.f32 %v5013, %v5076
      %v5105 = vadd.f32 %v5014, %v5081
      %v5106 = vadd.f32 %v5015, %v5084
      %v5107 = vadd.f32 %v5016, %v5089
      %v5108 = vadd.f32 %v5017, %v5092
      %v5109 = vadd.f32 %v5018, %v5097
      %v5110 = vadd.f32 %v5019, %v5100
      %v5111 = vld [vmem:[#allocation2] sm:$0xff]
      %v5112 = vld [vmem:[#allocation2 + $0x8] sm:$0xff]
      %v5113 = vld [vmem:[#allocation2 + $0x10] sm:$0xff]
      %v5114 = vld [vmem:[#allocation2 + $0x18] sm:$0xff]
      %v5115 = vld [vmem:[#allocation2 + $0x20] sm:$0xff]
      %v5116 = vld [vmem:[#allocation2 + $0x28] sm:$0xff]
      %v5117 = vld [vmem:[#allocation2 + $0x30] sm:$0xff]
      %v5118 = vld [vmem:[#allocation2 + $0x38] sm:$0xff]
      %v5119 = vadd.f32 %v5111, %v5103
      %v5120 = vadd.f32 %v5112, %v5104
      %v5121 = vadd.f32 %v5113, %v5105
      %v5122 = vadd.f32 %v5114, %v5106
      %v5123 = vadd.f32 %v5115, %v5107
      %v5124 = vadd.f32 %v5116, %v5108
      %v5125 = vadd.f32 %v5117, %v5109
      %v5126 = vadd.f32 %v5118, %v5110
      %vm5127 = vcmask 130048
      %5128 = vst.msk [vmem:[#allocation2] sm:$0xff] %vm5127, %v5119
      %5129 = vst.msk [vmem:[#allocation2 + $0x8] sm:$0xff] %vm5127, %v5120
      %5130 = vst.msk [vmem:[#allocation2 + $0x10] sm:$0xff] %vm5127, %v5121
      %5131 = vst.msk [vmem:[#allocation2 + $0x18] sm:$0xff] %vm5127, %v5122
      %5132 = vst.msk [vmem:[#allocation2 + $0x20] sm:$0xff] %vm5127, %v5123
      %5133 = vst.msk [vmem:[#allocation2 + $0x28] sm:$0xff] %vm5127, %v5124
      %5134 = vst.msk [vmem:[#allocation2 + $0x30] sm:$0xff] %vm5127, %v5125
      %5135 = vst.msk [vmem:[#allocation2 + $0x38] sm:$0xff] %vm5127, %v5126
      // Predicated region
      $region33: #{stem_forward.2} parent=27 // pred_check
        %p5136 = pneg %p306
      $region34: #{stem_forward.2} parent=27 // pred_check_branch
        %5138 = sbr.rel (%p5136) target = $region36
      $region35: #{stem_forward.2} parent=27 // pred_region
        %v5139 = vld [vmem:[#allocation2] sm:$0xff]
        %v5140 = vld [vmem:[#allocation2 + $0x8] sm:$0xff]
        %v5141 = vld [vmem:[#allocation2 + $0x10] sm:$0xff]
        %v5142 = vld [vmem:[#allocation2 + $0x18] sm:$0xff]
        %v5143 = vld [vmem:[#allocation2 + $0x20] sm:$0xff]
        %v5144 = vld [vmem:[#allocation2 + $0x28] sm:$0xff]
        %v5145 = vld [vmem:[#allocation2 + $0x30] sm:$0xff]
        %v5146 = vld [vmem:[#allocation2 + $0x38] sm:$0xff]
        %v5147 = vpack.c.bf16 %v5140, %v5139
        %v5148 = vpack.c.bf16 %v5142, %v5141
        %v5149 = vpack.c.bf16 %v5144, %v5143
        %v5150 = vpack.c.bf16 %v5146, %v5145
        %v5155 = vunpack.c.l.b16 %v5147
        %v5156 = vunpack.c.h.b16 %v5147
        %v5157 = vunpack.c.l.b16 %v5148
        %v5158 = vunpack.c.h.b16 %v5148
        %v5159 = vunpack.c.l.b16 %v5149
        %v5160 = vunpack.c.h.b16 %v5149
        %v5161 = vunpack.c.l.b16 %v5150
        %v5162 = vunpack.c.h.b16 %v5150
        %v5163 = vpack.c.b16 %v5155, %v5155
        %v5164 = vpack.c.b16 %v5156, %v5156
        %v5165 = vpack.c.b16 %v5157, %v5157
        %v5166 = vpack.c.b16 %v5158, %v5158
        %v5167 = vpack.c.b16 %v5159, %v5159
        %v5168 = vpack.c.b16 %v5160, %v5160
        %v5169 = vpack.c.b16 %v5161, %v5161
        %v5170 = vpack.c.b16 %v5162, %v5162
        %vm5179 = vcmask 125952
        %5180 = vst.msk [vmem:[%s288] sm:$0xf] %vm5179, %v5163
        %5181 = vst.msk [vmem:[%s288 + $0x4] sm:$0xf] %vm5179, %v5164
        %5182 = vst.msk [vmem:[%s288 + $0x8] sm:$0xf] %vm5179, %v5165
        %5183 = vst.msk [vmem:[%s288 + $0xc] sm:$0xf] %vm5179, %v5166
        %5184 = vst.msk [vmem:[%s288 + $0x10] sm:$0xf] %vm5179, %v5167
        %5185 = vst.msk [vmem:[%s288 + $0x14] sm:$0xf] %vm5179, %v5168
        %5186 = vst.msk [vmem:[%s288 + $0x18] sm:$0xf] %vm5179, %v5169
        %5187 = vst.msk [vmem:[%s288 + $0x1c] sm:$0xf] %vm5179, %v5170
        %v5188 = vsel %vm5127, %v5139, 0.0
        %v5189 = vsel %vm5127, %v5140, 0.0
        %v5190 = vadd.f32 %v5188, %v5189
        %v5191 = vsel %vm5127, %v5141, 0.0
        %v5192 = vadd.f32 %v5190, %v5191
        %v5193 = vsel %vm5127, %v5142, 0.0
        %v5194 = vadd.f32 %v5192, %v5193
        %v5195 = vsel %vm5127, %v5143, 0.0
        %v5196 = vadd.f32 %v5194, %v5195
        %v5197 = vsel %vm5127, %v5144, 0.0
        %v5198 = vadd.f32 %v5196, %v5197
        %v5199 = vsel %vm5127, %v5145, 0.0
        %v5200 = vadd.f32 %v5198, %v5199
        %v5201 = vsel %vm5127, %v5146, 0.0
        %v5202 = vadd.f32 %v5200, %v5201
        %v5203 = vrot.slane %v5202, 4
        %v5204 = vadd.f32 %v5202, %v5203
        %v5205 = vrot.slane %v5204, 2
        %v5206 = vadd.f32 %v5204, %v5205
        %v5207 = vrot.slane %v5206, 1
        %v5208 = vadd.f32 %v5206, %v5207
        %vm5209 = vcmask 122880
        %5210 = vst.msk [vmem:[%s295] sm:$0x1] %vm5209, %v5208
        %v5211 = vmul.f32 %v5139, %v5139
        %v5212 = vmul.f32 %v5140, %v5140
        %v5213 = vmul.f32 %v5141, %v5141
        %v5214 = vmul.f32 %v5142, %v5142
        %v5215 = vmul.f32 %v5143, %v5143
        %v5216 = vmul.f32 %v5144, %v5144
        %v5217 = vmul.f32 %v5145, %v5145
        %v5218 = vmul.f32 %v5146, %v5146
        %v5219 = vsel %vm5127, %v5211, 0.0
        %v5220 = vsel %vm5127, %v5212, 0.0
        %v5221 = vadd.f32 %v5219, %v5220
        %v5222 = vsel %vm5127, %v5213, 0.0
        %v5223 = vadd.f32 %v5221, %v5222
        %v5224 = vsel %vm5127, %v5214, 0.0
        %v5225 = vadd.f32 %v5223, %v5224
        %v5226 = vsel %vm5127, %v5215, 0.0
        %v5227 = vadd.f32 %v5225, %v5226
        %v5228 = vsel %vm5127, %v5216, 0.0
        %v5229 = vadd.f32 %v5227, %v5228
        %v5230 = vsel %vm5127, %v5217, 0.0
        %v5231 = vadd.f32 %v5229, %v5230
        %v5232 = vsel %vm5127, %v5218, 0.0
        %v5233 = vadd.f32 %v5231, %v5232
        %v5234 = vrot.slane %v5233, 4
        %v5235 = vadd.f32 %v5233, %v5234
        %v5236 = vrot.slane %v5235, 2
        %v5237 = vadd.f32 %v5235, %v5236
        %v5238 = vrot.slane %v5237, 1
        %v5239 = vadd.f32 %v5237, %v5238
        %5240 = vst.msk [vmem:[%s302] sm:$0x1] %vm5209, %v5239
      $region36: #{stem_forward.2} parent=27 // pred_fallthru
        _
      %s5241 = smul.u32 %s21, 4
      %s5242 = sadd.s32 %s5241, %s22
      %p5243 = scmp.lt.s32.totalorder %s5242, 7
      %s5244 = scalar_select %p5243, %s5242, 7
      %s5245 = smul.addr %s5244, 8
      %s5246 = smul.addr %s5245, 4
      %s5247 = scalar_lea.vmem %s2, %s5246
      %s5248 = smul.u32 %s21, 4
      %s5249 = sadd.s32 %s5248, %s22
      %p5250 = scmp.lt.s32.totalorder %s5249, 7
      %s5251 = scalar_select %p5250, %s5249, 7
      %s5252 = scalar_lea.vmem %s3, %s5251
      %s5253 = smul.u32 %s21, 4
      %s5254 = sadd.s32 %s5253, %s22
      %p5255 = scmp.lt.s32.totalorder %s5254, 7
      %s5256 = scalar_select %p5255, %s5254, 7
      %s5257 = scalar_lea.vmem %s4, %s5256
      // Predicated region
      $region37: #{stem_forward.2} parent=27 // pred_check
        %p5258 = pneg %p113
      $region38: #{stem_forward.2} parent=27 // pred_check_branch
        %5260 = sbr.rel (%p5258) target = $region40
      $region39: #{stem_forward.2} parent=27 // pred_region
        %s5261 = smul.u32 %s21, 4
        %s5262 = sadd.s32 %s5261, %s22
      $region40: #{stem_forward.2} parent=27 // pred_fallthru
        _
      // Predicated region
      $region41: #{stem_forward.2} parent=27 // pred_check
        %p5263 = pneg %p143
      $region42: #{stem_forward.2} parent=27 // pred_check_branch
        %5265 = sbr.rel (%p5263) target = $region44
      $region43: #{stem_forward.2} parent=27 // pred_region
        %s5266 = smul.u32 %s21, 4
        %s5267 = sadd.s32 %s5266, %s22
      $region44: #{stem_forward.2} parent=27 // pred_fallthru
        _
      // Predicated region
      $region45: #{stem_forward.2} parent=27 // pred_check
        %p5268 = pneg %p173
      $region46: #{stem_forward.2} parent=27 // pred_check_branch
        %5270 = sbr.rel (%p5268) target = $region48
      $region47: #{stem_forward.2} parent=27 // pred_region
        %s5271 = smul.u32 %s21, 4
        %s5272 = sadd.s32 %s5271, %s22
      $region48: #{stem_forward.2} parent=27 // pred_fallthru
        _
    $region28: #{stem_forward.2} parent=5 // pred_fallthru
      _
    %p5273 = scmp.le.s32.totalorder 2, %s11
    // Predicated region
    $region49: #{stem_forward.2} parent=5 // pred_check
      %p5274 = pneg %p5273
    $region50: #{stem_forward.2} parent=5 // pred_check_branch
      %5276 = sbr.rel (%p5274) target = $region52
    $region51: #{stem_forward.2} parent=5 // pred_region
      %s5277 = ssub.s32 %s11, 2
      // Predicated region
      $region53: #{stem_forward.2} parent=51 // pred_check
        %p5278 = pneg %p119
      $region54: #{stem_forward.2} parent=51 // pred_check_branch
        %5280 = sbr.rel (%p5278) target = $region56
      $region55: #{stem_forward.2} parent=51 // pred_region
        %s5281 = smul.u32 %s24, 4
        %s5282 = sadd.s32 %s5281, %s25
        %p5283 = scmp.lt.s32.totalorder %s5282, 7
        %s5284 = scalar_select %p5283, %s5282, 7
        %s5285 = smul.addr %s5284, 8
        %s5286 = smul.addr %s5285, 4
        %s5287 = scalar_lea.vmem %s2, %s5286
      $region56: #{stem_forward.2} parent=51 // pred_fallthru
        _
      // Predicated region
      $region57: #{stem_forward.2} parent=51 // pred_check
        %p5288 = pneg %p149
      $region58: #{stem_forward.2} parent=51 // pred_check_branch
        %5290 = sbr.rel (%p5288) target = $region60
      $region59: #{stem_forward.2} parent=51 // pred_region
        %s5291 = smul.u32 %s24, 4
        %s5292 = sadd.s32 %s5291, %s25
        %p5293 = scmp.lt.s32.totalorder %s5292, 7
        %s5294 = scalar_select %p5293, %s5292, 7
        %s5295 = scalar_lea.vmem %s3, %s5294
      $region60: #{stem_forward.2} parent=51 // pred_fallthru
        _
      // Predicated region
      $region61: #{stem_forward.2} parent=51 // pred_check
        %p5296 = pneg %p179
      $region62: #{stem_forward.2} parent=51 // pred_check_branch
        %5298 = sbr.rel (%p5296) target = $region64
      $region63: #{stem_forward.2} parent=51 // pred_region
        %s5299 = smul.u32 %s24, 4
        %s5300 = sadd.s32 %s5299, %s25
        %p5301 = scmp.lt.s32.totalorder %s5300, 7
        %s5302 = scalar_select %p5301, %s5300, 7
        %s5303 = scalar_lea.vmem %s4, %s5302
      $region64: #{stem_forward.2} parent=51 // pred_fallthru
        _
    $region52: #{stem_forward.2} parent=5 // pred_fallthru
      _
  $region6: #{stem_forward.2} parent=0 // loop_footer
    %s15 = sadd.s32 1, %s11
  $region7: #{stem_forward.2} parent=0 // loop_footer_branch
    %10 = sbr.rel target = $region3
  $region8: #{stem_forward.2} parent=0 // loop_exit
    _

</llo_original>
